<compile_context>
chip_gen: v5e
topology: v5e:2x2
jax: 0.10.0
libtpu: 0.0.40
codegen_flags: <defaults>
</compile_context>

<pallas_src>
import functools

import jax
import jax.numpy as jnp
from jax.experimental import pallas as pl
from jax.experimental.pallas import tpu as pltpu

NEG_INF = -1e9


def _parallel(n=1):
    return pltpu.CompilerParams(dimension_semantics=("parallel",) * n)


# ---------------------------------------------------------------------------
# Dense: y = act(x @ W + b), row-tiled, bf16 inputs / f32 accumulation
# ---------------------------------------------------------------------------

def _dense_kernel(x_ref, w_ref, b_ref, o_ref, *, activation):
    y = jnp.dot(x_ref[...], w_ref[...], preferred_element_type=jnp.float32) + b_ref[...]
    if activation == "tanh":
        y = jnp.tanh(y)
    elif activation == "sigmoid":
        y = jax.nn.sigmoid(y)
    elif activation == "softmax":
        y = jax.nn.softmax(y, axis=-1)
    o_ref[...] = y


def dense(x, w, b=None, activation="none", block_m=256):
    """x: (M, K) -> (M, N).  Weights stay resident; M is tiled & parallel."""
    # TODO(synk): for very large N (real vocab) the N axis should also be tiled
    # (two-pass softmax); at these model sizes full-N blocks fit VMEM comfortably.
    M, K = x.shape
    N = w.shape[1]
    if b is None:
        b = jnp.zeros((N,), jnp.float32)
    tm = min(block_m, M)
    return pl.pallas_call(
        functools.partial(_dense_kernel, activation=activation),
        grid=(pl.cdiv(M, tm),),
        in_specs=[pl.BlockSpec((tm, K), lambda i: (i, 0)),
                  pl.BlockSpec((K, N), lambda i: (0, 0)),
                  pl.BlockSpec((1, N), lambda i: (0, 0))],
        out_specs=pl.BlockSpec((tm, N), lambda i: (i, 0)),
        out_shape=jax.ShapeDtypeStruct((M, N), jnp.float32),
        compiler_params=_parallel(1),
    )(x.astype(jnp.bfloat16), w.astype(jnp.bfloat16),
      jnp.asarray(b, jnp.float32).reshape(1, N))


# ---------------------------------------------------------------------------
# Fused pointer head: one matmul -> softmax(generation) + sigmoid(copy gate)
# ---------------------------------------------------------------------------

def _head_kernel(x_ref, w_ref, b_ref, gen_ref, gate_ref):
    y = jnp.dot(x_ref[...], w_ref[...], preferred_element_type=jnp.float32) + b_ref[...]
    V = gen_ref.shape[-1]
    gen_ref[...] = jax.nn.softmax(y[:, :V], axis=-1)
    gate_ref[...] = jax.nn.sigmoid(y[:, V:])


def pointer_head(x, w, b, vocab, block_m=256):
    M, K = x.shape
    N = w.shape[1]  # vocab + 1
    tm = min(block_m, M)
    return pl.pallas_call(
        _head_kernel,
        grid=(pl.cdiv(M, tm),),
        in_specs=[pl.BlockSpec((tm, K), lambda i: (i, 0)),
                  pl.BlockSpec((K, N), lambda i: (0, 0)),
                  pl.BlockSpec((1, N), lambda i: (0, 0))],
        out_specs=(pl.BlockSpec((tm, vocab), lambda i: (i, 0)),
                   pl.BlockSpec((tm, 1), lambda i: (i, 0))),
        out_shape=(jax.ShapeDtypeStruct((M, vocab), jnp.float32),
                   jax.ShapeDtypeStruct((M, 1), jnp.float32)),
        compiler_params=_parallel(1),
    )(x.astype(jnp.bfloat16), w.astype(jnp.bfloat16),
      jnp.asarray(b, jnp.float32).reshape(1, N))


# ---------------------------------------------------------------------------
# Fused 2-layer MLP with softmax head (bow_fc1 / bow_fc2)
# ---------------------------------------------------------------------------

def _mlp2_kernel(x_ref, w1_ref, b1_ref, w2_ref, b2_ref, o_ref):
    h = jnp.tanh(jnp.dot(x_ref[...], w1_ref[...],
                         preferred_element_type=jnp.float32) + b1_ref[...])
    y = jnp.dot(h.astype(jnp.bfloat16), w2_ref[...],
                preferred_element_type=jnp.float32) + b2_ref[...]
    o_ref[...] = jax.nn.softmax(y, axis=-1)


def mlp2_softmax(x, p, block_m=256):
    M, K = x.shape
    H = p["w1"].shape[1]
    V = p["w2"].shape[1]
    tm = min(block_m, M)
    return pl.pallas_call(
        _mlp2_kernel,
        grid=(pl.cdiv(M, tm),),
        in_specs=[pl.BlockSpec((tm, K), lambda i: (i, 0)),
                  pl.BlockSpec((K, H), lambda i: (0, 0)),
                  pl.BlockSpec((1, H), lambda i: (0, 0)),
                  pl.BlockSpec((H, V), lambda i: (0, 0)),
                  pl.BlockSpec((1, V), lambda i: (0, 0))],
        out_specs=pl.BlockSpec((tm, V), lambda i: (i, 0)),
        out_shape=jax.ShapeDtypeStruct((M, V), jnp.float32),
        compiler_params=_parallel(1),
    )(x.astype(jnp.bfloat16), p["w1"].astype(jnp.bfloat16),
      p["b1"].reshape(1, H).astype(jnp.float32),
      p["w2"].astype(jnp.bfloat16),
      p["b2"].reshape(1, V).astype(jnp.float32))


# ---------------------------------------------------------------------------
# Masked dot-product attention (per-batch grid), optional query projection
# ---------------------------------------------------------------------------

def _attn_core(q, k, v, m):
    s = jax.lax.dot_general(q, k, (((1,), (1,)), ((), ())),
                            preferred_element_type=jnp.float32)      # (Tq, Tk) f32
    s = jnp.where(jnp.broadcast_to(m, s.shape) > 0.0, s, NEG_INF)
    a = jax.nn.softmax(s, axis=-1)
    ctx = jax.lax.dot_general(a.astype(v.dtype), v, (((1,), (0,)), ((), ())),
                              preferred_element_type=jnp.float32)    # (Tq, Dv) f32
    return ctx, a


def _attn_ctx_kernel(q_ref, k_ref, v_ref, m_ref, ctx_ref):
    ctx, _ = _attn_core(q_ref[...], k_ref[...], v_ref[...], m_ref[...])
    ctx_ref[...] = ctx


def _attn_wts_kernel(q_ref, k_ref, v_ref, m_ref, ctx_ref, attn_ref):
    ctx, a = _attn_core(q_ref[...], k_ref[...], v_ref[...], m_ref[...])
    ctx_ref[...] = ctx
    attn_ref[...] = a


def _gen_attn_kernel(q_ref, wq_ref, bq_ref, k_ref, v_ref, m_ref, ctx_ref, attn_ref):
    qp = jnp.dot(q_ref[...], wq_ref[...],
                 preferred_element_type=jnp.float32) + bq_ref[...]
    ctx, a = _attn_core(qp.astype(jnp.bfloat16), k_ref[...], v_ref[...], m_ref[...])
    ctx_ref[...] = ctx
    attn_ref[...] = a


def masked_attention(q, k, v, mask, *, need_weights=True):
    """q: (B,Tq,D), k/v: (B,Tk,D), mask: (B,1,Tk) (1=keep)."""
    B, Tq, D = q.shape
    Tk, Dv = k.shape[1], v.shape[2]
    in_specs = [pl.BlockSpec((None, Tq, D), lambda b: (b, 0, 0)),
                pl.BlockSpec((None, Tk, D), lambda b: (b, 0, 0)),
                pl.BlockSpec((None, Tk, Dv), lambda b: (b, 0, 0)),
                pl.BlockSpec((None, 1, Tk), lambda b: (b, 0, 0))]
    args = (q.astype(jnp.bfloat16), k.astype(jnp.bfloat16),
            v.astype(jnp.bfloat16), mask.astype(jnp.float32))
    if need_weights:
        return pl.pallas_call(
            _attn_wts_kernel, grid=(B,), in_specs=in_specs,
            out_specs=(pl.BlockSpec((None, Tq, Dv), lambda b: (b, 0, 0)),
                       pl.BlockSpec((None, Tq, Tk), lambda b: (b, 0, 0))),
            out_shape=(jax.ShapeDtypeStruct((B, Tq, Dv), jnp.float32),
                       jax.ShapeDtypeStruct((B, Tq, Tk), jnp.float32)),
            compiler_params=_parallel(1))(*args)
    return pl.pallas_call(
        _attn_ctx_kernel, grid=(B,), in_specs=in_specs,
        out_specs=pl.BlockSpec((None, Tq, Dv), lambda b: (b, 0, 0)),
        out_shape=jax.ShapeDtypeStruct((B, Tq, Dv), jnp.float32),
        compiler_params=_parallel(1))(*args)


def general_attention(q_raw, p, k, v, mask):
    """Fused query projection + masked dot attention (GeneralAttention)."""
    B, Tq, Din = q_raw.shape
    Tk, H = k.shape[1], k.shape[2]
    return pl.pallas_call(
        _gen_attn_kernel, grid=(B,),
        in_specs=[pl.BlockSpec((None, Tq, Din), lambda b: (b, 0, 0)),
                  pl.BlockSpec((Din, H), lambda b: (0, 0)),
                  pl.BlockSpec((1, H), lambda b: (0, 0)),
                  pl.BlockSpec((None, Tk, H), lambda b: (b, 0, 0)),
                  pl.BlockSpec((None, Tk, H), lambda b: (b, 0, 0)),
                  pl.BlockSpec((None, 1, Tk), lambda b: (b, 0, 0))],
        out_specs=(pl.BlockSpec((None, Tq, H), lambda b: (b, 0, 0)),
                   pl.BlockSpec((None, Tq, Tk), lambda b: (b, 0, 0))),
        out_shape=(jax.ShapeDtypeStruct((B, Tq, H), jnp.float32),
                   jax.ShapeDtypeStruct((B, Tq, Tk), jnp.float32)),
        compiler_params=_parallel(1),
    )(q_raw.astype(jnp.bfloat16), p["w"].astype(jnp.bfloat16),
      p["b"].reshape(1, H).astype(jnp.float32),
      k.astype(jnp.bfloat16), v.astype(jnp.bfloat16), mask.astype(jnp.float32))


# ---------------------------------------------------------------------------
# GRU: time axis as a pipelined grid axis, fused (H, 3H) hidden matmul
# ---------------------------------------------------------------------------

def _gru_kernel(xg_ref, h0_ref, whh_ref, bhh_ref, out_ref, h_scr):
    @pl.when(pl.program_id(0) == 0)
    def _():
        h_scr[...] = h0_ref[...]

    h = h_scr[...]                                       # (B, H) f32
    H = h.shape[-1]
    hg = jnp.dot(h.astype(jnp.bfloat16), whh_ref[...],
                 preferred_element_type=jnp.float32) + bhh_ref[...]   # (B, 3H) f32
    xg = xg_ref[...]                                     # (B, 3H) f32 precomputed gates
    r = jax.nn.sigmoid(xg[:, :H] + hg[:, :H])
    z = jax.nn.sigmoid(xg[:, H:2 * H] + hg[:, H:2 * H])
    n = jnp.tanh(xg[:, 2 * H:] + r * hg[:, 2 * H:])
    h_new = (1.0 - z) * n + z * h
    h_scr[...] = h_new
    out_ref[...] = h_new


def gru_seq(x_tm, h0, p, *, last_only=False):
    """Single-layer GRU over time-major input x_tm: (T, B, Fin).

    Returns (outputs (T, B, H), last hidden (B, H)), or only the last hidden if
    last_only=True (no sequence output is written to HBM in that case).
    """
    T, B, _ = x_tm.shape
    H = h0.shape[-1]
    G = 3 * H
    Fin = x_tm.shape[-1]
    # Input gates for all timesteps in one MXU pass (time-major, no transpose needed).
    xg = dense(x_tm.reshape(T * B, Fin), p["w_ih"], p["b_ih"]).reshape(T, B, G)

    if last_only:
        out_specs = pl.BlockSpec((B, H), lambda t: (0, 0))       # resident, written once
        out_shape = jax.ShapeDtypeStruct((B, H), jnp.float32)
    else:
        out_specs = pl.BlockSpec((None, B, H), lambda t: (t, 0, 0))
        out_shape = jax.ShapeDtypeStruct((T, B, H), jnp.float32)

    out = pl.pallas_call(
        _gru_kernel,
        grid=(T,),
        in_specs=[pl.BlockSpec((None, B, G), lambda t: (t, 0, 0)),   # streamed per step
                  pl.BlockSpec((B, H), lambda t: (0, 0)),            # h0 resident
                  pl.BlockSpec((H, G), lambda t: (0, 0)),            # w_hh resident
                  pl.BlockSpec((1, G), lambda t: (0, 0))],           # b_hh resident
        out_specs=out_specs,
        out_shape=out_shape,
        scratch_shapes=[pltpu.VMEM((B, H), jnp.float32)],            # carried hidden
        compiler_params=pltpu.CompilerParams(dimension_semantics=("arbitrary",)),
    )(xg, h0.astype(jnp.float32), p["w_hh"].astype(jnp.bfloat16),
      p["b_hh"].reshape(1, G).astype(jnp.float32))

    if last_only:
        return out
    return out, out[-1]


# ---------------------------------------------------------------------------
# Pointer-generator mixing: gen*(1-gate) + (attn @ onehot(ids))*gate
# One-hot is built in-register from int32 ids via an iota compare.
# ---------------------------------------------------------------------------

def _copy_mix_kernel(gen_ref, gate_ref, attn_ref, ids_ref, out_ref, *, vocab):
    gen = gen_ref[...]                                    # (Td, V)
    gate = gate_ref[...]                                  # (Td, 1)
    attn = attn_ref[...]                                  # (Td, J)
    ids = ids_ref[...]                                    # (1, J) int32
    Td = gen.shape[0]
    Vext = out_ref.shape[-1]
    J = attn.shape[-1]

    iota = jax.lax.broadcasted_iota(jnp.int32, (Vext, J), 0)
    onehot = (iota == ids).astype(jnp.float32)            # (Vext, J), built in-register
    copy = jax.lax.dot_general(attn, onehot, (((1,), (1,)), ((), ())),
                               preferred_element_type=jnp.float32)   # (Td, Vext)

    gen_ext = gen * (1.0 - gate)
    extra = Vext - vocab
    if extra:
        gen_ext = jnp.concatenate(
            [gen_ext, jnp.zeros((Td, extra), jnp.float32)], axis=-1)
    out_ref[...] = gen_ext + copy * gate


def copy_mix(gen, gate, attn, ids, n_extra):
    B, Td, V = gen.shape
    J = attn.shape[-1]
    Vext = V + n_extra
    ids3 = ids.reshape(B, 1, J).astype(jnp.int32)
    return pl.pallas_call(
        functools.partial(_copy_mix_kernel, vocab=V),
        grid=(B,),
        in_specs=[pl.BlockSpec((None, Td, V), lambda b: (b, 0, 0)),
                  pl.BlockSpec((None, Td, 1), lambda b: (b, 0, 0)),
                  pl.BlockSpec((None, Td, J), lambda b: (b, 0, 0)),
                  pl.BlockSpec((None, 1, J), lambda b: (b, 0, 0))],
        out_specs=pl.BlockSpec((None, Td, Vext), lambda b: (b, 0, 0)),
        out_shape=jax.ShapeDtypeStruct((B, Td, Vext), jnp.float32),
        compiler_params=_parallel(1),
    )(gen, gate, attn, ids3)


# ---------------------------------------------------------------------------
# Parameters
# ---------------------------------------------------------------------------

def init_params(key, cfg):
    V, E, H = cfg["vocab_size"], cfg["embed_size"], cfg["hidden_size"]
    keys = jax.random.split(key, 32)
    it = iter(keys)

    def w(shape, scale=0.1):
        return jax.random.normal(next(it), shape, jnp.float32) * scale

    def gru_params(in_size):
        return dict(w_ih=w((in_size, 3 * H)), b_ih=jnp.zeros((3 * H,), jnp.float32),
                    w_hh=w((H, 3 * H)), b_hh=jnp.zeros((3 * H,), jnp.float32))

    return dict(
        embedding=w((V, E)),
        utt_enc=gru_params(E),
        kg_enc=gru_params(E),
        bridge=dict(w=w((H, H)), b=jnp.zeros((H,), jnp.float32)),
        prior=dict(w=w((H + E, H)), b=jnp.zeros((H,), jnp.float32)),
        post=dict(w=w((2 * H, H)), b=jnp.zeros((H,), jnp.float32)),
        init_dec=dict(w=w((2 * H, H)), b=jnp.zeros((H,), jnp.float32)),
        bow_fc1=dict(w1=w((2 * H, H)), b1=jnp.zeros((H,), jnp.float32),
                     w2=w((H, V)), b2=jnp.zeros((V,), jnp.float32)),
        bow_fc2=dict(w1=w((H, H)), b1=jnp.zeros((H,), jnp.float32),
                     w2=w((H, V)), b2=jnp.zeros((V,), jnp.float32)),
        dec_gru=gru_params(E + H),
        # fused output head: columns [0:V] generation logits, column V copy gate
        dec_head=dict(w=w((3 * H, V + 1)), b=jnp.zeros((V + 1,), jnp.float32)),
    )


# ---------------------------------------------------------------------------
# Model forward (is_train=True path)
# ---------------------------------------------------------------------------

def decoder_forward(params, cfg, tgt_in, init_hidden, src_outputs, src_pad_mask,
                    kg_fusion, kg_outputs_flat, kg_pad_mask, kg_extend_vocab, n_extra):
    # TODO(synk): original Decoder source unavailable; a standard attentive GRU
    # pointer-generator over KG tokens is used as the approximation.
    emb_w = params["embedding"]
    B, Td = tgt_in.shape
    H, V = cfg["hidden_size"], cfg["vocab_size"]

    emb_tm = jnp.take(emb_w, tgt_in.T, axis=0)                          # (Td, B, E)
    fuse_tm = jnp.broadcast_to(kg_fusion.reshape(1, B, H), (Td, B, H))
    dec_in_tm = jnp.concatenate([emb_tm, fuse_tm], axis=-1)             # (Td, B, E+H)
    dec_outs_tm, _ = gru_seq(dec_in_tm, init_hidden, params["dec_gru"])  # (Td, B, H)
    dec_outs = dec_outs_tm.transpose(1, 0, 2)                           # (B, Td, H)

    src_ctx = masked_attention(dec_outs, src_outputs, src_outputs, src_pad_mask,
                               need_weights=False)                      # weights unused
    kg_ctx, kg_attn = masked_attention(dec_outs, kg_outputs_flat, kg_outputs_flat,
                                       kg_pad_mask, need_weights=True)

    feat = jnp.concatenate([dec_outs, src_ctx, kg_ctx], axis=-1).reshape(B * Td, 3 * H)
    gen_flat, gate_flat = pointer_head(feat, params["dec_head"]["w"],
                                       params["dec_head"]["b"], V)
    gen_dist = gen_flat.reshape(B, Td, V)
    gate = gate_flat.reshape(B, Td, 1)

    return copy_mix(gen_dist, gate, kg_attn, kg_extend_vocab, n_extra)  # (B, Td, V+extra)


def seq2seq_forward(params, cfg, src_input, src_len, src_padding_mask,
                    kg_input, kg_len, kg_mask, kg_padding_mask,
                    kg_extend_vocab, extra_zero, tgt_input, tgt_len):
    emb_w = params["embedding"]
    B = src_input.shape[0]
    H = cfg["hidden_size"]
    K = kg_mask.shape[-1]

    def embed_tm(ids):   # (B, T) int -> (T, B, E) time-major (only the tiny ids transpose)
        return jnp.take(emb_w, ids.T, axis=0)

    # ---- utterance encoder ----
    # TODO(synk): pack_padded_sequence length masking (src_len/kg_len/tgt_len) skipped;
    # the GRU runs over the full padded length.
    src_outs_tm, src_hT = gru_seq(embed_tm(src_input),
                                  jnp.zeros((B, H), jnp.float32), params["utt_enc"])
    src_outputs = src_outs_tm.transpose(1, 0, 2)                        # (B, Tsrc, H)

    # ---- knowledge encoder ----
    BK = kg_input.shape[0]
    kg_outs_tm, kg_hT = gru_seq(embed_tm(kg_input),
                                jnp.zeros((BK, H), jnp.float32), params["kg_enc"])
    kg_outputs_flat = kg_outs_tm.transpose(1, 0, 2).reshape(B, -1, H)   # (B, K*Tkg, H)

    kg_mask3 = kg_mask[:, None, :].astype(jnp.float32)                  # (B, 1, K)
    src_pad_mask3 = src_padding_mask[:, None, :].astype(jnp.float32)    # (B, 1, Tsrc)
    kg_pad_mask3 = kg_padding_mask[:, None, :].astype(jnp.float32)      # (B, 1, K*Tkg)

    # ---- bridge + top hidden ----
    top_src_hidden = dense(src_hT, params["bridge"]["w"], params["bridge"]["b"],
                           activation="tanh")[:, None, :]               # (B, 1, H)
    kg_hidden_r = kg_hT.reshape(B, K, H)                                # (B, K, H)

    # ---- pre-fusion via dot attention (weights discarded) ----
    pre_kg_fusion = masked_attention(top_src_hidden, kg_hidden_r, kg_hidden_r,
                                     kg_mask3, need_weights=False)      # (B, 1, H)

    # ---- bow_fc1 (fused Linear+Tanh+Linear+Softmax) + pos_info ----
    bow1_in = jnp.concatenate([top_src_hidden, pre_kg_fusion], axis=-1).reshape(B, 2 * H)
    pos_bow_dist = mlp2_softmax(bow1_in, params["bow_fc1"])             # (B, V)
    pos_info = dense(pos_bow_dist, emb_w)                               # (B, E)

    # ---- prior net (fused GeneralAttention: projection + masked softmax) ----
    prior_q = jnp.concatenate([top_src_hidden, pos_info[:, None, :]], axis=-1)
    _, prior_dist = general_attention(prior_q, params["prior"],
                                      kg_hidden_r, kg_hidden_r, kg_mask3)

    # ---- is_train=True branch ----
    tgt_hT = gru_seq(embed_tm(tgt_input[:, 1:]), jnp.zeros((B, H), jnp.float32),
                     params["utt_enc"], last_only=True)                 # (B, H), no seq write
    post_q = jnp.concatenate([top_src_hidden, tgt_hT[:, None, :]], axis=-1)
    kg_fusion, posterior_dist = general_attention(post_q, params["post"],
                                                  kg_hidden_r, kg_hidden_r, kg_mask3)
    posterior_dist = jax.lax.stop_gradient(posterior_dist)

    bow_logits = mlp2_softmax(kg_fusion.reshape(B, H), params["bow_fc2"])[:, None, :]

    dec_init_hidden = dense(
        jnp.concatenate([top_src_hidden, kg_fusion], axis=-1).reshape(B, 2 * H),
        params["init_dec"]["w"], params["init_dec"]["b"])               # (B, H)

    n_extra = extra_zero.shape[-1]
    decode_logits = decoder_forward(
        params, cfg, tgt_input[:, :-1], dec_init_hidden, src_outputs, src_pad_mask3,
        kg_fusion, kg_outputs_flat, kg_pad_mask3, kg_extend_vocab, n_extra)

    # TODO(synk): is_train=False greedy-decode loop (max_dec_len step decoding) not implemented.
    return [bow_logits, decode_logits, prior_dist, posterior_dist]


# ---------------------------------------------------------------------------
# Main
# ---------------------------------------------------------------------------

if __name__ == "__main__":
    cfg = dict(vocab_size=64, embed_size=16, hidden_size=32, dropout=0.0,
               max_kg_num=3, n_extra=4, unk_id=1, max_dec_len=4)
    B, Tsrc, Tkg, Ttgt = 2, 8, 6, 7
    K = cfg["max_kg_num"]

    params = init_params(jax.random.PRNGKey(0), cfg)

    k1, k2, k3, k4 = jax.random.split(jax.random.PRNGKey(0), 4)
    src_input = jax.random.randint(k1, (B, Tsrc), 0, cfg["vocab_size"], dtype=jnp.int32)
    kg_input = jax.random.randint(k2, (B * K, Tkg), 0, cfg["vocab_size"], dtype=jnp.int32)
    tgt_input = jax.random.randint(k3, (B, Ttgt), 0, cfg["vocab_size"], dtype=jnp.int32)
    kg_extend_vocab = jax.random.randint(k4, (B, K * Tkg), 0,
                                         cfg["vocab_size"] + cfg["n_extra"], dtype=jnp.int32)

    src_len = jnp.full((B,), Tsrc, jnp.int32)
    kg_len = jnp.full((B * K,), Tkg, jnp.int32)
    tgt_len = jnp.full((B,), Ttgt, jnp.int32)
    src_padding_mask = jnp.ones((B, Tsrc), jnp.float32)
    kg_mask = jnp.ones((B, K), jnp.float32)
    kg_padding_mask = jnp.ones((B, K * Tkg), jnp.float32)
    extra_zero = jnp.zeros((B, cfg["n_extra"]), jnp.float32)

    fwd = jax.jit(lambda p, *args: seq2seq_forward(p, cfg, *args))
    outs = fwd(params, src_input, src_len, src_padding_mask,
               kg_input, kg_len, kg_mask, kg_padding_mask,
               kg_extend_vocab, extra_zero, tgt_input, tgt_len)
    jax.block_until_ready(outs)

    bow_logits, decode_logits, prior_dist, posterior_dist = outs
    assert bow_logits.shape == (B, 1, cfg["vocab_size"])
    assert decode_logits.shape == (B, Ttgt - 1, cfg["vocab_size"] + cfg["n_extra"])
    assert prior_dist.shape == (B, 1, K)
    assert posterior_dist.shape == (B, 1, K)
    print("KERNEL_OK")
</pallas_src>

<mosaic_0001>
module attributes {stable_mosaic.version = 11 : i64} {
  func.func @_dense_kernel(%arg0: i32, %arg1: memref<16x16xbf16, #tpu.memory_space<vmem>>, %arg2: memref<16x96xbf16, #tpu.memory_space<vmem>>, %arg3: memref<1x96xf32, #tpu.memory_space<vmem>>, %arg4: memref<16x96xf32, #tpu.memory_space<vmem>>) attributes {dimension_semantics = [#tpu.dimension_semantics<parallel>], iteration_bounds = array<i64: 1>, scalar_prefetch = 0 : i64, scratch_operands = 0 : i64, tpu.core_type = #tpu.core_type<tc>, window_params = [{transform_indices = @transform_0, window_bounds = array<i64: 16, 16>}, {pipeline_mode = #tpu.pipeline_mode<synchronous>, transform_indices = @transform_1, window_bounds = array<i64: 16, 96>}, {pipeline_mode = #tpu.pipeline_mode<synchronous>, transform_indices = @transform_2, window_bounds = array<i64: 1, 96>}, {transform_indices = @transform_3, window_bounds = array<i64: 16, 96>}]} {
    %c0 = arith.constant 0 : index
    %c0_0 = arith.constant 0 : index
    %0 = vector.load %arg1[%c0, %c0_0] : memref<16x16xbf16, #tpu.memory_space<vmem>>, vector<16x16xbf16>
    %c0_1 = arith.constant 0 : index
    %c0_2 = arith.constant 0 : index
    %1 = vector.load %arg2[%c0_1, %c0_2] : memref<16x96xbf16, #tpu.memory_space<vmem>>, vector<16x96xbf16>
    %cst = arith.constant dense<0.000000e+00> : vector<16x96xf32>
    %2 = tpu.matmul %0, %1, %cst {dimension_numbers = #tpu.dot_dimension_numbers<[1], [0], [0], [1], [0, 0, 1, 1], [], []>} : vector<16x16xbf16>, vector<16x96xbf16>, vector<16x96xf32> -> vector<16x96xf32>
    %c0_3 = arith.constant 0 : index
    %c0_4 = arith.constant 0 : index
    %3 = vector.load %arg3[%c0_3, %c0_4] : memref<1x96xf32, #tpu.memory_space<vmem>>, vector<1x96xf32>
    %4 = vector.broadcast %3 : vector<1x96xf32> to vector<16x96xf32>
    %5 = arith.addf %2, %4 : vector<16x96xf32>
    %c0_5 = arith.constant 0 : index
    %c0_6 = arith.constant 0 : index
    %6 = vector.load %arg4[%c0_5, %c0_6] : memref<16x96xf32, #tpu.memory_space<vmem>>, vector<16x96xf32>
    tpu.vector_store %arg4[%c0_5, %c0_6], %5 {strides = array<i32>} : memref<16x96xf32, #tpu.memory_space<vmem>>, vector<16x96xf32>,
    return
  }
  func.func @transform_0(%arg0: i32) -> (i32, i32) {
    %c0_i32 = arith.constant 0 : i32
    %c0_i32_0 = arith.constant 0 : i32
    return %arg0, %c0_i32 : i32, i32
  }
  func.func @transform_1(%arg0: i32) -> (i32, i32) {
    %c0_i32 = arith.constant 0 : i32
    %c0_i32_0 = arith.constant 0 : i32
    %c0_i32_1 = arith.constant 0 : i32
    return %c0_i32, %c0_i32_0 : i32, i32
  }
  func.func @transform_2(%arg0: i32) -> (i32, i32) {
    %c0_i32 = arith.constant 0 : i32
    %c0_i32_0 = arith.constant 0 : i32
    %c0_i32_1 = arith.constant 0 : i32
    return %c0_i32, %c0_i32_0 : i32, i32
  }
  func.func @transform_3(%arg0: i32) -> (i32, i32) {
    %c0_i32 = arith.constant 0 : i32
    %c0_i32_0 = arith.constant 0 : i32
    return %arg0, %c0_i32 : i32, i32
  }
}

module attributes {stable_mosaic.version = 11 : i64} {
  func.func @_gru_kernel(%arg0: i32, %arg1: memref<1x2x96xf32, #tpu.memory_space<vmem>>, %arg2: memref<2x32xf32, #tpu.memory_space<vmem>>, %arg3: memref<32x96xbf16, #tpu.memory_space<vmem>>, %arg4: memref<1x96xf32, #tpu.memory_space<vmem>>, %arg5: memref<1x2x32xf32, #tpu.memory_space<vmem>>, %arg6: memref<2x32xf32, #tpu.memory_space<vmem>>) attributes {dimension_semantics = [#tpu.dimension_semantics<arbitrary>], iteration_bounds = array<i64: 8>, scalar_prefetch = 0 : i64, scratch_operands = 1 : i64, tpu.core_type = #tpu.core_type<tc>, window_params = [{transform_indices = @transform_0, window_bounds = array<i64: 1, 2, 96>}, {pipeline_mode = #tpu.pipeline_mode<synchronous>, transform_indices = @transform_1, window_bounds = array<i64: 2, 32>}, {pipeline_mode = #tpu.pipeline_mode<synchronous>, transform_indices = @transform_2, window_bounds = array<i64: 32, 96>}, {pipeline_mode = #tpu.pipeline_mode<synchronous>, transform_indices = @transform_3, window_bounds = array<i64: 1, 96>}, {transform_indices = @transform_4, window_bounds = array<i64: 1, 2, 32>}]} {
    %c0_i32 = arith.constant 0 : i32
    %0 = arith.cmpi eq, %arg0, %c0_i32 : i32
    %1 = arith.extui %0 : i1 to i32
    %c0_i32_0 = arith.constant 0 : i32
    %2 = arith.cmpi ne, %1, %c0_i32_0 : i32
    scf.if %2 {
      %c0_17 = arith.constant 0 : index
      %c0_18 = arith.constant 0 : index
      %42 = vector.load %arg2[%c0_17, %c0_18] : memref<2x32xf32, #tpu.memory_space<vmem>>, vector<2x32xf32>
      %c0_19 = arith.constant 0 : index
      %c0_20 = arith.constant 0 : index
      %43 = vector.load %arg6[%c0_19, %c0_20] : memref<2x32xf32, #tpu.memory_space<vmem>>, vector<2x32xf32>
      tpu.vector_store %arg6[%c0_19, %c0_20], %42 {strides = array<i32>} : memref<2x32xf32, #tpu.memory_space<vmem>>, vector<2x32xf32>,
    } else {
    }
    %c0 = arith.constant 0 : index
    %c0_1 = arith.constant 0 : index
    %3 = vector.load %arg6[%c0, %c0_1] : memref<2x32xf32, #tpu.memory_space<vmem>>, vector<2x32xf32>
    %4 = arith.truncf %3 : vector<2x32xf32> to vector<2x32xbf16>
    %c0_2 = arith.constant 0 : index
    %c0_3 = arith.constant 0 : index
    %5 = vector.load %arg3[%c0_2, %c0_3] : memref<32x96xbf16, #tpu.memory_space<vmem>>, vector<32x96xbf16>
    %cst = arith.constant dense<0.000000e+00> : vector<2x96xf32>
    %6 = tpu.matmul %4, %5, %cst {dimension_numbers = #tpu.dot_dimension_numbers<[1], [0], [0], [1], [0, 0, 1, 1], [], []>} : vector<2x32xbf16>, vector<32x96xbf16>, vector<2x96xf32> -> vector<2x96xf32>
    %c0_4 = arith.constant 0 : index
    %c0_5 = arith.constant 0 : index
    %7 = vector.load %arg4[%c0_4, %c0_5] : memref<1x96xf32, #tpu.memory_space<vmem>>, vector<1x96xf32>
    %8 = vector.broadcast %7 : vector<1x96xf32> to vector<2x96xf32>
    %9 = arith.addf %6, %8 : vector<2x96xf32>
    %c0_6 = arith.constant 0 : index
    %c0_7 = arith.constant 0 : index
    %c0_8 = arith.constant 0 : index
    %10 = vector.load %arg1[%c0_6, %c0_7, %c0_8] : memref<1x2x96xf32, #tpu.memory_space<vmem>>, vector<1x2x96xf32>
    %11 = vector.shape_cast %10 : vector<1x2x96xf32> to vector<2x96xf32>
    %12 = vector.extract_strided_slice %11 {offsets = [0, 0], sizes = [2, 32], strides = [1, 1]} : vector<2x96xf32> to vector<2x32xf32>
    %13 = vector.extract_strided_slice %9 {offsets = [0, 0], sizes = [2, 32], strides = [1, 1]} : vector<2x96xf32> to vector<2x32xf32>
    %14 = arith.addf %12, %13 : vector<2x32xf32>
    %15 = arith.negf %14 : vector<2x32xf32>
    %16 = math.exp %15 : vector<2x32xf32>
    %cst_9 = arith.constant 1.000000e+00 : f32
    %17 = vector.broadcast %cst_9 : f32 to vector<2x32xf32>
    %18 = arith.addf %17, %16 : vector<2x32xf32>
    %19 = arith.divf %17, %18 : vector<2x32xf32>
    %20 = vector.extract_strided_slice %11 {offsets = [0, 32], sizes = [2, 32], strides = [1, 1]} : vector<2x96xf32> to vector<2x32xf32>
    %21 = vector.extract_strided_slice %9 {offsets = [0, 32], sizes = [2, 32], strides = [1, 1]} : vector<2x96xf32> to vector<2x32xf32>
    %22 = arith.addf %20, %21 : vector<2x32xf32>
    %23 = arith.negf %22 : vector<2x32xf32>
    %24 = math.exp %23 : vector<2x32xf32>
    %cst_10 = arith.constant 1.000000e+00 : f32
    %25 = vector.broadcast %cst_10 : f32 to vector<2x32xf32>
    %26 = arith.addf %25, %24 : vector<2x32xf32>
    %27 = arith.divf %25, %26 : vector<2x32xf32>
    %28 = vector.extract_strided_slice %11 {offsets = [0, 64], sizes = [2, 32], strides = [1, 1]} : vector<2x96xf32> to vector<2x32xf32>
    %29 = vector.extract_strided_slice %9 {offsets = [0, 64], sizes = [2, 32], strides = [1, 1]} : vector<2x96xf32> to vector<2x32xf32>
    %30 = arith.mulf %19, %29 : vector<2x32xf32>
    %31 = arith.addf %28, %30 : vector<2x32xf32>
    %32 = math.tanh %31 : vector<2x32xf32>
    %cst_11 = arith.constant 1.000000e+00 : f32
    %33 = vector.broadcast %cst_11 : f32 to vector<2x32xf32>
    %34 = arith.subf %33, %27 : vector<2x32xf32>
    %35 = arith.mulf %34, %32 : vector<2x32xf32>
    %36 = arith.mulf %27, %3 : vector<2x32xf32>
    %37 = arith.addf %35, %36 : vector<2x32xf32>
    %c0_12 = arith.constant 0 : index
    %c0_13 = arith.constant 0 : index
    %38 = vector.load %arg6[%c0_12, %c0_13] : memref<2x32xf32, #tpu.memory_space<vmem>>, vector<2x32xf32>
    tpu.vector_store %arg6[%c0_12, %c0_13], %37 {strides = array<i32>} : memref<2x32xf32, #tpu.memory_space<vmem>>, vector<2x32xf32>,
    %c0_14 = arith.constant 0 : index
    %c0_15 = arith.constant 0 : index
    %c0_16 = arith.constant 0 : index
    %39 = vector.load %arg5[%c0_14, %c0_15, %c0_16] : memref<1x2x32xf32, #tpu.memory_space<vmem>>, vector<1x2x32xf32>
    %40 = vector.shape_cast %39 : vector<1x2x32xf32> to vector<2x32xf32>
    %41 = vector.shape_cast %37 : vector<2x32xf32> to vector<1x2x32xf32>
    tpu.vector_store %arg5[%c0_14, %c0_15, %c0_16], %41 {strides = array<i32>} : memref<1x2x32xf32, #tpu.memory_space<vmem>>, vector<1x2x32xf32>,
    return
  }
  func.func @transform_0(%arg0: i32) -> (i32, i32, i32) {
    %c0_i32 = arith.constant 0 : i32
    %c0_i32_0 = arith.constant 0 : i32
    %c0_i32_1 = arith.constant 0 : i32
    return %arg0, %c0_i32, %c0_i32_0 : i32, i32, i32
  }
  func.func @transform_1(%arg0: i32) -> (i32, i32) {
    %c0_i32 = arith.constant 0 : i32
    %c0_i32_0 = arith.constant 0 : i32
    %c0_i32_1 = arith.constant 0 : i32
    return %c0_i32, %c0_i32_0 : i32, i32
  }
  func.func @transform_2(%arg0: i32) -> (i32, i32) {
    %c0_i32 = arith.constant 0 : i32
    %c0_i32_0 = arith.constant 0 : i32
    %c0_i32_1 = arith.constant 0 : i32
    return %c0_i32, %c0_i32_0 : i32, i32
  }
  func.func @transform_3(%arg0: i32) -> (i32, i32) {
    %c0_i32 = arith.constant 0 : i32
    %c0_i32_0 = arith.constant 0 : i32
    %c0_i32_1 = arith.constant 0 : i32
    return %c0_i32, %c0_i32_0 : i32, i32
  }
  func.func @transform_4(%arg0: i32) -> (i32, i32, i32) {
    %c0_i32 = arith.constant 0 : i32
    %c0_i32_0 = arith.constant 0 : i32
    %c0_i32_1 = arith.constant 0 : i32
    return %arg0, %c0_i32, %c0_i32_0 : i32, i32, i32
  }
}

module attributes {stable_mosaic.version = 11 : i64} {
  func.func @_dense_kernel(%arg0: i32, %arg1: memref<2x32xbf16, #tpu.memory_space<vmem>>, %arg2: memref<32x32xbf16, #tpu.memory_space<vmem>>, %arg3: memref<1x32xf32, #tpu.memory_space<vmem>>, %arg4: memref<2x32xf32, #tpu.memory_space<vmem>>) attributes {dimension_semantics = [#tpu.dimension_semantics<parallel>], iteration_bounds = array<i64: 1>, scalar_prefetch = 0 : i64, scratch_operands = 0 : i64, tpu.core_type = #tpu.core_type<tc>, window_params = [{transform_indices = @transform_0, window_bounds = array<i64: 2, 32>}, {pipeline_mode = #tpu.pipeline_mode<synchronous>, transform_indices = @transform_1, window_bounds = array<i64: 32, 32>}, {pipeline_mode = #tpu.pipeline_mode<synchronous>, transform_indices = @transform_2, window_bounds = array<i64: 1, 32>}, {transform_indices = @transform_3, window_bounds = array<i64: 2, 32>}]} {
    %c0 = arith.constant 0 : index
    %c0_0 = arith.constant 0 : index
    %0 = vector.load %arg1[%c0, %c0_0] : memref<2x32xbf16, #tpu.memory_space<vmem>>, vector<2x32xbf16>
    %c0_1 = arith.constant 0 : index
    %c0_2 = arith.constant 0 : index
    %1 = vector.load %arg2[%c0_1, %c0_2] : memref<32x32xbf16, #tpu.memory_space<vmem>>, vector<32x32xbf16>
    %cst = arith.constant dense<0.000000e+00> : vector<2x32xf32>
    %2 = tpu.matmul %0, %1, %cst {dimension_numbers = #tpu.dot_dimension_numbers<[1], [0], [0], [1], [0, 0, 1, 1], [], []>} : vector<2x32xbf16>, vector<32x32xbf16>, vector<2x32xf32> -> vector<2x32xf32>
    %c0_3 = arith.constant 0 : index
    %c0_4 = arith.constant 0 : index
    %3 = vector.load %arg3[%c0_3, %c0_4] : memref<1x32xf32, #tpu.memory_space<vmem>>, vector<1x32xf32>
    %4 = vector.broadcast %3 : vector<1x32xf32> to vector<2x32xf32>
    %5 = arith.addf %2, %4 : vector<2x32xf32>
    %6 = math.tanh %5 : vector<2x32xf32>
    %c0_5 = arith.constant 0 : index
    %c0_6 = arith.constant 0 : index
    %7 = vector.load %arg4[%c0_5, %c0_6] : memref<2x32xf32, #tpu.memory_space<vmem>>, vector<2x32xf32>
    tpu.vector_store %arg4[%c0_5, %c0_6], %6 {strides = array<i32>} : memref<2x32xf32, #tpu.memory_space<vmem>>, vector<2x32xf32>,
    return
  }
  func.func @transform_0(%arg0: i32) -> (i32, i32) {
    %c0_i32 = arith.constant 0 : i32
    %c0_i32_0 = arith.constant 0 : i32
    return %arg0, %c0_i32 : i32, i32
  }
  func.func @transform_1(%arg0: i32) -> (i32, i32) {
    %c0_i32 = arith.constant 0 : i32
    %c0_i32_0 = arith.constant 0 : i32
    %c0_i32_1 = arith.constant 0 : i32
    return %c0_i32, %c0_i32_0 : i32, i32
  }
  func.func @transform_2(%arg0: i32) -> (i32, i32) {
    %c0_i32 = arith.constant 0 : i32
    %c0_i32_0 = arith.constant 0 : i32
    %c0_i32_1 = arith.constant 0 : i32
    return %c0_i32, %c0_i32_0 : i32, i32
  }
  func.func @transform_3(%arg0: i32) -> (i32, i32) {
    %c0_i32 = arith.constant 0 : i32
    %c0_i32_0 = arith.constant 0 : i32
    return %arg0, %c0_i32 : i32, i32
  }
}

module attributes {stable_mosaic.version = 11 : i64} {
  func.func @_dense_kernel(%arg0: i32, %arg1: memref<12x16xbf16, #tpu.memory_space<vmem>>, %arg2: memref<16x96xbf16, #tpu.memory_space<vmem>>, %arg3: memref<1x96xf32, #tpu.memory_space<vmem>>, %arg4: memref<12x96xf32, #tpu.memory_space<vmem>>) attributes {dimension_semantics = [#tpu.dimension_semantics<parallel>], iteration_bounds = array<i64: 1>, scalar_prefetch = 0 : i64, scratch_operands = 0 : i64, tpu.core_type = #tpu.core_type<tc>, window_params = [{transform_indices = @transform_0, window_bounds = array<i64: 12, 16>}, {pipeline_mode = #tpu.pipeline_mode<synchronous>, transform_indices = @transform_1, window_bounds = array<i64: 16, 96>}, {pipeline_mode = #tpu.pipeline_mode<synchronous>, transform_indices = @transform_2, window_bounds = array<i64: 1, 96>}, {transform_indices = @transform_3, window_bounds = array<i64: 12, 96>}]} {
    %c0 = arith.constant 0 : index
    %c0_0 = arith.constant 0 : index
    %0 = vector.load %arg1[%c0, %c0_0] : memref<12x16xbf16, #tpu.memory_space<vmem>>, vector<12x16xbf16>
    %c0_1 = arith.constant 0 : index
    %c0_2 = arith.constant 0 : index
    %1 = vector.load %arg2[%c0_1, %c0_2] : memref<16x96xbf16, #tpu.memory_space<vmem>>, vector<16x96xbf16>
    %cst = arith.constant dense<0.000000e+00> : vector<12x96xf32>
    %2 = tpu.matmul %0, %1, %cst {dimension_numbers = #tpu.dot_dimension_numbers<[1], [0], [0], [1], [0, 0, 1, 1], [], []>} : vector<12x16xbf16>, vector<16x96xbf16>, vector<12x96xf32> -> vector<12x96xf32>
    %c0_3 = arith.constant 0 : index
    %c0_4 = arith.constant 0 : index
    %3 = vector.load %arg3[%c0_3, %c0_4] : memref<1x96xf32, #tpu.memory_space<vmem>>, vector<1x96xf32>
    %4 = vector.broadcast %3 : vector<1x96xf32> to vector<12x96xf32>
    %5 = arith.addf %2, %4 : vector<12x96xf32>
    %c0_5 = arith.constant 0 : index
    %c0_6 = arith.constant 0 : index
    %6 = vector.load %arg4[%c0_5, %c0_6] : memref<12x96xf32, #tpu.memory_space<vmem>>, vector<12x96xf32>
    tpu.vector_store %arg4[%c0_5, %c0_6], %5 {strides = array<i32>} : memref<12x96xf32, #tpu.memory_space<vmem>>, vector<12x96xf32>,
    return
  }
  func.func @transform_0(%arg0: i32) -> (i32, i32) {
    %c0_i32 = arith.constant 0 : i32
    %c0_i32_0 = arith.constant 0 : i32
    return %arg0, %c0_i32 : i32, i32
  }
  func.func @transform_1(%arg0: i32) -> (i32, i32) {
    %c0_i32 = arith.constant 0 : i32
    %c0_i32_0 = arith.constant 0 : i32
    %c0_i32_1 = arith.constant 0 : i32
    return %c0_i32, %c0_i32_0 : i32, i32
  }
  func.func @transform_2(%arg0: i32) -> (i32, i32) {
    %c0_i32 = arith.constant 0 : i32
    %c0_i32_0 = arith.constant 0 : i32
    %c0_i32_1 = arith.constant 0 : i32
    return %c0_i32, %c0_i32_0 : i32, i32
  }
  func.func @transform_3(%arg0: i32) -> (i32, i32) {
    %c0_i32 = arith.constant 0 : i32
    %c0_i32_0 = arith.constant 0 : i32
    return %arg0, %c0_i32 : i32, i32
  }
}

module attributes {stable_mosaic.version = 11 : i64} {
  func.func @_gru_kernel(%arg0: i32, %arg1: memref<1x2x96xf32, #tpu.memory_space<vmem>>, %arg2: memref<2x32xf32, #tpu.memory_space<vmem>>, %arg3: memref<32x96xbf16, #tpu.memory_space<vmem>>, %arg4: memref<1x96xf32, #tpu.memory_space<vmem>>, %arg5: memref<2x32xf32, #tpu.memory_space<vmem>>, %arg6: memref<2x32xf32, #tpu.memory_space<vmem>>) attributes {dimension_semantics = [#tpu.dimension_semantics<arbitrary>], iteration_bounds = array<i64: 6>, scalar_prefetch = 0 : i64, scratch_operands = 1 : i64, tpu.core_type = #tpu.core_type<tc>, window_params = [{transform_indices = @transform_0, window_bounds = array<i64: 1, 2, 96>}, {pipeline_mode = #tpu.pipeline_mode<synchronous>, transform_indices = @transform_1, window_bounds = array<i64: 2, 32>}, {pipeline_mode = #tpu.pipeline_mode<synchronous>, transform_indices = @transform_2, window_bounds = array<i64: 32, 96>}, {pipeline_mode = #tpu.pipeline_mode<synchronous>, transform_indices = @transform_3, window_bounds = array<i64: 1, 96>}, {pipeline_mode = #tpu.pipeline_mode<synchronous>, transform_indices = @transform_4, window_bounds = array<i64: 2, 32>}]} {
    %c0_i32 = arith.constant 0 : i32
    %0 = arith.cmpi eq, %arg0, %c0_i32 : i32
    %1 = arith.extui %0 : i1 to i32
    %c0_i32_0 = arith.constant 0 : i32
    %2 = arith.cmpi ne, %1, %c0_i32_0 : i32
    scf.if %2 {
      %c0_16 = arith.constant 0 : index
      %c0_17 = arith.constant 0 : index
      %40 = vector.load %arg2[%c0_16, %c0_17] : memref<2x32xf32, #tpu.memory_space<vmem>>, vector<2x32xf32>
      %c0_18 = arith.constant 0 : index
      %c0_19 = arith.constant 0 : index
      %41 = vector.load %arg6[%c0_18, %c0_19] : memref<2x32xf32, #tpu.memory_space<vmem>>, vector<2x32xf32>
      tpu.vector_store %arg6[%c0_18, %c0_19], %40 {strides = array<i32>} : memref<2x32xf32, #tpu.memory_space<vmem>>, vector<2x32xf32>,
    } else {
    }
    %c0 = arith.constant 0 : index
    %c0_1 = arith.constant 0 : index
    %3 = vector.load %arg6[%c0, %c0_1] : memref<2x32xf32, #tpu.memory_space<vmem>>, vector<2x32xf32>
    %4 = arith.truncf %3 : vector<2x32xf32> to vector<2x32xbf16>
    %c0_2 = arith.constant 0 : index
    %c0_3 = arith.constant 0 : index
    %5 = vector.load %arg3[%c0_2, %c0_3] : memref<32x96xbf16, #tpu.memory_space<vmem>>, vector<32x96xbf16>
    %cst = arith.constant dense<0.000000e+00> : vector<2x96xf32>
    %6 = tpu.matmul %4, %5, %cst {dimension_numbers = #tpu.dot_dimension_numbers<[1], [0], [0], [1], [0, 0, 1, 1], [], []>} : vector<2x32xbf16>, vector<32x96xbf16>, vector<2x96xf32> -> vector<2x96xf32>
    %c0_4 = arith.constant 0 : index
    %c0_5 = arith.constant 0 : index
    %7 = vector.load %arg4[%c0_4, %c0_5] : memref<1x96xf32, #tpu.memory_space<vmem>>, vector<1x96xf32>
    %8 = vector.broadcast %7 : vector<1x96xf32> to vector<2x96xf32>
    %9 = arith.addf %6, %8 : vector<2x96xf32>
    %c0_6 = arith.constant 0 : index
    %c0_7 = arith.constant 0 : index
    %c0_8 = arith.constant 0 : index
    %10 = vector.load %arg1[%c0_6, %c0_7, %c0_8] : memref<1x2x96xf32, #tpu.memory_space<vmem>>, vector<1x2x96xf32>
    %11 = vector.shape_cast %10 : vector<1x2x96xf32> to vector<2x96xf32>
    %12 = vector.extract_strided_slice %11 {offsets = [0, 0], sizes = [2, 32], strides = [1, 1]} : vector<2x96xf32> to vector<2x32xf32>
    %13 = vector.extract_strided_slice %9 {offsets = [0, 0], sizes = [2, 32], strides = [1, 1]} : vector<2x96xf32> to vector<2x32xf32>
    %14 = arith.addf %12, %13 : vector<2x32xf32>
    %15 = arith.negf %14 : vector<2x32xf32>
    %16 = math.exp %15 : vector<2x32xf32>
    %cst_9 = arith.constant 1.000000e+00 : f32
    %17 = vector.broadcast %cst_9 : f32 to vector<2x32xf32>
    %18 = arith.addf %17, %16 : vector<2x32xf32>
    %19 = arith.divf %17, %18 : vector<2x32xf32>
    %20 = vector.extract_strided_slice %11 {offsets = [0, 32], sizes = [2, 32], strides = [1, 1]} : vector<2x96xf32> to vector<2x32xf32>
    %21 = vector.extract_strided_slice %9 {offsets = [0, 32], sizes = [2, 32], strides = [1, 1]} : vector<2x96xf32> to vector<2x32xf32>
    %22 = arith.addf %20, %21 : vector<2x32xf32>
    %23 = arith.negf %22 : vector<2x32xf32>
    %24 = math.exp %23 : vector<2x32xf32>
    %cst_10 = arith.constant 1.000000e+00 : f32
    %25 = vector.broadcast %cst_10 : f32 to vector<2x32xf32>
    %26 = arith.addf %25, %24 : vector<2x32xf32>
    %27 = arith.divf %25, %26 : vector<2x32xf32>
    %28 = vector.extract_strided_slice %11 {offsets = [0, 64], sizes = [2, 32], strides = [1, 1]} : vector<2x96xf32> to vector<2x32xf32>
    %29 = vector.extract_strided_slice %9 {offsets = [0, 64], sizes = [2, 32], strides = [1, 1]} : vector<2x96xf32> to vector<2x32xf32>
    %30 = arith.mulf %19, %29 : vector<2x32xf32>
    %31 = arith.addf %28, %30 : vector<2x32xf32>
    %32 = math.tanh %31 : vector<2x32xf32>
    %cst_11 = arith.constant 1.000000e+00 : f32
    %33 = vector.broadcast %cst_11 : f32 to vector<2x32xf32>
    %34 = arith.subf %33, %27 : vector<2x32xf32>
    %35 = arith.mulf %34, %32 : vector<2x32xf32>
    %36 = arith.mulf %27, %3 : vector<2x32xf32>
    %37 = arith.addf %35, %36 : vector<2x32xf32>
    %c0_12 = arith.constant 0 : index
    %c0_13 = arith.constant 0 : index
    %38 = vector.load %arg6[%c0_12, %c0_13] : memref<2x32xf32, #tpu.memory_space<vmem>>, vector<2x32xf32>
    tpu.vector_store %arg6[%c0_12, %c0_13], %37 {strides = array<i32>} : memref<2x32xf32, #tpu.memory_space<vmem>>, vector<2x32xf32>,
    %c0_14 = arith.constant 0 : index
    %c0_15 = arith.constant 0 : index
    %39 = vector.load %arg5[%c0_14, %c0_15] : memref<2x32xf32, #tpu.memory_space<vmem>>, vector<2x32xf32>
    tpu.vector_store %arg5[%c0_14, %c0_15], %37 {strides = array<i32>} : memref<2x32xf32, #tpu.memory_space<vmem>>, vector<2x32xf32>,
    return
  }
  func.func @transform_0(%arg0: i32) -> (i32, i32, i32) {
    %c0_i32 = arith.constant 0 : i32
    %c0_i32_0 = arith.constant 0 : i32
    %c0_i32_1 = arith.constant 0 : i32
    return %arg0, %c0_i32, %c0_i32_0 : i32, i32, i32
  }
  func.func @transform_1(%arg0: i32) -> (i32, i32) {
    %c0_i32 = arith.constant 0 : i32
    %c0_i32_0 = arith.constant 0 : i32
    %c0_i32_1 = arith.constant 0 : i32
    return %c0_i32, %c0_i32_0 : i32, i32
  }
  func.func @transform_2(%arg0: i32) -> (i32, i32) {
    %c0_i32 = arith.constant 0 : i32
    %c0_i32_0 = arith.constant 0 : i32
    %c0_i32_1 = arith.constant 0 : i32
    return %c0_i32, %c0_i32_0 : i32, i32
  }
  func.func @transform_3(%arg0: i32) -> (i32, i32) {
    %c0_i32 = arith.constant 0 : i32
    %c0_i32_0 = arith.constant 0 : i32
    %c0_i32_1 = arith.constant 0 : i32
    return %c0_i32, %c0_i32_0 : i32, i32
  }
  func.func @transform_4(%arg0: i32) -> (i32, i32) {
    %c0_i32 = arith.constant 0 : i32
    %c0_i32_0 = arith.constant 0 : i32
    %c0_i32_1 = arith.constant 0 : i32
    return %c0_i32, %c0_i32_0 : i32, i32
  }
}

module attributes {stable_mosaic.version = 11 : i64} {
  func.func @_dense_kernel(%arg0: i32, %arg1: memref<36x16xbf16, #tpu.memory_space<vmem>>, %arg2: memref<16x96xbf16, #tpu.memory_space<vmem>>, %arg3: memref<1x96xf32, #tpu.memory_space<vmem>>, %arg4: memref<36x96xf32, #tpu.memory_space<vmem>>) attributes {dimension_semantics = [#tpu.dimension_semantics<parallel>], iteration_bounds = array<i64: 1>, scalar_prefetch = 0 : i64, scratch_operands = 0 : i64, tpu.core_type = #tpu.core_type<tc>, window_params = [{transform_indices = @transform_0, window_bounds = array<i64: 36, 16>}, {pipeline_mode = #tpu.pipeline_mode<synchronous>, transform_indices = @transform_1, window_bounds = array<i64: 16, 96>}, {pipeline_mode = #tpu.pipeline_mode<synchronous>, transform_indices = @transform_2, window_bounds = array<i64: 1, 96>}, {transform_indices = @transform_3, window_bounds = array<i64: 36, 96>}]} {
    %c0 = arith.constant 0 : index
    %c0_0 = arith.constant 0 : index
    %0 = vector.load %arg1[%c0, %c0_0] : memref<36x16xbf16, #tpu.memory_space<vmem>>, vector<36x16xbf16>
    %c0_1 = arith.constant 0 : index
    %c0_2 = arith.constant 0 : index
    %1 = vector.load %arg2[%c0_1, %c0_2] : memref<16x96xbf16, #tpu.memory_space<vmem>>, vector<16x96xbf16>
    %cst = arith.constant dense<0.000000e+00> : vector<36x96xf32>
    %2 = tpu.matmul %0, %1, %cst {dimension_numbers = #tpu.dot_dimension_numbers<[1], [0], [0], [1], [0, 0, 1, 1], [], []>} : vector<36x16xbf16>, vector<16x96xbf16>, vector<36x96xf32> -> vector<36x96xf32>
    %c0_3 = arith.constant 0 : index
    %c0_4 = arith.constant 0 : index
    %3 = vector.load %arg3[%c0_3, %c0_4] : memref<1x96xf32, #tpu.memory_space<vmem>>, vector<1x96xf32>
    %4 = vector.broadcast %3 : vector<1x96xf32> to vector<36x96xf32>
    %5 = arith.addf %2, %4 : vector<36x96xf32>
    %c0_5 = arith.constant 0 : index
    %c0_6 = arith.constant 0 : index
    %6 = vector.load %arg4[%c0_5, %c0_6] : memref<36x96xf32, #tpu.memory_space<vmem>>, vector<36x96xf32>
    tpu.vector_store %arg4[%c0_5, %c0_6], %5 {strides = array<i32>} : memref<36x96xf32, #tpu.memory_space<vmem>>, vector<36x96xf32>,
    return
  }
  func.func @transform_0(%arg0: i32) -> (i32, i32) {
    %c0_i32 = arith.constant 0 : i32
    %c0_i32_0 = arith.constant 0 : i32
    return %arg0, %c0_i32 : i32, i32
  }
  func.func @transform_1(%arg0: i32) -> (i32, i32) {
    %c0_i32 = arith.constant 0 : i32
    %c0_i32_0 = arith.constant 0 : i32
    %c0_i32_1 = arith.constant 0 : i32
    return %c0_i32, %c0_i32_0 : i32, i32
  }
  func.func @transform_2(%arg0: i32) -> (i32, i32) {
    %c0_i32 = arith.constant 0 : i32
    %c0_i32_0 = arith.constant 0 : i32
    %c0_i32_1 = arith.constant 0 : i32
    return %c0_i32, %c0_i32_0 : i32, i32
  }
  func.func @transform_3(%arg0: i32) -> (i32, i32) {
    %c0_i32 = arith.constant 0 : i32
    %c0_i32_0 = arith.constant 0 : i32
    return %arg0, %c0_i32 : i32, i32
  }
}

module attributes {stable_mosaic.version = 11 : i64} {
  func.func @_gru_kernel(%arg0: i32, %arg1: memref<1x6x96xf32, #tpu.memory_space<vmem>>, %arg2: memref<6x32xf32, #tpu.memory_space<vmem>>, %arg3: memref<32x96xbf16, #tpu.memory_space<vmem>>, %arg4: memref<1x96xf32, #tpu.memory_space<vmem>>, %arg5: memref<1x6x32xf32, #tpu.memory_space<vmem>>, %arg6: memref<6x32xf32, #tpu.memory_space<vmem>>) attributes {dimension_semantics = [#tpu.dimension_semantics<arbitrary>], iteration_bounds = array<i64: 6>, scalar_prefetch = 0 : i64, scratch_operands = 1 : i64, tpu.core_type = #tpu.core_type<tc>, window_params = [{transform_indices = @transform_0, window_bounds = array<i64: 1, 6, 96>}, {pipeline_mode = #tpu.pipeline_mode<synchronous>, transform_indices = @transform_1, window_bounds = array<i64: 6, 32>}, {pipeline_mode = #tpu.pipeline_mode<synchronous>, transform_indices = @transform_2, window_bounds = array<i64: 32, 96>}, {pipeline_mode = #tpu.pipeline_mode<synchronous>, transform_indices = @transform_3, window_bounds = array<i64: 1, 96>}, {transform_indices = @transform_4, window_bounds = array<i64: 1, 6, 32>}]} {
    %c0_i32 = arith.constant 0 : i32
    %0 = arith.cmpi eq, %arg0, %c0_i32 : i32
    %1 = arith.extui %0 : i1 to i32
    %c0_i32_0 = arith.constant 0 : i32
    %2 = arith.cmpi ne, %1, %c0_i32_0 : i32
    scf.if %2 {
      %c0_17 = arith.constant 0 : index
      %c0_18 = arith.constant 0 : index
      %42 = vector.load %arg2[%c0_17, %c0_18] : memref<6x32xf32, #tpu.memory_space<vmem>>, vector<6x32xf32>
      %c0_19 = arith.constant 0 : index
      %c0_20 = arith.constant 0 : index
      %43 = vector.load %arg6[%c0_19, %c0_20] : memref<6x32xf32, #tpu.memory_space<vmem>>, vector<6x32xf32>
      tpu.vector_store %arg6[%c0_19, %c0_20], %42 {strides = array<i32>} : memref<6x32xf32, #tpu.memory_space<vmem>>, vector<6x32xf32>,
    } else {
    }
    %c0 = arith.constant 0 : index
    %c0_1 = arith.constant 0 : index
    %3 = vector.load %arg6[%c0, %c0_1] : memref<6x32xf32, #tpu.memory_space<vmem>>, vector<6x32xf32>
    %4 = arith.truncf %3 : vector<6x32xf32> to vector<6x32xbf16>
    %c0_2 = arith.constant 0 : index
    %c0_3 = arith.constant 0 : index
    %5 = vector.load %arg3[%c0_2, %c0_3] : memref<32x96xbf16, #tpu.memory_space<vmem>>, vector<32x96xbf16>
    %cst = arith.constant dense<0.000000e+00> : vector<6x96xf32>
    %6 = tpu.matmul %4, %5, %cst {dimension_numbers = #tpu.dot_dimension_numbers<[1], [0], [0], [1], [0, 0, 1, 1], [], []>} : vector<6x32xbf16>, vector<32x96xbf16>, vector<6x96xf32> -> vector<6x96xf32>
    %c0_4 = arith.constant 0 : index
    %c0_5 = arith.constant 0 : index
    %7 = vector.load %arg4[%c0_4, %c0_5] : memref<1x96xf32, #tpu.memory_space<vmem>>, vector<1x96xf32>
    %8 = vector.broadcast %7 : vector<1x96xf32> to vector<6x96xf32>
    %9 = arith.addf %6, %8 : vector<6x96xf32>
    %c0_6 = arith.constant 0 : index
    %c0_7 = arith.constant 0 : index
    %c0_8 = arith.constant 0 : index
    %10 = vector.load %arg1[%c0_6, %c0_7, %c0_8] : memref<1x6x96xf32, #tpu.memory_space<vmem>>, vector<1x6x96xf32>
    %11 = vector.shape_cast %10 : vector<1x6x96xf32> to vector<6x96xf32>
    %12 = vector.extract_strided_slice %11 {offsets = [0, 0], sizes = [6, 32], strides = [1, 1]} : vector<6x96xf32> to vector<6x32xf32>
    %13 = vector.extract_strided_slice %9 {offsets = [0, 0], sizes = [6, 32], strides = [1, 1]} : vector<6x96xf32> to vector<6x32xf32>
    %14 = arith.addf %12, %13 : vector<6x32xf32>
    %15 = arith.negf %14 : vector<6x32xf32>
    %16 = math.exp %15 : vector<6x32xf32>
    %cst_9 = arith.constant 1.000000e+00 : f32
    %17 = vector.broadcast %cst_9 : f32 to vector<6x32xf32>
    %18 = arith.addf %17, %16 : vector<6x32xf32>
    %19 = arith.divf %17, %18 : vector<6x32xf32>
    %20 = vector.extract_strided_slice %11 {offsets = [0, 32], sizes = [6, 32], strides = [1, 1]} : vector<6x96xf32> to vector<6x32xf32>
    %21 = vector.extract_strided_slice %9 {offsets = [0, 32], sizes = [6, 32], strides = [1, 1]} : vector<6x96xf32> to vector<6x32xf32>
    %22 = arith.addf %20, %21 : vector<6x32xf32>
    %23 = arith.negf %22 : vector<6x32xf32>
    %24 = math.exp %23 : vector<6x32xf32>
    %cst_10 = arith.constant 1.000000e+00 : f32
    %25 = vector.broadcast %cst_10 : f32 to vector<6x32xf32>
    %26 = arith.addf %25, %24 : vector<6x32xf32>
    %27 = arith.divf %25, %26 : vector<6x32xf32>
    %28 = vector.extract_strided_slice %11 {offsets = [0, 64], sizes = [6, 32], strides = [1, 1]} : vector<6x96xf32> to vector<6x32xf32>
    %29 = vector.extract_strided_slice %9 {offsets = [0, 64], sizes = [6, 32], strides = [1, 1]} : vector<6x96xf32> to vector<6x32xf32>
    %30 = arith.mulf %19, %29 : vector<6x32xf32>
    %31 = arith.addf %28, %30 : vector<6x32xf32>
    %32 = math.tanh %31 : vector<6x32xf32>
    %cst_11 = arith.constant 1.000000e+00 : f32
    %33 = vector.broadcast %cst_11 : f32 to vector<6x32xf32>
    %34 = arith.subf %33, %27 : vector<6x32xf32>
    %35 = arith.mulf %34, %32 : vector<6x32xf32>
    %36 = arith.mulf %27, %3 : vector<6x32xf32>
    %37 = arith.addf %35, %36 : vector<6x32xf32>
    %c0_12 = arith.constant 0 : index
    %c0_13 = arith.constant 0 : index
    %38 = vector.load %arg6[%c0_12, %c0_13] : memref<6x32xf32, #tpu.memory_space<vmem>>, vector<6x32xf32>
    tpu.vector_store %arg6[%c0_12, %c0_13], %37 {strides = array<i32>} : memref<6x32xf32, #tpu.memory_space<vmem>>, vector<6x32xf32>,
    %c0_14 = arith.constant 0 : index
    %c0_15 = arith.constant 0 : index
    %c0_16 = arith.constant 0 : index
    %39 = vector.load %arg5[%c0_14, %c0_15, %c0_16] : memref<1x6x32xf32, #tpu.memory_space<vmem>>, vector<1x6x32xf32>
    %40 = vector.shape_cast %39 : vector<1x6x32xf32> to vector<6x32xf32>
    %41 = vector.shape_cast %37 : vector<6x32xf32> to vector<1x6x32xf32>
    tpu.vector_store %arg5[%c0_14, %c0_15, %c0_16], %41 {strides = array<i32>} : memref<1x6x32xf32, #tpu.memory_space<vmem>>, vector<1x6x32xf32>,
    return
  }
  func.func @transform_0(%arg0: i32) -> (i32, i32, i32) {
    %c0_i32 = arith.constant 0 : i32
    %c0_i32_0 = arith.constant 0 : i32
    %c0_i32_1 = arith.constant 0 : i32
    return %arg0, %c0_i32, %c0_i32_0 : i32, i32, i32
  }
  func.func @transform_1(%arg0: i32) -> (i32, i32) {
    %c0_i32 = arith.constant 0 : i32
    %c0_i32_0 = arith.constant 0 : i32
    %c0_i32_1 = arith.constant 0 : i32
    return %c0_i32, %c0_i32_0 : i32, i32
  }
  func.func @transform_2(%arg0: i32) -> (i32, i32) {
    %c0_i32 = arith.constant 0 : i32
    %c0_i32_0 = arith.constant 0 : i32
    %c0_i32_1 = arith.constant 0 : i32
    return %c0_i32, %c0_i32_0 : i32, i32
  }
  func.func @transform_3(%arg0: i32) -> (i32, i32) {
    %c0_i32 = arith.constant 0 : i32
    %c0_i32_0 = arith.constant 0 : i32
    %c0_i32_1 = arith.constant 0 : i32
    return %c0_i32, %c0_i32_0 : i32, i32
  }
  func.func @transform_4(%arg0: i32) -> (i32, i32, i32) {
    %c0_i32 = arith.constant 0 : i32
    %c0_i32_0 = arith.constant 0 : i32
    %c0_i32_1 = arith.constant 0 : i32
    return %arg0, %c0_i32, %c0_i32_0 : i32, i32, i32
  }
}

module attributes {stable_mosaic.version = 11 : i64} {
  func.func @_gen_attn_kernel(%arg0: i32, %arg1: memref<1x1x64xbf16, #tpu.memory_space<vmem>>, %arg2: memref<64x32xbf16, #tpu.memory_space<vmem>>, %arg3: memref<1x32xf32, #tpu.memory_space<vmem>>, %arg4: memref<1x3x32xbf16, #tpu.memory_space<vmem>>, %arg5: memref<1x3x32xbf16, #tpu.memory_space<vmem>>, %arg6: memref<1x1x3xf32, #tpu.memory_space<vmem>>, %arg7: memref<1x1x32xf32, #tpu.memory_space<vmem>>, %arg8: memref<1x1x3xf32, #tpu.memory_space<vmem>>) attributes {dimension_semantics = [#tpu.dimension_semantics<parallel>], iteration_bounds = array<i64: 2>, scalar_prefetch = 0 : i64, scratch_operands = 0 : i64, tpu.core_type = #tpu.core_type<tc>, window_params = [{transform_indices = @transform_0, window_bounds = array<i64: 1, 1, 64>}, {pipeline_mode = #tpu.pipeline_mode<synchronous>, transform_indices = @transform_1, window_bounds = array<i64: 64, 32>}, {pipeline_mode = #tpu.pipeline_mode<synchronous>, transform_indices = @transform_2, window_bounds = array<i64: 1, 32>}, {transform_indices = @transform_3, window_bounds = array<i64: 1, 3, 32>}, {transform_indices = @transform_4, window_bounds = array<i64: 1, 3, 32>}, {transform_indices = @transform_5, window_bounds = array<i64: 1, 1, 3>}, {transform_indices = @transform_6, window_bounds = array<i64: 1, 1, 32>}, {transform_indices = @transform_7, window_bounds = array<i64: 1, 1, 3>}]} {
    %c0 = arith.constant 0 : index
    %c0_0 = arith.constant 0 : index
    %c0_1 = arith.constant 0 : index
    %0 = vector.load %arg1[%c0, %c0_0, %c0_1] : memref<1x1x64xbf16, #tpu.memory_space<vmem>>, vector<1x1x64xbf16>
    %1 = vector.shape_cast %0 : vector<1x1x64xbf16> to vector<1x64xbf16>
    %c0_2 = arith.constant 0 : index
    %c0_3 = arith.constant 0 : index
    %2 = vector.load %arg2[%c0_2, %c0_3] : memref<64x32xbf16, #tpu.memory_space<vmem>>, vector<64x32xbf16>
    %cst = arith.constant dense<0.000000e+00> : vector<1x32xf32>
    %3 = tpu.matmul %1, %2, %cst {dimension_numbers = #tpu.dot_dimension_numbers<[1], [0], [0], [1], [0, 0, 1, 1], [], []>} : vector<1x64xbf16>, vector<64x32xbf16>, vector<1x32xf32> -> vector<1x32xf32>
    %c0_4 = arith.constant 0 : index
    %c0_5 = arith.constant 0 : index
    %4 = vector.load %arg3[%c0_4, %c0_5] : memref<1x32xf32, #tpu.memory_space<vmem>>, vector<1x32xf32>
    %5 = arith.addf %3, %4 : vector<1x32xf32>
    %6 = arith.truncf %5 : vector<1x32xf32> to vector<1x32xbf16>
    %c0_6 = arith.constant 0 : index
    %c0_7 = arith.constant 0 : index
    %c0_8 = arith.constant 0 : index
    %7 = vector.load %arg4[%c0_6, %c0_7, %c0_8] : memref<1x3x32xbf16, #tpu.memory_space<vmem>>, vector<1x3x32xbf16>
    %8 = vector.shape_cast %7 : vector<1x3x32xbf16> to vector<3x32xbf16>
    %c0_9 = arith.constant 0 : index
    %c0_10 = arith.constant 0 : index
    %c0_11 = arith.constant 0 : index
    %9 = vector.load %arg5[%c0_9, %c0_10, %c0_11] : memref<1x3x32xbf16, #tpu.memory_space<vmem>>, vector<1x3x32xbf16>
    %10 = vector.shape_cast %9 : vector<1x3x32xbf16> to vector<3x32xbf16>
    %c0_12 = arith.constant 0 : index
    %c0_13 = arith.constant 0 : index
    %c0_14 = arith.constant 0 : index
    %11 = vector.load %arg6[%c0_12, %c0_13, %c0_14] : memref<1x1x3xf32, #tpu.memory_space<vmem>>, vector<1x1x3xf32>
    %12 = vector.shape_cast %11 : vector<1x1x3xf32> to vector<1x3xf32>
    %cst_15 = arith.constant dense<0.000000e+00> : vector<1x3xf32>
    %13 = tpu.matmul %6, %8, %cst_15 {dimension_numbers = #tpu.dot_dimension_numbers<[1], [1], [0], [0], [0, 0, 1, 0], [], []>} : vector<1x32xbf16>, vector<3x32xbf16>, vector<1x3xf32> -> vector<1x3xf32>
    %cst_16 = arith.constant 0.000000e+00 : f32
    %14 = vector.broadcast %cst_16 : f32 to vector<1x3xf32>
    %15 = arith.cmpf ogt, %12, %14 : vector<1x3xf32>
    %cst_17 = arith.constant -1.000000e+09 : f32
    %16 = vector.broadcast %cst_17 : f32 to vector<1x3xf32>
    %17 = arith.select %15, %13, %16 : vector<1x3xi1>, vector<1x3xf32>
    %cst_18 = arith.constant dense<0xFF800000> : vector<1xf32>
    %18 = vector.multi_reduction <maximumf>, %17, %cst_18 [1] : vector<1x3xf32> to vector<1xf32>
    %cst_19 = arith.constant 0xFF800000 : f32
    %19 = vector.broadcast %cst_19 : f32 to vector<1xf32>
    %20 = arith.maximumf %19, %18 : vector<1xf32>
    %21 = vector.shape_cast %20 : vector<1xf32> to vector<1x1xf32>
    %22 = vector.broadcast %21 : vector<1x1xf32> to vector<1x3xf32>
    %23 = arith.subf %17, %22 : vector<1x3xf32>
    %24 = math.exp %23 : vector<1x3xf32>
    %cst_20 = arith.constant dense<0.000000e+00> : vector<1xf32>
    %25 = vector.multi_reduction <add>, %24, %cst_20 [1] : vector<1x3xf32> to vector<1xf32>
    %26 = vector.shape_cast %25 : vector<1xf32> to vector<1x1xf32>
    %27 = vector.broadcast %26 : vector<1x1xf32> to vector<1x3xf32>
    %28 = arith.divf %24, %27 : vector<1x3xf32>
    %29 = arith.truncf %28 : vector<1x3xf32> to vector<1x3xbf16>
    %cst_21 = arith.constant dense<0.000000e+00> : vector<1x32xf32>
    %30 = tpu.matmul %29, %10, %cst_21 {dimension_numbers = #tpu.dot_dimension_numbers<[1], [0], [0], [1], [0, 0, 1, 1], [], []>} : vector<1x3xbf16>, vector<3x32xbf16>, vector<1x32xf32> -> vector<1x32xf32>
    %c0_22 = arith.constant 0 : index
    %c0_23 = arith.constant 0 : index
    %c0_24 = arith.constant 0 : index
    %31 = vector.load %arg7[%c0_22, %c0_23, %c0_24] : memref<1x1x32xf32, #tpu.memory_space<vmem>>, vector<1x1x32xf32>
    %32 = vector.shape_cast %31 : vector<1x1x32xf32> to vector<1x32xf32>
    %33 = vector.shape_cast %30 : vector<1x32xf32> to vector<1x1x32xf32>
    tpu.vector_store %arg7[%c0_22, %c0_23, %c0_24], %33 {strides = array<i32>} : memref<1x1x32xf32, #tpu.memory_space<vmem>>, vector<1x1x32xf32>,
    %c0_25 = arith.constant 0 : index
    %c0_26 = arith.constant 0 : index
    %c0_27 = arith.constant 0 : index
    %34 = vector.load %arg8[%c0_25, %c0_26, %c0_27] : memref<1x1x3xf32, #tpu.memory_space<vmem>>, vector<1x1x3xf32>
    %35 = vector.shape_cast %34 : vector<1x1x3xf32> to vector<1x3xf32>
    %36 = vector.shape_cast %28 : vector<1x3xf32> to vector<1x1x3xf32>
    tpu.vector_store %arg8[%c0_25, %c0_26, %c0_27], %36 {strides = array<i32>} : memref<1x1x3xf32, #tpu.memory_space<vmem>>, vector<1x1x3xf32>,
    return
  }
  func.func @transform_0(%arg0: i32) -> (i32, i32, i32) {
    %c0_i32 = arith.constant 0 : i32
    %c0_i32_0 = arith.constant 0 : i32
    %c0_i32_1 = arith.constant 0 : i32
    return %arg0, %c0_i32, %c0_i32_0 : i32, i32, i32
  }
  func.func @transform_1(%arg0: i32) -> (i32, i32) {
    %c0_i32 = arith.constant 0 : i32
    %c0_i32_0 = arith.constant 0 : i32
    %c0_i32_1 = arith.constant 0 : i32
    return %c0_i32, %c0_i32_0 : i32, i32
  }
  func.func @transform_2(%arg0: i32) -> (i32, i32) {
    %c0_i32 = arith.constant 0 : i32
    %c0_i32_0 = arith.constant 0 : i32
    %c0_i32_1 = arith.constant 0 : i32
    return %c0_i32, %c0_i32_0 : i32, i32
  }
  func.func @transform_3(%arg0: i32) -> (i32, i32, i32) {
    %c0_i32 = arith.constant 0 : i32
    %c0_i32_0 = arith.constant 0 : i32
    %c0_i32_1 = arith.constant 0 : i32
    return %arg0, %c0_i32, %c0_i32_0 : i32, i32, i32
  }
  func.func @transform_4(%arg0: i32) -> (i32, i32, i32) {
    %c0_i32 = arith.constant 0 : i32
    %c0_i32_0 = arith.constant 0 : i32
    %c0_i32_1 = arith.constant 0 : i32
    return %arg0, %c0_i32, %c0_i32_0 : i32, i32, i32
  }
  func.func @transform_5(%arg0: i32) -> (i32, i32, i32) {
    %c0_i32 = arith.constant 0 : i32
    %c0_i32_0 = arith.constant 0 : i32
    %c0_i32_1 = arith.constant 0 : i32
    return %arg0, %c0_i32, %c0_i32_0 : i32, i32, i32
  }
  func.func @transform_6(%arg0: i32) -> (i32, i32, i32) {
    %c0_i32 = arith.constant 0 : i32
    %c0_i32_0 = arith.constant 0 : i32
    %c0_i32_1 = arith.constant 0 : i32
    return %arg0, %c0_i32, %c0_i32_0 : i32, i32, i32
  }
  func.func @transform_7(%arg0: i32) -> (i32, i32, i32) {
    %c0_i32 = arith.constant 0 : i32
    %c0_i32_0 = arith.constant 0 : i32
    %c0_i32_1 = arith.constant 0 : i32
    return %arg0, %c0_i32, %c0_i32_0 : i32, i32, i32
  }
}

module attributes {stable_mosaic.version = 11 : i64} {
  func.func @_attn_ctx_kernel(%arg0: i32, %arg1: memref<1x1x32xbf16, #tpu.memory_space<vmem>>, %arg2: memref<1x3x32xbf16, #tpu.memory_space<vmem>>, %arg3: memref<1x3x32xbf16, #tpu.memory_space<vmem>>, %arg4: memref<1x1x3xf32, #tpu.memory_space<vmem>>, %arg5: memref<1x1x32xf32, #tpu.memory_space<vmem>>) attributes {dimension_semantics = [#tpu.dimension_semantics<parallel>], iteration_bounds = array<i64: 2>, scalar_prefetch = 0 : i64, scratch_operands = 0 : i64, tpu.core_type = #tpu.core_type<tc>, window_params = [{transform_indices = @transform_0, window_bounds = array<i64: 1, 1, 32>}, {transform_indices = @transform_1, window_bounds = array<i64: 1, 3, 32>}, {transform_indices = @transform_2, window_bounds = array<i64: 1, 3, 32>}, {transform_indices = @transform_3, window_bounds = array<i64: 1, 1, 3>}, {transform_indices = @transform_4, window_bounds = array<i64: 1, 1, 32>}]} {
    %c0 = arith.constant 0 : index
    %c0_0 = arith.constant 0 : index
    %c0_1 = arith.constant 0 : index
    %0 = vector.load %arg1[%c0, %c0_0, %c0_1] : memref<1x1x32xbf16, #tpu.memory_space<vmem>>, vector<1x1x32xbf16>
    %1 = vector.shape_cast %0 : vector<1x1x32xbf16> to vector<1x32xbf16>
    %c0_2 = arith.constant 0 : index
    %c0_3 = arith.constant 0 : index
    %c0_4 = arith.constant 0 : index
    %2 = vector.load %arg2[%c0_2, %c0_3, %c0_4] : memref<1x3x32xbf16, #tpu.memory_space<vmem>>, vector<1x3x32xbf16>
    %3 = vector.shape_cast %2 : vector<1x3x32xbf16> to vector<3x32xbf16>
    %c0_5 = arith.constant 0 : index
    %c0_6 = arith.constant 0 : index
    %c0_7 = arith.constant 0 : index
    %4 = vector.load %arg3[%c0_5, %c0_6, %c0_7] : memref<1x3x32xbf16, #tpu.memory_space<vmem>>, vector<1x3x32xbf16>
    %5 = vector.shape_cast %4 : vector<1x3x32xbf16> to vector<3x32xbf16>
    %c0_8 = arith.constant 0 : index
    %c0_9 = arith.constant 0 : index
    %c0_10 = arith.constant 0 : index
    %6 = vector.load %arg4[%c0_8, %c0_9, %c0_10] : memref<1x1x3xf32, #tpu.memory_space<vmem>>, vector<1x1x3xf32>
    %7 = vector.shape_cast %6 : vector<1x1x3xf32> to vector<1x3xf32>
    %cst = arith.constant dense<0.000000e+00> : vector<1x3xf32>
    %8 = tpu.matmul %1, %3, %cst {dimension_numbers = #tpu.dot_dimension_numbers<[1], [1], [0], [0], [0, 0, 1, 0], [], []>} : vector<1x32xbf16>, vector<3x32xbf16>, vector<1x3xf32> -> vector<1x3xf32>
    %cst_11 = arith.constant 0.000000e+00 : f32
    %9 = vector.broadcast %cst_11 : f32 to vector<1x3xf32>
    %10 = arith.cmpf ogt, %7, %9 : vector<1x3xf32>
    %cst_12 = arith.constant -1.000000e+09 : f32
    %11 = vector.broadcast %cst_12 : f32 to vector<1x3xf32>
    %12 = arith.select %10, %8, %11 : vector<1x3xi1>, vector<1x3xf32>
    %cst_13 = arith.constant dense<0xFF800000> : vector<1xf32>
    %13 = vector.multi_reduction <maximumf>, %12, %cst_13 [1] : vector<1x3xf32> to vector<1xf32>
    %cst_14 = arith.constant 0xFF800000 : f32
    %14 = vector.broadcast %cst_14 : f32 to vector<1xf32>
    %15 = arith.maximumf %14, %13 : vector<1xf32>
    %16 = vector.shape_cast %15 : vector<1xf32> to vector<1x1xf32>
    %17 = vector.broadcast %16 : vector<1x1xf32> to vector<1x3xf32>
    %18 = arith.subf %12, %17 : vector<1x3xf32>
    %19 = math.exp %18 : vector<1x3xf32>
    %cst_15 = arith.constant dense<0.000000e+00> : vector<1xf32>
    %20 = vector.multi_reduction <add>, %19, %cst_15 [1] : vector<1x3xf32> to vector<1xf32>
    %21 = vector.shape_cast %20 : vector<1xf32> to vector<1x1xf32>
    %22 = vector.broadcast %21 : vector<1x1xf32> to vector<1x3xf32>
    %23 = arith.divf %19, %22 : vector<1x3xf32>
    %24 = arith.truncf %23 : vector<1x3xf32> to vector<1x3xbf16>
    %cst_16 = arith.constant dense<0.000000e+00> : vector<1x32xf32>
    %25 = tpu.matmul %24, %5, %cst_16 {dimension_numbers = #tpu.dot_dimension_numbers<[1], [0], [0], [1], [0, 0, 1, 1], [], []>} : vector<1x3xbf16>, vector<3x32xbf16>, vector<1x32xf32> -> vector<1x32xf32>
    %c0_17 = arith.constant 0 : index
    %c0_18 = arith.constant 0 : index
    %c0_19 = arith.constant 0 : index
    %26 = vector.load %arg5[%c0_17, %c0_18, %c0_19] : memref<1x1x32xf32, #tpu.memory_space<vmem>>, vector<1x1x32xf32>
    %27 = vector.shape_cast %26 : vector<1x1x32xf32> to vector<1x32xf32>
    %28 = vector.shape_cast %25 : vector<1x32xf32> to vector<1x1x32xf32>
    tpu.vector_store %arg5[%c0_17, %c0_18, %c0_19], %28 {strides = array<i32>} : memref<1x1x32xf32, #tpu.memory_space<vmem>>, vector<1x1x32xf32>,
    return
  }
  func.func @transform_0(%arg0: i32) -> (i32, i32, i32) {
    %c0_i32 = arith.constant 0 : i32
    %c0_i32_0 = arith.constant 0 : i32
    %c0_i32_1 = arith.constant 0 : i32
    return %arg0, %c0_i32, %c0_i32_0 : i32, i32, i32
  }
  func.func @transform_1(%arg0: i32) -> (i32, i32, i32) {
    %c0_i32 = arith.constant 0 : i32
    %c0_i32_0 = arith.constant 0 : i32
    %c0_i32_1 = arith.constant 0 : i32
    return %arg0, %c0_i32, %c0_i32_0 : i32, i32, i32
  }
  func.func @transform_2(%arg0: i32) -> (i32, i32, i32) {
    %c0_i32 = arith.constant 0 : i32
    %c0_i32_0 = arith.constant 0 : i32
    %c0_i32_1 = arith.constant 0 : i32
    return %arg0, %c0_i32, %c0_i32_0 : i32, i32, i32
  }
  func.func @transform_3(%arg0: i32) -> (i32, i32, i32) {
    %c0_i32 = arith.constant 0 : i32
    %c0_i32_0 = arith.constant 0 : i32
    %c0_i32_1 = arith.constant 0 : i32
    return %arg0, %c0_i32, %c0_i32_0 : i32, i32, i32
  }
  func.func @transform_4(%arg0: i32) -> (i32, i32, i32) {
    %c0_i32 = arith.constant 0 : i32
    %c0_i32_0 = arith.constant 0 : i32
    %c0_i32_1 = arith.constant 0 : i32
    return %arg0, %c0_i32, %c0_i32_0 : i32, i32, i32
  }
}

module attributes {stable_mosaic.version = 11 : i64} {
  func.func @_dense_kernel(%arg0: i32, %arg1: memref<12x48xbf16, #tpu.memory_space<vmem>>, %arg2: memref<48x96xbf16, #tpu.memory_space<vmem>>, %arg3: memref<1x96xf32, #tpu.memory_space<vmem>>, %arg4: memref<12x96xf32, #tpu.memory_space<vmem>>) attributes {dimension_semantics = [#tpu.dimension_semantics<parallel>], iteration_bounds = array<i64: 1>, scalar_prefetch = 0 : i64, scratch_operands = 0 : i64, tpu.core_type = #tpu.core_type<tc>, window_params = [{transform_indices = @transform_0, window_bounds = array<i64: 12, 48>}, {pipeline_mode = #tpu.pipeline_mode<synchronous>, transform_indices = @transform_1, window_bounds = array<i64: 48, 96>}, {pipeline_mode = #tpu.pipeline_mode<synchronous>, transform_indices = @transform_2, window_bounds = array<i64: 1, 96>}, {transform_indices = @transform_3, window_bounds = array<i64: 12, 96>}]} {
    %c0 = arith.constant 0 : index
    %c0_0 = arith.constant 0 : index
    %0 = vector.load %arg1[%c0, %c0_0] : memref<12x48xbf16, #tpu.memory_space<vmem>>, vector<12x48xbf16>
    %c0_1 = arith.constant 0 : index
    %c0_2 = arith.constant 0 : index
    %1 = vector.load %arg2[%c0_1, %c0_2] : memref<48x96xbf16, #tpu.memory_space<vmem>>, vector<48x96xbf16>
    %cst = arith.constant dense<0.000000e+00> : vector<12x96xf32>
    %2 = tpu.matmul %0, %1, %cst {dimension_numbers = #tpu.dot_dimension_numbers<[1], [0], [0], [1], [0, 0, 1, 1], [], []>} : vector<12x48xbf16>, vector<48x96xbf16>, vector<12x96xf32> -> vector<12x96xf32>
    %c0_3 = arith.constant 0 : index
    %c0_4 = arith.constant 0 : index
    %3 = vector.load %arg3[%c0_3, %c0_4] : memref<1x96xf32, #tpu.memory_space<vmem>>, vector<1x96xf32>
    %4 = vector.broadcast %3 : vector<1x96xf32> to vector<12x96xf32>
    %5 = arith.addf %2, %4 : vector<12x96xf32>
    %c0_5 = arith.constant 0 : index
    %c0_6 = arith.constant 0 : index
    %6 = vector.load %arg4[%c0_5, %c0_6] : memref<12x96xf32, #tpu.memory_space<vmem>>, vector<12x96xf32>
    tpu.vector_store %arg4[%c0_5, %c0_6], %5 {strides = array<i32>} : memref<12x96xf32, #tpu.memory_space<vmem>>, vector<12x96xf32>,
    return
  }
  func.func @transform_0(%arg0: i32) -> (i32, i32) {
    %c0_i32 = arith.constant 0 : i32
    %c0_i32_0 = arith.constant 0 : i32
    return %arg0, %c0_i32 : i32, i32
  }
  func.func @transform_1(%arg0: i32) -> (i32, i32) {
    %c0_i32 = arith.constant 0 : i32
    %c0_i32_0 = arith.constant 0 : i32
    %c0_i32_1 = arith.constant 0 : i32
    return %c0_i32, %c0_i32_0 : i32, i32
  }
  func.func @transform_2(%arg0: i32) -> (i32, i32) {
    %c0_i32 = arith.constant 0 : i32
    %c0_i32_0 = arith.constant 0 : i32
    %c0_i32_1 = arith.constant 0 : i32
    return %c0_i32, %c0_i32_0 : i32, i32
  }
  func.func @transform_3(%arg0: i32) -> (i32, i32) {
    %c0_i32 = arith.constant 0 : i32
    %c0_i32_0 = arith.constant 0 : i32
    return %arg0, %c0_i32 : i32, i32
  }
}

module attributes {stable_mosaic.version = 11 : i64} {
  func.func @_dense_kernel(%arg0: i32, %arg1: memref<2x64xbf16, #tpu.memory_space<vmem>>, %arg2: memref<64x32xbf16, #tpu.memory_space<vmem>>, %arg3: memref<1x32xf32, #tpu.memory_space<vmem>>, %arg4: memref<2x32xf32, #tpu.memory_space<vmem>>) attributes {dimension_semantics = [#tpu.dimension_semantics<parallel>], iteration_bounds = array<i64: 1>, scalar_prefetch = 0 : i64, scratch_operands = 0 : i64, tpu.core_type = #tpu.core_type<tc>, window_params = [{transform_indices = @transform_0, window_bounds = array<i64: 2, 64>}, {pipeline_mode = #tpu.pipeline_mode<synchronous>, transform_indices = @transform_1, window_bounds = array<i64: 64, 32>}, {pipeline_mode = #tpu.pipeline_mode<synchronous>, transform_indices = @transform_2, window_bounds = array<i64: 1, 32>}, {transform_indices = @transform_3, window_bounds = array<i64: 2, 32>}]} {
    %c0 = arith.constant 0 : index
    %c0_0 = arith.constant 0 : index
    %0 = vector.load %arg1[%c0, %c0_0] : memref<2x64xbf16, #tpu.memory_space<vmem>>, vector<2x64xbf16>
    %c0_1 = arith.constant 0 : index
    %c0_2 = arith.constant 0 : index
    %1 = vector.load %arg2[%c0_1, %c0_2] : memref<64x32xbf16, #tpu.memory_space<vmem>>, vector<64x32xbf16>
    %cst = arith.constant dense<0.000000e+00> : vector<2x32xf32>
    %2 = tpu.matmul %0, %1, %cst {dimension_numbers = #tpu.dot_dimension_numbers<[1], [0], [0], [1], [0, 0, 1, 1], [], []>} : vector<2x64xbf16>, vector<64x32xbf16>, vector<2x32xf32> -> vector<2x32xf32>
    %c0_3 = arith.constant 0 : index
    %c0_4 = arith.constant 0 : index
    %3 = vector.load %arg3[%c0_3, %c0_4] : memref<1x32xf32, #tpu.memory_space<vmem>>, vector<1x32xf32>
    %4 = vector.broadcast %3 : vector<1x32xf32> to vector<2x32xf32>
    %5 = arith.addf %2, %4 : vector<2x32xf32>
    %c0_5 = arith.constant 0 : index
    %c0_6 = arith.constant 0 : index
    %6 = vector.load %arg4[%c0_5, %c0_6] : memref<2x32xf32, #tpu.memory_space<vmem>>, vector<2x32xf32>
    tpu.vector_store %arg4[%c0_5, %c0_6], %5 {strides = array<i32>} : memref<2x32xf32, #tpu.memory_space<vmem>>, vector<2x32xf32>,
    return
  }
  func.func @transform_0(%arg0: i32) -> (i32, i32) {
    %c0_i32 = arith.constant 0 : i32
    %c0_i32_0 = arith.constant 0 : i32
    return %arg0, %c0_i32 : i32, i32
  }
  func.func @transform_1(%arg0: i32) -> (i32, i32) {
    %c0_i32 = arith.constant 0 : i32
    %c0_i32_0 = arith.constant 0 : i32
    %c0_i32_1 = arith.constant 0 : i32
    return %c0_i32, %c0_i32_0 : i32, i32
  }
  func.func @transform_2(%arg0: i32) -> (i32, i32) {
    %c0_i32 = arith.constant 0 : i32
    %c0_i32_0 = arith.constant 0 : i32
    %c0_i32_1 = arith.constant 0 : i32
    return %c0_i32, %c0_i32_0 : i32, i32
  }
  func.func @transform_3(%arg0: i32) -> (i32, i32) {
    %c0_i32 = arith.constant 0 : i32
    %c0_i32_0 = arith.constant 0 : i32
    return %arg0, %c0_i32 : i32, i32
  }
}

module attributes {stable_mosaic.version = 11 : i64} {
  func.func @_gru_kernel(%arg0: i32, %arg1: memref<1x2x96xf32, #tpu.memory_space<vmem>>, %arg2: memref<2x32xf32, #tpu.memory_space<vmem>>, %arg3: memref<32x96xbf16, #tpu.memory_space<vmem>>, %arg4: memref<1x96xf32, #tpu.memory_space<vmem>>, %arg5: memref<1x2x32xf32, #tpu.memory_space<vmem>>, %arg6: memref<2x32xf32, #tpu.memory_space<vmem>>) attributes {dimension_semantics = [#tpu.dimension_semantics<arbitrary>], iteration_bounds = array<i64: 6>, scalar_prefetch = 0 : i64, scratch_operands = 1 : i64, tpu.core_type = #tpu.core_type<tc>, window_params = [{transform_indices = @transform_0, window_bounds = array<i64: 1, 2, 96>}, {pipeline_mode = #tpu.pipeline_mode<synchronous>, transform_indices = @transform_1, window_bounds = array<i64: 2, 32>}, {pipeline_mode = #tpu.pipeline_mode<synchronous>, transform_indices = @transform_2, window_bounds = array<i64: 32, 96>}, {pipeline_mode = #tpu.pipeline_mode<synchronous>, transform_indices = @transform_3, window_bounds = array<i64: 1, 96>}, {transform_indices = @transform_4, window_bounds = array<i64: 1, 2, 32>}]} {
    %c0_i32 = arith.constant 0 : i32
    %0 = arith.cmpi eq, %arg0, %c0_i32 : i32
    %1 = arith.extui %0 : i1 to i32
    %c0_i32_0 = arith.constant 0 : i32
    %2 = arith.cmpi ne, %1, %c0_i32_0 : i32
    scf.if %2 {
      %c0_17 = arith.constant 0 : index
      %c0_18 = arith.constant 0 : index
      %42 = vector.load %arg2[%c0_17, %c0_18] : memref<2x32xf32, #tpu.memory_space<vmem>>, vector<2x32xf32>
      %c0_19 = arith.constant 0 : index
      %c0_20 = arith.constant 0 : index
      %43 = vector.load %arg6[%c0_19, %c0_20] : memref<2x32xf32, #tpu.memory_space<vmem>>, vector<2x32xf32>
      tpu.vector_store %arg6[%c0_19, %c0_20], %42 {strides = array<i32>} : memref<2x32xf32, #tpu.memory_space<vmem>>, vector<2x32xf32>,
    } else {
    }
    %c0 = arith.constant 0 : index
    %c0_1 = arith.constant 0 : index
    %3 = vector.load %arg6[%c0, %c0_1] : memref<2x32xf32, #tpu.memory_space<vmem>>, vector<2x32xf32>
    %4 = arith.truncf %3 : vector<2x32xf32> to vector<2x32xbf16>
    %c0_2 = arith.constant 0 : index
    %c0_3 = arith.constant 0 : index
    %5 = vector.load %arg3[%c0_2, %c0_3] : memref<32x96xbf16, #tpu.memory_space<vmem>>, vector<32x96xbf16>
    %cst = arith.constant dense<0.000000e+00> : vector<2x96xf32>
    %6 = tpu.matmul %4, %5, %cst {dimension_numbers = #tpu.dot_dimension_numbers<[1], [0], [0], [1], [0, 0, 1, 1], [], []>} : vector<2x32xbf16>, vector<32x96xbf16>, vector<2x96xf32> -> vector<2x96xf32>
    %c0_4 = arith.constant 0 : index
    %c0_5 = arith.constant 0 : index
    %7 = vector.load %arg4[%c0_4, %c0_5] : memref<1x96xf32, #tpu.memory_space<vmem>>, vector<1x96xf32>
    %8 = vector.broadcast %7 : vector<1x96xf32> to vector<2x96xf32>
    %9 = arith.addf %6, %8 : vector<2x96xf32>
    %c0_6 = arith.constant 0 : index
    %c0_7 = arith.constant 0 : index
    %c0_8 = arith.constant 0 : index
    %10 = vector.load %arg1[%c0_6, %c0_7, %c0_8] : memref<1x2x96xf32, #tpu.memory_space<vmem>>, vector<1x2x96xf32>
    %11 = vector.shape_cast %10 : vector<1x2x96xf32> to vector<2x96xf32>
    %12 = vector.extract_strided_slice %11 {offsets = [0, 0], sizes = [2, 32], strides = [1, 1]} : vector<2x96xf32> to vector<2x32xf32>
    %13 = vector.extract_strided_slice %9 {offsets = [0, 0], sizes = [2, 32], strides = [1, 1]} : vector<2x96xf32> to vector<2x32xf32>
    %14 = arith.addf %12, %13 : vector<2x32xf32>
    %15 = arith.negf %14 : vector<2x32xf32>
    %16 = math.exp %15 : vector<2x32xf32>
    %cst_9 = arith.constant 1.000000e+00 : f32
    %17 = vector.broadcast %cst_9 : f32 to vector<2x32xf32>
    %18 = arith.addf %17, %16 : vector<2x32xf32>
    %19 = arith.divf %17, %18 : vector<2x32xf32>
    %20 = vector.extract_strided_slice %11 {offsets = [0, 32], sizes = [2, 32], strides = [1, 1]} : vector<2x96xf32> to vector<2x32xf32>
    %21 = vector.extract_strided_slice %9 {offsets = [0, 32], sizes = [2, 32], strides = [1, 1]} : vector<2x96xf32> to vector<2x32xf32>
    %22 = arith.addf %20, %21 : vector<2x32xf32>
    %23 = arith.negf %22 : vector<2x32xf32>
    %24 = math.exp %23 : vector<2x32xf32>
    %cst_10 = arith.constant 1.000000e+00 : f32
    %25 = vector.broadcast %cst_10 : f32 to vector<2x32xf32>
    %26 = arith.addf %25, %24 : vector<2x32xf32>
    %27 = arith.divf %25, %26 : vector<2x32xf32>
    %28 = vector.extract_strided_slice %11 {offsets = [0, 64], sizes = [2, 32], strides = [1, 1]} : vector<2x96xf32> to vector<2x32xf32>
    %29 = vector.extract_strided_slice %9 {offsets = [0, 64], sizes = [2, 32], strides = [1, 1]} : vector<2x96xf32> to vector<2x32xf32>
    %30 = arith.mulf %19, %29 : vector<2x32xf32>
    %31 = arith.addf %28, %30 : vector<2x32xf32>
    %32 = math.tanh %31 : vector<2x32xf32>
    %cst_11 = arith.constant 1.000000e+00 : f32
    %33 = vector.broadcast %cst_11 : f32 to vector<2x32xf32>
    %34 = arith.subf %33, %27 : vector<2x32xf32>
    %35 = arith.mulf %34, %32 : vector<2x32xf32>
    %36 = arith.mulf %27, %3 : vector<2x32xf32>
    %37 = arith.addf %35, %36 : vector<2x32xf32>
    %c0_12 = arith.constant 0 : index
    %c0_13 = arith.constant 0 : index
    %38 = vector.load %arg6[%c0_12, %c0_13] : memref<2x32xf32, #tpu.memory_space<vmem>>, vector<2x32xf32>
    tpu.vector_store %arg6[%c0_12, %c0_13], %37 {strides = array<i32>} : memref<2x32xf32, #tpu.memory_space<vmem>>, vector<2x32xf32>,
    %c0_14 = arith.constant 0 : index
    %c0_15 = arith.constant 0 : index
    %c0_16 = arith.constant 0 : index
    %39 = vector.load %arg5[%c0_14, %c0_15, %c0_16] : memref<1x2x32xf32, #tpu.memory_space<vmem>>, vector<1x2x32xf32>
    %40 = vector.shape_cast %39 : vector<1x2x32xf32> to vector<2x32xf32>
    %41 = vector.shape_cast %37 : vector<2x32xf32> to vector<1x2x32xf32>
    tpu.vector_store %arg5[%c0_14, %c0_15, %c0_16], %41 {strides = array<i32>} : memref<1x2x32xf32, #tpu.memory_space<vmem>>, vector<1x2x32xf32>,
    return
  }
  func.func @transform_0(%arg0: i32) -> (i32, i32, i32) {
    %c0_i32 = arith.constant 0 : i32
    %c0_i32_0 = arith.constant 0 : i32
    %c0_i32_1 = arith.constant 0 : i32
    return %arg0, %c0_i32, %c0_i32_0 : i32, i32, i32
  }
  func.func @transform_1(%arg0: i32) -> (i32, i32) {
    %c0_i32 = arith.constant 0 : i32
    %c0_i32_0 = arith.constant 0 : i32
    %c0_i32_1 = arith.constant 0 : i32
    return %c0_i32, %c0_i32_0 : i32, i32
  }
  func.func @transform_2(%arg0: i32) -> (i32, i32) {
    %c0_i32 = arith.constant 0 : i32
    %c0_i32_0 = arith.constant 0 : i32
    %c0_i32_1 = arith.constant 0 : i32
    return %c0_i32, %c0_i32_0 : i32, i32
  }
  func.func @transform_3(%arg0: i32) -> (i32, i32) {
    %c0_i32 = arith.constant 0 : i32
    %c0_i32_0 = arith.constant 0 : i32
    %c0_i32_1 = arith.constant 0 : i32
    return %c0_i32, %c0_i32_0 : i32, i32
  }
  func.func @transform_4(%arg0: i32) -> (i32, i32, i32) {
    %c0_i32 = arith.constant 0 : i32
    %c0_i32_0 = arith.constant 0 : i32
    %c0_i32_1 = arith.constant 0 : i32
    return %arg0, %c0_i32, %c0_i32_0 : i32, i32, i32
  }
}

module attributes {stable_mosaic.version = 11 : i64} {
  func.func @_attn_ctx_kernel(%arg0: i32, %arg1: memref<1x6x32xbf16, #tpu.memory_space<vmem>>, %arg2: memref<1x8x32xbf16, #tpu.memory_space<vmem>>, %arg3: memref<1x8x32xbf16, #tpu.memory_space<vmem>>, %arg4: memref<1x1x8xf32, #tpu.memory_space<vmem>>, %arg5: memref<1x6x32xf32, #tpu.memory_space<vmem>>) attributes {dimension_semantics = [#tpu.dimension_semantics<parallel>], iteration_bounds = array<i64: 2>, scalar_prefetch = 0 : i64, scratch_operands = 0 : i64, tpu.core_type = #tpu.core_type<tc>, window_params = [{transform_indices = @transform_0, window_bounds = array<i64: 1, 6, 32>}, {transform_indices = @transform_1, window_bounds = array<i64: 1, 8, 32>}, {transform_indices = @transform_2, window_bounds = array<i64: 1, 8, 32>}, {transform_indices = @transform_3, window_bounds = array<i64: 1, 1, 8>}, {transform_indices = @transform_4, window_bounds = array<i64: 1, 6, 32>}]} {
    %c0 = arith.constant 0 : index
    %c0_0 = arith.constant 0 : index
    %c0_1 = arith.constant 0 : index
    %0 = vector.load %arg1[%c0, %c0_0, %c0_1] : memref<1x6x32xbf16, #tpu.memory_space<vmem>>, vector<1x6x32xbf16>
    %1 = vector.shape_cast %0 : vector<1x6x32xbf16> to vector<6x32xbf16>
    %c0_2 = arith.constant 0 : index
    %c0_3 = arith.constant 0 : index
    %c0_4 = arith.constant 0 : index
    %2 = vector.load %arg2[%c0_2, %c0_3, %c0_4] : memref<1x8x32xbf16, #tpu.memory_space<vmem>>, vector<1x8x32xbf16>
    %3 = vector.shape_cast %2 : vector<1x8x32xbf16> to vector<8x32xbf16>
    %c0_5 = arith.constant 0 : index
    %c0_6 = arith.constant 0 : index
    %c0_7 = arith.constant 0 : index
    %4 = vector.load %arg3[%c0_5, %c0_6, %c0_7] : memref<1x8x32xbf16, #tpu.memory_space<vmem>>, vector<1x8x32xbf16>
    %5 = vector.shape_cast %4 : vector<1x8x32xbf16> to vector<8x32xbf16>
    %c0_8 = arith.constant 0 : index
    %c0_9 = arith.constant 0 : index
    %c0_10 = arith.constant 0 : index
    %6 = vector.load %arg4[%c0_8, %c0_9, %c0_10] : memref<1x1x8xf32, #tpu.memory_space<vmem>>, vector<1x1x8xf32>
    %7 = vector.shape_cast %6 : vector<1x1x8xf32> to vector<1x8xf32>
    %cst = arith.constant dense<0.000000e+00> : vector<6x8xf32>
    %8 = tpu.matmul %1, %3, %cst {dimension_numbers = #tpu.dot_dimension_numbers<[1], [1], [0], [0], [0, 0, 1, 0], [], []>} : vector<6x32xbf16>, vector<8x32xbf16>, vector<6x8xf32> -> vector<6x8xf32>
    %9 = vector.shape_cast %7 : vector<1x8xf32> to vector<1x8xf32>
    %10 = vector.broadcast %9 : vector<1x8xf32> to vector<6x8xf32>
    %cst_11 = arith.constant 0.000000e+00 : f32
    %11 = vector.broadcast %cst_11 : f32 to vector<6x8xf32>
    %12 = arith.cmpf ogt, %10, %11 : vector<6x8xf32>
    %cst_12 = arith.constant -1.000000e+09 : f32
    %13 = vector.broadcast %cst_12 : f32 to vector<6x8xf32>
    %14 = arith.select %12, %8, %13 : vector<6x8xi1>, vector<6x8xf32>
    %cst_13 = arith.constant dense<0xFF800000> : vector<6xf32>
    %15 = vector.multi_reduction <maximumf>, %14, %cst_13 [1] : vector<6x8xf32> to vector<6xf32>
    %cst_14 = arith.constant 0xFF800000 : f32
    %16 = vector.broadcast %cst_14 : f32 to vector<6xf32>
    %17 = arith.maximumf %16, %15 : vector<6xf32>
    %18 = vector.shape_cast %17 : vector<6xf32> to vector<6x1xf32>
    %19 = vector.broadcast %18 : vector<6x1xf32> to vector<6x8xf32>
    %20 = arith.subf %14, %19 : vector<6x8xf32>
    %21 = math.exp %20 : vector<6x8xf32>
    %cst_15 = arith.constant dense<0.000000e+00> : vector<6xf32>
    %22 = vector.multi_reduction <add>, %21, %cst_15 [1] : vector<6x8xf32> to vector<6xf32>
    %23 = vector.shape_cast %22 : vector<6xf32> to vector<6x1xf32>
    %24 = vector.broadcast %23 : vector<6x1xf32> to vector<6x8xf32>
    %25 = arith.divf %21, %24 : vector<6x8xf32>
    %26 = arith.truncf %25 : vector<6x8xf32> to vector<6x8xbf16>
    %cst_16 = arith.constant dense<0.000000e+00> : vector<6x32xf32>
    %27 = tpu.matmul %26, %5, %cst_16 {dimension_numbers = #tpu.dot_dimension_numbers<[1], [0], [0], [1], [0, 0, 1, 1], [], []>} : vector<6x8xbf16>, vector<8x32xbf16>, vector<6x32xf32> -> vector<6x32xf32>
    %c0_17 = arith.constant 0 : index
    %c0_18 = arith.constant 0 : index
    %c0_19 = arith.constant 0 : index
    %28 = vector.load %arg5[%c0_17, %c0_18, %c0_19] : memref<1x6x32xf32, #tpu.memory_space<vmem>>, vector<1x6x32xf32>
    %29 = vector.shape_cast %28 : vector<1x6x32xf32> to vector<6x32xf32>
    %30 = vector.shape_cast %27 : vector<6x32xf32> to vector<1x6x32xf32>
    tpu.vector_store %arg5[%c0_17, %c0_18, %c0_19], %30 {strides = array<i32>} : memref<1x6x32xf32, #tpu.memory_space<vmem>>, vector<1x6x32xf32>,
    return
  }
  func.func @transform_0(%arg0: i32) -> (i32, i32, i32) {
    %c0_i32 = arith.constant 0 : i32
    %c0_i32_0 = arith.constant 0 : i32
    %c0_i32_1 = arith.constant 0 : i32
    return %arg0, %c0_i32, %c0_i32_0 : i32, i32, i32
  }
  func.func @transform_1(%arg0: i32) -> (i32, i32, i32) {
    %c0_i32 = arith.constant 0 : i32
    %c0_i32_0 = arith.constant 0 : i32
    %c0_i32_1 = arith.constant 0 : i32
    return %arg0, %c0_i32, %c0_i32_0 : i32, i32, i32
  }
  func.func @transform_2(%arg0: i32) -> (i32, i32, i32) {
    %c0_i32 = arith.constant 0 : i32
    %c0_i32_0 = arith.constant 0 : i32
    %c0_i32_1 = arith.constant 0 : i32
    return %arg0, %c0_i32, %c0_i32_0 : i32, i32, i32
  }
  func.func @transform_3(%arg0: i32) -> (i32, i32, i32) {
    %c0_i32 = arith.constant 0 : i32
    %c0_i32_0 = arith.constant 0 : i32
    %c0_i32_1 = arith.constant 0 : i32
    return %arg0, %c0_i32, %c0_i32_0 : i32, i32, i32
  }
  func.func @transform_4(%arg0: i32) -> (i32, i32, i32) {
    %c0_i32 = arith.constant 0 : i32
    %c0_i32_0 = arith.constant 0 : i32
    %c0_i32_1 = arith.constant 0 : i32
    return %arg0, %c0_i32, %c0_i32_0 : i32, i32, i32
  }
}

module attributes {stable_mosaic.version = 11 : i64} {
  func.func @_attn_wts_kernel(%arg0: i32, %arg1: memref<1x6x32xbf16, #tpu.memory_space<vmem>>, %arg2: memref<1x18x32xbf16, #tpu.memory_space<vmem>>, %arg3: memref<1x18x32xbf16, #tpu.memory_space<vmem>>, %arg4: memref<1x1x18xf32, #tpu.memory_space<vmem>>, %arg5: memref<1x6x32xf32, #tpu.memory_space<vmem>>, %arg6: memref<1x6x18xf32, #tpu.memory_space<vmem>>) attributes {dimension_semantics = [#tpu.dimension_semantics<parallel>], iteration_bounds = array<i64: 2>, scalar_prefetch = 0 : i64, scratch_operands = 0 : i64, tpu.core_type = #tpu.core_type<tc>, window_params = [{transform_indices = @transform_0, window_bounds = array<i64: 1, 6, 32>}, {transform_indices = @transform_1, window_bounds = array<i64: 1, 18, 32>}, {transform_indices = @transform_2, window_bounds = array<i64: 1, 18, 32>}, {transform_indices = @transform_3, window_bounds = array<i64: 1, 1, 18>}, {transform_indices = @transform_4, window_bounds = array<i64: 1, 6, 32>}, {transform_indices = @transform_5, window_bounds = array<i64: 1, 6, 18>}]} {
    %c0 = arith.constant 0 : index
    %c0_0 = arith.constant 0 : index
    %c0_1 = arith.constant 0 : index
    %0 = vector.load %arg1[%c0, %c0_0, %c0_1] : memref<1x6x32xbf16, #tpu.memory_space<vmem>>, vector<1x6x32xbf16>
    %1 = vector.shape_cast %0 : vector<1x6x32xbf16> to vector<6x32xbf16>
    %c0_2 = arith.constant 0 : index
    %c0_3 = arith.constant 0 : index
    %c0_4 = arith.constant 0 : index
    %2 = vector.load %arg2[%c0_2, %c0_3, %c0_4] : memref<1x18x32xbf16, #tpu.memory_space<vmem>>, vector<1x18x32xbf16>
    %3 = vector.shape_cast %2 : vector<1x18x32xbf16> to vector<18x32xbf16>
    %c0_5 = arith.constant 0 : index
    %c0_6 = arith.constant 0 : index
    %c0_7 = arith.constant 0 : index
    %4 = vector.load %arg3[%c0_5, %c0_6, %c0_7] : memref<1x18x32xbf16, #tpu.memory_space<vmem>>, vector<1x18x32xbf16>
    %5 = vector.shape_cast %4 : vector<1x18x32xbf16> to vector<18x32xbf16>
    %c0_8 = arith.constant 0 : index
    %c0_9 = arith.constant 0 : index
    %c0_10 = arith.constant 0 : index
    %6 = vector.load %arg4[%c0_8, %c0_9, %c0_10] : memref<1x1x18xf32, #tpu.memory_space<vmem>>, vector<1x1x18xf32>
    %7 = vector.shape_cast %6 : vector<1x1x18xf32> to vector<1x18xf32>
    %cst = arith.constant dense<0.000000e+00> : vector<6x18xf32>
    %8 = tpu.matmul %1, %3, %cst {dimension_numbers = #tpu.dot_dimension_numbers<[1], [1], [0], [0], [0, 0, 1, 0], [], []>} : vector<6x32xbf16>, vector<18x32xbf16>, vector<6x18xf32> -> vector<6x18xf32>
    %9 = vector.shape_cast %7 : vector<1x18xf32> to vector<1x18xf32>
    %10 = vector.broadcast %9 : vector<1x18xf32> to vector<6x18xf32>
    %cst_11 = arith.constant 0.000000e+00 : f32
    %11 = vector.broadcast %cst_11 : f32 to vector<6x18xf32>
    %12 = arith.cmpf ogt, %10, %11 : vector<6x18xf32>
    %cst_12 = arith.constant -1.000000e+09 : f32
    %13 = vector.broadcast %cst_12 : f32 to vector<6x18xf32>
    %14 = arith.select %12, %8, %13 : vector<6x18xi1>, vector<6x18xf32>
    %cst_13 = arith.constant dense<0xFF800000> : vector<6xf32>
    %15 = vector.multi_reduction <maximumf>, %14, %cst_13 [1] : vector<6x18xf32> to vector<6xf32>
    %cst_14 = arith.constant 0xFF800000 : f32
    %16 = vector.broadcast %cst_14 : f32 to vector<6xf32>
    %17 = arith.maximumf %16, %15 : vector<6xf32>
    %18 = vector.shape_cast %17 : vector<6xf32> to vector<6x1xf32>
    %19 = vector.broadcast %18 : vector<6x1xf32> to vector<6x18xf32>
    %20 = arith.subf %14, %19 : vector<6x18xf32>
    %21 = math.exp %20 : vector<6x18xf32>
    %cst_15 = arith.constant dense<0.000000e+00> : vector<6xf32>
    %22 = vector.multi_reduction <add>, %21, %cst_15 [1] : vector<6x18xf32> to vector<6xf32>
    %23 = vector.shape_cast %22 : vector<6xf32> to vector<6x1xf32>
    %24 = vector.broadcast %23 : vector<6x1xf32> to vector<6x18xf32>
    %25 = arith.divf %21, %24 : vector<6x18xf32>
    %26 = arith.truncf %25 : vector<6x18xf32> to vector<6x18xbf16>
    %cst_16 = arith.constant dense<0.000000e+00> : vector<6x32xf32>
    %27 = tpu.matmul %26, %5, %cst_16 {dimension_numbers = #tpu.dot_dimension_numbers<[1], [0], [0], [1], [0, 0, 1, 1], [], []>} : vector<6x18xbf16>, vector<18x32xbf16>, vector<6x32xf32> -> vector<6x32xf32>
    %c0_17 = arith.constant 0 : index
    %c0_18 = arith.constant 0 : index
    %c0_19 = arith.constant 0 : index
    %28 = vector.load %arg5[%c0_17, %c0_18, %c0_19] : memref<1x6x32xf32, #tpu.memory_space<vmem>>, vector<1x6x32xf32>
    %29 = vector.shape_cast %28 : vector<1x6x32xf32> to vector<6x32xf32>
    %30 = vector.shape_cast %27 : vector<6x32xf32> to vector<1x6x32xf32>
    tpu.vector_store %arg5[%c0_17, %c0_18, %c0_19], %30 {strides = array<i32>} : memref<1x6x32xf32, #tpu.memory_space<vmem>>, vector<1x6x32xf32>,
    %c0_20 = arith.constant 0 : index
    %c0_21 = arith.constant 0 : index
    %c0_22 = arith.constant 0 : index
    %31 = vector.load %arg6[%c0_20, %c0_21, %c0_22] : memref<1x6x18xf32, #tpu.memory_space<vmem>>, vector<1x6x18xf32>
    %32 = vector.shape_cast %31 : vector<1x6x18xf32> to vector<6x18xf32>
    %33 = vector.shape_cast %25 : vector<6x18xf32> to vector<1x6x18xf32>
    tpu.vector_store %arg6[%c0_20, %c0_21, %c0_22], %33 {strides = array<i32>} : memref<1x6x18xf32, #tpu.memory_space<vmem>>, vector<1x6x18xf32>,
    return
  }
  func.func @transform_0(%arg0: i32) -> (i32, i32, i32) {
    %c0_i32 = arith.constant 0 : i32
    %c0_i32_0 = arith.constant 0 : i32
    %c0_i32_1 = arith.constant 0 : i32
    return %arg0, %c0_i32, %c0_i32_0 : i32, i32, i32
  }
  func.func @transform_1(%arg0: i32) -> (i32, i32, i32) {
    %c0_i32 = arith.constant 0 : i32
    %c0_i32_0 = arith.constant 0 : i32
    %c0_i32_1 = arith.constant 0 : i32
    return %arg0, %c0_i32, %c0_i32_0 : i32, i32, i32
  }
  func.func @transform_2(%arg0: i32) -> (i32, i32, i32) {
    %c0_i32 = arith.constant 0 : i32
    %c0_i32_0 = arith.constant 0 : i32
    %c0_i32_1 = arith.constant 0 : i32
    return %arg0, %c0_i32, %c0_i32_0 : i32, i32, i32
  }
  func.func @transform_3(%arg0: i32) -> (i32, i32, i32) {
    %c0_i32 = arith.constant 0 : i32
    %c0_i32_0 = arith.constant 0 : i32
    %c0_i32_1 = arith.constant 0 : i32
    return %arg0, %c0_i32, %c0_i32_0 : i32, i32, i32
  }
  func.func @transform_4(%arg0: i32) -> (i32, i32, i32) {
    %c0_i32 = arith.constant 0 : i32
    %c0_i32_0 = arith.constant 0 : i32
    %c0_i32_1 = arith.constant 0 : i32
    return %arg0, %c0_i32, %c0_i32_0 : i32, i32, i32
  }
  func.func @transform_5(%arg0: i32) -> (i32, i32, i32) {
    %c0_i32 = arith.constant 0 : i32
    %c0_i32_0 = arith.constant 0 : i32
    %c0_i32_1 = arith.constant 0 : i32
    return %arg0, %c0_i32, %c0_i32_0 : i32, i32, i32
  }
}

module attributes {stable_mosaic.version = 11 : i64} {
  func.func @_copy_mix_kernel(%arg0: i32, %arg1: memref<1x6x64xf32, #tpu.memory_space<vmem>>, %arg2: memref<1x6x1xf32, #tpu.memory_space<vmem>>, %arg3: memref<1x6x18xf32, #tpu.memory_space<vmem>>, %arg4: memref<1x1x18xi32, #tpu.memory_space<vmem>>, %arg5: memref<1x6x68xf32, #tpu.memory_space<vmem>>) attributes {dimension_semantics = [#tpu.dimension_semantics<parallel>], iteration_bounds = array<i64: 2>, scalar_prefetch = 0 : i64, scratch_operands = 0 : i64, tpu.core_type = #tpu.core_type<tc>, window_params = [{transform_indices = @transform_0, window_bounds = array<i64: 1, 6, 64>}, {transform_indices = @transform_1, window_bounds = array<i64: 1, 6, 1>}, {transform_indices = @transform_2, window_bounds = array<i64: 1, 6, 18>}, {transform_indices = @transform_3, window_bounds = array<i64: 1, 1, 18>}, {transform_indices = @transform_4, window_bounds = array<i64: 1, 6, 68>}]} {
    %c0 = arith.constant 0 : index
    %c0_0 = arith.constant 0 : index
    %c0_1 = arith.constant 0 : index
    %0 = vector.load %arg1[%c0, %c0_0, %c0_1] : memref<1x6x64xf32, #tpu.memory_space<vmem>>, vector<1x6x64xf32>
    %1 = vector.shape_cast %0 : vector<1x6x64xf32> to vector<6x64xf32>
    %c0_2 = arith.constant 0 : index
    %c0_3 = arith.constant 0 : index
    %c0_4 = arith.constant 0 : index
    %2 = vector.load %arg2[%c0_2, %c0_3, %c0_4] : memref<1x6x1xf32, #tpu.memory_space<vmem>>, vector<1x6x1xf32>
    %3 = vector.shape_cast %2 : vector<1x6x1xf32> to vector<6x1xf32>
    %c0_5 = arith.constant 0 : index
    %c0_6 = arith.constant 0 : index
    %c0_7 = arith.constant 0 : index
    %4 = vector.load %arg3[%c0_5, %c0_6, %c0_7] : memref<1x6x18xf32, #tpu.memory_space<vmem>>, vector<1x6x18xf32>
    %5 = vector.shape_cast %4 : vector<1x6x18xf32> to vector<6x18xf32>
    %c0_8 = arith.constant 0 : index
    %c0_9 = arith.constant 0 : index
    %c0_10 = arith.constant 0 : index
    %6 = vector.load %arg4[%c0_8, %c0_9, %c0_10] : memref<1x1x18xi32, #tpu.memory_space<vmem>>, vector<1x1x18xi32>
    %7 = vector.shape_cast %6 : vector<1x1x18xi32> to vector<1x18xi32>
    %8 = tpu.iota {dimensions = array<i32: 0>} : vector<68x18xi32>
    %9 = vector.broadcast %7 : vector<1x18xi32> to vector<68x18xi32>
    %10 = arith.cmpi eq, %8, %9 : vector<68x18xi32>
    %11 = arith.extui %10 : vector<68x18xi1> to vector<68x18xi32>
    %12 = arith.sitofp %11 : vector<68x18xi32> to vector<68x18xf32>
    %cst = arith.constant dense<0.000000e+00> : vector<6x68xf32>
    %13 = tpu.matmul %5, %12, %cst {dimension_numbers = #tpu.dot_dimension_numbers<[1], [1], [0], [0], [0, 0, 1, 0], [], []>} : vector<6x18xf32>, vector<68x18xf32>, vector<6x68xf32> -> vector<6x68xf32>
    %cst_11 = arith.constant 1.000000e+00 : f32
    %14 = vector.broadcast %cst_11 : f32 to vector<6x1xf32>
    %15 = arith.subf %14, %3 : vector<6x1xf32>
    %16 = vector.broadcast %15 : vector<6x1xf32> to vector<6x64xf32>
    %17 = arith.mulf %1, %16 : vector<6x64xf32>
    %cst_12 = arith.constant 0.000000e+00 : f32
    %18 = vector.broadcast %cst_12 : f32 to vector<6x4xf32>
    %19 = tpu.concatenate %17, %18 in 1 : vector<6x64xf32>, vector<6x4xf32> -> vector<6x68xf32>
    %20 = vector.broadcast %3 : vector<6x1xf32> to vector<6x68xf32>
    %21 = arith.mulf %13, %20 : vector<6x68xf32>
    %22 = arith.addf %19, %21 : vector<6x68xf32>
    %c0_13 = arith.constant 0 : index
    %c0_14 = arith.constant 0 : index
    %c0_15 = arith.constant 0 : index
    %23 = vector.load %arg5[%c0_13, %c0_14, %c0_15] : memref<1x6x68xf32, #tpu.memory_space<vmem>>, vector<1x6x68xf32>
    %24 = vector.shape_cast %23 : vector<1x6x68xf32> to vector<6x68xf32>
    %25 = vector.shape_cast %22 : vector<6x68xf32> to vector<1x6x68xf32>
    tpu.vector_store %arg5[%c0_13, %c0_14, %c0_15], %25 {strides = array<i32>} : memref<1x6x68xf32, #tpu.memory_space<vmem>>, vector<1x6x68xf32>,
    return
  }
  func.func @transform_0(%arg0: i32) -> (i32, i32, i32) {
    %c0_i32 = arith.constant 0 : i32
    %c0_i32_0 = arith.constant 0 : i32
    %c0_i32_1 = arith.constant 0 : i32
    return %arg0, %c0_i32, %c0_i32_0 : i32, i32, i32
  }
  func.func @transform_1(%arg0: i32) -> (i32, i32, i32) {
    %c0_i32 = arith.constant 0 : i32
    %c0_i32_0 = arith.constant 0 : i32
    %c0_i32_1 = arith.constant 0 : i32
    return %arg0, %c0_i32, %c0_i32_0 : i32, i32, i32
  }
  func.func @transform_2(%arg0: i32) -> (i32, i32, i32) {
    %c0_i32 = arith.constant 0 : i32
    %c0_i32_0 = arith.constant 0 : i32
    %c0_i32_1 = arith.constant 0 : i32
    return %arg0, %c0_i32, %c0_i32_0 : i32, i32, i32
  }
  func.func @transform_3(%arg0: i32) -> (i32, i32, i32) {
    %c0_i32 = arith.constant 0 : i32
    %c0_i32_0 = arith.constant 0 : i32
    %c0_i32_1 = arith.constant 0 : i32
    return %arg0, %c0_i32, %c0_i32_0 : i32, i32, i32
  }
  func.func @transform_4(%arg0: i32) -> (i32, i32, i32) {
    %c0_i32 = arith.constant 0 : i32
    %c0_i32_0 = arith.constant 0 : i32
    %c0_i32_1 = arith.constant 0 : i32
    return %arg0, %c0_i32, %c0_i32_0 : i32, i32, i32
  }
}

module attributes {stable_mosaic.version = 11 : i64} {
  func.func @_head_kernel(%arg0: i32, %arg1: memref<12x96xbf16, #tpu.memory_space<vmem>>, %arg2: memref<96x65xbf16, #tpu.memory_space<vmem>>, %arg3: memref<1x65xf32, #tpu.memory_space<vmem>>, %arg4: memref<12x64xf32, #tpu.memory_space<vmem>>, %arg5: memref<12x1xf32, #tpu.memory_space<vmem>>) attributes {dimension_semantics = [#tpu.dimension_semantics<parallel>], iteration_bounds = array<i64: 1>, scalar_prefetch = 0 : i64, scratch_operands = 0 : i64, tpu.core_type = #tpu.core_type<tc>, window_params = [{transform_indices = @transform_0, window_bounds = array<i64: 12, 96>}, {pipeline_mode = #tpu.pipeline_mode<synchronous>, transform_indices = @transform_1, window_bounds = array<i64: 96, 65>}, {pipeline_mode = #tpu.pipeline_mode<synchronous>, transform_indices = @transform_2, window_bounds = array<i64: 1, 65>}, {transform_indices = @transform_3, window_bounds = array<i64: 12, 64>}, {transform_indices = @transform_4, window_bounds = array<i64: 12, 1>}]} {
    %c0 = arith.constant 0 : index
    %c0_0 = arith.constant 0 : index
    %0 = vector.load %arg1[%c0, %c0_0] : memref<12x96xbf16, #tpu.memory_space<vmem>>, vector<12x96xbf16>
    %c0_1 = arith.constant 0 : index
    %c0_2 = arith.constant 0 : index
    %1 = vector.load %arg2[%c0_1, %c0_2] : memref<96x65xbf16, #tpu.memory_space<vmem>>, vector<96x65xbf16>
    %cst = arith.constant dense<0.000000e+00> : vector<12x65xf32>
    %2 = tpu.matmul %0, %1, %cst {dimension_numbers = #tpu.dot_dimension_numbers<[1], [0], [0], [1], [0, 0, 1, 1], [], []>} : vector<12x96xbf16>, vector<96x65xbf16>, vector<12x65xf32> -> vector<12x65xf32>
    %c0_3 = arith.constant 0 : index
    %c0_4 = arith.constant 0 : index
    %3 = vector.load %arg3[%c0_3, %c0_4] : memref<1x65xf32, #tpu.memory_space<vmem>>, vector<1x65xf32>
    %4 = vector.broadcast %3 : vector<1x65xf32> to vector<12x65xf32>
    %5 = arith.addf %2, %4 : vector<12x65xf32>
    %6 = vector.extract_strided_slice %5 {offsets = [0, 0], sizes = [12, 64], strides = [1, 1]} : vector<12x65xf32> to vector<12x64xf32>
    %cst_5 = arith.constant dense<0xFF800000> : vector<12xf32>
    %7 = vector.multi_reduction <maximumf>, %6, %cst_5 [1] : vector<12x64xf32> to vector<12xf32>
    %cst_6 = arith.constant 0xFF800000 : f32
    %8 = vector.broadcast %cst_6 : f32 to vector<12xf32>
    %9 = arith.maximumf %8, %7 : vector<12xf32>
    %10 = vector.shape_cast %9 : vector<12xf32> to vector<12x1xf32>
    %11 = vector.broadcast %10 : vector<12x1xf32> to vector<12x64xf32>
    %12 = arith.subf %6, %11 : vector<12x64xf32>
    %13 = math.exp %12 : vector<12x64xf32>
    %cst_7 = arith.constant dense<0.000000e+00> : vector<12xf32>
    %14 = vector.multi_reduction <add>, %13, %cst_7 [1] : vector<12x64xf32> to vector<12xf32>
    %15 = vector.shape_cast %14 : vector<12xf32> to vector<12x1xf32>
    %16 = vector.broadcast %15 : vector<12x1xf32> to vector<12x64xf32>
    %17 = arith.divf %13, %16 : vector<12x64xf32>
    %c0_8 = arith.constant 0 : index
    %c0_9 = arith.constant 0 : index
    %18 = vector.load %arg4[%c0_8, %c0_9] : memref<12x64xf32, #tpu.memory_space<vmem>>, vector<12x64xf32>
    tpu.vector_store %arg4[%c0_8, %c0_9], %17 {strides = array<i32>} : memref<12x64xf32, #tpu.memory_space<vmem>>, vector<12x64xf32>,
    %19 = vector.extract_strided_slice %5 {offsets = [0, 64], sizes = [12, 1], strides = [1, 1]} : vector<12x65xf32> to vector<12x1xf32>
    %20 = arith.negf %19 : vector<12x1xf32>
    %21 = math.exp %20 : vector<12x1xf32>
    %cst_10 = arith.constant 1.000000e+00 : f32
    %22 = vector.broadcast %cst_10 : f32 to vector<12x1xf32>
    %23 = arith.addf %22, %21 : vector<12x1xf32>
    %24 = arith.divf %22, %23 : vector<12x1xf32>
    %c0_11 = arith.constant 0 : index
    %c0_12 = arith.constant 0 : index
    %25 = vector.load %arg5[%c0_11, %c0_12] : memref<12x1xf32, #tpu.memory_space<vmem>>, vector<12x1xf32>
    tpu.vector_store %arg5[%c0_11, %c0_12], %24 {strides = array<i32>} : memref<12x1xf32, #tpu.memory_space<vmem>>, vector<12x1xf32>,
    return
  }
  func.func @transform_0(%arg0: i32) -> (i32, i32) {
    %c0_i32 = arith.constant 0 : i32
    %c0_i32_0 = arith.constant 0 : i32
    return %arg0, %c0_i32 : i32, i32
  }
  func.func @transform_1(%arg0: i32) -> (i32, i32) {
    %c0_i32 = arith.constant 0 : i32
    %c0_i32_0 = arith.constant 0 : i32
    %c0_i32_1 = arith.constant 0 : i32
    return %c0_i32, %c0_i32_0 : i32, i32
  }
  func.func @transform_2(%arg0: i32) -> (i32, i32) {
    %c0_i32 = arith.constant 0 : i32
    %c0_i32_0 = arith.constant 0 : i32
    %c0_i32_1 = arith.constant 0 : i32
    return %c0_i32, %c0_i32_0 : i32, i32
  }
  func.func @transform_3(%arg0: i32) -> (i32, i32) {
    %c0_i32 = arith.constant 0 : i32
    %c0_i32_0 = arith.constant 0 : i32
    return %arg0, %c0_i32 : i32, i32
  }
  func.func @transform_4(%arg0: i32) -> (i32, i32) {
    %c0_i32 = arith.constant 0 : i32
    %c0_i32_0 = arith.constant 0 : i32
    return %arg0, %c0_i32 : i32, i32
  }
}

module attributes {stable_mosaic.version = 11 : i64} {
  func.func @_mlp2_kernel(%arg0: i32, %arg1: memref<2x64xbf16, #tpu.memory_space<vmem>>, %arg2: memref<64x32xbf16, #tpu.memory_space<vmem>>, %arg3: memref<1x32xf32, #tpu.memory_space<vmem>>, %arg4: memref<32x64xbf16, #tpu.memory_space<vmem>>, %arg5: memref<1x64xf32, #tpu.memory_space<vmem>>, %arg6: memref<2x64xf32, #tpu.memory_space<vmem>>) attributes {dimension_semantics = [#tpu.dimension_semantics<parallel>], iteration_bounds = array<i64: 1>, scalar_prefetch = 0 : i64, scratch_operands = 0 : i64, tpu.core_type = #tpu.core_type<tc>, window_params = [{transform_indices = @transform_0, window_bounds = array<i64: 2, 64>}, {pipeline_mode = #tpu.pipeline_mode<synchronous>, transform_indices = @transform_1, window_bounds = array<i64: 64, 32>}, {pipeline_mode = #tpu.pipeline_mode<synchronous>, transform_indices = @transform_2, window_bounds = array<i64: 1, 32>}, {pipeline_mode = #tpu.pipeline_mode<synchronous>, transform_indices = @transform_3, window_bounds = array<i64: 32, 64>}, {pipeline_mode = #tpu.pipeline_mode<synchronous>, transform_indices = @transform_4, window_bounds = array<i64: 1, 64>}, {transform_indices = @transform_5, window_bounds = array<i64: 2, 64>}]} {
    %c0 = arith.constant 0 : index
    %c0_0 = arith.constant 0 : index
    %0 = vector.load %arg1[%c0, %c0_0] : memref<2x64xbf16, #tpu.memory_space<vmem>>, vector<2x64xbf16>
    %c0_1 = arith.constant 0 : index
    %c0_2 = arith.constant 0 : index
    %1 = vector.load %arg2[%c0_1, %c0_2] : memref<64x32xbf16, #tpu.memory_space<vmem>>, vector<64x32xbf16>
    %cst = arith.constant dense<0.000000e+00> : vector<2x32xf32>
    %2 = tpu.matmul %0, %1, %cst {dimension_numbers = #tpu.dot_dimension_numbers<[1], [0], [0], [1], [0, 0, 1, 1], [], []>} : vector<2x64xbf16>, vector<64x32xbf16>, vector<2x32xf32> -> vector<2x32xf32>
    %c0_3 = arith.constant 0 : index
    %c0_4 = arith.constant 0 : index
    %3 = vector.load %arg3[%c0_3, %c0_4] : memref<1x32xf32, #tpu.memory_space<vmem>>, vector<1x32xf32>
    %4 = vector.broadcast %3 : vector<1x32xf32> to vector<2x32xf32>
    %5 = arith.addf %2, %4 : vector<2x32xf32>
    %6 = math.tanh %5 : vector<2x32xf32>
    %7 = arith.truncf %6 : vector<2x32xf32> to vector<2x32xbf16>
    %c0_5 = arith.constant 0 : index
    %c0_6 = arith.constant 0 : index
    %8 = vector.load %arg4[%c0_5, %c0_6] : memref<32x64xbf16, #tpu.memory_space<vmem>>, vector<32x64xbf16>
    %cst_7 = arith.constant dense<0.000000e+00> : vector<2x64xf32>
    %9 = tpu.matmul %7, %8, %cst_7 {dimension_numbers = #tpu.dot_dimension_numbers<[1], [0], [0], [1], [0, 0, 1, 1], [], []>} : vector<2x32xbf16>, vector<32x64xbf16>, vector<2x64xf32> -> vector<2x64xf32>
    %c0_8 = arith.constant 0 : index
    %c0_9 = arith.constant 0 : index
    %10 = vector.load %arg5[%c0_8, %c0_9] : memref<1x64xf32, #tpu.memory_space<vmem>>, vector<1x64xf32>
    %11 = vector.broadcast %10 : vector<1x64xf32> to vector<2x64xf32>
    %12 = arith.addf %9, %11 : vector<2x64xf32>
    %cst_10 = arith.constant dense<0xFF800000> : vector<2xf32>
    %13 = vector.multi_reduction <maximumf>, %12, %cst_10 [1] : vector<2x64xf32> to vector<2xf32>
    %cst_11 = arith.constant 0xFF800000 : f32
    %14 = vector.broadcast %cst_11 : f32 to vector<2xf32>
    %15 = arith.maximumf %14, %13 : vector<2xf32>
    %16 = vector.shape_cast %15 : vector<2xf32> to vector<2x1xf32>
    %17 = vector.broadcast %16 : vector<2x1xf32> to vector<2x64xf32>
    %18 = arith.subf %12, %17 : vector<2x64xf32>
    %19 = math.exp %18 : vector<2x64xf32>
    %cst_12 = arith.constant dense<0.000000e+00> : vector<2xf32>
    %20 = vector.multi_reduction <add>, %19, %cst_12 [1] : vector<2x64xf32> to vector<2xf32>
    %21 = vector.shape_cast %20 : vector<2xf32> to vector<2x1xf32>
    %22 = vector.broadcast %21 : vector<2x1xf32> to vector<2x64xf32>
    %23 = arith.divf %19, %22 : vector<2x64xf32>
    %c0_13 = arith.constant 0 : index
    %c0_14 = arith.constant 0 : index
    %24 = vector.load %arg6[%c0_13, %c0_14] : memref<2x64xf32, #tpu.memory_space<vmem>>, vector<2x64xf32>
    tpu.vector_store %arg6[%c0_13, %c0_14], %23 {strides = array<i32>} : memref<2x64xf32, #tpu.memory_space<vmem>>, vector<2x64xf32>,
    return
  }
  func.func @transform_0(%arg0: i32) -> (i32, i32) {
    %c0_i32 = arith.constant 0 : i32
    %c0_i32_0 = arith.constant 0 : i32
    return %arg0, %c0_i32 : i32, i32
  }
  func.func @transform_1(%arg0: i32) -> (i32, i32) {
    %c0_i32 = arith.constant 0 : i32
    %c0_i32_0 = arith.constant 0 : i32
    %c0_i32_1 = arith.constant 0 : i32
    return %c0_i32, %c0_i32_0 : i32, i32
  }
  func.func @transform_2(%arg0: i32) -> (i32, i32) {
    %c0_i32 = arith.constant 0 : i32
    %c0_i32_0 = arith.constant 0 : i32
    %c0_i32_1 = arith.constant 0 : i32
    return %c0_i32, %c0_i32_0 : i32, i32
  }
  func.func @transform_3(%arg0: i32) -> (i32, i32) {
    %c0_i32 = arith.constant 0 : i32
    %c0_i32_0 = arith.constant 0 : i32
    %c0_i32_1 = arith.constant 0 : i32
    return %c0_i32, %c0_i32_0 : i32, i32
  }
  func.func @transform_4(%arg0: i32) -> (i32, i32) {
    %c0_i32 = arith.constant 0 : i32
    %c0_i32_0 = arith.constant 0 : i32
    %c0_i32_1 = arith.constant 0 : i32
    return %c0_i32, %c0_i32_0 : i32, i32
  }
  func.func @transform_5(%arg0: i32) -> (i32, i32) {
    %c0_i32 = arith.constant 0 : i32
    %c0_i32_0 = arith.constant 0 : i32
    return %arg0, %c0_i32 : i32, i32
  }
}

module attributes {stable_mosaic.version = 11 : i64} {
  func.func @_dense_kernel(%arg0: i32, %arg1: memref<2x64xbf16, #tpu.memory_space<vmem>>, %arg2: memref<64x16xbf16, #tpu.memory_space<vmem>>, %arg3: memref<1x16xf32, #tpu.memory_space<vmem>>, %arg4: memref<2x16xf32, #tpu.memory_space<vmem>>) attributes {dimension_semantics = [#tpu.dimension_semantics<parallel>], iteration_bounds = array<i64: 1>, scalar_prefetch = 0 : i64, scratch_operands = 0 : i64, tpu.core_type = #tpu.core_type<tc>, window_params = [{transform_indices = @transform_0, window_bounds = array<i64: 2, 64>}, {pipeline_mode = #tpu.pipeline_mode<synchronous>, transform_indices = @transform_1, window_bounds = array<i64: 64, 16>}, {pipeline_mode = #tpu.pipeline_mode<synchronous>, transform_indices = @transform_2, window_bounds = array<i64: 1, 16>}, {transform_indices = @transform_3, window_bounds = array<i64: 2, 16>}]} {
    %c0 = arith.constant 0 : index
    %c0_0 = arith.constant 0 : index
    %0 = vector.load %arg1[%c0, %c0_0] : memref<2x64xbf16, #tpu.memory_space<vmem>>, vector<2x64xbf16>
    %c0_1 = arith.constant 0 : index
    %c0_2 = arith.constant 0 : index
    %1 = vector.load %arg2[%c0_1, %c0_2] : memref<64x16xbf16, #tpu.memory_space<vmem>>, vector<64x16xbf16>
    %cst = arith.constant dense<0.000000e+00> : vector<2x16xf32>
    %2 = tpu.matmul %0, %1, %cst {dimension_numbers = #tpu.dot_dimension_numbers<[1], [0], [0], [1], [0, 0, 1, 1], [], []>} : vector<2x64xbf16>, vector<64x16xbf16>, vector<2x16xf32> -> vector<2x16xf32>
    %c0_3 = arith.constant 0 : index
    %c0_4 = arith.constant 0 : index
    %3 = vector.load %arg3[%c0_3, %c0_4] : memref<1x16xf32, #tpu.memory_space<vmem>>, vector<1x16xf32>
    %4 = vector.broadcast %3 : vector<1x16xf32> to vector<2x16xf32>
    %5 = arith.addf %2, %4 : vector<2x16xf32>
    %c0_5 = arith.constant 0 : index
    %c0_6 = arith.constant 0 : index
    %6 = vector.load %arg4[%c0_5, %c0_6] : memref<2x16xf32, #tpu.memory_space<vmem>>, vector<2x16xf32>
    tpu.vector_store %arg4[%c0_5, %c0_6], %5 {strides = array<i32>} : memref<2x16xf32, #tpu.memory_space<vmem>>, vector<2x16xf32>,
    return
  }
  func.func @transform_0(%arg0: i32) -> (i32, i32) {
    %c0_i32 = arith.constant 0 : i32
    %c0_i32_0 = arith.constant 0 : i32
    return %arg0, %c0_i32 : i32, i32
  }
  func.func @transform_1(%arg0: i32) -> (i32, i32) {
    %c0_i32 = arith.constant 0 : i32
    %c0_i32_0 = arith.constant 0 : i32
    %c0_i32_1 = arith.constant 0 : i32
    return %c0_i32, %c0_i32_0 : i32, i32
  }
  func.func @transform_2(%arg0: i32) -> (i32, i32) {
    %c0_i32 = arith.constant 0 : i32
    %c0_i32_0 = arith.constant 0 : i32
    %c0_i32_1 = arith.constant 0 : i32
    return %c0_i32, %c0_i32_0 : i32, i32
  }
  func.func @transform_3(%arg0: i32) -> (i32, i32) {
    %c0_i32 = arith.constant 0 : i32
    %c0_i32_0 = arith.constant 0 : i32
    return %arg0, %c0_i32 : i32, i32
  }
}

module attributes {stable_mosaic.version = 11 : i64} {
  func.func @_mlp2_kernel(%arg0: i32, %arg1: memref<2x32xbf16, #tpu.memory_space<vmem>>, %arg2: memref<32x32xbf16, #tpu.memory_space<vmem>>, %arg3: memref<1x32xf32, #tpu.memory_space<vmem>>, %arg4: memref<32x64xbf16, #tpu.memory_space<vmem>>, %arg5: memref<1x64xf32, #tpu.memory_space<vmem>>, %arg6: memref<2x64xf32, #tpu.memory_space<vmem>>) attributes {dimension_semantics = [#tpu.dimension_semantics<parallel>], iteration_bounds = array<i64: 1>, scalar_prefetch = 0 : i64, scratch_operands = 0 : i64, tpu.core_type = #tpu.core_type<tc>, window_params = [{transform_indices = @transform_0, window_bounds = array<i64: 2, 32>}, {pipeline_mode = #tpu.pipeline_mode<synchronous>, transform_indices = @transform_1, window_bounds = array<i64: 32, 32>}, {pipeline_mode = #tpu.pipeline_mode<synchronous>, transform_indices = @transform_2, window_bounds = array<i64: 1, 32>}, {pipeline_mode = #tpu.pipeline_mode<synchronous>, transform_indices = @transform_3, window_bounds = array<i64: 32, 64>}, {pipeline_mode = #tpu.pipeline_mode<synchronous>, transform_indices = @transform_4, window_bounds = array<i64: 1, 64>}, {transform_indices = @transform_5, window_bounds = array<i64: 2, 64>}]} {
    %c0 = arith.constant 0 : index
    %c0_0 = arith.constant 0 : index
    %0 = vector.load %arg1[%c0, %c0_0] : memref<2x32xbf16, #tpu.memory_space<vmem>>, vector<2x32xbf16>
    %c0_1 = arith.constant 0 : index
    %c0_2 = arith.constant 0 : index
    %1 = vector.load %arg2[%c0_1, %c0_2] : memref<32x32xbf16, #tpu.memory_space<vmem>>, vector<32x32xbf16>
    %cst = arith.constant dense<0.000000e+00> : vector<2x32xf32>
    %2 = tpu.matmul %0, %1, %cst {dimension_numbers = #tpu.dot_dimension_numbers<[1], [0], [0], [1], [0, 0, 1, 1], [], []>} : vector<2x32xbf16>, vector<32x32xbf16>, vector<2x32xf32> -> vector<2x32xf32>
    %c0_3 = arith.constant 0 : index
    %c0_4 = arith.constant 0 : index
    %3 = vector.load %arg3[%c0_3, %c0_4] : memref<1x32xf32, #tpu.memory_space<vmem>>, vector<1x32xf32>
    %4 = vector.broadcast %3 : vector<1x32xf32> to vector<2x32xf32>
    %5 = arith.addf %2, %4 : vector<2x32xf32>
    %6 = math.tanh %5 : vector<2x32xf32>
    %7 = arith.truncf %6 : vector<2x32xf32> to vector<2x32xbf16>
    %c0_5 = arith.constant 0 : index
    %c0_6 = arith.constant 0 : index
    %8 = vector.load %arg4[%c0_5, %c0_6] : memref<32x64xbf16, #tpu.memory_space<vmem>>, vector<32x64xbf16>
    %cst_7 = arith.constant dense<0.000000e+00> : vector<2x64xf32>
    %9 = tpu.matmul %7, %8, %cst_7 {dimension_numbers = #tpu.dot_dimension_numbers<[1], [0], [0], [1], [0, 0, 1, 1], [], []>} : vector<2x32xbf16>, vector<32x64xbf16>, vector<2x64xf32> -> vector<2x64xf32>
    %c0_8 = arith.constant 0 : index
    %c0_9 = arith.constant 0 : index
    %10 = vector.load %arg5[%c0_8, %c0_9] : memref<1x64xf32, #tpu.memory_space<vmem>>, vector<1x64xf32>
    %11 = vector.broadcast %10 : vector<1x64xf32> to vector<2x64xf32>
    %12 = arith.addf %9, %11 : vector<2x64xf32>
    %cst_10 = arith.constant dense<0xFF800000> : vector<2xf32>
    %13 = vector.multi_reduction <maximumf>, %12, %cst_10 [1] : vector<2x64xf32> to vector<2xf32>
    %cst_11 = arith.constant 0xFF800000 : f32
    %14 = vector.broadcast %cst_11 : f32 to vector<2xf32>
    %15 = arith.maximumf %14, %13 : vector<2xf32>
    %16 = vector.shape_cast %15 : vector<2xf32> to vector<2x1xf32>
    %17 = vector.broadcast %16 : vector<2x1xf32> to vector<2x64xf32>
    %18 = arith.subf %12, %17 : vector<2x64xf32>
    %19 = math.exp %18 : vector<2x64xf32>
    %cst_12 = arith.constant dense<0.000000e+00> : vector<2xf32>
    %20 = vector.multi_reduction <add>, %19, %cst_12 [1] : vector<2x64xf32> to vector<2xf32>
    %21 = vector.shape_cast %20 : vector<2xf32> to vector<2x1xf32>
    %22 = vector.broadcast %21 : vector<2x1xf32> to vector<2x64xf32>
    %23 = arith.divf %19, %22 : vector<2x64xf32>
    %c0_13 = arith.constant 0 : index
    %c0_14 = arith.constant 0 : index
    %24 = vector.load %arg6[%c0_13, %c0_14] : memref<2x64xf32, #tpu.memory_space<vmem>>, vector<2x64xf32>
    tpu.vector_store %arg6[%c0_13, %c0_14], %23 {strides = array<i32>} : memref<2x64xf32, #tpu.memory_space<vmem>>, vector<2x64xf32>,
    return
  }
  func.func @transform_0(%arg0: i32) -> (i32, i32) {
    %c0_i32 = arith.constant 0 : i32
    %c0_i32_0 = arith.constant 0 : i32
    return %arg0, %c0_i32 : i32, i32
  }
  func.func @transform_1(%arg0: i32) -> (i32, i32) {
    %c0_i32 = arith.constant 0 : i32
    %c0_i32_0 = arith.constant 0 : i32
    %c0_i32_1 = arith.constant 0 : i32
    return %c0_i32, %c0_i32_0 : i32, i32
  }
  func.func @transform_2(%arg0: i32) -> (i32, i32) {
    %c0_i32 = arith.constant 0 : i32
    %c0_i32_0 = arith.constant 0 : i32
    %c0_i32_1 = arith.constant 0 : i32
    return %c0_i32, %c0_i32_0 : i32, i32
  }
  func.func @transform_3(%arg0: i32) -> (i32, i32) {
    %c0_i32 = arith.constant 0 : i32
    %c0_i32_0 = arith.constant 0 : i32
    %c0_i32_1 = arith.constant 0 : i32
    return %c0_i32, %c0_i32_0 : i32, i32
  }
  func.func @transform_4(%arg0: i32) -> (i32, i32) {
    %c0_i32 = arith.constant 0 : i32
    %c0_i32_0 = arith.constant 0 : i32
    %c0_i32_1 = arith.constant 0 : i32
    return %c0_i32, %c0_i32_0 : i32, i32
  }
  func.func @transform_5(%arg0: i32) -> (i32, i32) {
    %c0_i32 = arith.constant 0 : i32
    %c0_i32_0 = arith.constant 0 : i32
    return %arg0, %c0_i32 : i32, i32
  }
}

module attributes {stable_mosaic.version = 11 : i64} {
  func.func @_gen_attn_kernel(%arg0: i32, %arg1: memref<1x1x48xbf16, #tpu.memory_space<vmem>>, %arg2: memref<48x32xbf16, #tpu.memory_space<vmem>>, %arg3: memref<1x32xf32, #tpu.memory_space<vmem>>, %arg4: memref<1x3x32xbf16, #tpu.memory_space<vmem>>, %arg5: memref<1x3x32xbf16, #tpu.memory_space<vmem>>, %arg6: memref<1x1x3xf32, #tpu.memory_space<vmem>>, %arg7: memref<1x1x32xf32, #tpu.memory_space<vmem>>, %arg8: memref<1x1x3xf32, #tpu.memory_space<vmem>>) attributes {dimension_semantics = [#tpu.dimension_semantics<parallel>], iteration_bounds = array<i64: 2>, scalar_prefetch = 0 : i64, scratch_operands = 0 : i64, tpu.core_type = #tpu.core_type<tc>, window_params = [{transform_indices = @transform_0, window_bounds = array<i64: 1, 1, 48>}, {pipeline_mode = #tpu.pipeline_mode<synchronous>, transform_indices = @transform_1, window_bounds = array<i64: 48, 32>}, {pipeline_mode = #tpu.pipeline_mode<synchronous>, transform_indices = @transform_2, window_bounds = array<i64: 1, 32>}, {transform_indices = @transform_3, window_bounds = array<i64: 1, 3, 32>}, {transform_indices = @transform_4, window_bounds = array<i64: 1, 3, 32>}, {transform_indices = @transform_5, window_bounds = array<i64: 1, 1, 3>}, {transform_indices = @transform_6, window_bounds = array<i64: 1, 1, 32>}, {transform_indices = @transform_7, window_bounds = array<i64: 1, 1, 3>}]} {
    %c0 = arith.constant 0 : index
    %c0_0 = arith.constant 0 : index
    %c0_1 = arith.constant 0 : index
    %0 = vector.load %arg1[%c0, %c0_0, %c0_1] : memref<1x1x48xbf16, #tpu.memory_space<vmem>>, vector<1x1x48xbf16>
    %1 = vector.shape_cast %0 : vector<1x1x48xbf16> to vector<1x48xbf16>
    %c0_2 = arith.constant 0 : index
    %c0_3 = arith.constant 0 : index
    %2 = vector.load %arg2[%c0_2, %c0_3] : memref<48x32xbf16, #tpu.memory_space<vmem>>, vector<48x32xbf16>
    %cst = arith.constant dense<0.000000e+00> : vector<1x32xf32>
    %3 = tpu.matmul %1, %2, %cst {dimension_numbers = #tpu.dot_dimension_numbers<[1], [0], [0], [1], [0, 0, 1, 1], [], []>} : vector<1x48xbf16>, vector<48x32xbf16>, vector<1x32xf32> -> vector<1x32xf32>
    %c0_4 = arith.constant 0 : index
    %c0_5 = arith.constant 0 : index
    %4 = vector.load %arg3[%c0_4, %c0_5] : memref<1x32xf32, #tpu.memory_space<vmem>>, vector<1x32xf32>
    %5 = arith.addf %3, %4 : vector<1x32xf32>
    %6 = arith.truncf %5 : vector<1x32xf32> to vector<1x32xbf16>
    %c0_6 = arith.constant 0 : index
    %c0_7 = arith.constant 0 : index
    %c0_8 = arith.constant 0 : index
    %7 = vector.load %arg4[%c0_6, %c0_7, %c0_8] : memref<1x3x32xbf16, #tpu.memory_space<vmem>>, vector<1x3x32xbf16>
    %8 = vector.shape_cast %7 : vector<1x3x32xbf16> to vector<3x32xbf16>
    %c0_9 = arith.constant 0 : index
    %c0_10 = arith.constant 0 : index
    %c0_11 = arith.constant 0 : index
    %9 = vector.load %arg5[%c0_9, %c0_10, %c0_11] : memref<1x3x32xbf16, #tpu.memory_space<vmem>>, vector<1x3x32xbf16>
    %10 = vector.shape_cast %9 : vector<1x3x32xbf16> to vector<3x32xbf16>
    %c0_12 = arith.constant 0 : index
    %c0_13 = arith.constant 0 : index
    %c0_14 = arith.constant 0 : index
    %11 = vector.load %arg6[%c0_12, %c0_13, %c0_14] : memref<1x1x3xf32, #tpu.memory_space<vmem>>, vector<1x1x3xf32>
    %12 = vector.shape_cast %11 : vector<1x1x3xf32> to vector<1x3xf32>
    %cst_15 = arith.constant dense<0.000000e+00> : vector<1x3xf32>
    %13 = tpu.matmul %6, %8, %cst_15 {dimension_numbers = #tpu.dot_dimension_numbers<[1], [1], [0], [0], [0, 0, 1, 0], [], []>} : vector<1x32xbf16>, vector<3x32xbf16>, vector<1x3xf32> -> vector<1x3xf32>
    %cst_16 = arith.constant 0.000000e+00 : f32
    %14 = vector.broadcast %cst_16 : f32 to vector<1x3xf32>
    %15 = arith.cmpf ogt, %12, %14 : vector<1x3xf32>
    %cst_17 = arith.constant -1.000000e+09 : f32
    %16 = vector.broadcast %cst_17 : f32 to vector<1x3xf32>
    %17 = arith.select %15, %13, %16 : vector<1x3xi1>, vector<1x3xf32>
    %cst_18 = arith.constant dense<0xFF800000> : vector<1xf32>
    %18 = vector.multi_reduction <maximumf>, %17, %cst_18 [1] : vector<1x3xf32> to vector<1xf32>
    %cst_19 = arith.constant 0xFF800000 : f32
    %19 = vector.broadcast %cst_19 : f32 to vector<1xf32>
    %20 = arith.maximumf %19, %18 : vector<1xf32>
    %21 = vector.shape_cast %20 : vector<1xf32> to vector<1x1xf32>
    %22 = vector.broadcast %21 : vector<1x1xf32> to vector<1x3xf32>
    %23 = arith.subf %17, %22 : vector<1x3xf32>
    %24 = math.exp %23 : vector<1x3xf32>
    %cst_20 = arith.constant dense<0.000000e+00> : vector<1xf32>
    %25 = vector.multi_reduction <add>, %24, %cst_20 [1] : vector<1x3xf32> to vector<1xf32>
    %26 = vector.shape_cast %25 : vector<1xf32> to vector<1x1xf32>
    %27 = vector.broadcast %26 : vector<1x1xf32> to vector<1x3xf32>
    %28 = arith.divf %24, %27 : vector<1x3xf32>
    %29 = arith.truncf %28 : vector<1x3xf32> to vector<1x3xbf16>
    %cst_21 = arith.constant dense<0.000000e+00> : vector<1x32xf32>
    %30 = tpu.matmul %29, %10, %cst_21 {dimension_numbers = #tpu.dot_dimension_numbers<[1], [0], [0], [1], [0, 0, 1, 1], [], []>} : vector<1x3xbf16>, vector<3x32xbf16>, vector<1x32xf32> -> vector<1x32xf32>
    %c0_22 = arith.constant 0 : index
    %c0_23 = arith.constant 0 : index
    %c0_24 = arith.constant 0 : index
    %31 = vector.load %arg7[%c0_22, %c0_23, %c0_24] : memref<1x1x32xf32, #tpu.memory_space<vmem>>, vector<1x1x32xf32>
    %32 = vector.shape_cast %31 : vector<1x1x32xf32> to vector<1x32xf32>
    %33 = vector.shape_cast %30 : vector<1x32xf32> to vector<1x1x32xf32>
    tpu.vector_store %arg7[%c0_22, %c0_23, %c0_24], %33 {strides = array<i32>} : memref<1x1x32xf32, #tpu.memory_space<vmem>>, vector<1x1x32xf32>,
    %c0_25 = arith.constant 0 : index
    %c0_26 = arith.constant 0 : index
    %c0_27 = arith.constant 0 : index
    %34 = vector.load %arg8[%c0_25, %c0_26, %c0_27] : memref<1x1x3xf32, #tpu.memory_space<vmem>>, vector<1x1x3xf32>
    %35 = vector.shape_cast %34 : vector<1x1x3xf32> to vector<1x3xf32>
    %36 = vector.shape_cast %28 : vector<1x3xf32> to vector<1x1x3xf32>
    tpu.vector_store %arg8[%c0_25, %c0_26, %c0_27], %36 {strides = array<i32>} : memref<1x1x3xf32, #tpu.memory_space<vmem>>, vector<1x1x3xf32>,
    return
  }
  func.func @transform_0(%arg0: i32) -> (i32, i32, i32) {
    %c0_i32 = arith.constant 0 : i32
    %c0_i32_0 = arith.constant 0 : i32
    %c0_i32_1 = arith.constant 0 : i32
    return %arg0, %c0_i32, %c0_i32_0 : i32, i32, i32
  }
  func.func @transform_1(%arg0: i32) -> (i32, i32) {
    %c0_i32 = arith.constant 0 : i32
    %c0_i32_0 = arith.constant 0 : i32
    %c0_i32_1 = arith.constant 0 : i32
    return %c0_i32, %c0_i32_0 : i32, i32
  }
  func.func @transform_2(%arg0: i32) -> (i32, i32) {
    %c0_i32 = arith.constant 0 : i32
    %c0_i32_0 = arith.constant 0 : i32
    %c0_i32_1 = arith.constant 0 : i32
    return %c0_i32, %c0_i32_0 : i32, i32
  }
  func.func @transform_3(%arg0: i32) -> (i32, i32, i32) {
    %c0_i32 = arith.constant 0 : i32
    %c0_i32_0 = arith.constant 0 : i32
    %c0_i32_1 = arith.constant 0 : i32
    return %arg0, %c0_i32, %c0_i32_0 : i32, i32, i32
  }
  func.func @transform_4(%arg0: i32) -> (i32, i32, i32) {
    %c0_i32 = arith.constant 0 : i32
    %c0_i32_0 = arith.constant 0 : i32
    %c0_i32_1 = arith.constant 0 : i32
    return %arg0, %c0_i32, %c0_i32_0 : i32, i32, i32
  }
  func.func @transform_5(%arg0: i32) -> (i32, i32, i32) {
    %c0_i32 = arith.constant 0 : i32
    %c0_i32_0 = arith.constant 0 : i32
    %c0_i32_1 = arith.constant 0 : i32
    return %arg0, %c0_i32, %c0_i32_0 : i32, i32, i32
  }
  func.func @transform_6(%arg0: i32) -> (i32, i32, i32) {
    %c0_i32 = arith.constant 0 : i32
    %c0_i32_0 = arith.constant 0 : i32
    %c0_i32_1 = arith.constant 0 : i32
    return %arg0, %c0_i32, %c0_i32_0 : i32, i32, i32
  }
  func.func @transform_7(%arg0: i32) -> (i32, i32, i32) {
    %c0_i32 = arith.constant 0 : i32
    %c0_i32_0 = arith.constant 0 : i32
    %c0_i32_1 = arith.constant 0 : i32
    return %arg0, %c0_i32, %c0_i32_0 : i32, i32, i32
  }
}

</mosaic_0001>

<llo_original>
// kernel: _lambda_.20
$region0: #{_lambda_.20}
  #allocation0 [shape = 'u32[]', space=smem, size = 0x4, offset = 0x4, fixed_abs, tag = 'smem constant byte address 0x4 - core index']
  #allocation1 [shape = 'u32[72,128]{1,0:T(1,128)}', space=vmem, size = 0x9000, scoped, tag = 'internal scratch']
  %s0 = inlined_call_operand.vmem [shape: bf16[16,16], index: 0, kind: input, shape index: {}]
  %s1 = inlined_call_operand.vmem [shape: bf16[16,96], index: 1, kind: input, shape index: {}]
  %s2 = inlined_call_operand.vmem [shape: f32[1,96], index: 2, kind: input, shape index: {}]
  %s3 = inlined_call_operand.vmem [shape: f32[16,96], index: 3, kind: output, shape index: {}]
  %s4 = sld [smem:[#allocation0]]
  $region22: #{_lambda_.20} parent=0
    _
  %s6 = ssub.s32 1, %s4
  %s7 = scalar_select 0, %s6, %s4
  // Predicated region
  $region2: #{_lambda_.20} parent=0 // pred_check
    _
  $region3: #{_lambda_.20} parent=0 // pred_check_branch
    %9 = sbr.rel (0) target = $region5
  $region4: #{_lambda_.20} parent=0 // pred_region
    _
  $region5: #{_lambda_.20} parent=0 // pred_fallthru
    _
  // Predicated region
  $region6: #{_lambda_.20} parent=0 // pred_check
    _
  $region7: #{_lambda_.20} parent=0 // pred_check_branch
    %11 = sbr.rel (0) target = $region9
  $region8: #{_lambda_.20} parent=0 // pred_region
    _
  $region9: #{_lambda_.20} parent=0 // pred_fallthru
    _
  // Predicated region
  $region10: #{_lambda_.20} parent=0 // pred_check
    _
  $region11: #{_lambda_.20} parent=0 // pred_check_branch
    %13 = sbr.rel (0) target = $region13
  $region12: #{_lambda_.20} parent=0 // pred_region
    _
  $region13: #{_lambda_.20} parent=0 // pred_fallthru
    _
  %v15 = vld [vmem:[%s0] sm:$0xf]
  %v16 = vld [vmem:[%s0 + $0x4] sm:$0xf]
  %v17 = vld [vmem:[%s1] sm:$0xf]
  %v18 = vld [vmem:[%s1 + $0x4] sm:$0xf]
  %v19 = vld [vmem:[%s2] sm:$0x1]
  %v21 = vperm.slane %v19, 0
  %v25 = vunpack.c.l.b16 %v15
  %v26 = vunpack.c.l.b16 %v16
  %v27 = vpack.c.b16 %v26, %v25
  %v30 = vunpack.c.l.b16 %v17
  %v31 = vunpack.c.l.b16 %v18
  %v32 = vpack.c.b16 %v31, %v30
  %vm34 = vcmask 130048
  %v36 = vsel %vm34, %v27, 0
  %38 = vmatpush.bf16.msra.mxu0 0
  %39 = vmatpush.bf16.msra.mxu0 0
  %40 = vmatpush.bf16.msra.mxu0 0
  %41 = vmatpush.bf16.msra.mxu0 0
  %42 = vmatpush.bf16.msra.mxu0 0
  %43 = vmatpush.bf16.msra.mxu0 0
  %44 = vmatpush.bf16.msra.mxu0 0
  %45 = vmatpush.bf16.msra.mxu0 %v32
  %46 = vmatmul.bf16.gmra.mxu0 %v36
  %v47 = vpop.f32.mrf.mxu0
  %v48 = vadd.f32 %v21, %v47
  %v49 = vpop.f32.mrf.mxu0
  %v50 = vadd.f32 %v21, %v49
  %51 = vdwg.mxu0
  %vm52 = vcmask 785408
  %53 = vst.msk [vmem:[%s3] sm:$0xff] %vm52, %v48
  %54 = vst.msk [vmem:[%s3 + $0x8] sm:$0xff] %vm52, %v50
  // Predicated region
  $region14: #{_lambda_.20} parent=0 // pred_check
    _
  $region15: #{_lambda_.20} parent=0 // pred_check_branch
    %56 = sbr.rel (0) target = $region17
  $region16: #{_lambda_.20} parent=0 // pred_region
    _
  $region17: #{_lambda_.20} parent=0 // pred_fallthru
    _
  // Predicated region
  $region18: #{_lambda_.20} parent=0 // pred_check
    _
  $region19: #{_lambda_.20} parent=0 // pred_check_branch
    %58 = sbr.rel (0) target = $region21
  $region20: #{_lambda_.20} parent=0 // pred_region
    _
  $region21: #{_lambda_.20} parent=0 // pred_fallthru
    _

// kernel: _lambda_.24
$region0: #{_lambda_.24}
  #allocation0 [shape = 'u32[]', space=smem, size = 0x4, offset = 0x4, fixed_abs, tag = 'smem constant byte address 0x4 - core index']
  #allocation1 [shape = 'u32[72,128]{1,0:T(1,128)}', space=vmem, size = 0x9000, scoped, tag = 'internal scratch']
  %s0 = inlined_call_operand.vmem [shape: bf16[2,32], index: 0, kind: input, shape index: {}]
  %s1 = inlined_call_operand.vmem [shape: bf16[32,32], index: 1, kind: input, shape index: {}]
  %s2 = inlined_call_operand.vmem [shape: f32[1,32], index: 2, kind: input, shape index: {}]
  %s3 = inlined_call_operand.vmem [shape: f32[2,32], index: 3, kind: output, shape index: {}]
  %s4 = sld [smem:[#allocation0]]
  $region22: #{_lambda_.24} parent=0
    _
  %s6 = ssub.s32 1, %s4
  %s7 = scalar_select 0, %s6, %s4
  // Predicated region
  $region2: #{_lambda_.24} parent=0 // pred_check
    _
  $region3: #{_lambda_.24} parent=0 // pred_check_branch
    %9 = sbr.rel (0) target = $region5
  $region4: #{_lambda_.24} parent=0 // pred_region
    _
  $region5: #{_lambda_.24} parent=0 // pred_fallthru
    _
  // Predicated region
  $region6: #{_lambda_.24} parent=0 // pred_check
    _
  $region7: #{_lambda_.24} parent=0 // pred_check_branch
    %11 = sbr.rel (0) target = $region9
  $region8: #{_lambda_.24} parent=0 // pred_region
    _
  $region9: #{_lambda_.24} parent=0 // pred_fallthru
    _
  // Predicated region
  $region10: #{_lambda_.24} parent=0 // pred_check
    _
  $region11: #{_lambda_.24} parent=0 // pred_check_branch
    %13 = sbr.rel (0) target = $region13
  $region12: #{_lambda_.24} parent=0 // pred_region
    _
  $region13: #{_lambda_.24} parent=0 // pred_fallthru
    _
  %v15 = vld [vmem:[%s0] sm:$0x1]
  %v16 = vld [vmem:[%s1] sm:$0xf]
  %v17 = vld [vmem:[%s1 + $0x4] sm:$0xf]
  %v18 = vld [vmem:[%s1 + $0x8] sm:$0xf]
  %v19 = vld [vmem:[%s1 + $0xc] sm:$0xf]
  %v20 = vld [vmem:[%s2] sm:$0x1]
  %v22 = vperm.slane %v20, 0
  %v28 = vunpack.c.l.b16 %v16
  %v29 = vunpack.c.l.b16 %v17
  %v30 = vunpack.c.l.b16 %v18
  %v31 = vunpack.c.l.b16 %v19
  %v32 = vpack.c.b16 %v29, %v28
  %v33 = vpack.c.b16 %v31, %v30
  %vm36 = vcmask 261120
  %v38 = vsel %vm36, %v15, 0
  %40 = vmatpush.bf16.msra.mxu0 0
  %41 = vmatpush.bf16.msra.mxu0 0
  %42 = vmatpush.bf16.msra.mxu0 0
  %43 = vmatpush.bf16.msra.mxu0 0
  %44 = vmatpush.bf16.msra.mxu0 0
  %45 = vmatpush.bf16.msra.mxu0 0
  %46 = vmatpush.bf16.msra.mxu0 %v33
  %47 = vmatpush.bf16.msra.mxu0 %v32
  %48 = vmatmul.bf16.gmra.mxu0 %v38
  %v49 = vpop.f32.mrf.mxu0
  %v50 = vadd.f32 %v22, %v49
  %v51 = vpop.f32.mrf.mxu0
  %52 = vdwg.mxu0
  %v53 = vtanh.pop %v50
  %vm54 = vcmask 254976
  %55 = vst.msk [vmem:[%s3] sm:$0x3] %vm54, %v53
  // Predicated region
  $region14: #{_lambda_.24} parent=0 // pred_check
    _
  $region15: #{_lambda_.24} parent=0 // pred_check_branch
    %57 = sbr.rel (0) target = $region17
  $region16: #{_lambda_.24} parent=0 // pred_region
    _
  $region17: #{_lambda_.24} parent=0 // pred_fallthru
    _
  // Predicated region
  $region18: #{_lambda_.24} parent=0 // pred_check
    _
  $region19: #{_lambda_.24} parent=0 // pred_check_branch
    %59 = sbr.rel (0) target = $region21
  $region20: #{_lambda_.24} parent=0 // pred_region
    _
  $region21: #{_lambda_.24} parent=0 // pred_fallthru
    _

// kernel: _lambda_.29
$region0: #{_lambda_.29}
  #allocation0 [shape = 'u32[]', space=smem, size = 0x4, offset = 0x4, fixed_abs, tag = 'smem constant byte address 0x4 - core index']
  #allocation1 [shape = 'u32[72,128]{1,0:T(1,128)}', space=vmem, size = 0x9000, scoped, tag = 'internal scratch']
  %s0 = inlined_call_operand.vmem [shape: bf16[12,16], index: 0, kind: input, shape index: {}]
  %s1 = inlined_call_operand.vmem [shape: bf16[16,96], index: 1, kind: input, shape index: {}]
  %s2 = inlined_call_operand.vmem [shape: f32[1,96], index: 2, kind: input, shape index: {}]
  %s3 = inlined_call_operand.vmem [shape: f32[12,96], index: 3, kind: output, shape index: {}]
  %s4 = sld [smem:[#allocation0]]
  $region22: #{_lambda_.29} parent=0
    _
  %s6 = ssub.s32 1, %s4
  %s7 = scalar_select 0, %s6, %s4
  // Predicated region
  $region2: #{_lambda_.29} parent=0 // pred_check
    _
  $region3: #{_lambda_.29} parent=0 // pred_check_branch
    %9 = sbr.rel (0) target = $region5
  $region4: #{_lambda_.29} parent=0 // pred_region
    _
  $region5: #{_lambda_.29} parent=0 // pred_fallthru
    _
  // Predicated region
  $region6: #{_lambda_.29} parent=0 // pred_check
    _
  $region7: #{_lambda_.29} parent=0 // pred_check_branch
    %11 = sbr.rel (0) target = $region9
  $region8: #{_lambda_.29} parent=0 // pred_region
    _
  $region9: #{_lambda_.29} parent=0 // pred_fallthru
    _
  // Predicated region
  $region10: #{_lambda_.29} parent=0 // pred_check
    _
  $region11: #{_lambda_.29} parent=0 // pred_check_branch
    %13 = sbr.rel (0) target = $region13
  $region12: #{_lambda_.29} parent=0 // pred_region
    _
  $region13: #{_lambda_.29} parent=0 // pred_fallthru
    _
  %v15 = vld [vmem:[%s0] sm:$0xf]
  %v16 = vld [vmem:[%s0 + $0x4] sm:$0x3]
  %v17 = vld [vmem:[%s1] sm:$0xf]
  %v18 = vld [vmem:[%s1 + $0x4] sm:$0xf]
  %v19 = vld [vmem:[%s2] sm:$0x1]
  %v21 = vperm.slane %v19, 0
  %v25 = vunpack.c.l.b16 %v15
  %v26 = vunpack.c.l.b16 %v16
  %v27 = vpack.c.b16 %v26, %v25
  %v30 = vunpack.c.l.b16 %v17
  %v31 = vunpack.c.l.b16 %v18
  %v32 = vpack.c.b16 %v31, %v30
  %vm34 = vcmask 130048
  %v36 = vsel %vm34, %v27, 0
  %38 = vmatpush.bf16.msra.mxu0 0
  %39 = vmatpush.bf16.msra.mxu0 0
  %40 = vmatpush.bf16.msra.mxu0 0
  %41 = vmatpush.bf16.msra.mxu0 0
  %42 = vmatpush.bf16.msra.mxu0 0
  %43 = vmatpush.bf16.msra.mxu0 0
  %44 = vmatpush.bf16.msra.mxu0 0
  %45 = vmatpush.bf16.msra.mxu0 %v32
  %46 = vmatmul.bf16.gmra.mxu0 %v36
  %v47 = vpop.f32.mrf.mxu0
  %v48 = vadd.f32 %v21, %v47
  %v49 = vpop.f32.mrf.mxu0
  %v50 = vadd.f32 %v21, %v49
  %51 = vdwg.mxu0
  %vm52 = vcmask 785408
  %53 = vst.msk [vmem:[%s3] sm:$0xff] %vm52, %v48
  %vm54 = vcmask 781312
  %55 = vst.msk [vmem:[%s3 + $0x8] sm:$0xf] %vm54, %v50
  // Predicated region
  $region14: #{_lambda_.29} parent=0 // pred_check
    _
  $region15: #{_lambda_.29} parent=0 // pred_check_branch
    %57 = sbr.rel (0) target = $region17
  $region16: #{_lambda_.29} parent=0 // pred_region
    _
  $region17: #{_lambda_.29} parent=0 // pred_fallthru
    _
  // Predicated region
  $region18: #{_lambda_.29} parent=0 // pred_check
    _
  $region19: #{_lambda_.29} parent=0 // pred_check_branch
    %59 = sbr.rel (0) target = $region21
  $region20: #{_lambda_.29} parent=0 // pred_region
    _
  $region21: #{_lambda_.29} parent=0 // pred_fallthru
    _

// kernel: _lambda_.21
$region0: #{_lambda_.21}
  #allocation0 [shape = 'u32[]', space=smem, size = 0x4, offset = 0x4, fixed_abs, tag = 'smem constant byte address 0x4 - core index']
  #allocation1 [shape = 'u32[72,128]{1,0:T(1,128)}', space=vmem, size = 0x9000, scoped, tag = 'internal scratch']
  #allocation2 [shape = 'f32[2,32]{1,0:T(2,128)}', space=vmem, size = 0x400, scoped, tag = 'scratch operand']
  %s0 = inlined_call_operand.vmem [shape: f32[8,2,96], index: 0, kind: input, shape index: {}]
  %s1 = inlined_call_operand.vmem [shape: f32[2,32], index: 1, kind: input, shape index: {}]
  %s2 = inlined_call_operand.vmem [shape: bf16[32,96], index: 2, kind: input, shape index: {}]
  %s3 = inlined_call_operand.vmem [shape: f32[1,96], index: 3, kind: input, shape index: {}]
  %s4 = inlined_call_operand.vmem [shape: f32[8,2,32], index: 4, kind: output, shape index: {}]
  %s5 = sld [smem:[#allocation0]]
  $region53: #{_lambda_.21} parent=0
    _
  %s7 = ssub.s32 1, %s5
  %s8 = scalar_select 0, %s7, %s5
  loop: start=0, step=1, limit=10
  $region2: #{_lambda_.21} parent=0 // loop_pre_header
    _
  $region3: #{_lambda_.21} parent=0 // loop_header
    %s10 = sphi 0, %s14
    %p11 = scmp.ge.s32.totalorder %s10, 10
    %s20 = sphi 0, %s22
    %s23 = sphi 0, %s20
    %s24 = sphi 0, %s23
    %s40 = sphi 0, %s24
    %s44 = sphi 0, %s44
    %s46 = sphi 0, %s44
    %s47 = sphi 0, %s46
    %s61 = sphi 0, %s47
    %s65 = sphi 0, %s65
    %s67 = sphi 0, %s65
    %s68 = sphi 0, %s67
    %s82 = sphi 0, %s68
    %s86 = sphi 0, %s86
    %s88 = sphi 0, %s86
    %s89 = sphi 0, %s88
    %s103 = sphi 0, %s89
    %s109 = sphi 0, %s111
    %s112 = sphi 0, %s109
    %s113 = sphi 0, %s112
    %s129 = sphi 0, %s113
  $region4: #{_lambda_.21} parent=0 // loop_header_branch
    %13 = sbr.rel (%p11) target = $region8
  $region5: #{_lambda_.21} parent=0 // loop_body
    %s15 = ssub.s32 %s10, 1
    %s16 = ssub.s32 %s10, 2
    %s17 = sadd.s32 %s10, 1
    %s18 = ssub.s32 %s10, %s17
    %p19 = scmp.eq.s32.totalorder %s18, 0
    %s21 = sadd.s32 %s20, 1
    %s22 = scalar_select %p19, %s20, %s21
    %p25 = pneg %p19
    %p26 = scmp.eq.s32.totalorder %s10, 7
    %p27 = por %p25, %p26
    %p28 = scmp.ne.s32.totalorder %s20, %s23
    %p29 = scmp.eq.s32.totalorder %s10, 0
    %p30 = por %p28, %p29
    %p31 = scmp.ne.s32.totalorder %s20, %s23
    %p32 = scmp.eq.s32.totalorder %s15, 7
    %p33 = por %p31, %p32
    %p34 = scmp.ne.s32.totalorder %s23, %s24
    %p35 = scmp.eq.s32.totalorder %s15, 0
    %p36 = por %p34, %p35
    %p37 = scmp.ne.s32.totalorder %s23, %s24
    %p38 = scmp.eq.s32.totalorder %s16, 7
    %p39 = por %p37, %p38
    %p41 = scmp.ne.s32.totalorder %s24, %s40
    %p42 = scmp.eq.s32.totalorder %s16, 0
    %p43 = por %p41, %p42
    %s45 = sadd.s32 %s44, 1
    %p48 = scmp.eq.s32.totalorder %s10, 7
    %p49 = scmp.ne.s32.totalorder %s44, %s46
    %p50 = scmp.eq.s32.totalorder %s10, 0
    %p51 = por %p49, %p50
    %p52 = scmp.ne.s32.totalorder %s44, %s46
    %p53 = scmp.eq.s32.totalorder %s15, 7
    %p54 = por %p52, %p53
    %p55 = scmp.ne.s32.totalorder %s46, %s47
    %p56 = scmp.eq.s32.totalorder %s15, 0
    %p57 = por %p55, %p56
    %p58 = scmp.ne.s32.totalorder %s46, %s47
    %p59 = scmp.eq.s32.totalorder %s16, 7
    %p60 = por %p58, %p59
    %p62 = scmp.ne.s32.totalorder %s47, %s61
    %p63 = scmp.eq.s32.totalorder %s16, 0
    %p64 = por %p62, %p63
    %s66 = sadd.s32 %s65, 1
    %p69 = scmp.eq.s32.totalorder %s10, 7
    %p70 = scmp.ne.s32.totalorder %s65, %s67
    %p71 = scmp.eq.s32.totalorder %s10, 0
    %p72 = por %p70, %p71
    %p73 = scmp.ne.s32.totalorder %s65, %s67
    %p74 = scmp.eq.s32.totalorder %s15, 7
    %p75 = por %p73, %p74
    %p76 = scmp.ne.s32.totalorder %s67, %s68
    %p77 = scmp.eq.s32.totalorder %s15, 0
    %p78 = por %p76, %p77
    %p79 = scmp.ne.s32.totalorder %s67, %s68
    %p80 = scmp.eq.s32.totalorder %s16, 7
    %p81 = por %p79, %p80
    %p83 = scmp.ne.s32.totalorder %s68, %s82
    %p84 = scmp.eq.s32.totalorder %s16, 0
    %p85 = por %p83, %p84
    %s87 = sadd.s32 %s86, 1
    %p90 = scmp.eq.s32.totalorder %s10, 7
    %p91 = scmp.ne.s32.totalorder %s86, %s88
    %p92 = scmp.eq.s32.totalorder %s10, 0
    %p93 = por %p91, %p92
    %p94 = scmp.ne.s32.totalorder %s86, %s88
    %p95 = scmp.eq.s32.totalorder %s15, 7
    %p96 = por %p94, %p95
    %p97 = scmp.ne.s32.totalorder %s88, %s89
    %p98 = scmp.eq.s32.totalorder %s15, 0
    %p99 = por %p97, %p98
    %p100 = scmp.ne.s32.totalorder %s88, %s89
    %p101 = scmp.eq.s32.totalorder %s16, 7
    %p102 = por %p100, %p101
    %p104 = scmp.ne.s32.totalorder %s89, %s103
    %p105 = scmp.eq.s32.totalorder %s16, 0
    %p106 = por %p104, %p105
    %s107 = ssub.s32 %s10, %s17
    %p108 = scmp.eq.s32.totalorder %s107, 0
    %s110 = sadd.s32 %s109, 1
    %s111 = scalar_select %p108, %s109, %s110
    %p114 = pneg %p108
    %p115 = scmp.eq.s32.totalorder %s10, 7
    %p116 = por %p114, %p115
    %p117 = scmp.ne.s32.totalorder %s109, %s112
    %p118 = scmp.eq.s32.totalorder %s10, 0
    %p119 = por %p117, %p118
    %p120 = scmp.ne.s32.totalorder %s109, %s112
    %p121 = scmp.eq.s32.totalorder %s15, 7
    %p122 = por %p120, %p121
    %p123 = scmp.ne.s32.totalorder %s112, %s113
    %p124 = scmp.eq.s32.totalorder %s15, 0
    %p125 = por %p123, %p124
    %p126 = scmp.ne.s32.totalorder %s112, %s113
    %p127 = scmp.eq.s32.totalorder %s16, 7
    %p128 = por %p126, %p127
    %p130 = scmp.ne.s32.totalorder %s113, %s129
    %p131 = scmp.eq.s32.totalorder %s16, 0
    %p132 = por %p130, %p131
    %p133 = scmp.le.s32.totalorder 1, %s10
    %p134 = scmp.lt.s32.totalorder %s10, 9
    %p135 = pnand %p133, %p134
    %p136 = pneg %p135
    // Predicated region
    $region9: #{_lambda_.21} parent=5 // pred_check
      _
    $region10: #{_lambda_.21} parent=5 // pred_check_branch
      %138 = sbr.rel (%p135) target = $region12
    $region11: #{_lambda_.21} parent=5 // pred_region
      %s139 = ssub.s32 %s10, 1
      // Predicated region
      $region13: #{_lambda_.21} parent=11 // pred_check
        %p140 = pneg %p57
      $region14: #{_lambda_.21} parent=11 // pred_check_branch
        %142 = sbr.rel (%p140) target = $region16
      $region15: #{_lambda_.21} parent=11 // pred_region
        _
      $region16: #{_lambda_.21} parent=11 // pred_fallthru
        _
      // Predicated region
      $region17: #{_lambda_.21} parent=11 // pred_check
        %p143 = pneg %p78
      $region18: #{_lambda_.21} parent=11 // pred_check_branch
        %145 = sbr.rel (%p143) target = $region20
      $region19: #{_lambda_.21} parent=11 // pred_region
        _
      $region20: #{_lambda_.21} parent=11 // pred_fallthru
        _
      // Predicated region
      $region21: #{_lambda_.21} parent=11 // pred_check
        %p146 = pneg %p99
      $region22: #{_lambda_.21} parent=11 // pred_check_branch
        %148 = sbr.rel (%p146) target = $region24
      $region23: #{_lambda_.21} parent=11 // pred_region
        _
      $region24: #{_lambda_.21} parent=11 // pred_fallthru
        _
    $region12: #{_lambda_.21} parent=5 // pred_fallthru
      _
    %p149 = scmp.lt.s32.totalorder %s10, 8
    // Predicated region
    $region25: #{_lambda_.21} parent=5 // pred_check
      %p150 = pneg %p149
    $region26: #{_lambda_.21} parent=5 // pred_check_branch
      %152 = sbr.rel (%p150) target = $region28
    $region27: #{_lambda_.21} parent=5 // pred_region
      // Predicated region
      $region29: #{_lambda_.21} parent=27 // pred_check
        %p153 = pneg %p30
      $region30: #{_lambda_.21} parent=27 // pred_check_branch
        %155 = sbr.rel (%p153) target = $region32
      $region31: #{_lambda_.21} parent=27 // pred_region
        %p156 = scmp.lt.s32.totalorder %s10, 7
        %s157 = scalar_select %p156, %s10, 7
        %s158 = smul.addr %s157, 2
        %s159 = scalar_lea.vmem %s0, %s158
      $region32: #{_lambda_.21} parent=27 // pred_fallthru
        _
    $region28: #{_lambda_.21} parent=5 // pred_fallthru
      _
    %p160 = scmp.le.s32.totalorder 1, %s10
    %p161 = scmp.lt.s32.totalorder %s10, 9
    %p162 = pnand %p160, %p161
    %p163 = pneg %p162
    // Predicated region
    $region33: #{_lambda_.21} parent=5 // pred_check
      _
    $region34: #{_lambda_.21} parent=5 // pred_check_branch
      %165 = sbr.rel (%p162) target = $region36
    $region35: #{_lambda_.21} parent=5 // pred_region
      %s166 = ssub.s32 %s10, 1
      %p167 = scmp.lt.s32.totalorder %s15, 7
      %s168 = scalar_select %p167, %s15, 7
      %s169 = smul.addr %s168, 2
      %s170 = scalar_lea.vmem %s0, %s169
      %p171 = pneg %p36
      %p172 = pneg %p33
      %p173 = pneg %p57
      %p174 = pneg %p54
      %p175 = pneg %p78
      %p176 = pneg %p75
      %p177 = pneg %p99
      %p178 = pneg %p96
      %p179 = pneg %p125
      %p180 = pneg %p122
      %p181 = scmp.lt.s32.totalorder %s15, 7
      %s182 = scalar_select %p181, %s15, 7
      %s183 = smul.addr %s182, 2
      %s184 = scalar_lea.vmem %s4, %s183
      %p185 = scmp.lt.s32.totalorder %s15, 7
      %s186 = scalar_select %p185, %s15, 7
      %s187 = smul.addr %s186, 2
      %s188 = scalar_lea.vmem %s0, %s187
      %p189 = scmp.lt.s32.totalorder %s15, 7
      %s190 = scalar_select %p189, %s15, 7
      %s191 = smul.addr %s190, 2
      %s192 = scalar_lea.vmem %s4, %s191
      %p194 = scmp.eq.s32.totalorder %s15, 0
      // Predicated region
      $region37: #{_lambda_.21} parent=35 // pred_check
        %p195 = pneg %p194
      $region38: #{_lambda_.21} parent=35 // pred_check_branch
        %197 = sbr.rel (%p195) target = $region40
      $region39: #{_lambda_.21} parent=35 // pred_region
        %v198 = vld [vmem:[%s1] sm:$0x3]
        %vm199 = vcmask 254976
        %200 = vst.msk [vmem:[#allocation2] sm:$0x3] %vm199, %v198
      $region40: #{_lambda_.21} parent=35 // pred_fallthru
        _
      %v201 = vld [vmem:[#allocation2] sm:$0x3]
      %v202 = vpack.c.bf16 %v201, %v201
      %v203 = vld [vmem:[%s2] sm:$0xf]
      %v204 = vld [vmem:[%s2 + $0x4] sm:$0xf]
      %v205 = vld [vmem:[%s2 + $0x8] sm:$0xf]
      %v206 = vld [vmem:[%s2 + $0xc] sm:$0xf]
      %v207 = vld [vmem:[%s3] sm:$0x1]
      %v209 = vperm.slane %v207, 0
      %v215 = vunpack.c.l.b16 %v203
      %v216 = vunpack.c.l.b16 %v204
      %v217 = vunpack.c.l.b16 %v205
      %v218 = vunpack.c.l.b16 %v206
      %v219 = vpack.c.b16 %v216, %v215
      %v220 = vpack.c.b16 %v218, %v217
      %vm223 = vcmask 261120
      %v225 = vsel %vm223, %v202, 0
      %227 = vmatpush.bf16.msra.mxu0 0
      %228 = vmatpush.bf16.msra.mxu0 0
      %229 = vmatpush.bf16.msra.mxu0 0
      %230 = vmatpush.bf16.msra.mxu0 0
      %231 = vmatpush.bf16.msra.mxu0 0
      %232 = vmatpush.bf16.msra.mxu0 0
      %233 = vmatpush.bf16.msra.mxu0 %v220
      %234 = vmatpush.bf16.msra.mxu0 %v219
      %235 = vmatmul.bf16.gmra.mxu0 %v225
      %v236 = vpop.f32.mrf.mxu0
      %v237 = vadd.f32 %v209, %v236
      %v238 = vpop.f32.mrf.mxu0
      %239 = vdwg.mxu0
      %v240 = vld [vmem:[%s188] sm:$0x3]
      %v241 = vadd.f32 %v240, %v237
      %v242 = vxor.u32 %v241, 2147483648
      %v243 = vmul.f32 %v242, 1.442695
      %v244 = vpow.pop %v243
      %v245 = vadd.f32 %v244, 1.0
      %v246 = vrcp.pop %v245
      %v247 = vmul.f32 %v245, %v246
      %v248 = vsub.f32 1.0, %v247
      %v249 = vmul.f32 %v246, %v248
      %v250 = vadd.f32 %v246, %v249
      %vm251 = vweird.f32 %v245
      %vm252 = vweird.f32 %v246
      %vm253 = vmor %vm251, %vm252
      %v254 = vsel %vm253, %v246, %v250
      %v255 = vand.u32 2147483647, %v245
      %vm256 = vcmp.eq.f32.partialorder %v255, 8.507059e+37
      %v257 = vand.u32 %v245, 2147483648
      %v258 = vor.u32 1.1754944e-38, %v257
      %v259 = vsel %vm256, %v258, %v254
      %v260 = vmul.f32 1.0, %v259
      %262 = vrot.lane.b32.xlu0 %v237, 64
      %v263 = vpop.permute.xlu0 %262
      %v265 = vmul.f32 %v260, %v263
      %267 = vrot.lane.b32.xlu0 %v265, 64
      %v268 = vpop.permute.xlu0 %267
      %v270 = vadd.f32 %v240, %v268
      %v271 = vtanh.pop %v270
      %v272 = vsub.f32 1.0, %v260
      %274 = vrot.lane.b32.xlu0 %v271, 96
      %v275 = vpop.permute.xlu0 %274
      %v277 = vmul.f32 %v272, %v275
      %279 = vrot.lane.b32.xlu0 %v201, 32
      %v280 = vpop.permute.xlu0 %279
      %v282 = vmul.f32 %v260, %v280
      %v283 = vadd.f32 %v277, %v282
      %285 = vrot.lane.b32.xlu0 %v283, 96
      %v286 = vpop.permute.xlu0 %285
      %vm288 = vcmask 254976
      %289 = vst.msk [vmem:[#allocation2] sm:$0x3] %vm288, %v286
      %290 = vst.msk [vmem:[%s192] sm:$0x3] %vm288, %v286
      %p291 = scmp.lt.s32.totalorder %s15, 7
      %s292 = scalar_select %p291, %s15, 7
      %s293 = smul.addr %s292, 2
      %s294 = scalar_lea.vmem %s4, %s293
      // Predicated region
      $region41: #{_lambda_.21} parent=35 // pred_check
        %p295 = pneg %p122
      $region42: #{_lambda_.21} parent=35 // pred_check_branch
        %297 = sbr.rel (%p295) target = $region44
      $region43: #{_lambda_.21} parent=35 // pred_region
        _
      $region44: #{_lambda_.21} parent=35 // pred_fallthru
        _
    $region36: #{_lambda_.21} parent=5 // pred_fallthru
      _
    %p298 = scmp.le.s32.totalorder 2, %s10
    // Predicated region
    $region45: #{_lambda_.21} parent=5 // pred_check
      %p299 = pneg %p298
    $region46: #{_lambda_.21} parent=5 // pred_check_branch
      %301 = sbr.rel (%p299) target = $region48
    $region47: #{_lambda_.21} parent=5 // pred_region
      %s302 = ssub.s32 %s10, 2
      // Predicated region
      $region49: #{_lambda_.21} parent=47 // pred_check
        %p303 = pneg %p128
      $region50: #{_lambda_.21} parent=47 // pred_check_branch
        %305 = sbr.rel (%p303) target = $region52
      $region51: #{_lambda_.21} parent=47 // pred_region
        %p306 = scmp.lt.s32.totalorder %s16, 7
        %s307 = scalar_select %p306, %s16, 7
        %s308 = smul.addr %s307, 2
        %s309 = scalar_lea.vmem %s4, %s308
      $region52: #{_lambda_.21} parent=47 // pred_fallthru
        _
    $region48: #{_lambda_.21} parent=5 // pred_fallthru
      _
  $region6: #{_lambda_.21} parent=0 // loop_footer
    %s14 = sadd.s32 1, %s10
  $region7: #{_lambda_.21} parent=0 // loop_footer_branch
    %9 = sbr.rel target = $region3
  $region8: #{_lambda_.21} parent=0 // loop_exit
    _

// kernel: _lambda_.30
$region0: #{_lambda_.30}
  #allocation0 [shape = 'u32[]', space=smem, size = 0x4, offset = 0x4, fixed_abs, tag = 'smem constant byte address 0x4 - core index']
  #allocation1 [shape = 'u32[72,128]{1,0:T(1,128)}', space=vmem, size = 0x9000, scoped, tag = 'internal scratch']
  #allocation2 [shape = 'f32[2,32]{1,0:T(2,128)}', space=vmem, size = 0x400, scoped, tag = 'scratch operand']
  %s0 = inlined_call_operand.vmem [shape: f32[6,2,96], index: 0, kind: input, shape index: {}]
  %s1 = inlined_call_operand.vmem [shape: f32[2,32], index: 1, kind: input, shape index: {}]
  %s2 = inlined_call_operand.vmem [shape: bf16[32,96], index: 2, kind: input, shape index: {}]
  %s3 = inlined_call_operand.vmem [shape: f32[1,96], index: 3, kind: input, shape index: {}]
  %s4 = inlined_call_operand.vmem [shape: f32[2,32], index: 4, kind: output, shape index: {}]
  %s5 = sld [smem:[#allocation0]]
  $region53: #{_lambda_.30} parent=0
    _
  %s7 = ssub.s32 1, %s5
  %s8 = scalar_select 0, %s7, %s5
  loop: start=0, step=1, limit=8
  $region2: #{_lambda_.30} parent=0 // loop_pre_header
    _
  $region3: #{_lambda_.30} parent=0 // loop_header
    %s10 = sphi 0, %s14
    %p11 = scmp.ge.s32.totalorder %s10, 8
    %s20 = sphi 0, %s22
    %s23 = sphi 0, %s20
    %s24 = sphi 0, %s23
    %s40 = sphi 0, %s24
    %s44 = sphi 0, %s44
    %s46 = sphi 0, %s44
    %s47 = sphi 0, %s46
    %s61 = sphi 0, %s47
    %s65 = sphi 0, %s65
    %s67 = sphi 0, %s65
    %s68 = sphi 0, %s67
    %s82 = sphi 0, %s68
    %s86 = sphi 0, %s86
    %s88 = sphi 0, %s86
    %s89 = sphi 0, %s88
    %s103 = sphi 0, %s89
    %s107 = sphi 0, %s107
    %s109 = sphi 0, %s107
    %s110 = sphi 0, %s109
    %s124 = sphi 0, %s110
  $region4: #{_lambda_.30} parent=0 // loop_header_branch
    %13 = sbr.rel (%p11) target = $region8
  $region5: #{_lambda_.30} parent=0 // loop_body
    %s15 = ssub.s32 %s10, 1
    %s16 = ssub.s32 %s10, 2
    %s17 = sadd.s32 %s10, 1
    %s18 = ssub.s32 %s10, %s17
    %p19 = scmp.eq.s32.totalorder %s18, 0
    %s21 = sadd.s32 %s20, 1
    %s22 = scalar_select %p19, %s20, %s21
    %p25 = pneg %p19
    %p26 = scmp.eq.s32.totalorder %s10, 5
    %p27 = por %p25, %p26
    %p28 = scmp.ne.s32.totalorder %s20, %s23
    %p29 = scmp.eq.s32.totalorder %s10, 0
    %p30 = por %p28, %p29
    %p31 = scmp.ne.s32.totalorder %s20, %s23
    %p32 = scmp.eq.s32.totalorder %s15, 5
    %p33 = por %p31, %p32
    %p34 = scmp.ne.s32.totalorder %s23, %s24
    %p35 = scmp.eq.s32.totalorder %s15, 0
    %p36 = por %p34, %p35
    %p37 = scmp.ne.s32.totalorder %s23, %s24
    %p38 = scmp.eq.s32.totalorder %s16, 5
    %p39 = por %p37, %p38
    %p41 = scmp.ne.s32.totalorder %s24, %s40
    %p42 = scmp.eq.s32.totalorder %s16, 0
    %p43 = por %p41, %p42
    %s45 = sadd.s32 %s44, 1
    %p48 = scmp.eq.s32.totalorder %s10, 5
    %p49 = scmp.ne.s32.totalorder %s44, %s46
    %p50 = scmp.eq.s32.totalorder %s10, 0
    %p51 = por %p49, %p50
    %p52 = scmp.ne.s32.totalorder %s44, %s46
    %p53 = scmp.eq.s32.totalorder %s15, 5
    %p54 = por %p52, %p53
    %p55 = scmp.ne.s32.totalorder %s46, %s47
    %p56 = scmp.eq.s32.totalorder %s15, 0
    %p57 = por %p55, %p56
    %p58 = scmp.ne.s32.totalorder %s46, %s47
    %p59 = scmp.eq.s32.totalorder %s16, 5
    %p60 = por %p58, %p59
    %p62 = scmp.ne.s32.totalorder %s47, %s61
    %p63 = scmp.eq.s32.totalorder %s16, 0
    %p64 = por %p62, %p63
    %s66 = sadd.s32 %s65, 1
    %p69 = scmp.eq.s32.totalorder %s10, 5
    %p70 = scmp.ne.s32.totalorder %s65, %s67
    %p71 = scmp.eq.s32.totalorder %s10, 0
    %p72 = por %p70, %p71
    %p73 = scmp.ne.s32.totalorder %s65, %s67
    %p74 = scmp.eq.s32.totalorder %s15, 5
    %p75 = por %p73, %p74
    %p76 = scmp.ne.s32.totalorder %s67, %s68
    %p77 = scmp.eq.s32.totalorder %s15, 0
    %p78 = por %p76, %p77
    %p79 = scmp.ne.s32.totalorder %s67, %s68
    %p80 = scmp.eq.s32.totalorder %s16, 5
    %p81 = por %p79, %p80
    %p83 = scmp.ne.s32.totalorder %s68, %s82
    %p84 = scmp.eq.s32.totalorder %s16, 0
    %p85 = por %p83, %p84
    %s87 = sadd.s32 %s86, 1
    %p90 = scmp.eq.s32.totalorder %s10, 5
    %p91 = scmp.ne.s32.totalorder %s86, %s88
    %p92 = scmp.eq.s32.totalorder %s10, 0
    %p93 = por %p91, %p92
    %p94 = scmp.ne.s32.totalorder %s86, %s88
    %p95 = scmp.eq.s32.totalorder %s15, 5
    %p96 = por %p94, %p95
    %p97 = scmp.ne.s32.totalorder %s88, %s89
    %p98 = scmp.eq.s32.totalorder %s15, 0
    %p99 = por %p97, %p98
    %p100 = scmp.ne.s32.totalorder %s88, %s89
    %p101 = scmp.eq.s32.totalorder %s16, 5
    %p102 = por %p100, %p101
    %p104 = scmp.ne.s32.totalorder %s89, %s103
    %p105 = scmp.eq.s32.totalorder %s16, 0
    %p106 = por %p104, %p105
    %s108 = sadd.s32 %s107, 1
    %p111 = scmp.eq.s32.totalorder %s10, 5
    %p112 = scmp.ne.s32.totalorder %s107, %s109
    %p113 = scmp.eq.s32.totalorder %s10, 0
    %p114 = por %p112, %p113
    %p115 = scmp.ne.s32.totalorder %s107, %s109
    %p116 = scmp.eq.s32.totalorder %s15, 5
    %p117 = por %p115, %p116
    %p118 = scmp.ne.s32.totalorder %s109, %s110
    %p119 = scmp.eq.s32.totalorder %s15, 0
    %p120 = por %p118, %p119
    %p121 = scmp.ne.s32.totalorder %s109, %s110
    %p122 = scmp.eq.s32.totalorder %s16, 5
    %p123 = por %p121, %p122
    %p125 = scmp.ne.s32.totalorder %s110, %s124
    %p126 = scmp.eq.s32.totalorder %s16, 0
    %p127 = por %p125, %p126
    %p128 = scmp.le.s32.totalorder 1, %s10
    %p129 = scmp.lt.s32.totalorder %s10, 7
    %p130 = pnand %p128, %p129
    %p131 = pneg %p130
    // Predicated region
    $region9: #{_lambda_.30} parent=5 // pred_check
      _
    $region10: #{_lambda_.30} parent=5 // pred_check_branch
      %133 = sbr.rel (%p130) target = $region12
    $region11: #{_lambda_.30} parent=5 // pred_region
      %s134 = ssub.s32 %s10, 1
      // Predicated region
      $region13: #{_lambda_.30} parent=11 // pred_check
        %p135 = pneg %p57
      $region14: #{_lambda_.30} parent=11 // pred_check_branch
        %137 = sbr.rel (%p135) target = $region16
      $region15: #{_lambda_.30} parent=11 // pred_region
        _
      $region16: #{_lambda_.30} parent=11 // pred_fallthru
        _
      // Predicated region
      $region17: #{_lambda_.30} parent=11 // pred_check
        %p138 = pneg %p78
      $region18: #{_lambda_.30} parent=11 // pred_check_branch
        %140 = sbr.rel (%p138) target = $region20
      $region19: #{_lambda_.30} parent=11 // pred_region
        _
      $region20: #{_lambda_.30} parent=11 // pred_fallthru
        _
      // Predicated region
      $region21: #{_lambda_.30} parent=11 // pred_check
        %p141 = pneg %p99
      $region22: #{_lambda_.30} parent=11 // pred_check_branch
        %143 = sbr.rel (%p141) target = $region24
      $region23: #{_lambda_.30} parent=11 // pred_region
        _
      $region24: #{_lambda_.30} parent=11 // pred_fallthru
        _
    $region12: #{_lambda_.30} parent=5 // pred_fallthru
      _
    %p144 = scmp.lt.s32.totalorder %s10, 6
    // Predicated region
    $region25: #{_lambda_.30} parent=5 // pred_check
      %p145 = pneg %p144
    $region26: #{_lambda_.30} parent=5 // pred_check_branch
      %147 = sbr.rel (%p145) target = $region28
    $region27: #{_lambda_.30} parent=5 // pred_region
      // Predicated region
      $region29: #{_lambda_.30} parent=27 // pred_check
        %p148 = pneg %p30
      $region30: #{_lambda_.30} parent=27 // pred_check_branch
        %150 = sbr.rel (%p148) target = $region32
      $region31: #{_lambda_.30} parent=27 // pred_region
        %p151 = scmp.lt.s32.totalorder %s10, 5
        %s152 = scalar_select %p151, %s10, 5
        %s153 = smul.addr %s152, 2
        %s154 = scalar_lea.vmem %s0, %s153
      $region32: #{_lambda_.30} parent=27 // pred_fallthru
        _
    $region28: #{_lambda_.30} parent=5 // pred_fallthru
      _
    %p155 = scmp.le.s32.totalorder 1, %s10
    %p156 = scmp.lt.s32.totalorder %s10, 7
    %p157 = pnand %p155, %p156
    %p158 = pneg %p157
    // Predicated region
    $region33: #{_lambda_.30} parent=5 // pred_check
      _
    $region34: #{_lambda_.30} parent=5 // pred_check_branch
      %160 = sbr.rel (%p157) target = $region36
    $region35: #{_lambda_.30} parent=5 // pred_region
      %s161 = ssub.s32 %s10, 1
      %p162 = scmp.lt.s32.totalorder %s15, 5
      %s163 = scalar_select %p162, %s15, 5
      %s164 = smul.addr %s163, 2
      %s165 = scalar_lea.vmem %s0, %s164
      %p166 = pneg %p36
      %p167 = pneg %p33
      %p168 = pneg %p57
      %p169 = pneg %p54
      %p170 = pneg %p78
      %p171 = pneg %p75
      %p172 = pneg %p99
      %p173 = pneg %p96
      %p174 = pneg %p120
      %p175 = pneg %p117
      %p176 = scmp.lt.s32.totalorder %s15, 5
      %s177 = scalar_select %p176, %s15, 5
      %s178 = smul.addr %s177, 2
      %s179 = scalar_lea.vmem %s0, %s178
      %p181 = scmp.eq.s32.totalorder %s15, 0
      // Predicated region
      $region37: #{_lambda_.30} parent=35 // pred_check
        %p182 = pneg %p181
      $region38: #{_lambda_.30} parent=35 // pred_check_branch
        %184 = sbr.rel (%p182) target = $region40
      $region39: #{_lambda_.30} parent=35 // pred_region
        %v185 = vld [vmem:[%s1] sm:$0x3]
        %vm186 = vcmask 254976
        %187 = vst.msk [vmem:[#allocation2] sm:$0x3] %vm186, %v185
      $region40: #{_lambda_.30} parent=35 // pred_fallthru
        _
      %v188 = vld [vmem:[#allocation2] sm:$0x3]
      %v189 = vpack.c.bf16 %v188, %v188
      %v190 = vld [vmem:[%s2] sm:$0xf]
      %v191 = vld [vmem:[%s2 + $0x4] sm:$0xf]
      %v192 = vld [vmem:[%s2 + $0x8] sm:$0xf]
      %v193 = vld [vmem:[%s2 + $0xc] sm:$0xf]
      %v194 = vld [vmem:[%s3] sm:$0x1]
      %v196 = vperm.slane %v194, 0
      %v202 = vunpack.c.l.b16 %v190
      %v203 = vunpack.c.l.b16 %v191
      %v204 = vunpack.c.l.b16 %v192
      %v205 = vunpack.c.l.b16 %v193
      %v206 = vpack.c.b16 %v203, %v202
      %v207 = vpack.c.b16 %v205, %v204
      %vm210 = vcmask 261120
      %v212 = vsel %vm210, %v189, 0
      %214 = vmatpush.bf16.msra.mxu0 0
      %215 = vmatpush.bf16.msra.mxu0 0
      %216 = vmatpush.bf16.msra.mxu0 0
      %217 = vmatpush.bf16.msra.mxu0 0
      %218 = vmatpush.bf16.msra.mxu0 0
      %219 = vmatpush.bf16.msra.mxu0 0
      %220 = vmatpush.bf16.msra.mxu0 %v207
      %221 = vmatpush.bf16.msra.mxu0 %v206
      %222 = vmatmul.bf16.gmra.mxu0 %v212
      %v223 = vpop.f32.mrf.mxu0
      %v224 = vadd.f32 %v196, %v223
      %v225 = vpop.f32.mrf.mxu0
      %226 = vdwg.mxu0
      %v227 = vld [vmem:[%s179] sm:$0x3]
      %v228 = vadd.f32 %v227, %v224
      %v229 = vxor.u32 %v228, 2147483648
      %v230 = vmul.f32 %v229, 1.442695
      %v231 = vpow.pop %v230
      %v232 = vadd.f32 %v231, 1.0
      %v233 = vrcp.pop %v232
      %v234 = vmul.f32 %v232, %v233
      %v235 = vsub.f32 1.0, %v234
      %v236 = vmul.f32 %v233, %v235
      %v237 = vadd.f32 %v233, %v236
      %vm238 = vweird.f32 %v232
      %vm239 = vweird.f32 %v233
      %vm240 = vmor %vm238, %vm239
      %v241 = vsel %vm240, %v233, %v237
      %v242 = vand.u32 2147483647, %v232
      %vm243 = vcmp.eq.f32.partialorder %v242, 8.507059e+37
      %v244 = vand.u32 %v232, 2147483648
      %v245 = vor.u32 1.1754944e-38, %v244
      %v246 = vsel %vm243, %v245, %v241
      %v247 = vmul.f32 1.0, %v246
      %249 = vrot.lane.b32.xlu0 %v224, 64
      %v250 = vpop.permute.xlu0 %249
      %v252 = vmul.f32 %v247, %v250
      %254 = vrot.lane.b32.xlu0 %v252, 64
      %v255 = vpop.permute.xlu0 %254
      %v257 = vadd.f32 %v227, %v255
      %v258 = vtanh.pop %v257
      %v259 = vsub.f32 1.0, %v247
      %261 = vrot.lane.b32.xlu0 %v258, 96
      %v262 = vpop.permute.xlu0 %261
      %v264 = vmul.f32 %v259, %v262
      %266 = vrot.lane.b32.xlu0 %v188, 32
      %v267 = vpop.permute.xlu0 %266
      %v269 = vmul.f32 %v247, %v267
      %v270 = vadd.f32 %v264, %v269
      %272 = vrot.lane.b32.xlu0 %v270, 96
      %v273 = vpop.permute.xlu0 %272
      %vm275 = vcmask 254976
      %276 = vst.msk [vmem:[#allocation2] sm:$0x3] %vm275, %v273
      %277 = vst.msk [vmem:[%s4] sm:$0x3] %vm275, %v273
      // Predicated region
      $region41: #{_lambda_.30} parent=35 // pred_check
        %p278 = pneg %p117
      $region42: #{_lambda_.30} parent=35 // pred_check_branch
        %280 = sbr.rel (%p278) target = $region44
      $region43: #{_lambda_.30} parent=35 // pred_region
        _
      $region44: #{_lambda_.30} parent=35 // pred_fallthru
        _
      // Predicated region
      $region45: #{_lambda_.30} parent=35 // pred_check
        %p281 = pneg %p117
      $region46: #{_lambda_.30} parent=35 // pred_check_branch
        %283 = sbr.rel (%p281) target = $region48
      $region47: #{_lambda_.30} parent=35 // pred_region
        _
      $region48: #{_lambda_.30} parent=35 // pred_fallthru
        _
    $region36: #{_lambda_.30} parent=5 // pred_fallthru
      _
    %p284 = scmp.le.s32.totalorder 2, %s10
    // Predicated region
    $region49: #{_lambda_.30} parent=5 // pred_check
      %p285 = pneg %p284
    $region50: #{_lambda_.30} parent=5 // pred_check_branch
      %287 = sbr.rel (%p285) target = $region52
    $region51: #{_lambda_.30} parent=5 // pred_region
      %s288 = ssub.s32 %s10, 2
    $region52: #{_lambda_.30} parent=5 // pred_fallthru
      _
  $region6: #{_lambda_.30} parent=0 // loop_footer
    %s14 = sadd.s32 1, %s10
  $region7: #{_lambda_.30} parent=0 // loop_footer_branch
    %9 = sbr.rel target = $region3
  $region8: #{_lambda_.30} parent=0 // loop_exit
    _

// kernel: _lambda_.22
$region0: #{_lambda_.22}
  #allocation0 [shape = 'u32[]', space=smem, size = 0x4, offset = 0x4, fixed_abs, tag = 'smem constant byte address 0x4 - core index']
  #allocation1 [shape = 'u32[72,128]{1,0:T(1,128)}', space=vmem, size = 0x9000, scoped, tag = 'internal scratch']
  %s0 = inlined_call_operand.vmem [shape: bf16[36,16], index: 0, kind: input, shape index: {}]
  %s1 = inlined_call_operand.vmem [shape: bf16[16,96], index: 1, kind: input, shape index: {}]
  %s2 = inlined_call_operand.vmem [shape: f32[1,96], index: 2, kind: input, shape index: {}]
  %s3 = inlined_call_operand.vmem [shape: f32[36,96], index: 3, kind: output, shape index: {}]
  %s4 = sld [smem:[#allocation0]]
  $region22: #{_lambda_.22} parent=0
    _
  %s6 = ssub.s32 1, %s4
  %s7 = scalar_select 0, %s6, %s4
  // Predicated region
  $region2: #{_lambda_.22} parent=0 // pred_check
    _
  $region3: #{_lambda_.22} parent=0 // pred_check_branch
    %9 = sbr.rel (0) target = $region5
  $region4: #{_lambda_.22} parent=0 // pred_region
    _
  $region5: #{_lambda_.22} parent=0 // pred_fallthru
    _
  // Predicated region
  $region6: #{_lambda_.22} parent=0 // pred_check
    _
  $region7: #{_lambda_.22} parent=0 // pred_check_branch
    %11 = sbr.rel (0) target = $region9
  $region8: #{_lambda_.22} parent=0 // pred_region
    _
  $region9: #{_lambda_.22} parent=0 // pred_fallthru
    _
  // Predicated region
  $region10: #{_lambda_.22} parent=0 // pred_check
    _
  $region11: #{_lambda_.22} parent=0 // pred_check_branch
    %13 = sbr.rel (0) target = $region13
  $region12: #{_lambda_.22} parent=0 // pred_region
    _
  $region13: #{_lambda_.22} parent=0 // pred_fallthru
    _
  %v15 = vld [vmem:[%s0] sm:$0xf]
  %v16 = vld [vmem:[%s0 + $0x4] sm:$0xf]
  %v17 = vld [vmem:[%s0 + $0x8] sm:$0xf]
  %v18 = vld [vmem:[%s0 + $0xc] sm:$0xf]
  %v19 = vld [vmem:[%s0 + $0x10] sm:$0x3]
  %v20 = vld [vmem:[%s1] sm:$0xf]
  %v21 = vld [vmem:[%s1 + $0x4] sm:$0xf]
  %v22 = vld [vmem:[%s2] sm:$0x1]
  %v24 = vperm.slane %v22, 0
  %v31 = vunpack.c.l.b16 %v15
  %v32 = vunpack.c.l.b16 %v16
  %v33 = vunpack.c.l.b16 %v17
  %v34 = vunpack.c.l.b16 %v18
  %v35 = vunpack.c.l.b16 %v19
  %v36 = vpack.c.b16 %v32, %v31
  %v37 = vpack.c.b16 %v34, %v33
  %v38 = vpack.c.b16 %v35, %v35
  %v41 = vunpack.c.l.b16 %v20
  %v42 = vunpack.c.l.b16 %v21
  %v43 = vpack.c.b16 %v42, %v41
  %vm45 = vcmask 130048
  %v47 = vsel %vm45, %v36, 0
  %v50 = vsel %vm45, %v37, 0
  %v53 = vsel %vm45, %v38, 0
  %55 = vmatpush.bf16.msra.mxu0 0
  %56 = vmatpush.bf16.msra.mxu0 0
  %57 = vmatpush.bf16.msra.mxu0 0
  %58 = vmatpush.bf16.msra.mxu0 0
  %59 = vmatpush.bf16.msra.mxu0 0
  %60 = vmatpush.bf16.msra.mxu0 0
  %61 = vmatpush.bf16.msra.mxu0 0
  %62 = vmatpush.bf16.msra.mxu0 %v43
  %63 = vmatmul.bf16.gmra.mxu0 %v47
  %v64 = vpop.f32.mrf.mxu0
  %v65 = vadd.f32 %v24, %v64
  %v66 = vpop.f32.mrf.mxu0
  %v67 = vadd.f32 %v24, %v66
  %68 = vmatmul.bf16.gmra.mxu0 %v50
  %v69 = vpop.f32.mrf.mxu0
  %v70 = vadd.f32 %v24, %v69
  %v71 = vpop.f32.mrf.mxu0
  %v72 = vadd.f32 %v24, %v71
  %73 = vmatmul.bf16.gmra.mxu0 %v53
  %v74 = vpop.f32.mrf.mxu0
  %v75 = vadd.f32 %v24, %v74
  %v76 = vpop.f32.mrf.mxu0
  %77 = vdwg.mxu0
  %vm78 = vcmask 785408
  %79 = vst.msk [vmem:[%s3] sm:$0xff] %vm78, %v65
  %80 = vst.msk [vmem:[%s3 + $0x8] sm:$0xff] %vm78, %v67
  %81 = vst.msk [vmem:[%s3 + $0x10] sm:$0xff] %vm78, %v70
  %82 = vst.msk [vmem:[%s3 + $0x18] sm:$0xff] %vm78, %v72
  %vm83 = vcmask 781312
  %84 = vst.msk [vmem:[%s3 + $0x20] sm:$0xf] %vm83, %v75
  // Predicated region
  $region14: #{_lambda_.22} parent=0 // pred_check
    _
  $region15: #{_lambda_.22} parent=0 // pred_check_branch
    %86 = sbr.rel (0) target = $region17
  $region16: #{_lambda_.22} parent=0 // pred_region
    _
  $region17: #{_lambda_.22} parent=0 // pred_fallthru
    _
  // Predicated region
  $region18: #{_lambda_.22} parent=0 // pred_check
    _
  $region19: #{_lambda_.22} parent=0 // pred_check_branch
    %88 = sbr.rel (0) target = $region21
  $region20: #{_lambda_.22} parent=0 // pred_region
    _
  $region21: #{_lambda_.22} parent=0 // pred_fallthru
    _

// kernel: _lambda_.23
$region0: #{_lambda_.23}
  #allocation0 [shape = 'u32[]', space=smem, size = 0x4, offset = 0x4, fixed_abs, tag = 'smem constant byte address 0x4 - core index']
  #allocation1 [shape = 'u32[72,128]{1,0:T(1,128)}', space=vmem, size = 0x9000, scoped, tag = 'internal scratch']
  #allocation2 [shape = 'f32[6,32]{1,0:T(8,128)}', space=vmem, size = 0x1000, scoped, tag = 'scratch operand']
  %s0 = inlined_call_operand.vmem [shape: f32[6,6,96], index: 0, kind: input, shape index: {}]
  %s1 = inlined_call_operand.vmem [shape: f32[6,32], index: 1, kind: input, shape index: {}]
  %s2 = inlined_call_operand.vmem [shape: bf16[32,96], index: 2, kind: input, shape index: {}]
  %s3 = inlined_call_operand.vmem [shape: f32[1,96], index: 3, kind: input, shape index: {}]
  %s4 = inlined_call_operand.vmem [shape: f32[6,6,32], index: 4, kind: output, shape index: {}]
  %s5 = sld [smem:[#allocation0]]
  $region53: #{_lambda_.23} parent=0
    _
  %s7 = ssub.s32 1, %s5
  %s8 = scalar_select 0, %s7, %s5
  loop: start=0, step=1, limit=8
  $region2: #{_lambda_.23} parent=0 // loop_pre_header
    _
  $region3: #{_lambda_.23} parent=0 // loop_header
    %s10 = sphi 0, %s14
    %p11 = scmp.ge.s32.totalorder %s10, 8
    %s20 = sphi 0, %s22
    %s23 = sphi 0, %s20
    %s24 = sphi 0, %s23
    %s40 = sphi 0, %s24
    %s44 = sphi 0, %s44
    %s46 = sphi 0, %s44
    %s47 = sphi 0, %s46
    %s61 = sphi 0, %s47
    %s65 = sphi 0, %s65
    %s67 = sphi 0, %s65
    %s68 = sphi 0, %s67
    %s82 = sphi 0, %s68
    %s86 = sphi 0, %s86
    %s88 = sphi 0, %s86
    %s89 = sphi 0, %s88
    %s103 = sphi 0, %s89
    %s109 = sphi 0, %s111
    %s112 = sphi 0, %s109
    %s113 = sphi 0, %s112
    %s129 = sphi 0, %s113
  $region4: #{_lambda_.23} parent=0 // loop_header_branch
    %13 = sbr.rel (%p11) target = $region8
  $region5: #{_lambda_.23} parent=0 // loop_body
    %s15 = ssub.s32 %s10, 1
    %s16 = ssub.s32 %s10, 2
    %s17 = sadd.s32 %s10, 1
    %s18 = ssub.s32 %s10, %s17
    %p19 = scmp.eq.s32.totalorder %s18, 0
    %s21 = sadd.s32 %s20, 1
    %s22 = scalar_select %p19, %s20, %s21
    %p25 = pneg %p19
    %p26 = scmp.eq.s32.totalorder %s10, 5
    %p27 = por %p25, %p26
    %p28 = scmp.ne.s32.totalorder %s20, %s23
    %p29 = scmp.eq.s32.totalorder %s10, 0
    %p30 = por %p28, %p29
    %p31 = scmp.ne.s32.totalorder %s20, %s23
    %p32 = scmp.eq.s32.totalorder %s15, 5
    %p33 = por %p31, %p32
    %p34 = scmp.ne.s32.totalorder %s23, %s24
    %p35 = scmp.eq.s32.totalorder %s15, 0
    %p36 = por %p34, %p35
    %p37 = scmp.ne.s32.totalorder %s23, %s24
    %p38 = scmp.eq.s32.totalorder %s16, 5
    %p39 = por %p37, %p38
    %p41 = scmp.ne.s32.totalorder %s24, %s40
    %p42 = scmp.eq.s32.totalorder %s16, 0
    %p43 = por %p41, %p42
    %s45 = sadd.s32 %s44, 1
    %p48 = scmp.eq.s32.totalorder %s10, 5
    %p49 = scmp.ne.s32.totalorder %s44, %s46
    %p50 = scmp.eq.s32.totalorder %s10, 0
    %p51 = por %p49, %p50
    %p52 = scmp.ne.s32.totalorder %s44, %s46
    %p53 = scmp.eq.s32.totalorder %s15, 5
    %p54 = por %p52, %p53
    %p55 = scmp.ne.s32.totalorder %s46, %s47
    %p56 = scmp.eq.s32.totalorder %s15, 0
    %p57 = por %p55, %p56
    %p58 = scmp.ne.s32.totalorder %s46, %s47
    %p59 = scmp.eq.s32.totalorder %s16, 5
    %p60 = por %p58, %p59
    %p62 = scmp.ne.s32.totalorder %s47, %s61
    %p63 = scmp.eq.s32.totalorder %s16, 0
    %p64 = por %p62, %p63
    %s66 = sadd.s32 %s65, 1
    %p69 = scmp.eq.s32.totalorder %s10, 5
    %p70 = scmp.ne.s32.totalorder %s65, %s67
    %p71 = scmp.eq.s32.totalorder %s10, 0
    %p72 = por %p70, %p71
    %p73 = scmp.ne.s32.totalorder %s65, %s67
    %p74 = scmp.eq.s32.totalorder %s15, 5
    %p75 = por %p73, %p74
    %p76 = scmp.ne.s32.totalorder %s67, %s68
    %p77 = scmp.eq.s32.totalorder %s15, 0
    %p78 = por %p76, %p77
    %p79 = scmp.ne.s32.totalorder %s67, %s68
    %p80 = scmp.eq.s32.totalorder %s16, 5
    %p81 = por %p79, %p80
    %p83 = scmp.ne.s32.totalorder %s68, %s82
    %p84 = scmp.eq.s32.totalorder %s16, 0
    %p85 = por %p83, %p84
    %s87 = sadd.s32 %s86, 1
    %p90 = scmp.eq.s32.totalorder %s10, 5
    %p91 = scmp.ne.s32.totalorder %s86, %s88
    %p92 = scmp.eq.s32.totalorder %s10, 0
    %p93 = por %p91, %p92
    %p94 = scmp.ne.s32.totalorder %s86, %s88
    %p95 = scmp.eq.s32.totalorder %s15, 5
    %p96 = por %p94, %p95
    %p97 = scmp.ne.s32.totalorder %s88, %s89
    %p98 = scmp.eq.s32.totalorder %s15, 0
    %p99 = por %p97, %p98
    %p100 = scmp.ne.s32.totalorder %s88, %s89
    %p101 = scmp.eq.s32.totalorder %s16, 5
    %p102 = por %p100, %p101
    %p104 = scmp.ne.s32.totalorder %s89, %s103
    %p105 = scmp.eq.s32.totalorder %s16, 0
    %p106 = por %p104, %p105
    %s107 = ssub.s32 %s10, %s17
    %p108 = scmp.eq.s32.totalorder %s107, 0
    %s110 = sadd.s32 %s109, 1
    %s111 = scalar_select %p108, %s109, %s110
    %p114 = pneg %p108
    %p115 = scmp.eq.s32.totalorder %s10, 5
    %p116 = por %p114, %p115
    %p117 = scmp.ne.s32.totalorder %s109, %s112
    %p118 = scmp.eq.s32.totalorder %s10, 0
    %p119 = por %p117, %p118
    %p120 = scmp.ne.s32.totalorder %s109, %s112
    %p121 = scmp.eq.s32.totalorder %s15, 5
    %p122 = por %p120, %p121
    %p123 = scmp.ne.s32.totalorder %s112, %s113
    %p124 = scmp.eq.s32.totalorder %s15, 0
    %p125 = por %p123, %p124
    %p126 = scmp.ne.s32.totalorder %s112, %s113
    %p127 = scmp.eq.s32.totalorder %s16, 5
    %p128 = por %p126, %p127
    %p130 = scmp.ne.s32.totalorder %s113, %s129
    %p131 = scmp.eq.s32.totalorder %s16, 0
    %p132 = por %p130, %p131
    %p133 = scmp.le.s32.totalorder 1, %s10
    %p134 = scmp.lt.s32.totalorder %s10, 7
    %p135 = pnand %p133, %p134
    %p136 = pneg %p135
    // Predicated region
    $region9: #{_lambda_.23} parent=5 // pred_check
      _
    $region10: #{_lambda_.23} parent=5 // pred_check_branch
      %138 = sbr.rel (%p135) target = $region12
    $region11: #{_lambda_.23} parent=5 // pred_region
      %s139 = ssub.s32 %s10, 1
      // Predicated region
      $region13: #{_lambda_.23} parent=11 // pred_check
        %p140 = pneg %p57
      $region14: #{_lambda_.23} parent=11 // pred_check_branch
        %142 = sbr.rel (%p140) target = $region16
      $region15: #{_lambda_.23} parent=11 // pred_region
        _
      $region16: #{_lambda_.23} parent=11 // pred_fallthru
        _
      // Predicated region
      $region17: #{_lambda_.23} parent=11 // pred_check
        %p143 = pneg %p78
      $region18: #{_lambda_.23} parent=11 // pred_check_branch
        %145 = sbr.rel (%p143) target = $region20
      $region19: #{_lambda_.23} parent=11 // pred_region
        _
      $region20: #{_lambda_.23} parent=11 // pred_fallthru
        _
      // Predicated region
      $region21: #{_lambda_.23} parent=11 // pred_check
        %p146 = pneg %p99
      $region22: #{_lambda_.23} parent=11 // pred_check_branch
        %148 = sbr.rel (%p146) target = $region24
      $region23: #{_lambda_.23} parent=11 // pred_region
        _
      $region24: #{_lambda_.23} parent=11 // pred_fallthru
        _
    $region12: #{_lambda_.23} parent=5 // pred_fallthru
      _
    %p149 = scmp.lt.s32.totalorder %s10, 6
    // Predicated region
    $region25: #{_lambda_.23} parent=5 // pred_check
      %p150 = pneg %p149
    $region26: #{_lambda_.23} parent=5 // pred_check_branch
      %152 = sbr.rel (%p150) target = $region28
    $region27: #{_lambda_.23} parent=5 // pred_region
      // Predicated region
      $region29: #{_lambda_.23} parent=27 // pred_check
        %p153 = pneg %p30
      $region30: #{_lambda_.23} parent=27 // pred_check_branch
        %155 = sbr.rel (%p153) target = $region32
      $region31: #{_lambda_.23} parent=27 // pred_region
        %p156 = scmp.lt.s32.totalorder %s10, 5
        %s157 = scalar_select %p156, %s10, 5
        %s158 = smul.addr %s157, 8
        %s159 = scalar_lea.vmem %s0, %s158
      $region32: #{_lambda_.23} parent=27 // pred_fallthru
        _
    $region28: #{_lambda_.23} parent=5 // pred_fallthru
      _
    %p160 = scmp.le.s32.totalorder 1, %s10
    %p161 = scmp.lt.s32.totalorder %s10, 7
    %p162 = pnand %p160, %p161
    %p163 = pneg %p162
    // Predicated region
    $region33: #{_lambda_.23} parent=5 // pred_check
      _
    $region34: #{_lambda_.23} parent=5 // pred_check_branch
      %165 = sbr.rel (%p162) target = $region36
    $region35: #{_lambda_.23} parent=5 // pred_region
      %s166 = ssub.s32 %s10, 1
      %p167 = scmp.lt.s32.totalorder %s15, 5
      %s168 = scalar_select %p167, %s15, 5
      %s169 = smul.addr %s168, 8
      %s170 = scalar_lea.vmem %s0, %s169
      %p171 = pneg %p36
      %p172 = pneg %p33
      %p173 = pneg %p57
      %p174 = pneg %p54
      %p175 = pneg %p78
      %p176 = pneg %p75
      %p177 = pneg %p99
      %p178 = pneg %p96
      %p179 = pneg %p125
      %p180 = pneg %p122
      %p181 = scmp.lt.s32.totalorder %s15, 5
      %s182 = scalar_select %p181, %s15, 5
      %s183 = smul.addr %s182, 8
      %s184 = scalar_lea.vmem %s4, %s183
      %p185 = scmp.lt.s32.totalorder %s15, 5
      %s186 = scalar_select %p185, %s15, 5
      %s187 = smul.addr %s186, 8
      %s188 = scalar_lea.vmem %s0, %s187
      %p189 = scmp.lt.s32.totalorder %s15, 5
      %s190 = scalar_select %p189, %s15, 5
      %s191 = smul.addr %s190, 8
      %s192 = scalar_lea.vmem %s4, %s191
      %p194 = scmp.eq.s32.totalorder %s15, 0
      // Predicated region
      $region37: #{_lambda_.23} parent=35 // pred_check
        %p195 = pneg %p194
      $region38: #{_lambda_.23} parent=35 // pred_check_branch
        %197 = sbr.rel (%p195) target = $region40
      $region39: #{_lambda_.23} parent=35 // pred_region
        %v198 = vld [vmem:[%s1] sm:$0x3f]
        %vm199 = vcmask 259072
        %200 = vst.msk [vmem:[#allocation2] sm:$0x3f] %vm199, %v198
      $region40: #{_lambda_.23} parent=35 // pred_fallthru
        _
      %v201 = vld [vmem:[#allocation2] sm:$0x3f]
      %v202 = vpack.c.bf16 %v201, %v201
      %v203 = vld [vmem:[%s2] sm:$0xf]
      %v204 = vld [vmem:[%s2 + $0x4] sm:$0xf]
      %v205 = vld [vmem:[%s2 + $0x8] sm:$0xf]
      %v206 = vld [vmem:[%s2 + $0xc] sm:$0xf]
      %v207 = vld [vmem:[%s3] sm:$0x1]
      %v209 = vperm.slane %v207, 0
      %v215 = vunpack.c.l.b16 %v203
      %v216 = vunpack.c.l.b16 %v204
      %v217 = vunpack.c.l.b16 %v205
      %v218 = vunpack.c.l.b16 %v206
      %v219 = vpack.c.b16 %v216, %v215
      %v220 = vpack.c.b16 %v218, %v217
      %vm223 = vcmask 261120
      %v225 = vsel %vm223, %v202, 0
      %227 = vmatpush.bf16.msra.mxu0 0
      %228 = vmatpush.bf16.msra.mxu0 0
      %229 = vmatpush.bf16.msra.mxu0 0
      %230 = vmatpush.bf16.msra.mxu0 0
      %231 = vmatpush.bf16.msra.mxu0 0
      %232 = vmatpush.bf16.msra.mxu0 0
      %233 = vmatpush.bf16.msra.mxu0 %v220
      %234 = vmatpush.bf16.msra.mxu0 %v219
      %235 = vmatmul.bf16.gmra.mxu0 %v225
      %v236 = vpop.f32.mrf.mxu0
      %v237 = vadd.f32 %v209, %v236
      %v238 = vpop.f32.mrf.mxu0
      %239 = vdwg.mxu0
      %v240 = vld [vmem:[%s188] sm:$0x3f]
      %v241 = vadd.f32 %v240, %v237
      %v242 = vxor.u32 %v241, 2147483648
      %v243 = vmul.f32 %v242, 1.442695
      %v244 = vpow.pop %v243
      %v245 = vadd.f32 %v244, 1.0
      %v246 = vrcp.pop %v245
      %v247 = vmul.f32 %v245, %v246
      %v248 = vsub.f32 1.0, %v247
      %v249 = vmul.f32 %v246, %v248
      %v250 = vadd.f32 %v246, %v249
      %vm251 = vweird.f32 %v245
      %vm252 = vweird.f32 %v246
      %vm253 = vmor %vm251, %vm252
      %v254 = vsel %vm253, %v246, %v250
      %v255 = vand.u32 2147483647, %v245
      %vm256 = vcmp.eq.f32.partialorder %v255, 8.507059e+37
      %v257 = vand.u32 %v245, 2147483648
      %v258 = vor.u32 1.1754944e-38, %v257
      %v259 = vsel %vm256, %v258, %v254
      %v260 = vmul.f32 1.0, %v259
      %262 = vrot.lane.b32.xlu0 %v237, 64
      %v263 = vpop.permute.xlu0 %262
      %v265 = vmul.f32 %v260, %v263
      %267 = vrot.lane.b32.xlu0 %v265, 64
      %v268 = vpop.permute.xlu0 %267
      %v270 = vadd.f32 %v240, %v268
      %v271 = vtanh.pop %v270
      %v272 = vsub.f32 1.0, %v260
      %274 = vrot.lane.b32.xlu0 %v271, 96
      %v275 = vpop.permute.xlu0 %274
      %v277 = vmul.f32 %v272, %v275
      %279 = vrot.lane.b32.xlu0 %v201, 32
      %v280 = vpop.permute.xlu0 %279
      %v282 = vmul.f32 %v260, %v280
      %v283 = vadd.f32 %v277, %v282
      %285 = vrot.lane.b32.xlu0 %v283, 96
      %v286 = vpop.permute.xlu0 %285
      %vm288 = vcmask 259072
      %289 = vst.msk [vmem:[#allocation2] sm:$0x3f] %vm288, %v286
      %290 = vst.msk [vmem:[%s192] sm:$0x3f] %vm288, %v286
      %p291 = scmp.lt.s32.totalorder %s15, 5
      %s292 = scalar_select %p291, %s15, 5
      %s293 = smul.addr %s292, 8
      %s294 = scalar_lea.vmem %s4, %s293
      // Predicated region
      $region41: #{_lambda_.23} parent=35 // pred_check
        %p295 = pneg %p122
      $region42: #{_lambda_.23} parent=35 // pred_check_branch
        %297 = sbr.rel (%p295) target = $region44
      $region43: #{_lambda_.23} parent=35 // pred_region
        _
      $region44: #{_lambda_.23} parent=35 // pred_fallthru
        _
    $region36: #{_lambda_.23} parent=5 // pred_fallthru
      _
    %p298 = scmp.le.s32.totalorder 2, %s10
    // Predicated region
    $region45: #{_lambda_.23} parent=5 // pred_check
      %p299 = pneg %p298
    $region46: #{_lambda_.23} parent=5 // pred_check_branch
      %301 = sbr.rel (%p299) target = $region48
    $region47: #{_lambda_.23} parent=5 // pred_region
      %s302 = ssub.s32 %s10, 2
      // Predicated region
      $region49: #{_lambda_.23} parent=47 // pred_check
        %p303 = pneg %p128
      $region50: #{_lambda_.23} parent=47 // pred_check_branch
        %305 = sbr.rel (%p303) target = $region52
      $region51: #{_lambda_.23} parent=47 // pred_region
        %p306 = scmp.lt.s32.totalorder %s16, 5
        %s307 = scalar_select %p306, %s16, 5
        %s308 = smul.addr %s307, 8
        %s309 = scalar_lea.vmem %s4, %s308
      $region52: #{_lambda_.23} parent=47 // pred_fallthru
        _
    $region48: #{_lambda_.23} parent=5 // pred_fallthru
      _
  $region6: #{_lambda_.23} parent=0 // loop_footer
    %s14 = sadd.s32 1, %s10
  $region7: #{_lambda_.23} parent=0 // loop_footer_branch
    %9 = sbr.rel target = $region3
  $region8: #{_lambda_.23} parent=0 // loop_exit
    _

// kernel: _lambda_.25
$region0: #{_lambda_.25}
  #allocation0 [shape = 'u32[]', space=smem, size = 0x4, offset = 0x4, fixed_abs, tag = 'smem constant byte address 0x4 - core index']
  #allocation1 [shape = 'u32[72,128]{1,0:T(1,128)}', space=vmem, size = 0x9000, scoped, tag = 'internal scratch']
  %s0 = inlined_call_operand.vmem [shape: bf16[2,1,32], index: 0, kind: input, shape index: {}]
  %s1 = inlined_call_operand.vmem [shape: bf16[2,3,32], index: 1, kind: input, shape index: {}, may-alias: {1,2}]
  %s2 = inlined_call_operand.vmem [shape: bf16[2,3,32], index: 2, kind: input, shape index: {}, may-alias: {1,2}]
  %s3 = inlined_call_operand.vmem [shape: f32[2,1,3], index: 3, kind: input, shape index: {}]
  %s4 = inlined_call_operand.vmem [shape: f32[2,1,32], index: 4, kind: output, shape index: {}]
  %s5 = sld [smem:[#allocation0]]
  $region49: #{_lambda_.25} parent=0
    _
  %s7 = ssub.s32 1, %s5
  %s8 = scalar_select 0, %s7, %s5
  loop: start=0, step=1, limit=4
  $region2: #{_lambda_.25} parent=0 // loop_pre_header
    _
  $region3: #{_lambda_.25} parent=0 // loop_header
    %s10 = sphi 0, %s14
    %p11 = scmp.ge.s32.totalorder %s10, 4
    %s20 = sphi 0, %s22
    %s23 = sphi 0, %s20
    %s24 = sphi 0, %s23
    %s40 = sphi 0, %s24
    %s46 = sphi 0, %s48
    %s49 = sphi 0, %s46
    %s50 = sphi 0, %s49
    %s66 = sphi 0, %s50
    %s72 = sphi 0, %s74
    %s75 = sphi 0, %s72
    %s76 = sphi 0, %s75
    %s92 = sphi 0, %s76
    %s98 = sphi 0, %s100
    %s101 = sphi 0, %s98
    %s102 = sphi 0, %s101
    %s118 = sphi 0, %s102
    %s124 = sphi 0, %s126
    %s127 = sphi 0, %s124
    %s128 = sphi 0, %s127
    %s144 = sphi 0, %s128
  $region4: #{_lambda_.25} parent=0 // loop_header_branch
    %13 = sbr.rel (%p11) target = $region8
  $region5: #{_lambda_.25} parent=0 // loop_body
    %s15 = ssub.s32 %s10, 1
    %s16 = ssub.s32 %s10, 2
    %s17 = sadd.s32 %s10, 1
    %s18 = ssub.s32 %s10, %s17
    %p19 = scmp.eq.s32.totalorder %s18, 0
    %s21 = sadd.s32 %s20, 1
    %s22 = scalar_select %p19, %s20, %s21
    %p25 = pneg %p19
    %p26 = scmp.eq.s32.totalorder %s10, 1
    %p27 = por %p25, %p26
    %p28 = scmp.ne.s32.totalorder %s20, %s23
    %p29 = scmp.eq.s32.totalorder %s10, 0
    %p30 = por %p28, %p29
    %p31 = scmp.ne.s32.totalorder %s20, %s23
    %p32 = scmp.eq.s32.totalorder %s15, 1
    %p33 = por %p31, %p32
    %p34 = scmp.ne.s32.totalorder %s23, %s24
    %p35 = scmp.eq.s32.totalorder %s15, 0
    %p36 = por %p34, %p35
    %p37 = scmp.ne.s32.totalorder %s23, %s24
    %p38 = scmp.eq.s32.totalorder %s16, 1
    %p39 = por %p37, %p38
    %p41 = scmp.ne.s32.totalorder %s24, %s40
    %p42 = scmp.eq.s32.totalorder %s16, 0
    %p43 = por %p41, %p42
    %s44 = ssub.s32 %s10, %s17
    %p45 = scmp.eq.s32.totalorder %s44, 0
    %s47 = sadd.s32 %s46, 1
    %s48 = scalar_select %p45, %s46, %s47
    %p51 = pneg %p45
    %p52 = scmp.eq.s32.totalorder %s10, 1
    %p53 = por %p51, %p52
    %p54 = scmp.ne.s32.totalorder %s46, %s49
    %p55 = scmp.eq.s32.totalorder %s10, 0
    %p56 = por %p54, %p55
    %p57 = scmp.ne.s32.totalorder %s46, %s49
    %p58 = scmp.eq.s32.totalorder %s15, 1
    %p59 = por %p57, %p58
    %p60 = scmp.ne.s32.totalorder %s49, %s50
    %p61 = scmp.eq.s32.totalorder %s15, 0
    %p62 = por %p60, %p61
    %p63 = scmp.ne.s32.totalorder %s49, %s50
    %p64 = scmp.eq.s32.totalorder %s16, 1
    %p65 = por %p63, %p64
    %p67 = scmp.ne.s32.totalorder %s50, %s66
    %p68 = scmp.eq.s32.totalorder %s16, 0
    %p69 = por %p67, %p68
    %s70 = ssub.s32 %s10, %s17
    %p71 = scmp.eq.s32.totalorder %s70, 0
    %s73 = sadd.s32 %s72, 1
    %s74 = scalar_select %p71, %s72, %s73
    %p77 = pneg %p71
    %p78 = scmp.eq.s32.totalorder %s10, 1
    %p79 = por %p77, %p78
    %p80 = scmp.ne.s32.totalorder %s72, %s75
    %p81 = scmp.eq.s32.totalorder %s10, 0
    %p82 = por %p80, %p81
    %p83 = scmp.ne.s32.totalorder %s72, %s75
    %p84 = scmp.eq.s32.totalorder %s15, 1
    %p85 = por %p83, %p84
    %p86 = scmp.ne.s32.totalorder %s75, %s76
    %p87 = scmp.eq.s32.totalorder %s15, 0
    %p88 = por %p86, %p87
    %p89 = scmp.ne.s32.totalorder %s75, %s76
    %p90 = scmp.eq.s32.totalorder %s16, 1
    %p91 = por %p89, %p90
    %p93 = scmp.ne.s32.totalorder %s76, %s92
    %p94 = scmp.eq.s32.totalorder %s16, 0
    %p95 = por %p93, %p94
    %s96 = ssub.s32 %s10, %s17
    %p97 = scmp.eq.s32.totalorder %s96, 0
    %s99 = sadd.s32 %s98, 1
    %s100 = scalar_select %p97, %s98, %s99
    %p103 = pneg %p97
    %p104 = scmp.eq.s32.totalorder %s10, 1
    %p105 = por %p103, %p104
    %p106 = scmp.ne.s32.totalorder %s98, %s101
    %p107 = scmp.eq.s32.totalorder %s10, 0
    %p108 = por %p106, %p107
    %p109 = scmp.ne.s32.totalorder %s98, %s101
    %p110 = scmp.eq.s32.totalorder %s15, 1
    %p111 = por %p109, %p110
    %p112 = scmp.ne.s32.totalorder %s101, %s102
    %p113 = scmp.eq.s32.totalorder %s15, 0
    %p114 = por %p112, %p113
    %p115 = scmp.ne.s32.totalorder %s101, %s102
    %p116 = scmp.eq.s32.totalorder %s16, 1
    %p117 = por %p115, %p116
    %p119 = scmp.ne.s32.totalorder %s102, %s118
    %p120 = scmp.eq.s32.totalorder %s16, 0
    %p121 = por %p119, %p120
    %s122 = ssub.s32 %s10, %s17
    %p123 = scmp.eq.s32.totalorder %s122, 0
    %s125 = sadd.s32 %s124, 1
    %s126 = scalar_select %p123, %s124, %s125
    %p129 = pneg %p123
    %p130 = scmp.eq.s32.totalorder %s10, 1
    %p131 = por %p129, %p130
    %p132 = scmp.ne.s32.totalorder %s124, %s127
    %p133 = scmp.eq.s32.totalorder %s10, 0
    %p134 = por %p132, %p133
    %p135 = scmp.ne.s32.totalorder %s124, %s127
    %p136 = scmp.eq.s32.totalorder %s15, 1
    %p137 = por %p135, %p136
    %p138 = scmp.ne.s32.totalorder %s127, %s128
    %p139 = scmp.eq.s32.totalorder %s15, 0
    %p140 = por %p138, %p139
    %p141 = scmp.ne.s32.totalorder %s127, %s128
    %p142 = scmp.eq.s32.totalorder %s16, 1
    %p143 = por %p141, %p142
    %p145 = scmp.ne.s32.totalorder %s128, %s144
    %p146 = scmp.eq.s32.totalorder %s16, 0
    %p147 = por %p145, %p146
    %p148 = scmp.le.s32.totalorder 1, %s10
    %p149 = scmp.lt.s32.totalorder %s10, 3
    %p150 = pnand %p148, %p149
    %p151 = pneg %p150
    // Predicated region
    $region9: #{_lambda_.25} parent=5 // pred_check
      _
    $region10: #{_lambda_.25} parent=5 // pred_check_branch
      %153 = sbr.rel (%p150) target = $region12
    $region11: #{_lambda_.25} parent=5 // pred_region
      %s154 = ssub.s32 %s10, 1
    $region12: #{_lambda_.25} parent=5 // pred_fallthru
      _
    %p155 = scmp.lt.s32.totalorder %s10, 2
    // Predicated region
    $region13: #{_lambda_.25} parent=5 // pred_check
      %p156 = pneg %p155
    $region14: #{_lambda_.25} parent=5 // pred_check_branch
      %158 = sbr.rel (%p156) target = $region16
    $region15: #{_lambda_.25} parent=5 // pred_region
      // Predicated region
      $region17: #{_lambda_.25} parent=15 // pred_check
        %p159 = pneg %p30
      $region18: #{_lambda_.25} parent=15 // pred_check_branch
        %161 = sbr.rel (%p159) target = $region20
      $region19: #{_lambda_.25} parent=15 // pred_region
        %p162 = scmp.lt.s32.totalorder %s10, 1
        %s163 = scalar_select %p162, %s10, 1
        %s164 = scalar_lea.vmem %s0, %s163
      $region20: #{_lambda_.25} parent=15 // pred_fallthru
        _
      // Predicated region
      $region21: #{_lambda_.25} parent=15 // pred_check
        %p165 = pneg %p56
      $region22: #{_lambda_.25} parent=15 // pred_check_branch
        %167 = sbr.rel (%p165) target = $region24
      $region23: #{_lambda_.25} parent=15 // pred_region
        %p168 = scmp.lt.s32.totalorder %s10, 1
        %s169 = scalar_select %p168, %s10, 1
        %s170 = smul.addr %s169, 2
        %s171 = scalar_lea.vmem %s1, %s170
      $region24: #{_lambda_.25} parent=15 // pred_fallthru
        _
      // Predicated region
      $region25: #{_lambda_.25} parent=15 // pred_check
        %p172 = pneg %p82
      $region26: #{_lambda_.25} parent=15 // pred_check_branch
        %174 = sbr.rel (%p172) target = $region28
      $region27: #{_lambda_.25} parent=15 // pred_region
        %p175 = scmp.lt.s32.totalorder %s10, 1
        %s176 = scalar_select %p175, %s10, 1
        %s177 = smul.addr %s176, 2
        %s178 = scalar_lea.vmem %s2, %s177
      $region28: #{_lambda_.25} parent=15 // pred_fallthru
        _
      // Predicated region
      $region29: #{_lambda_.25} parent=15 // pred_check
        %p179 = pneg %p108
      $region30: #{_lambda_.25} parent=15 // pred_check_branch
        %181 = sbr.rel (%p179) target = $region32
      $region31: #{_lambda_.25} parent=15 // pred_region
        %p182 = scmp.lt.s32.totalorder %s10, 1
        %s183 = scalar_select %p182, %s10, 1
        %s184 = scalar_lea.vmem %s3, %s183
      $region32: #{_lambda_.25} parent=15 // pred_fallthru
        _
    $region16: #{_lambda_.25} parent=5 // pred_fallthru
      _
    %p185 = scmp.le.s32.totalorder 1, %s10
    %p186 = scmp.lt.s32.totalorder %s10, 3
    %p187 = pnand %p185, %p186
    %p188 = pneg %p187
    // Predicated region
    $region33: #{_lambda_.25} parent=5 // pred_check
      _
    $region34: #{_lambda_.25} parent=5 // pred_check_branch
      %190 = sbr.rel (%p187) target = $region36
    $region35: #{_lambda_.25} parent=5 // pred_region
      %s191 = ssub.s32 %s10, 1
      %p192 = scmp.lt.s32.totalorder %s15, 1
      %s193 = scalar_select %p192, %s15, 1
      %s194 = scalar_lea.vmem %s0, %s193
      %p195 = pneg %p36
      %p196 = pneg %p33
      %p197 = scmp.lt.s32.totalorder %s15, 1
      %s198 = scalar_select %p197, %s15, 1
      %s199 = smul.addr %s198, 2
      %s200 = scalar_lea.vmem %s1, %s199
      %p201 = pneg %p62
      %p202 = pneg %p59
      %p203 = scmp.lt.s32.totalorder %s15, 1
      %s204 = scalar_select %p203, %s15, 1
      %s205 = smul.addr %s204, 2
      %s206 = scalar_lea.vmem %s2, %s205
      %p207 = pneg %p88
      %p208 = pneg %p85
      %p209 = scmp.lt.s32.totalorder %s15, 1
      %s210 = scalar_select %p209, %s15, 1
      %s211 = scalar_lea.vmem %s3, %s210
      %p212 = pneg %p114
      %p213 = pneg %p111
      %p214 = pneg %p140
      %p215 = pneg %p137
      %p216 = scmp.lt.s32.totalorder %s15, 1
      %s217 = scalar_select %p216, %s15, 1
      %s218 = scalar_lea.vmem %s4, %s217
      %p219 = scmp.lt.s32.totalorder %s15, 1
      %s220 = scalar_select %p219, %s15, 1
      %s221 = scalar_lea.vmem %s0, %s220
      %p222 = scmp.lt.s32.totalorder %s15, 1
      %s223 = scalar_select %p222, %s15, 1
      %s224 = smul.addr %s223, 2
      %s225 = scalar_lea.vmem %s1, %s224
      %p226 = scmp.lt.s32.totalorder %s15, 1
      %s227 = scalar_select %p226, %s15, 1
      %s228 = smul.addr %s227, 2
      %s229 = scalar_lea.vmem %s2, %s228
      %p230 = scmp.lt.s32.totalorder %s15, 1
      %s231 = scalar_select %p230, %s15, 1
      %s232 = scalar_lea.vmem %s3, %s231
      %p233 = scmp.lt.s32.totalorder %s15, 1
      %s234 = scalar_select %p233, %s15, 1
      %s235 = scalar_lea.vmem %s4, %s234
      %v237 = vld [vmem:[%s221] sm:$0x1]
      %v238 = vld [vmem:[%s225] sm:$0x3]
      %v239 = vld [vmem:[%s229] sm:$0x3]
      %v240 = vld [vmem:[%s232] sm:$0x1]
      %vm241 = vcmask 261120
      %v243 = vsel %vm241, %v237, 0
      %v246 = vsel %vm241, %v238, 0
      %248 = vmatpush.bf16.xpose.msra.mxu0 0
      %249 = vmatpush.bf16.xpose.msra.mxu0 0
      %250 = vmatpush.bf16.xpose.msra.mxu0 0
      %251 = vmatpush.bf16.xpose.msra.mxu0 0
      %252 = vmatpush.bf16.xpose.msra.mxu0 0
      %253 = vmatpush.bf16.xpose.msra.mxu0 0
      %254 = vmatpush.bf16.xpose.msra.mxu0 0
      %255 = vmatpush.bf16.xpose.msra.mxu0 %v246
      %256 = vmatmul.bf16.gmra.mxu0 %v243
      %v257 = vpop.f32.mrf.mxu0
      %v258 = vadd.f32 0.0, %v257
      %v259 = vpop.f32.mrf.mxu0
      %260 = vdwg.mxu0
      %vm261 = vcmp.gt.f32.partialorder %v240, 0.0
      %v262 = vsel %vm261, %v258, -1e+09
      %vm263 = vcmask 16384
      %v264 = vsel %vm263, %v262, -inf
      %265 = vmax.xlane.f32.xlu0 %v264
      %v266 = vpop.xlane.xlu0 %265
      %v267 = vsub.f32 %v262, %v266
      %v268 = vmul.f32 %v267, 1.442695
      %v269 = vpow.pop %v268
      %v270 = vsel %vm263, %v269, 0.0
      %271 = vadd.xlane.f32.xlu0 %v270
      %v272 = vpop.xlane.xlu0 %271
      %v273 = vrcp.pop %v272
      %v274 = vmul.f32 %v272, %v273
      %v275 = vsub.f32 1.0, %v274
      %v276 = vmul.f32 %v273, %v275
      %v277 = vadd.f32 %v273, %v276
      %vm278 = vweird.f32 %v272
      %vm279 = vweird.f32 %v273
      %vm280 = vmor %vm278, %vm279
      %v281 = vsel %vm280, %v273, %v277
      %v282 = vand.u32 2147483647, %v272
      %vm283 = vcmp.eq.f32.partialorder %v282, 8.507059e+37
      %v284 = vand.u32 %v272, 2147483648
      %v285 = vor.u32 1.1754944e-38, %v284
      %v286 = vsel %vm283, %v285, %v281
      %v287 = vmul.f32 %v269, %v286
      %v288 = vpack.c.bf16 %v287, %v287
      %vm289 = vcmask 23552
      %v291 = vsel %vm289, %v288, 0
      %vm293 = vcmask 1040384
      %vm294 = vcmask 1041408
      %v295 = vsel %vm293, 4294967295, 65535
      %v296 = vsel %vm294, %v295, 0
      %v298 = vand.u32 %v239, %v296
      %300 = vmatpush.bf16.msra.mxu0 0
      %301 = vmatpush.bf16.msra.mxu0 0
      %302 = vmatpush.bf16.msra.mxu0 0
      %303 = vmatpush.bf16.msra.mxu0 0
      %304 = vmatpush.bf16.msra.mxu0 0
      %305 = vmatpush.bf16.msra.mxu0 0
      %306 = vmatpush.bf16.msra.mxu0 0
      %307 = vmatpush.bf16.msra.mxu0 %v298
      %308 = vmatmul.bf16.gmra.mxu0 %v291
      %v309 = vpop.f32.mrf.mxu0
      %v310 = vadd.f32 0.0, %v309
      %v311 = vpop.f32.mrf.mxu0
      %312 = vdwg.mxu0
      %vm313 = vcmask 253952
      %314 = vst.msk [vmem:[%s235] sm:$0x1] %vm313, %v310
      %p315 = scmp.lt.s32.totalorder %s15, 1
      %s316 = scalar_select %p315, %s15, 1
      %s317 = scalar_lea.vmem %s4, %s316
      // Predicated region
      $region37: #{_lambda_.25} parent=35 // pred_check
        %p318 = pneg %p137
      $region38: #{_lambda_.25} parent=35 // pred_check_branch
        %320 = sbr.rel (%p318) target = $region40
      $region39: #{_lambda_.25} parent=35 // pred_region
        _
      $region40: #{_lambda_.25} parent=35 // pred_fallthru
        _
    $region36: #{_lambda_.25} parent=5 // pred_fallthru
      _
    %p321 = scmp.le.s32.totalorder 2, %s10
    // Predicated region
    $region41: #{_lambda_.25} parent=5 // pred_check
      %p322 = pneg %p321
    $region42: #{_lambda_.25} parent=5 // pred_check_branch
      %324 = sbr.rel (%p322) target = $region44
    $region43: #{_lambda_.25} parent=5 // pred_region
      %s325 = ssub.s32 %s10, 2
      // Predicated region
      $region45: #{_lambda_.25} parent=43 // pred_check
        %p326 = pneg %p143
      $region46: #{_lambda_.25} parent=43 // pred_check_branch
        %328 = sbr.rel (%p326) target = $region48
      $region47: #{_lambda_.25} parent=43 // pred_region
        %p329 = scmp.lt.s32.totalorder %s16, 1
        %s330 = scalar_select %p329, %s16, 1
        %s331 = scalar_lea.vmem %s4, %s330
      $region48: #{_lambda_.25} parent=43 // pred_fallthru
        _
    $region44: #{_lambda_.25} parent=5 // pred_fallthru
      _
  $region6: #{_lambda_.25} parent=0 // loop_footer
    %s14 = sadd.s32 1, %s10
  $region7: #{_lambda_.25} parent=0 // loop_footer_branch
    %9 = sbr.rel target = $region3
  $region8: #{_lambda_.25} parent=0 // loop_exit
    _

// kernel: _lambda_.31
$region0: #{_lambda_.31}
  #allocation0 [shape = 'u32[]', space=smem, size = 0x4, offset = 0x4, fixed_abs, tag = 'smem constant byte address 0x4 - core index']
  #allocation1 [shape = 'u32[72,128]{1,0:T(1,128)}', space=vmem, size = 0x9000, scoped, tag = 'internal scratch']
  %s0 = inlined_call_operand.vmem [shape: bf16[2,1,64], index: 0, kind: input, shape index: {}]
  %s1 = inlined_call_operand.vmem [shape: bf16[64,32], index: 1, kind: input, shape index: {}]
  %s2 = inlined_call_operand.vmem [shape: f32[1,32], index: 2, kind: input, shape index: {}]
  %s3 = inlined_call_operand.vmem [shape: bf16[2,3,32], index: 3, kind: input, shape index: {}, may-alias: {3,4}]
  %s4 = inlined_call_operand.vmem [shape: bf16[2,3,32], index: 4, kind: input, shape index: {}, may-alias: {3,4}]
  %s5 = inlined_call_operand.vmem [shape: f32[2,1,3], index: 5, kind: input, shape index: {}]
  %s6 = inlined_call_operand.vmem [shape: f32[2,1,32], index: 6, kind: output, shape index: {0}]
  %s7 = inlined_call_operand.hbm [shape: f32[2,1,3], index: 7, kind: output, shape index: {1}]
  %8 = xla_tuple %s6, %s7
  %s9 = sld [smem:[#allocation0]]
  $region65: #{_lambda_.31} parent=0
    _
  %s11 = ssub.s32 1, %s9
  %s12 = scalar_select 0, %s11, %s9
  $region1: #{_lambda_.31} parent=0
    #allocation2 [shape = 'u8[1024]{0}', space=vmem, size = 0x400, scoped, tag = 'output window, operand 1']
    #allocation3 [shape = 's32[2]{0}', space=sflag, size = 0x8, scoped, tag = 'scoped memory for _lambda_.31']
    %13 = vsyncpa [#allocation3], 0
    %s14 = scalar_lea.sflag [#allocation3], 1
    %15 = vsyncpa %s14, 0
    loop: start=0, step=1, limit=4
    $region2: #{_lambda_.31} parent=1 // loop_pre_header
      _
    $region3: #{_lambda_.31} parent=1 // loop_header
      %s17 = sphi 0, %s21
      %p18 = scmp.ge.s32.totalorder %s17, 4
      %s27 = sphi 0, %s29
      %s30 = sphi 0, %s27
      %s31 = sphi 0, %s30
      %s47 = sphi 0, %s31
      %s51 = sphi 0, %s51
      %s53 = sphi 0, %s51
      %s54 = sphi 0, %s53
      %s68 = sphi 0, %s54
      %s72 = sphi 0, %s72
      %s74 = sphi 0, %s72
      %s75 = sphi 0, %s74
      %s89 = sphi 0, %s75
      %s95 = sphi 0, %s97
      %s98 = sphi 0, %s95
      %s99 = sphi 0, %s98
      %s115 = sphi 0, %s99
      %s121 = sphi 0, %s123
      %s124 = sphi 0, %s121
      %s125 = sphi 0, %s124
      %s141 = sphi 0, %s125
      %s147 = sphi 0, %s149
      %s150 = sphi 0, %s147
      %s151 = sphi 0, %s150
      %s167 = sphi 0, %s151
      %s173 = sphi 0, %s175
      %s176 = sphi 0, %s173
      %s177 = sphi 0, %s176
      %s193 = sphi 0, %s177
      %s199 = sphi 0, %s201
      %s202 = sphi 0, %s199
      %s203 = sphi 0, %s202
      %s219 = sphi 0, %s203
    $region4: #{_lambda_.31} parent=1 // loop_header_branch
      %20 = sbr.rel (%p18) target = $region8
    $region5: #{_lambda_.31} parent=1 // loop_body
      %s22 = ssub.s32 %s17, 1
      %s23 = ssub.s32 %s17, 2
      %s24 = sadd.s32 %s17, 1
      %s25 = ssub.s32 %s17, %s24
      %p26 = scmp.eq.s32.totalorder %s25, 0
      %s28 = sadd.s32 %s27, 1
      %s29 = scalar_select %p26, %s27, %s28
      %p32 = pneg %p26
      %p33 = scmp.eq.s32.totalorder %s17, 1
      %p34 = por %p32, %p33
      %p35 = scmp.ne.s32.totalorder %s27, %s30
      %p36 = scmp.eq.s32.totalorder %s17, 0
      %p37 = por %p35, %p36
      %p38 = scmp.ne.s32.totalorder %s27, %s30
      %p39 = scmp.eq.s32.totalorder %s22, 1
      %p40 = por %p38, %p39
      %p41 = scmp.ne.s32.totalorder %s30, %s31
      %p42 = scmp.eq.s32.totalorder %s22, 0
      %p43 = por %p41, %p42
      %p44 = scmp.ne.s32.totalorder %s30, %s31
      %p45 = scmp.eq.s32.totalorder %s23, 1
      %p46 = por %p44, %p45
      %p48 = scmp.ne.s32.totalorder %s31, %s47
      %p49 = scmp.eq.s32.totalorder %s23, 0
      %p50 = por %p48, %p49
      %s52 = sadd.s32 %s51, 1
      %p55 = scmp.eq.s32.totalorder %s17, 1
      %p56 = scmp.ne.s32.totalorder %s51, %s53
      %p57 = scmp.eq.s32.totalorder %s17, 0
      %p58 = por %p56, %p57
      %p59 = scmp.ne.s32.totalorder %s51, %s53
      %p60 = scmp.eq.s32.totalorder %s22, 1
      %p61 = por %p59, %p60
      %p62 = scmp.ne.s32.totalorder %s53, %s54
      %p63 = scmp.eq.s32.totalorder %s22, 0
      %p64 = por %p62, %p63
      %p65 = scmp.ne.s32.totalorder %s53, %s54
      %p66 = scmp.eq.s32.totalorder %s23, 1
      %p67 = por %p65, %p66
      %p69 = scmp.ne.s32.totalorder %s54, %s68
      %p70 = scmp.eq.s32.totalorder %s23, 0
      %p71 = por %p69, %p70
      %s73 = sadd.s32 %s72, 1
      %p76 = scmp.eq.s32.totalorder %s17, 1
      %p77 = scmp.ne.s32.totalorder %s72, %s74
      %p78 = scmp.eq.s32.totalorder %s17, 0
      %p79 = por %p77, %p78
      %p80 = scmp.ne.s32.totalorder %s72, %s74
      %p81 = scmp.eq.s32.totalorder %s22, 1
      %p82 = por %p80, %p81
      %p83 = scmp.ne.s32.totalorder %s74, %s75
      %p84 = scmp.eq.s32.totalorder %s22, 0
      %p85 = por %p83, %p84
      %p86 = scmp.ne.s32.totalorder %s74, %s75
      %p87 = scmp.eq.s32.totalorder %s23, 1
      %p88 = por %p86, %p87
      %p90 = scmp.ne.s32.totalorder %s75, %s89
      %p91 = scmp.eq.s32.totalorder %s23, 0
      %p92 = por %p90, %p91
      %s93 = ssub.s32 %s17, %s24
      %p94 = scmp.eq.s32.totalorder %s93, 0
      %s96 = sadd.s32 %s95, 1
      %s97 = scalar_select %p94, %s95, %s96
      %p100 = pneg %p94
      %p101 = scmp.eq.s32.totalorder %s17, 1
      %p102 = por %p100, %p101
      %p103 = scmp.ne.s32.totalorder %s95, %s98
      %p104 = scmp.eq.s32.totalorder %s17, 0
      %p105 = por %p103, %p104
      %p106 = scmp.ne.s32.totalorder %s95, %s98
      %p107 = scmp.eq.s32.totalorder %s22, 1
      %p108 = por %p106, %p107
      %p109 = scmp.ne.s32.totalorder %s98, %s99
      %p110 = scmp.eq.s32.totalorder %s22, 0
      %p111 = por %p109, %p110
      %p112 = scmp.ne.s32.totalorder %s98, %s99
      %p113 = scmp.eq.s32.totalorder %s23, 1
      %p114 = por %p112, %p113
      %p116 = scmp.ne.s32.totalorder %s99, %s115
      %p117 = scmp.eq.s32.totalorder %s23, 0
      %p118 = por %p116, %p117
      %s119 = ssub.s32 %s17, %s24
      %p120 = scmp.eq.s32.totalorder %s119, 0
      %s122 = sadd.s32 %s121, 1
      %s123 = scalar_select %p120, %s121, %s122
      %p126 = pneg %p120
      %p127 = scmp.eq.s32.totalorder %s17, 1
      %p128 = por %p126, %p127
      %p129 = scmp.ne.s32.totalorder %s121, %s124
      %p130 = scmp.eq.s32.totalorder %s17, 0
      %p131 = por %p129, %p130
      %p132 = scmp.ne.s32.totalorder %s121, %s124
      %p133 = scmp.eq.s32.totalorder %s22, 1
      %p134 = por %p132, %p133
      %p135 = scmp.ne.s32.totalorder %s124, %s125
      %p136 = scmp.eq.s32.totalorder %s22, 0
      %p137 = por %p135, %p136
      %p138 = scmp.ne.s32.totalorder %s124, %s125
      %p139 = scmp.eq.s32.totalorder %s23, 1
      %p140 = por %p138, %p139
      %p142 = scmp.ne.s32.totalorder %s125, %s141
      %p143 = scmp.eq.s32.totalorder %s23, 0
      %p144 = por %p142, %p143
      %s145 = ssub.s32 %s17, %s24
      %p146 = scmp.eq.s32.totalorder %s145, 0
      %s148 = sadd.s32 %s147, 1
      %s149 = scalar_select %p146, %s147, %s148
      %p152 = pneg %p146
      %p153 = scmp.eq.s32.totalorder %s17, 1
      %p154 = por %p152, %p153
      %p155 = scmp.ne.s32.totalorder %s147, %s150
      %p156 = scmp.eq.s32.totalorder %s17, 0
      %p157 = por %p155, %p156
      %p158 = scmp.ne.s32.totalorder %s147, %s150
      %p159 = scmp.eq.s32.totalorder %s22, 1
      %p160 = por %p158, %p159
      %p161 = scmp.ne.s32.totalorder %s150, %s151
      %p162 = scmp.eq.s32.totalorder %s22, 0
      %p163 = por %p161, %p162
      %p164 = scmp.ne.s32.totalorder %s150, %s151
      %p165 = scmp.eq.s32.totalorder %s23, 1
      %p166 = por %p164, %p165
      %p168 = scmp.ne.s32.totalorder %s151, %s167
      %p169 = scmp.eq.s32.totalorder %s23, 0
      %p170 = por %p168, %p169
      %s171 = ssub.s32 %s17, %s24
      %p172 = scmp.eq.s32.totalorder %s171, 0
      %s174 = sadd.s32 %s173, 1
      %s175 = scalar_select %p172, %s173, %s174
      %p178 = pneg %p172
      %p179 = scmp.eq.s32.totalorder %s17, 1
      %p180 = por %p178, %p179
      %p181 = scmp.ne.s32.totalorder %s173, %s176
      %p182 = scmp.eq.s32.totalorder %s17, 0
      %p183 = por %p181, %p182
      %p184 = scmp.ne.s32.totalorder %s173, %s176
      %p185 = scmp.eq.s32.totalorder %s22, 1
      %p186 = por %p184, %p185
      %p187 = scmp.ne.s32.totalorder %s176, %s177
      %p188 = scmp.eq.s32.totalorder %s22, 0
      %p189 = por %p187, %p188
      %p190 = scmp.ne.s32.totalorder %s176, %s177
      %p191 = scmp.eq.s32.totalorder %s23, 1
      %p192 = por %p190, %p191
      %p194 = scmp.ne.s32.totalorder %s177, %s193
      %p195 = scmp.eq.s32.totalorder %s23, 0
      %p196 = por %p194, %p195
      %s197 = ssub.s32 %s17, %s24
      %p198 = scmp.eq.s32.totalorder %s197, 0
      %s200 = sadd.s32 %s199, 1
      %s201 = scalar_select %p198, %s199, %s200
      %p204 = pneg %p198
      %p205 = scmp.eq.s32.totalorder %s17, 1
      %p206 = por %p204, %p205
      %p207 = scmp.ne.s32.totalorder %s199, %s202
      %p208 = scmp.eq.s32.totalorder %s17, 0
      %p209 = por %p207, %p208
      %p210 = scmp.ne.s32.totalorder %s199, %s202
      %p211 = scmp.eq.s32.totalorder %s22, 1
      %p212 = por %p210, %p211
      %p213 = scmp.ne.s32.totalorder %s202, %s203
      %p214 = scmp.eq.s32.totalorder %s22, 0
      %p215 = por %p213, %p214
      %p216 = scmp.ne.s32.totalorder %s202, %s203
      %p217 = scmp.eq.s32.totalorder %s23, 1
      %p218 = por %p216, %p217
      %p220 = scmp.ne.s32.totalorder %s203, %s219
      %p221 = scmp.eq.s32.totalorder %s23, 0
      %p222 = por %p220, %p221
      %p223 = scmp.le.s32.totalorder 1, %s17
      %p224 = scmp.lt.s32.totalorder %s17, 3
      %p225 = pnand %p223, %p224
      %p226 = pneg %p225
      // Predicated region
      $region9: #{_lambda_.31} parent=5 // pred_check
        _
      $region10: #{_lambda_.31} parent=5 // pred_check_branch
        %228 = sbr.rel (%p225) target = $region12
      $region11: #{_lambda_.31} parent=5 // pred_region
        %s229 = ssub.s32 %s17, 1
        // Predicated region
        $region13: #{_lambda_.31} parent=11 // pred_check
          %p230 = pneg %p64
        $region14: #{_lambda_.31} parent=11 // pred_check_branch
          %232 = sbr.rel (%p230) target = $region16
        $region15: #{_lambda_.31} parent=11 // pred_region
          _
        $region16: #{_lambda_.31} parent=11 // pred_fallthru
          _
        // Predicated region
        $region17: #{_lambda_.31} parent=11 // pred_check
          %p233 = pneg %p85
        $region18: #{_lambda_.31} parent=11 // pred_check_branch
          %235 = sbr.rel (%p233) target = $region20
        $region19: #{_lambda_.31} parent=11 // pred_region
          _
        $region20: #{_lambda_.31} parent=11 // pred_fallthru
          _
      $region12: #{_lambda_.31} parent=5 // pred_fallthru
        _
      %p236 = scmp.lt.s32.totalorder %s17, 2
      // Predicated region
      $region21: #{_lambda_.31} parent=5 // pred_check
        %p237 = pneg %p236
      $region22: #{_lambda_.31} parent=5 // pred_check_branch
        %239 = sbr.rel (%p237) target = $region24
      $region23: #{_lambda_.31} parent=5 // pred_region
        // Predicated region
        $region25: #{_lambda_.31} parent=23 // pred_check
          %p240 = pneg %p37
        $region26: #{_lambda_.31} parent=23 // pred_check_branch
          %242 = sbr.rel (%p240) target = $region28
        $region27: #{_lambda_.31} parent=23 // pred_region
          %p243 = scmp.lt.s32.totalorder %s17, 1
          %s244 = scalar_select %p243, %s17, 1
          %s245 = scalar_lea.vmem %s0, %s244
        $region28: #{_lambda_.31} parent=23 // pred_fallthru
          _
        // Predicated region
        $region29: #{_lambda_.31} parent=23 // pred_check
          %p246 = pneg %p105
        $region30: #{_lambda_.31} parent=23 // pred_check_branch
          %248 = sbr.rel (%p246) target = $region32
        $region31: #{_lambda_.31} parent=23 // pred_region
          %p249 = scmp.lt.s32.totalorder %s17, 1
          %s250 = scalar_select %p249, %s17, 1
          %s251 = smul.addr %s250, 2
          %s252 = scalar_lea.vmem %s3, %s251
        $region32: #{_lambda_.31} parent=23 // pred_fallthru
          _
        // Predicated region
        $region33: #{_lambda_.31} parent=23 // pred_check
          %p253 = pneg %p131
        $region34: #{_lambda_.31} parent=23 // pred_check_branch
          %255 = sbr.rel (%p253) target = $region36
        $region35: #{_lambda_.31} parent=23 // pred_region
          %p256 = scmp.lt.s32.totalorder %s17, 1
          %s257 = scalar_select %p256, %s17, 1
          %s258 = smul.addr %s257, 2
          %s259 = scalar_lea.vmem %s4, %s258
        $region36: #{_lambda_.31} parent=23 // pred_fallthru
          _
        // Predicated region
        $region37: #{_lambda_.31} parent=23 // pred_check
          %p260 = pneg %p157
        $region38: #{_lambda_.31} parent=23 // pred_check_branch
          %262 = sbr.rel (%p260) target = $region40
        $region39: #{_lambda_.31} parent=23 // pred_region
          %p263 = scmp.lt.s32.totalorder %s17, 1
          %s264 = scalar_select %p263, %s17, 1
          %s265 = scalar_lea.vmem %s5, %s264
        $region40: #{_lambda_.31} parent=23 // pred_fallthru
          _
      $region24: #{_lambda_.31} parent=5 // pred_fallthru
        _
      %p266 = scmp.le.s32.totalorder 1, %s17
      %p267 = scmp.lt.s32.totalorder %s17, 3
      %p268 = pnand %p266, %p267
      %p269 = pneg %p268
      // Predicated region
      $region41: #{_lambda_.31} parent=5 // pred_check
        _
      $region42: #{_lambda_.31} parent=5 // pred_check_branch
        %271 = sbr.rel (%p268) target = $region44
      $region43: #{_lambda_.31} parent=5 // pred_region
        %s272 = ssub.s32 %s17, 1
        %p273 = scmp.lt.s32.totalorder %s22, 1
        %s274 = scalar_select %p273, %s22, 1
        %s275 = scalar_lea.vmem %s0, %s274
        %p276 = pneg %p43
        %p277 = pneg %p40
        %p278 = pneg %p64
        %p279 = pneg %p61
        %p280 = pneg %p85
        %p281 = pneg %p82
        %p282 = scmp.lt.s32.totalorder %s22, 1
        %s283 = scalar_select %p282, %s22, 1
        %s284 = smul.addr %s283, 2
        %s285 = scalar_lea.vmem %s3, %s284
        %p286 = pneg %p111
        %p287 = pneg %p108
        %p288 = scmp.lt.s32.totalorder %s22, 1
        %s289 = scalar_select %p288, %s22, 1
        %s290 = smul.addr %s289, 2
        %s291 = scalar_lea.vmem %s4, %s290
        %p292 = pneg %p137
        %p293 = pneg %p134
        %p294 = scmp.lt.s32.totalorder %s22, 1
        %s295 = scalar_select %p294, %s22, 1
        %s296 = scalar_lea.vmem %s5, %s295
        %p297 = pneg %p163
        %p298 = pneg %p160
        %p299 = pneg %p189
        %p300 = pneg %p186
        %p301 = scmp.lt.s32.totalorder %s22, 1
        %s302 = scalar_select %p301, %s22, 1
        %s303 = scalar_lea.vmem %s6, %s302
        %p304 = pneg %p215
        %p305 = pneg %p212
        %s306 = sand.u32 %s202, 1
        %s307 = scalar_lea.sflag [#allocation3], %s306
        %s308 = sand.u32 %s202, 1
        %s309 = scalar_lea.vmem [#allocation2], %s308
        %p310 = scmp.lt.s32.totalorder %s22, 1
        %s311 = scalar_select %p310, %s22, 1
        %s312 = scalar_lea.vmem %s0, %s311
        %p313 = scmp.lt.s32.totalorder %s22, 1
        %s314 = scalar_select %p313, %s22, 1
        %s315 = smul.addr %s314, 2
        %s316 = scalar_lea.vmem %s3, %s315
        %p317 = scmp.lt.s32.totalorder %s22, 1
        %s318 = scalar_select %p317, %s22, 1
        %s319 = smul.addr %s318, 2
        %s320 = scalar_lea.vmem %s4, %s319
        %p321 = scmp.lt.s32.totalorder %s22, 1
        %s322 = scalar_select %p321, %s22, 1
        %s323 = scalar_lea.vmem %s5, %s322
        %p324 = scmp.lt.s32.totalorder %s22, 1
        %s325 = scalar_select %p324, %s22, 1
        %s326 = scalar_lea.vmem %s6, %s325
        %v328 = vld [vmem:[%s312] sm:$0x1]
        %v329 = vld [vmem:[%s1] sm:$0xf]
        %v330 = vld [vmem:[%s1 + $0x4] sm:$0xf]
        %v331 = vld [vmem:[%s1 + $0x8] sm:$0xf]
        %v332 = vld [vmem:[%s1 + $0xc] sm:$0xf]
        %v333 = vld [vmem:[%s1 + $0x10] sm:$0xf]
        %v334 = vld [vmem:[%s1 + $0x14] sm:$0xf]
        %v335 = vld [vmem:[%s1 + $0x18] sm:$0xf]
        %v336 = vld [vmem:[%s1 + $0x1c] sm:$0xf]
        %v337 = vld [vmem:[%s2] sm:$0x1]
        %v346 = vunpack.c.l.b16 %v329
        %v347 = vunpack.c.l.b16 %v330
        %v348 = vunpack.c.l.b16 %v331
        %v349 = vunpack.c.l.b16 %v332
        %v350 = vunpack.c.l.b16 %v333
        %v351 = vunpack.c.l.b16 %v334
        %v352 = vunpack.c.l.b16 %v335
        %v353 = vunpack.c.l.b16 %v336
        %v354 = vpack.c.b16 %v347, %v346
        %v355 = vpack.c.b16 %v349, %v348
        %v356 = vpack.c.b16 %v351, %v350
        %v357 = vpack.c.b16 %v353, %v352
        %vm362 = vcmask 523264
        %v364 = vsel %vm362, %v328, 0
        %366 = vmatpush.bf16.msra.mxu0 0
        %367 = vmatpush.bf16.msra.mxu0 0
        %368 = vmatpush.bf16.msra.mxu0 0
        %369 = vmatpush.bf16.msra.mxu0 0
        %370 = vmatpush.bf16.msra.mxu0 %v357
        %371 = vmatpush.bf16.msra.mxu0 %v356
        %372 = vmatpush.bf16.msra.mxu0 %v355
        %373 = vmatpush.bf16.msra.mxu0 %v354
        %374 = vmatmul.bf16.gmra.mxu0 %v364
        %v375 = vpop.f32.mrf.mxu0
        %v376 = vadd.f32 %v337, %v375
        %v377 = vpop.f32.mrf.mxu0
        %378 = vdwg.mxu0
        %v379 = vpack.c.bf16 %v376, %v376
        %v380 = vld [vmem:[%s316] sm:$0x3]
        %v381 = vld [vmem:[%s320] sm:$0x3]
        %v382 = vld [vmem:[%s323] sm:$0x1]
        %vm383 = vcmask 261120
        %v385 = vsel %vm383, %v379, 0
        %v388 = vsel %vm383, %v380, 0
        %390 = vmatpush.bf16.xpose.msra.mxu0 0
        %391 = vmatpush.bf16.xpose.msra.mxu0 0
        %392 = vmatpush.bf16.xpose.msra.mxu0 0
        %393 = vmatpush.bf16.xpose.msra.mxu0 0
        %394 = vmatpush.bf16.xpose.msra.mxu0 0
        %395 = vmatpush.bf16.xpose.msra.mxu0 0
        %396 = vmatpush.bf16.xpose.msra.mxu0 0
        %397 = vmatpush.bf16.xpose.msra.mxu0 %v388
        %398 = vmatmul.bf16.gmra.mxu0 %v385
        %v399 = vpop.f32.mrf.mxu0
        %v400 = vadd.f32 0.0, %v399
        %v401 = vpop.f32.mrf.mxu0
        %402 = vdwg.mxu0
        %vm403 = vcmp.gt.f32.partialorder %v382, 0.0
        %v404 = vsel %vm403, %v400, -1e+09
        %vm405 = vcmask 16384
        %v406 = vsel %vm405, %v404, -inf
        %407 = vmax.xlane.f32.xlu0 %v406
        %v408 = vpop.xlane.xlu0 %407
        %v409 = vsub.f32 %v404, %v408
        %v410 = vmul.f32 %v409, 1.442695
        %v411 = vpow.pop %v410
        %v412 = vsel %vm405, %v411, 0.0
        %413 = vadd.xlane.f32.xlu0 %v412
        %v414 = vpop.xlane.xlu0 %413
        %v415 = vrcp.pop %v414
        %v416 = vmul.f32 %v414, %v415
        %v417 = vsub.f32 1.0, %v416
        %v418 = vmul.f32 %v415, %v417
        %v419 = vadd.f32 %v415, %v418
        %vm420 = vweird.f32 %v414
        %vm421 = vweird.f32 %v415
        %vm422 = vmor %vm420, %vm421
        %v423 = vsel %vm422, %v415, %v419
        %v424 = vand.u32 2147483647, %v414
        %vm425 = vcmp.eq.f32.partialorder %v424, 8.507059e+37
        %v426 = vand.u32 %v414, 2147483648
        %v427 = vor.u32 1.1754944e-38, %v426
        %v428 = vsel %vm425, %v427, %v423
        %v429 = vmul.f32 %v411, %v428
        %v430 = vpack.c.bf16 %v429, %v429
        %vm431 = vcmask 23552
        %v433 = vsel %vm431, %v430, 0
        %vm435 = vcmask 1040384
        %vm436 = vcmask 1041408
        %v437 = vsel %vm435, 4294967295, 65535
        %v438 = vsel %vm436, %v437, 0
        %v440 = vand.u32 %v381, %v438
        %442 = vmatpush.bf16.msra.mxu0 0
        %443 = vmatpush.bf16.msra.mxu0 0
        %444 = vmatpush.bf16.msra.mxu0 0
        %445 = vmatpush.bf16.msra.mxu0 0
        %446 = vmatpush.bf16.msra.mxu0 0
        %447 = vmatpush.bf16.msra.mxu0 0
        %448 = vmatpush.bf16.msra.mxu0 0
        %449 = vmatpush.bf16.msra.mxu0 %v440
        %450 = vmatmul.bf16.gmra.mxu0 %v433
        %v451 = vpop.f32.mrf.mxu0
        %v452 = vadd.f32 0.0, %v451
        %v453 = vpop.f32.mrf.mxu0
        %454 = vdwg.mxu0
        %vm455 = vcmask 253952
        %456 = vst.msk [vmem:[%s326] sm:$0x1] %vm455, %v452
        %457 = vst.msk [vmem:[%s309] sm:$0x1] %vm405, %v429
        %p458 = scmp.lt.s32.totalorder %s22, 1
        %s459 = scalar_select %p458, %s22, 1
        %s460 = scalar_lea.vmem %s6, %s459
        %s461 = sand.u32 %s202, 1
        %s462 = scalar_lea.sflag [#allocation3], %s461
        %s463 = sand.u32 %s202, 1
        %s464 = scalar_lea.vmem [#allocation2], %s463
        // Predicated region
        $region45: #{_lambda_.31} parent=43 // pred_check
          %p465 = pneg %p186
        $region46: #{_lambda_.31} parent=43 // pred_check_branch
          %467 = sbr.rel (%p465) target = $region48
        $region47: #{_lambda_.31} parent=43 // pred_region
          _
        $region48: #{_lambda_.31} parent=43 // pred_fallthru
          _
        // Predicated region
        $region49: #{_lambda_.31} parent=43 // pred_check
          %p468 = pneg %p212
        $region50: #{_lambda_.31} parent=43 // pred_check_branch
          %470 = sbr.rel (%p468) target = $region52
        $region51: #{_lambda_.31} parent=43 // pred_region
          %472 = vsyncadd %s462, 0
          %s473 = scalar_lea.hbm %s7, %s22
          %s475 = sshll.u32 %s464, 4
          %s476 = int_to_ptr.vmem [resolvable:$true] %s475
          %s477 = sshll.u32 %s473, 4
          %s478 = int_to_ptr.hbm [resolvable:$true] %s477
          %480 = dma.vmem_to_hbm [thread:$0]  %s476, 16, %s478, %s462
        $region52: #{_lambda_.31} parent=43 // pred_fallthru
          _
      $region44: #{_lambda_.31} parent=5 // pred_fallthru
        _
      %p481 = scmp.le.s32.totalorder 2, %s17
      // Predicated region
      $region53: #{_lambda_.31} parent=5 // pred_check
        %p482 = pneg %p481
      $region54: #{_lambda_.31} parent=5 // pred_check_branch
        %484 = sbr.rel (%p482) target = $region56
      $region55: #{_lambda_.31} parent=5 // pred_region
        %s485 = ssub.s32 %s17, 2
        // Predicated region
        $region57: #{_lambda_.31} parent=55 // pred_check
          %p486 = pneg %p192
        $region58: #{_lambda_.31} parent=55 // pred_check_branch
          %488 = sbr.rel (%p486) target = $region60
        $region59: #{_lambda_.31} parent=55 // pred_region
          %p489 = scmp.lt.s32.totalorder %s23, 1
          %s490 = scalar_select %p489, %s23, 1
          %s491 = scalar_lea.vmem %s6, %s490
        $region60: #{_lambda_.31} parent=55 // pred_fallthru
          _
        // Predicated region
        $region61: #{_lambda_.31} parent=55 // pred_check
          %p492 = pneg %p218
        $region62: #{_lambda_.31} parent=55 // pred_check_branch
          %494 = sbr.rel (%p492) target = $region64
        $region63: #{_lambda_.31} parent=55 // pred_region
          %s495 = sand.u32 %s203, 1
          %s496 = scalar_lea.sflag [#allocation3], %s495
          %s497 = sand.u32 %s203, 1
          %s498 = scalar_lea.vmem [#allocation2], %s497
          %500 = dma.done %s496, 16
        $region64: #{_lambda_.31} parent=55 // pred_fallthru
          _
      $region56: #{_lambda_.31} parent=5 // pred_fallthru
        _
    $region6: #{_lambda_.31} parent=1 // loop_footer
      %s21 = sadd.s32 1, %s17
    $region7: #{_lambda_.31} parent=1 // loop_footer_branch
      %16 = sbr.rel target = $region3
    $region8: #{_lambda_.31} parent=1 // loop_exit
      _
    %501 = vsyncpa [#allocation3], 1
    %s502 = scalar_lea.sflag [#allocation3], 1
    %503 = vsyncpa %s502, 1

// kernel: _lambda_.34
$region0: #{_lambda_.34}
  #allocation0 [shape = 'u32[]', space=smem, size = 0x4, offset = 0x4, fixed_abs, tag = 'smem constant byte address 0x4 - core index']
  #allocation1 [shape = 'u32[72,128]{1,0:T(1,128)}', space=vmem, size = 0x9000, scoped, tag = 'internal scratch']
  %s0 = inlined_call_operand.vmem [shape: bf16[12,48], index: 0, kind: input, shape index: {}]
  %s1 = inlined_call_operand.vmem [shape: bf16[48,96], index: 1, kind: input, shape index: {}]
  %s2 = inlined_call_operand.vmem [shape: f32[1,96], index: 2, kind: input, shape index: {}]
  %s3 = inlined_call_operand.vmem [shape: f32[12,96], index: 3, kind: output, shape index: {}]
  %s4 = sld [smem:[#allocation0]]
  $region22: #{_lambda_.34} parent=0
    _
  %s6 = ssub.s32 1, %s4
  %s7 = scalar_select 0, %s6, %s4
  // Predicated region
  $region2: #{_lambda_.34} parent=0 // pred_check
    _
  $region3: #{_lambda_.34} parent=0 // pred_check_branch
    %9 = sbr.rel (0) target = $region5
  $region4: #{_lambda_.34} parent=0 // pred_region
    _
  $region5: #{_lambda_.34} parent=0 // pred_fallthru
    _
  // Predicated region
  $region6: #{_lambda_.34} parent=0 // pred_check
    _
  $region7: #{_lambda_.34} parent=0 // pred_check_branch
    %11 = sbr.rel (0) target = $region9
  $region8: #{_lambda_.34} parent=0 // pred_region
    _
  $region9: #{_lambda_.34} parent=0 // pred_fallthru
    _
  // Predicated region
  $region10: #{_lambda_.34} parent=0 // pred_check
    _
  $region11: #{_lambda_.34} parent=0 // pred_check_branch
    %13 = sbr.rel (0) target = $region13
  $region12: #{_lambda_.34} parent=0 // pred_region
    _
  $region13: #{_lambda_.34} parent=0 // pred_fallthru
    _
  %v15 = vld [vmem:[%s0] sm:$0xf]
  %v16 = vld [vmem:[%s0 + $0x4] sm:$0x3]
  %v17 = vld [vmem:[%s1] sm:$0xf]
  %v18 = vld [vmem:[%s1 + $0x4] sm:$0xf]
  %v19 = vld [vmem:[%s1 + $0x8] sm:$0xf]
  %v20 = vld [vmem:[%s1 + $0xc] sm:$0xf]
  %v21 = vld [vmem:[%s1 + $0x10] sm:$0xf]
  %v22 = vld [vmem:[%s1 + $0x14] sm:$0xf]
  %v23 = vld [vmem:[%s2] sm:$0x1]
  %v25 = vperm.slane %v23, 0
  %v29 = vunpack.c.l.b16 %v15
  %v30 = vunpack.c.l.b16 %v16
  %v31 = vpack.c.b16 %v30, %v29
  %v38 = vunpack.c.l.b16 %v17
  %v39 = vunpack.c.l.b16 %v18
  %v40 = vunpack.c.l.b16 %v19
  %v41 = vunpack.c.l.b16 %v20
  %v42 = vunpack.c.l.b16 %v21
  %v43 = vunpack.c.l.b16 %v22
  %v44 = vpack.c.b16 %v39, %v38
  %v45 = vpack.c.b16 %v41, %v40
  %v46 = vpack.c.b16 %v43, %v42
  %vm50 = vcmask 392192
  %v52 = vsel %vm50, %v31, 0
  %54 = vmatpush.bf16.msra.mxu0 0
  %55 = vmatpush.bf16.msra.mxu0 0
  %56 = vmatpush.bf16.msra.mxu0 0
  %57 = vmatpush.bf16.msra.mxu0 0
  %58 = vmatpush.bf16.msra.mxu0 0
  %59 = vmatpush.bf16.msra.mxu0 %v46
  %60 = vmatpush.bf16.msra.mxu0 %v45
  %61 = vmatpush.bf16.msra.mxu0 %v44
  %62 = vmatmul.bf16.gmra.mxu0 %v52
  %v63 = vpop.f32.mrf.mxu0
  %v64 = vadd.f32 %v25, %v63
  %v65 = vpop.f32.mrf.mxu0
  %v66 = vadd.f32 %v25, %v65
  %67 = vdwg.mxu0
  %vm68 = vcmask 785408
  %69 = vst.msk [vmem:[%s3] sm:$0xff] %vm68, %v64
  %vm70 = vcmask 781312
  %71 = vst.msk [vmem:[%s3 + $0x8] sm:$0xf] %vm70, %v66
  // Predicated region
  $region14: #{_lambda_.34} parent=0 // pred_check
    _
  $region15: #{_lambda_.34} parent=0 // pred_check_branch
    %73 = sbr.rel (0) target = $region17
  $region16: #{_lambda_.34} parent=0 // pred_region
    _
  $region17: #{_lambda_.34} parent=0 // pred_fallthru
    _
  // Predicated region
  $region18: #{_lambda_.34} parent=0 // pred_check
    _
  $region19: #{_lambda_.34} parent=0 // pred_check_branch
    %75 = sbr.rel (0) target = $region21
  $region20: #{_lambda_.34} parent=0 // pred_region
    _
  $region21: #{_lambda_.34} parent=0 // pred_fallthru
    _

// kernel: _lambda_.33
$region0: #{_lambda_.33}
  #allocation0 [shape = 'u32[]', space=smem, size = 0x4, offset = 0x4, fixed_abs, tag = 'smem constant byte address 0x4 - core index']
  #allocation1 [shape = 'u32[72,128]{1,0:T(1,128)}', space=vmem, size = 0x9000, scoped, tag = 'internal scratch']
  %s0 = inlined_call_operand.vmem [shape: bf16[2,64], index: 0, kind: input, shape index: {}]
  %s1 = inlined_call_operand.vmem [shape: bf16[64,32], index: 1, kind: input, shape index: {}]
  %s2 = inlined_call_operand.vmem [shape: f32[1,32], index: 2, kind: input, shape index: {}]
  %s3 = inlined_call_operand.vmem [shape: f32[2,32], index: 3, kind: output, shape index: {}]
  %s4 = sld [smem:[#allocation0]]
  $region22: #{_lambda_.33} parent=0
    _
  %s6 = ssub.s32 1, %s4
  %s7 = scalar_select 0, %s6, %s4
  // Predicated region
  $region2: #{_lambda_.33} parent=0 // pred_check
    _
  $region3: #{_lambda_.33} parent=0 // pred_check_branch
    %9 = sbr.rel (0) target = $region5
  $region4: #{_lambda_.33} parent=0 // pred_region
    _
  $region5: #{_lambda_.33} parent=0 // pred_fallthru
    _
  // Predicated region
  $region6: #{_lambda_.33} parent=0 // pred_check
    _
  $region7: #{_lambda_.33} parent=0 // pred_check_branch
    %11 = sbr.rel (0) target = $region9
  $region8: #{_lambda_.33} parent=0 // pred_region
    _
  $region9: #{_lambda_.33} parent=0 // pred_fallthru
    _
  // Predicated region
  $region10: #{_lambda_.33} parent=0 // pred_check
    _
  $region11: #{_lambda_.33} parent=0 // pred_check_branch
    %13 = sbr.rel (0) target = $region13
  $region12: #{_lambda_.33} parent=0 // pred_region
    _
  $region13: #{_lambda_.33} parent=0 // pred_fallthru
    _
  %v15 = vld [vmem:[%s0] sm:$0x1]
  %v16 = vld [vmem:[%s1] sm:$0xf]
  %v17 = vld [vmem:[%s1 + $0x4] sm:$0xf]
  %v18 = vld [vmem:[%s1 + $0x8] sm:$0xf]
  %v19 = vld [vmem:[%s1 + $0xc] sm:$0xf]
  %v20 = vld [vmem:[%s1 + $0x10] sm:$0xf]
  %v21 = vld [vmem:[%s1 + $0x14] sm:$0xf]
  %v22 = vld [vmem:[%s1 + $0x18] sm:$0xf]
  %v23 = vld [vmem:[%s1 + $0x1c] sm:$0xf]
  %v24 = vld [vmem:[%s2] sm:$0x1]
  %v26 = vperm.slane %v24, 0
  %v36 = vunpack.c.l.b16 %v16
  %v37 = vunpack.c.l.b16 %v17
  %v38 = vunpack.c.l.b16 %v18
  %v39 = vunpack.c.l.b16 %v19
  %v40 = vunpack.c.l.b16 %v20
  %v41 = vunpack.c.l.b16 %v21
  %v42 = vunpack.c.l.b16 %v22
  %v43 = vunpack.c.l.b16 %v23
  %v44 = vpack.c.b16 %v37, %v36
  %v45 = vpack.c.b16 %v39, %v38
  %v46 = vpack.c.b16 %v41, %v40
  %v47 = vpack.c.b16 %v43, %v42
  %vm52 = vcmask 523264
  %v54 = vsel %vm52, %v15, 0
  %56 = vmatpush.bf16.msra.mxu0 0
  %57 = vmatpush.bf16.msra.mxu0 0
  %58 = vmatpush.bf16.msra.mxu0 0
  %59 = vmatpush.bf16.msra.mxu0 0
  %60 = vmatpush.bf16.msra.mxu0 %v47
  %61 = vmatpush.bf16.msra.mxu0 %v46
  %62 = vmatpush.bf16.msra.mxu0 %v45
  %63 = vmatpush.bf16.msra.mxu0 %v44
  %64 = vmatmul.bf16.gmra.mxu0 %v54
  %v65 = vpop.f32.mrf.mxu0
  %v66 = vadd.f32 %v26, %v65
  %v67 = vpop.f32.mrf.mxu0
  %68 = vdwg.mxu0
  %vm69 = vcmask 254976
  %70 = vst.msk [vmem:[%s3] sm:$0x3] %vm69, %v66
  // Predicated region
  $region14: #{_lambda_.33} parent=0 // pred_check
    _
  $region15: #{_lambda_.33} parent=0 // pred_check_branch
    %72 = sbr.rel (0) target = $region17
  $region16: #{_lambda_.33} parent=0 // pred_region
    _
  $region17: #{_lambda_.33} parent=0 // pred_fallthru
    _
  // Predicated region
  $region18: #{_lambda_.33} parent=0 // pred_check
    _
  $region19: #{_lambda_.33} parent=0 // pred_check_branch
    %74 = sbr.rel (0) target = $region21
  $region20: #{_lambda_.33} parent=0 // pred_region
    _
  $region21: #{_lambda_.33} parent=0 // pred_fallthru
    _

// kernel: _lambda_.35
$region0: #{_lambda_.35}
  #allocation0 [shape = 'u32[]', space=smem, size = 0x4, offset = 0x4, fixed_abs, tag = 'smem constant byte address 0x4 - core index']
  #allocation1 [shape = 'u32[72,128]{1,0:T(1,128)}', space=vmem, size = 0x9000, scoped, tag = 'internal scratch']
  #allocation2 [shape = 'f32[2,32]{1,0:T(2,128)}', space=vmem, size = 0x400, scoped, tag = 'scratch operand']
  %s0 = inlined_call_operand.vmem [shape: f32[6,2,96], index: 0, kind: input, shape index: {}]
  %s1 = inlined_call_operand.vmem [shape: f32[2,32], index: 1, kind: input, shape index: {}]
  %s2 = inlined_call_operand.vmem [shape: bf16[32,96], index: 2, kind: input, shape index: {}]
  %s3 = inlined_call_operand.vmem [shape: f32[1,96], index: 3, kind: input, shape index: {}]
  %s4 = inlined_call_operand.vmem [shape: f32[6,2,32], index: 4, kind: output, shape index: {}]
  %s5 = sld [smem:[#allocation0]]
  $region53: #{_lambda_.35} parent=0
    _
  %s7 = ssub.s32 1, %s5
  %s8 = scalar_select 0, %s7, %s5
  loop: start=0, step=1, limit=8
  $region2: #{_lambda_.35} parent=0 // loop_pre_header
    _
  $region3: #{_lambda_.35} parent=0 // loop_header
    %s10 = sphi 0, %s14
    %p11 = scmp.ge.s32.totalorder %s10, 8
    %s20 = sphi 0, %s22
    %s23 = sphi 0, %s20
    %s24 = sphi 0, %s23
    %s40 = sphi 0, %s24
    %s44 = sphi 0, %s44
    %s46 = sphi 0, %s44
    %s47 = sphi 0, %s46
    %s61 = sphi 0, %s47
    %s65 = sphi 0, %s65
    %s67 = sphi 0, %s65
    %s68 = sphi 0, %s67
    %s82 = sphi 0, %s68
    %s86 = sphi 0, %s86
    %s88 = sphi 0, %s86
    %s89 = sphi 0, %s88
    %s103 = sphi 0, %s89
    %s109 = sphi 0, %s111
    %s112 = sphi 0, %s109
    %s113 = sphi 0, %s112
    %s129 = sphi 0, %s113
  $region4: #{_lambda_.35} parent=0 // loop_header_branch
    %13 = sbr.rel (%p11) target = $region8
  $region5: #{_lambda_.35} parent=0 // loop_body
    %s15 = ssub.s32 %s10, 1
    %s16 = ssub.s32 %s10, 2
    %s17 = sadd.s32 %s10, 1
    %s18 = ssub.s32 %s10, %s17
    %p19 = scmp.eq.s32.totalorder %s18, 0
    %s21 = sadd.s32 %s20, 1
    %s22 = scalar_select %p19, %s20, %s21
    %p25 = pneg %p19
    %p26 = scmp.eq.s32.totalorder %s10, 5
    %p27 = por %p25, %p26
    %p28 = scmp.ne.s32.totalorder %s20, %s23
    %p29 = scmp.eq.s32.totalorder %s10, 0
    %p30 = por %p28, %p29
    %p31 = scmp.ne.s32.totalorder %s20, %s23
    %p32 = scmp.eq.s32.totalorder %s15, 5
    %p33 = por %p31, %p32
    %p34 = scmp.ne.s32.totalorder %s23, %s24
    %p35 = scmp.eq.s32.totalorder %s15, 0
    %p36 = por %p34, %p35
    %p37 = scmp.ne.s32.totalorder %s23, %s24
    %p38 = scmp.eq.s32.totalorder %s16, 5
    %p39 = por %p37, %p38
    %p41 = scmp.ne.s32.totalorder %s24, %s40
    %p42 = scmp.eq.s32.totalorder %s16, 0
    %p43 = por %p41, %p42
    %s45 = sadd.s32 %s44, 1
    %p48 = scmp.eq.s32.totalorder %s10, 5
    %p49 = scmp.ne.s32.totalorder %s44, %s46
    %p50 = scmp.eq.s32.totalorder %s10, 0
    %p51 = por %p49, %p50
    %p52 = scmp.ne.s32.totalorder %s44, %s46
    %p53 = scmp.eq.s32.totalorder %s15, 5
    %p54 = por %p52, %p53
    %p55 = scmp.ne.s32.totalorder %s46, %s47
    %p56 = scmp.eq.s32.totalorder %s15, 0
    %p57 = por %p55, %p56
    %p58 = scmp.ne.s32.totalorder %s46, %s47
    %p59 = scmp.eq.s32.totalorder %s16, 5
    %p60 = por %p58, %p59
    %p62 = scmp.ne.s32.totalorder %s47, %s61
    %p63 = scmp.eq.s32.totalorder %s16, 0
    %p64 = por %p62, %p63
    %s66 = sadd.s32 %s65, 1
    %p69 = scmp.eq.s32.totalorder %s10, 5
    %p70 = scmp.ne.s32.totalorder %s65, %s67
    %p71 = scmp.eq.s32.totalorder %s10, 0
    %p72 = por %p70, %p71
    %p73 = scmp.ne.s32.totalorder %s65, %s67
    %p74 = scmp.eq.s32.totalorder %s15, 5
    %p75 = por %p73, %p74
    %p76 = scmp.ne.s32.totalorder %s67, %s68
    %p77 = scmp.eq.s32.totalorder %s15, 0
    %p78 = por %p76, %p77
    %p79 = scmp.ne.s32.totalorder %s67, %s68
    %p80 = scmp.eq.s32.totalorder %s16, 5
    %p81 = por %p79, %p80
    %p83 = scmp.ne.s32.totalorder %s68, %s82
    %p84 = scmp.eq.s32.totalorder %s16, 0
    %p85 = por %p83, %p84
    %s87 = sadd.s32 %s86, 1
    %p90 = scmp.eq.s32.totalorder %s10, 5
    %p91 = scmp.ne.s32.totalorder %s86, %s88
    %p92 = scmp.eq.s32.totalorder %s10, 0
    %p93 = por %p91, %p92
    %p94 = scmp.ne.s32.totalorder %s86, %s88
    %p95 = scmp.eq.s32.totalorder %s15, 5
    %p96 = por %p94, %p95
    %p97 = scmp.ne.s32.totalorder %s88, %s89
    %p98 = scmp.eq.s32.totalorder %s15, 0
    %p99 = por %p97, %p98
    %p100 = scmp.ne.s32.totalorder %s88, %s89
    %p101 = scmp.eq.s32.totalorder %s16, 5
    %p102 = por %p100, %p101
    %p104 = scmp.ne.s32.totalorder %s89, %s103
    %p105 = scmp.eq.s32.totalorder %s16, 0
    %p106 = por %p104, %p105
    %s107 = ssub.s32 %s10, %s17
    %p108 = scmp.eq.s32.totalorder %s107, 0
    %s110 = sadd.s32 %s109, 1
    %s111 = scalar_select %p108, %s109, %s110
    %p114 = pneg %p108
    %p115 = scmp.eq.s32.totalorder %s10, 5
    %p116 = por %p114, %p115
    %p117 = scmp.ne.s32.totalorder %s109, %s112
    %p118 = scmp.eq.s32.totalorder %s10, 0
    %p119 = por %p117, %p118
    %p120 = scmp.ne.s32.totalorder %s109, %s112
    %p121 = scmp.eq.s32.totalorder %s15, 5
    %p122 = por %p120, %p121
    %p123 = scmp.ne.s32.totalorder %s112, %s113
    %p124 = scmp.eq.s32.totalorder %s15, 0
    %p125 = por %p123, %p124
    %p126 = scmp.ne.s32.totalorder %s112, %s113
    %p127 = scmp.eq.s32.totalorder %s16, 5
    %p128 = por %p126, %p127
    %p130 = scmp.ne.s32.totalorder %s113, %s129
    %p131 = scmp.eq.s32.totalorder %s16, 0
    %p132 = por %p130, %p131
    %p133 = scmp.le.s32.totalorder 1, %s10
    %p134 = scmp.lt.s32.totalorder %s10, 7
    %p135 = pnand %p133, %p134
    %p136 = pneg %p135
    // Predicated region
    $region9: #{_lambda_.35} parent=5 // pred_check
      _
    $region10: #{_lambda_.35} parent=5 // pred_check_branch
      %138 = sbr.rel (%p135) target = $region12
    $region11: #{_lambda_.35} parent=5 // pred_region
      %s139 = ssub.s32 %s10, 1
      // Predicated region
      $region13: #{_lambda_.35} parent=11 // pred_check
        %p140 = pneg %p57
      $region14: #{_lambda_.35} parent=11 // pred_check_branch
        %142 = sbr.rel (%p140) target = $region16
      $region15: #{_lambda_.35} parent=11 // pred_region
        _
      $region16: #{_lambda_.35} parent=11 // pred_fallthru
        _
      // Predicated region
      $region17: #{_lambda_.35} parent=11 // pred_check
        %p143 = pneg %p78
      $region18: #{_lambda_.35} parent=11 // pred_check_branch
        %145 = sbr.rel (%p143) target = $region20
      $region19: #{_lambda_.35} parent=11 // pred_region
        _
      $region20: #{_lambda_.35} parent=11 // pred_fallthru
        _
      // Predicated region
      $region21: #{_lambda_.35} parent=11 // pred_check
        %p146 = pneg %p99
      $region22: #{_lambda_.35} parent=11 // pred_check_branch
        %148 = sbr.rel (%p146) target = $region24
      $region23: #{_lambda_.35} parent=11 // pred_region
        _
      $region24: #{_lambda_.35} parent=11 // pred_fallthru
        _
    $region12: #{_lambda_.35} parent=5 // pred_fallthru
      _
    %p149 = scmp.lt.s32.totalorder %s10, 6
    // Predicated region
    $region25: #{_lambda_.35} parent=5 // pred_check
      %p150 = pneg %p149
    $region26: #{_lambda_.35} parent=5 // pred_check_branch
      %152 = sbr.rel (%p150) target = $region28
    $region27: #{_lambda_.35} parent=5 // pred_region
      // Predicated region
      $region29: #{_lambda_.35} parent=27 // pred_check
        %p153 = pneg %p30
      $region30: #{_lambda_.35} parent=27 // pred_check_branch
        %155 = sbr.rel (%p153) target = $region32
      $region31: #{_lambda_.35} parent=27 // pred_region
        %p156 = scmp.lt.s32.totalorder %s10, 5
        %s157 = scalar_select %p156, %s10, 5
        %s158 = smul.addr %s157, 2
        %s159 = scalar_lea.vmem %s0, %s158
      $region32: #{_lambda_.35} parent=27 // pred_fallthru
        _
    $region28: #{_lambda_.35} parent=5 // pred_fallthru
      _
    %p160 = scmp.le.s32.totalorder 1, %s10
    %p161 = scmp.lt.s32.totalorder %s10, 7
    %p162 = pnand %p160, %p161
    %p163 = pneg %p162
    // Predicated region
    $region33: #{_lambda_.35} parent=5 // pred_check
      _
    $region34: #{_lambda_.35} parent=5 // pred_check_branch
      %165 = sbr.rel (%p162) target = $region36
    $region35: #{_lambda_.35} parent=5 // pred_region
      %s166 = ssub.s32 %s10, 1
      %p167 = scmp.lt.s32.totalorder %s15, 5
      %s168 = scalar_select %p167, %s15, 5
      %s169 = smul.addr %s168, 2
      %s170 = scalar_lea.vmem %s0, %s169
      %p171 = pneg %p36
      %p172 = pneg %p33
      %p173 = pneg %p57
      %p174 = pneg %p54
      %p175 = pneg %p78
      %p176 = pneg %p75
      %p177 = pneg %p99
      %p178 = pneg %p96
      %p179 = pneg %p125
      %p180 = pneg %p122
      %p181 = scmp.lt.s32.totalorder %s15, 5
      %s182 = scalar_select %p181, %s15, 5
      %s183 = smul.addr %s182, 2
      %s184 = scalar_lea.vmem %s4, %s183
      %p185 = scmp.lt.s32.totalorder %s15, 5
      %s186 = scalar_select %p185, %s15, 5
      %s187 = smul.addr %s186, 2
      %s188 = scalar_lea.vmem %s0, %s187
      %p189 = scmp.lt.s32.totalorder %s15, 5
      %s190 = scalar_select %p189, %s15, 5
      %s191 = smul.addr %s190, 2
      %s192 = scalar_lea.vmem %s4, %s191
      %p194 = scmp.eq.s32.totalorder %s15, 0
      // Predicated region
      $region37: #{_lambda_.35} parent=35 // pred_check
        %p195 = pneg %p194
      $region38: #{_lambda_.35} parent=35 // pred_check_branch
        %197 = sbr.rel (%p195) target = $region40
      $region39: #{_lambda_.35} parent=35 // pred_region
        %v198 = vld [vmem:[%s1] sm:$0x3]
        %vm199 = vcmask 254976
        %200 = vst.msk [vmem:[#allocation2] sm:$0x3] %vm199, %v198
      $region40: #{_lambda_.35} parent=35 // pred_fallthru
        _
      %v201 = vld [vmem:[#allocation2] sm:$0x3]
      %v202 = vpack.c.bf16 %v201, %v201
      %v203 = vld [vmem:[%s2] sm:$0xf]
      %v204 = vld [vmem:[%s2 + $0x4] sm:$0xf]
      %v205 = vld [vmem:[%s2 + $0x8] sm:$0xf]
      %v206 = vld [vmem:[%s2 + $0xc] sm:$0xf]
      %v207 = vld [vmem:[%s3] sm:$0x1]
      %v209 = vperm.slane %v207, 0
      %v215 = vunpack.c.l.b16 %v203
      %v216 = vunpack.c.l.b16 %v204
      %v217 = vunpack.c.l.b16 %v205
      %v218 = vunpack.c.l.b16 %v206
      %v219 = vpack.c.b16 %v216, %v215
      %v220 = vpack.c.b16 %v218, %v217
      %vm223 = vcmask 261120
      %v225 = vsel %vm223, %v202, 0
      %227 = vmatpush.bf16.msra.mxu0 0
      %228 = vmatpush.bf16.msra.mxu0 0
      %229 = vmatpush.bf16.msra.mxu0 0
      %230 = vmatpush.bf16.msra.mxu0 0
      %231 = vmatpush.bf16.msra.mxu0 0
      %232 = vmatpush.bf16.msra.mxu0 0
      %233 = vmatpush.bf16.msra.mxu0 %v220
      %234 = vmatpush.bf16.msra.mxu0 %v219
      %235 = vmatmul.bf16.gmra.mxu0 %v225
      %v236 = vpop.f32.mrf.mxu0
      %v237 = vadd.f32 %v209, %v236
      %v238 = vpop.f32.mrf.mxu0
      %239 = vdwg.mxu0
      %v240 = vld [vmem:[%s188] sm:$0x3]
      %v241 = vadd.f32 %v240, %v237
      %v242 = vxor.u32 %v241, 2147483648
      %v243 = vmul.f32 %v242, 1.442695
      %v244 = vpow.pop %v243
      %v245 = vadd.f32 %v244, 1.0
      %v246 = vrcp.pop %v245
      %v247 = vmul.f32 %v245, %v246
      %v248 = vsub.f32 1.0, %v247
      %v249 = vmul.f32 %v246, %v248
      %v250 = vadd.f32 %v246, %v249
      %vm251 = vweird.f32 %v245
      %vm252 = vweird.f32 %v246
      %vm253 = vmor %vm251, %vm252
      %v254 = vsel %vm253, %v246, %v250
      %v255 = vand.u32 2147483647, %v245
      %vm256 = vcmp.eq.f32.partialorder %v255, 8.507059e+37
      %v257 = vand.u32 %v245, 2147483648
      %v258 = vor.u32 1.1754944e-38, %v257
      %v259 = vsel %vm256, %v258, %v254
      %v260 = vmul.f32 1.0, %v259
      %262 = vrot.lane.b32.xlu0 %v237, 64
      %v263 = vpop.permute.xlu0 %262
      %v265 = vmul.f32 %v260, %v263
      %267 = vrot.lane.b32.xlu0 %v265, 64
      %v268 = vpop.permute.xlu0 %267
      %v270 = vadd.f32 %v240, %v268
      %v271 = vtanh.pop %v270
      %v272 = vsub.f32 1.0, %v260
      %274 = vrot.lane.b32.xlu0 %v271, 96
      %v275 = vpop.permute.xlu0 %274
      %v277 = vmul.f32 %v272, %v275
      %279 = vrot.lane.b32.xlu0 %v201, 32
      %v280 = vpop.permute.xlu0 %279
      %v282 = vmul.f32 %v260, %v280
      %v283 = vadd.f32 %v277, %v282
      %285 = vrot.lane.b32.xlu0 %v283, 96
      %v286 = vpop.permute.xlu0 %285
      %vm288 = vcmask 254976
      %289 = vst.msk [vmem:[#allocation2] sm:$0x3] %vm288, %v286
      %290 = vst.msk [vmem:[%s192] sm:$0x3] %vm288, %v286
      %p291 = scmp.lt.s32.totalorder %s15, 5
      %s292 = scalar_select %p291, %s15, 5
      %s293 = smul.addr %s292, 2
      %s294 = scalar_lea.vmem %s4, %s293
      // Predicated region
      $region41: #{_lambda_.35} parent=35 // pred_check
        %p295 = pneg %p122
      $region42: #{_lambda_.35} parent=35 // pred_check_branch
        %297 = sbr.rel (%p295) target = $region44
      $region43: #{_lambda_.35} parent=35 // pred_region
        _
      $region44: #{_lambda_.35} parent=35 // pred_fallthru
        _
    $region36: #{_lambda_.35} parent=5 // pred_fallthru
      _
    %p298 = scmp.le.s32.totalorder 2, %s10
    // Predicated region
    $region45: #{_lambda_.35} parent=5 // pred_check
      %p299 = pneg %p298
    $region46: #{_lambda_.35} parent=5 // pred_check_branch
      %301 = sbr.rel (%p299) target = $region48
    $region47: #{_lambda_.35} parent=5 // pred_region
      %s302 = ssub.s32 %s10, 2
      // Predicated region
      $region49: #{_lambda_.35} parent=47 // pred_check
        %p303 = pneg %p128
      $region50: #{_lambda_.35} parent=47 // pred_check_branch
        %305 = sbr.rel (%p303) target = $region52
      $region51: #{_lambda_.35} parent=47 // pred_region
        %p306 = scmp.lt.s32.totalorder %s16, 5
        %s307 = scalar_select %p306, %s16, 5
        %s308 = smul.addr %s307, 2
        %s309 = scalar_lea.vmem %s4, %s308
      $region52: #{_lambda_.35} parent=47 // pred_fallthru
        _
    $region48: #{_lambda_.35} parent=5 // pred_fallthru
      _
  $region6: #{_lambda_.35} parent=0 // loop_footer
    %s14 = sadd.s32 1, %s10
  $region7: #{_lambda_.35} parent=0 // loop_footer_branch
    %9 = sbr.rel target = $region3
  $region8: #{_lambda_.35} parent=0 // loop_exit
    _

// kernel: _lambda_.36
$region0: #{_lambda_.36}
  #allocation0 [shape = 'u32[]', space=smem, size = 0x4, offset = 0x4, fixed_abs, tag = 'smem constant byte address 0x4 - core index']
  #allocation1 [shape = 'u32[72,128]{1,0:T(1,128)}', space=vmem, size = 0x9000, scoped, tag = 'internal scratch']
  %s0 = inlined_call_operand.vmem [shape: bf16[2,6,32], index: 0, kind: input, shape index: {}]
  %s1 = inlined_call_operand.vmem [shape: bf16[2,8,32], index: 1, kind: input, shape index: {}, may-alias: {1,2}]
  %s2 = inlined_call_operand.vmem [shape: bf16[2,8,32], index: 2, kind: input, shape index: {}, may-alias: {1,2}]
  %s3 = inlined_call_operand.vmem [shape: f32[2,1,8], index: 3, kind: input, shape index: {}]
  %s4 = inlined_call_operand.vmem [shape: f32[2,6,32], index: 4, kind: output, shape index: {}]
  %s5 = sld [smem:[#allocation0]]
  $region49: #{_lambda_.36} parent=0
    _
  %s7 = ssub.s32 1, %s5
  %s8 = scalar_select 0, %s7, %s5
  loop: start=0, step=1, limit=4
  $region2: #{_lambda_.36} parent=0 // loop_pre_header
    _
  $region3: #{_lambda_.36} parent=0 // loop_header
    %s10 = sphi 0, %s14
    %p11 = scmp.ge.s32.totalorder %s10, 4
    %s20 = sphi 0, %s22
    %s23 = sphi 0, %s20
    %s24 = sphi 0, %s23
    %s40 = sphi 0, %s24
    %s46 = sphi 0, %s48
    %s49 = sphi 0, %s46
    %s50 = sphi 0, %s49
    %s66 = sphi 0, %s50
    %s72 = sphi 0, %s74
    %s75 = sphi 0, %s72
    %s76 = sphi 0, %s75
    %s92 = sphi 0, %s76
    %s98 = sphi 0, %s100
    %s101 = sphi 0, %s98
    %s102 = sphi 0, %s101
    %s118 = sphi 0, %s102
    %s124 = sphi 0, %s126
    %s127 = sphi 0, %s124
    %s128 = sphi 0, %s127
    %s144 = sphi 0, %s128
  $region4: #{_lambda_.36} parent=0 // loop_header_branch
    %13 = sbr.rel (%p11) target = $region8
  $region5: #{_lambda_.36} parent=0 // loop_body
    %s15 = ssub.s32 %s10, 1
    %s16 = ssub.s32 %s10, 2
    %s17 = sadd.s32 %s10, 1
    %s18 = ssub.s32 %s10, %s17
    %p19 = scmp.eq.s32.totalorder %s18, 0
    %s21 = sadd.s32 %s20, 1
    %s22 = scalar_select %p19, %s20, %s21
    %p25 = pneg %p19
    %p26 = scmp.eq.s32.totalorder %s10, 1
    %p27 = por %p25, %p26
    %p28 = scmp.ne.s32.totalorder %s20, %s23
    %p29 = scmp.eq.s32.totalorder %s10, 0
    %p30 = por %p28, %p29
    %p31 = scmp.ne.s32.totalorder %s20, %s23
    %p32 = scmp.eq.s32.totalorder %s15, 1
    %p33 = por %p31, %p32
    %p34 = scmp.ne.s32.totalorder %s23, %s24
    %p35 = scmp.eq.s32.totalorder %s15, 0
    %p36 = por %p34, %p35
    %p37 = scmp.ne.s32.totalorder %s23, %s24
    %p38 = scmp.eq.s32.totalorder %s16, 1
    %p39 = por %p37, %p38
    %p41 = scmp.ne.s32.totalorder %s24, %s40
    %p42 = scmp.eq.s32.totalorder %s16, 0
    %p43 = por %p41, %p42
    %s44 = ssub.s32 %s10, %s17
    %p45 = scmp.eq.s32.totalorder %s44, 0
    %s47 = sadd.s32 %s46, 1
    %s48 = scalar_select %p45, %s46, %s47
    %p51 = pneg %p45
    %p52 = scmp.eq.s32.totalorder %s10, 1
    %p53 = por %p51, %p52
    %p54 = scmp.ne.s32.totalorder %s46, %s49
    %p55 = scmp.eq.s32.totalorder %s10, 0
    %p56 = por %p54, %p55
    %p57 = scmp.ne.s32.totalorder %s46, %s49
    %p58 = scmp.eq.s32.totalorder %s15, 1
    %p59 = por %p57, %p58
    %p60 = scmp.ne.s32.totalorder %s49, %s50
    %p61 = scmp.eq.s32.totalorder %s15, 0
    %p62 = por %p60, %p61
    %p63 = scmp.ne.s32.totalorder %s49, %s50
    %p64 = scmp.eq.s32.totalorder %s16, 1
    %p65 = por %p63, %p64
    %p67 = scmp.ne.s32.totalorder %s50, %s66
    %p68 = scmp.eq.s32.totalorder %s16, 0
    %p69 = por %p67, %p68
    %s70 = ssub.s32 %s10, %s17
    %p71 = scmp.eq.s32.totalorder %s70, 0
    %s73 = sadd.s32 %s72, 1
    %s74 = scalar_select %p71, %s72, %s73
    %p77 = pneg %p71
    %p78 = scmp.eq.s32.totalorder %s10, 1
    %p79 = por %p77, %p78
    %p80 = scmp.ne.s32.totalorder %s72, %s75
    %p81 = scmp.eq.s32.totalorder %s10, 0
    %p82 = por %p80, %p81
    %p83 = scmp.ne.s32.totalorder %s72, %s75
    %p84 = scmp.eq.s32.totalorder %s15, 1
    %p85 = por %p83, %p84
    %p86 = scmp.ne.s32.totalorder %s75, %s76
    %p87 = scmp.eq.s32.totalorder %s15, 0
    %p88 = por %p86, %p87
    %p89 = scmp.ne.s32.totalorder %s75, %s76
    %p90 = scmp.eq.s32.totalorder %s16, 1
    %p91 = por %p89, %p90
    %p93 = scmp.ne.s32.totalorder %s76, %s92
    %p94 = scmp.eq.s32.totalorder %s16, 0
    %p95 = por %p93, %p94
    %s96 = ssub.s32 %s10, %s17
    %p97 = scmp.eq.s32.totalorder %s96, 0
    %s99 = sadd.s32 %s98, 1
    %s100 = scalar_select %p97, %s98, %s99
    %p103 = pneg %p97
    %p104 = scmp.eq.s32.totalorder %s10, 1
    %p105 = por %p103, %p104
    %p106 = scmp.ne.s32.totalorder %s98, %s101
    %p107 = scmp.eq.s32.totalorder %s10, 0
    %p108 = por %p106, %p107
    %p109 = scmp.ne.s32.totalorder %s98, %s101
    %p110 = scmp.eq.s32.totalorder %s15, 1
    %p111 = por %p109, %p110
    %p112 = scmp.ne.s32.totalorder %s101, %s102
    %p113 = scmp.eq.s32.totalorder %s15, 0
    %p114 = por %p112, %p113
    %p115 = scmp.ne.s32.totalorder %s101, %s102
    %p116 = scmp.eq.s32.totalorder %s16, 1
    %p117 = por %p115, %p116
    %p119 = scmp.ne.s32.totalorder %s102, %s118
    %p120 = scmp.eq.s32.totalorder %s16, 0
    %p121 = por %p119, %p120
    %s122 = ssub.s32 %s10, %s17
    %p123 = scmp.eq.s32.totalorder %s122, 0
    %s125 = sadd.s32 %s124, 1
    %s126 = scalar_select %p123, %s124, %s125
    %p129 = pneg %p123
    %p130 = scmp.eq.s32.totalorder %s10, 1
    %p131 = por %p129, %p130
    %p132 = scmp.ne.s32.totalorder %s124, %s127
    %p133 = scmp.eq.s32.totalorder %s10, 0
    %p134 = por %p132, %p133
    %p135 = scmp.ne.s32.totalorder %s124, %s127
    %p136 = scmp.eq.s32.totalorder %s15, 1
    %p137 = por %p135, %p136
    %p138 = scmp.ne.s32.totalorder %s127, %s128
    %p139 = scmp.eq.s32.totalorder %s15, 0
    %p140 = por %p138, %p139
    %p141 = scmp.ne.s32.totalorder %s127, %s128
    %p142 = scmp.eq.s32.totalorder %s16, 1
    %p143 = por %p141, %p142
    %p145 = scmp.ne.s32.totalorder %s128, %s144
    %p146 = scmp.eq.s32.totalorder %s16, 0
    %p147 = por %p145, %p146
    %p148 = scmp.le.s32.totalorder 1, %s10
    %p149 = scmp.lt.s32.totalorder %s10, 3
    %p150 = pnand %p148, %p149
    %p151 = pneg %p150
    // Predicated region
    $region9: #{_lambda_.36} parent=5 // pred_check
      _
    $region10: #{_lambda_.36} parent=5 // pred_check_branch
      %153 = sbr.rel (%p150) target = $region12
    $region11: #{_lambda_.36} parent=5 // pred_region
      %s154 = ssub.s32 %s10, 1
    $region12: #{_lambda_.36} parent=5 // pred_fallthru
      _
    %p155 = scmp.lt.s32.totalorder %s10, 2
    // Predicated region
    $region13: #{_lambda_.36} parent=5 // pred_check
      %p156 = pneg %p155
    $region14: #{_lambda_.36} parent=5 // pred_check_branch
      %158 = sbr.rel (%p156) target = $region16
    $region15: #{_lambda_.36} parent=5 // pred_region
      // Predicated region
      $region17: #{_lambda_.36} parent=15 // pred_check
        %p159 = pneg %p30
      $region18: #{_lambda_.36} parent=15 // pred_check_branch
        %161 = sbr.rel (%p159) target = $region20
      $region19: #{_lambda_.36} parent=15 // pred_region
        %p162 = scmp.lt.s32.totalorder %s10, 1
        %s163 = scalar_select %p162, %s10, 1
        %s164 = smul.addr %s163, 4
        %s165 = scalar_lea.vmem %s0, %s164
      $region20: #{_lambda_.36} parent=15 // pred_fallthru
        _
      // Predicated region
      $region21: #{_lambda_.36} parent=15 // pred_check
        %p166 = pneg %p56
      $region22: #{_lambda_.36} parent=15 // pred_check_branch
        %168 = sbr.rel (%p166) target = $region24
      $region23: #{_lambda_.36} parent=15 // pred_region
        %p169 = scmp.lt.s32.totalorder %s10, 1
        %s170 = scalar_select %p169, %s10, 1
        %s171 = smul.addr %s170, 4
        %s172 = scalar_lea.vmem %s1, %s171
      $region24: #{_lambda_.36} parent=15 // pred_fallthru
        _
      // Predicated region
      $region25: #{_lambda_.36} parent=15 // pred_check
        %p173 = pneg %p82
      $region26: #{_lambda_.36} parent=15 // pred_check_branch
        %175 = sbr.rel (%p173) target = $region28
      $region27: #{_lambda_.36} parent=15 // pred_region
        %p176 = scmp.lt.s32.totalorder %s10, 1
        %s177 = scalar_select %p176, %s10, 1
        %s178 = smul.addr %s177, 4
        %s179 = scalar_lea.vmem %s2, %s178
      $region28: #{_lambda_.36} parent=15 // pred_fallthru
        _
      // Predicated region
      $region29: #{_lambda_.36} parent=15 // pred_check
        %p180 = pneg %p108
      $region30: #{_lambda_.36} parent=15 // pred_check_branch
        %182 = sbr.rel (%p180) target = $region32
      $region31: #{_lambda_.36} parent=15 // pred_region
        %p183 = scmp.lt.s32.totalorder %s10, 1
        %s184 = scalar_select %p183, %s10, 1
        %s185 = scalar_lea.vmem %s3, %s184
      $region32: #{_lambda_.36} parent=15 // pred_fallthru
        _
    $region16: #{_lambda_.36} parent=5 // pred_fallthru
      _
    %p186 = scmp.le.s32.totalorder 1, %s10
    %p187 = scmp.lt.s32.totalorder %s10, 3
    %p188 = pnand %p186, %p187
    %p189 = pneg %p188
    // Predicated region
    $region33: #{_lambda_.36} parent=5 // pred_check
      _
    $region34: #{_lambda_.36} parent=5 // pred_check_branch
      %191 = sbr.rel (%p188) target = $region36
    $region35: #{_lambda_.36} parent=5 // pred_region
      %s192 = ssub.s32 %s10, 1
      %p193 = scmp.lt.s32.totalorder %s15, 1
      %s194 = scalar_select %p193, %s15, 1
      %s195 = smul.addr %s194, 4
      %s196 = scalar_lea.vmem %s0, %s195
      %p197 = pneg %p36
      %p198 = pneg %p33
      %p199 = scmp.lt.s32.totalorder %s15, 1
      %s200 = scalar_select %p199, %s15, 1
      %s201 = smul.addr %s200, 4
      %s202 = scalar_lea.vmem %s1, %s201
      %p203 = pneg %p62
      %p204 = pneg %p59
      %p205 = scmp.lt.s32.totalorder %s15, 1
      %s206 = scalar_select %p205, %s15, 1
      %s207 = smul.addr %s206, 4
      %s208 = scalar_lea.vmem %s2, %s207
      %p209 = pneg %p88
      %p210 = pneg %p85
      %p211 = scmp.lt.s32.totalorder %s15, 1
      %s212 = scalar_select %p211, %s15, 1
      %s213 = scalar_lea.vmem %s3, %s212
      %p214 = pneg %p114
      %p215 = pneg %p111
      %p216 = pneg %p140
      %p217 = pneg %p137
      %p218 = scmp.lt.s32.totalorder %s15, 1
      %s219 = scalar_select %p218, %s15, 1
      %s220 = smul.addr %s219, 8
      %s221 = scalar_lea.vmem %s4, %s220
      %p222 = scmp.lt.s32.totalorder %s15, 1
      %s223 = scalar_select %p222, %s15, 1
      %s224 = smul.addr %s223, 4
      %s225 = scalar_lea.vmem %s0, %s224
      %p226 = scmp.lt.s32.totalorder %s15, 1
      %s227 = scalar_select %p226, %s15, 1
      %s228 = smul.addr %s227, 4
      %s229 = scalar_lea.vmem %s1, %s228
      %p230 = scmp.lt.s32.totalorder %s15, 1
      %s231 = scalar_select %p230, %s15, 1
      %s232 = smul.addr %s231, 4
      %s233 = scalar_lea.vmem %s2, %s232
      %p234 = scmp.lt.s32.totalorder %s15, 1
      %s235 = scalar_select %p234, %s15, 1
      %s236 = scalar_lea.vmem %s3, %s235
      %p237 = scmp.lt.s32.totalorder %s15, 1
      %s238 = scalar_select %p237, %s15, 1
      %s239 = smul.addr %s238, 8
      %s240 = scalar_lea.vmem %s4, %s239
      %v242 = vld [vmem:[%s225] sm:$0x7]
      %v243 = vld [vmem:[%s229] sm:$0xf]
      %v244 = vld [vmem:[%s233] sm:$0xf]
      %v245 = vld [vmem:[%s236] sm:$0x1]
      %vm246 = vcmask 261120
      %v248 = vsel %vm246, %v242, 0
      %v251 = vsel %vm246, %v243, 0
      %253 = vmatpush.bf16.xpose.msra.mxu0 0
      %254 = vmatpush.bf16.xpose.msra.mxu0 0
      %255 = vmatpush.bf16.xpose.msra.mxu0 0
      %256 = vmatpush.bf16.xpose.msra.mxu0 0
      %257 = vmatpush.bf16.xpose.msra.mxu0 0
      %258 = vmatpush.bf16.xpose.msra.mxu0 0
      %259 = vmatpush.bf16.xpose.msra.mxu0 0
      %260 = vmatpush.bf16.xpose.msra.mxu0 %v251
      %261 = vmatmul.bf16.gmra.mxu0 %v248
      %v262 = vpop.f32.mrf.mxu0
      %v263 = vadd.f32 0.0, %v262
      %v264 = vpop.f32.mrf.mxu0
      %265 = vdwg.mxu0
      %v267 = vperm.slane %v245, 0
      %vm269 = vcmp.gt.f32.partialorder %v267, 0.0
      %v270 = vsel %vm269, %v263, -1e+09
      %vm271 = vcmask 62464
      %v272 = vsel %vm271, %v270, -inf
      %273 = vmax.xlane.f32.xlu0 %v272
      %v274 = vpop.xlane.xlu0 %273
      %v275 = vsub.f32 %v270, %v274
      %v276 = vmul.f32 %v275, 1.442695
      %v277 = vpow.pop %v276
      %v278 = vsel %vm271, %v277, 0.0
      %279 = vadd.xlane.f32.xlu0 %v278
      %v280 = vpop.xlane.xlu0 %279
      %v281 = vrcp.pop %v280
      %v282 = vmul.f32 %v280, %v281
      %v283 = vsub.f32 1.0, %v282
      %v284 = vmul.f32 %v281, %v283
      %v285 = vadd.f32 %v281, %v284
      %vm286 = vweird.f32 %v280
      %vm287 = vweird.f32 %v281
      %vm288 = vmor %vm286, %vm287
      %v289 = vsel %vm288, %v281, %v285
      %v290 = vand.u32 2147483647, %v280
      %vm291 = vcmp.eq.f32.partialorder %v290, 8.507059e+37
      %v292 = vand.u32 %v280, 2147483648
      %v293 = vor.u32 1.1754944e-38, %v292
      %v294 = vsel %vm291, %v293, %v289
      %v295 = vmul.f32 %v277, %v294
      %v296 = vpack.c.bf16 %v295, %v295
      %vm297 = vcmask 64512
      %v299 = vsel %vm297, %v296, 0
      %vm301 = vcmask 1043456
      %v303 = vsel %vm301, %v244, 0
      %305 = vmatpush.bf16.msra.mxu0 0
      %306 = vmatpush.bf16.msra.mxu0 0
      %307 = vmatpush.bf16.msra.mxu0 0
      %308 = vmatpush.bf16.msra.mxu0 0
      %309 = vmatpush.bf16.msra.mxu0 0
      %310 = vmatpush.bf16.msra.mxu0 0
      %311 = vmatpush.bf16.msra.mxu0 0
      %312 = vmatpush.bf16.msra.mxu0 %v303
      %313 = vmatmul.bf16.gmra.mxu0 %v299
      %v314 = vpop.f32.mrf.mxu0
      %v315 = vadd.f32 0.0, %v314
      %v316 = vpop.f32.mrf.mxu0
      %317 = vdwg.mxu0
      %vm318 = vcmask 259072
      %319 = vst.msk [vmem:[%s240] sm:$0x3f] %vm318, %v315
      %p320 = scmp.lt.s32.totalorder %s15, 1
      %s321 = scalar_select %p320, %s15, 1
      %s322 = smul.addr %s321, 8
      %s323 = scalar_lea.vmem %s4, %s322
      // Predicated region
      $region37: #{_lambda_.36} parent=35 // pred_check
        %p324 = pneg %p137
      $region38: #{_lambda_.36} parent=35 // pred_check_branch
        %326 = sbr.rel (%p324) target = $region40
      $region39: #{_lambda_.36} parent=35 // pred_region
        _
      $region40: #{_lambda_.36} parent=35 // pred_fallthru
        _
    $region36: #{_lambda_.36} parent=5 // pred_fallthru
      _
    %p327 = scmp.le.s32.totalorder 2, %s10
    // Predicated region
    $region41: #{_lambda_.36} parent=5 // pred_check
      %p328 = pneg %p327
    $region42: #{_lambda_.36} parent=5 // pred_check_branch
      %330 = sbr.rel (%p328) target = $region44
    $region43: #{_lambda_.36} parent=5 // pred_region
      %s331 = ssub.s32 %s10, 2
      // Predicated region
      $region45: #{_lambda_.36} parent=43 // pred_check
        %p332 = pneg %p143
      $region46: #{_lambda_.36} parent=43 // pred_check_branch
        %334 = sbr.rel (%p332) target = $region48
      $region47: #{_lambda_.36} parent=43 // pred_region
        %p335 = scmp.lt.s32.totalorder %s16, 1
        %s336 = scalar_select %p335, %s16, 1
        %s337 = smul.addr %s336, 8
        %s338 = scalar_lea.vmem %s4, %s337
      $region48: #{_lambda_.36} parent=43 // pred_fallthru
        _
    $region44: #{_lambda_.36} parent=5 // pred_fallthru
      _
  $region6: #{_lambda_.36} parent=0 // loop_footer
    %s14 = sadd.s32 1, %s10
  $region7: #{_lambda_.36} parent=0 // loop_footer_branch
    %9 = sbr.rel target = $region3
  $region8: #{_lambda_.36} parent=0 // loop_exit
    _

// kernel: _lambda_.37
$region0: #{_lambda_.37}
  #allocation0 [shape = 'u32[]', space=smem, size = 0x4, offset = 0x4, fixed_abs, tag = 'smem constant byte address 0x4 - core index']
  #allocation1 [shape = 'u32[72,128]{1,0:T(1,128)}', space=vmem, size = 0x9000, scoped, tag = 'internal scratch']
  %s0 = inlined_call_operand.vmem [shape: bf16[2,6,32], index: 0, kind: input, shape index: {}]
  %s1 = inlined_call_operand.vmem [shape: bf16[2,18,32], index: 1, kind: input, shape index: {}, may-alias: {1,2}]
  %s2 = inlined_call_operand.vmem [shape: bf16[2,18,32], index: 2, kind: input, shape index: {}, may-alias: {1,2}]
  %s3 = inlined_call_operand.vmem [shape: f32[2,1,18], index: 3, kind: input, shape index: {}]
  %s4 = inlined_call_operand.vmem [shape: f32[2,6,32], index: 4, kind: output, shape index: {0}]
  %s5 = inlined_call_operand.vmem [shape: f32[2,6,18], index: 5, kind: output, shape index: {1}]
  %6 = xla_tuple %s4, %s5
  %s7 = sld [smem:[#allocation0]]
  $region57: #{_lambda_.37} parent=0
    _
  %s9 = ssub.s32 1, %s7
  %s10 = scalar_select 0, %s9, %s7
  loop: start=0, step=1, limit=4
  $region2: #{_lambda_.37} parent=0 // loop_pre_header
    _
  $region3: #{_lambda_.37} parent=0 // loop_header
    %s12 = sphi 0, %s16
    %p13 = scmp.ge.s32.totalorder %s12, 4
    %s22 = sphi 0, %s24
    %s25 = sphi 0, %s22
    %s26 = sphi 0, %s25
    %s42 = sphi 0, %s26
    %s48 = sphi 0, %s50
    %s51 = sphi 0, %s48
    %s52 = sphi 0, %s51
    %s68 = sphi 0, %s52
    %s74 = sphi 0, %s76
    %s77 = sphi 0, %s74
    %s78 = sphi 0, %s77
    %s94 = sphi 0, %s78
    %s100 = sphi 0, %s102
    %s103 = sphi 0, %s100
    %s104 = sphi 0, %s103
    %s120 = sphi 0, %s104
    %s126 = sphi 0, %s128
    %s129 = sphi 0, %s126
    %s130 = sphi 0, %s129
    %s146 = sphi 0, %s130
    %s152 = sphi 0, %s154
    %s155 = sphi 0, %s152
    %s156 = sphi 0, %s155
    %s172 = sphi 0, %s156
  $region4: #{_lambda_.37} parent=0 // loop_header_branch
    %15 = sbr.rel (%p13) target = $region8
  $region5: #{_lambda_.37} parent=0 // loop_body
    %s17 = ssub.s32 %s12, 1
    %s18 = ssub.s32 %s12, 2
    %s19 = sadd.s32 %s12, 1
    %s20 = ssub.s32 %s12, %s19
    %p21 = scmp.eq.s32.totalorder %s20, 0
    %s23 = sadd.s32 %s22, 1
    %s24 = scalar_select %p21, %s22, %s23
    %p27 = pneg %p21
    %p28 = scmp.eq.s32.totalorder %s12, 1
    %p29 = por %p27, %p28
    %p30 = scmp.ne.s32.totalorder %s22, %s25
    %p31 = scmp.eq.s32.totalorder %s12, 0
    %p32 = por %p30, %p31
    %p33 = scmp.ne.s32.totalorder %s22, %s25
    %p34 = scmp.eq.s32.totalorder %s17, 1
    %p35 = por %p33, %p34
    %p36 = scmp.ne.s32.totalorder %s25, %s26
    %p37 = scmp.eq.s32.totalorder %s17, 0
    %p38 = por %p36, %p37
    %p39 = scmp.ne.s32.totalorder %s25, %s26
    %p40 = scmp.eq.s32.totalorder %s18, 1
    %p41 = por %p39, %p40
    %p43 = scmp.ne.s32.totalorder %s26, %s42
    %p44 = scmp.eq.s32.totalorder %s18, 0
    %p45 = por %p43, %p44
    %s46 = ssub.s32 %s12, %s19
    %p47 = scmp.eq.s32.totalorder %s46, 0
    %s49 = sadd.s32 %s48, 1
    %s50 = scalar_select %p47, %s48, %s49
    %p53 = pneg %p47
    %p54 = scmp.eq.s32.totalorder %s12, 1
    %p55 = por %p53, %p54
    %p56 = scmp.ne.s32.totalorder %s48, %s51
    %p57 = scmp.eq.s32.totalorder %s12, 0
    %p58 = por %p56, %p57
    %p59 = scmp.ne.s32.totalorder %s48, %s51
    %p60 = scmp.eq.s32.totalorder %s17, 1
    %p61 = por %p59, %p60
    %p62 = scmp.ne.s32.totalorder %s51, %s52
    %p63 = scmp.eq.s32.totalorder %s17, 0
    %p64 = por %p62, %p63
    %p65 = scmp.ne.s32.totalorder %s51, %s52
    %p66 = scmp.eq.s32.totalorder %s18, 1
    %p67 = por %p65, %p66
    %p69 = scmp.ne.s32.totalorder %s52, %s68
    %p70 = scmp.eq.s32.totalorder %s18, 0
    %p71 = por %p69, %p70
    %s72 = ssub.s32 %s12, %s19
    %p73 = scmp.eq.s32.totalorder %s72, 0
    %s75 = sadd.s32 %s74, 1
    %s76 = scalar_select %p73, %s74, %s75
    %p79 = pneg %p73
    %p80 = scmp.eq.s32.totalorder %s12, 1
    %p81 = por %p79, %p80
    %p82 = scmp.ne.s32.totalorder %s74, %s77
    %p83 = scmp.eq.s32.totalorder %s12, 0
    %p84 = por %p82, %p83
    %p85 = scmp.ne.s32.totalorder %s74, %s77
    %p86 = scmp.eq.s32.totalorder %s17, 1
    %p87 = por %p85, %p86
    %p88 = scmp.ne.s32.totalorder %s77, %s78
    %p89 = scmp.eq.s32.totalorder %s17, 0
    %p90 = por %p88, %p89
    %p91 = scmp.ne.s32.totalorder %s77, %s78
    %p92 = scmp.eq.s32.totalorder %s18, 1
    %p93 = por %p91, %p92
    %p95 = scmp.ne.s32.totalorder %s78, %s94
    %p96 = scmp.eq.s32.totalorder %s18, 0
    %p97 = por %p95, %p96
    %s98 = ssub.s32 %s12, %s19
    %p99 = scmp.eq.s32.totalorder %s98, 0
    %s101 = sadd.s32 %s100, 1
    %s102 = scalar_select %p99, %s100, %s101
    %p105 = pneg %p99
    %p106 = scmp.eq.s32.totalorder %s12, 1
    %p107 = por %p105, %p106
    %p108 = scmp.ne.s32.totalorder %s100, %s103
    %p109 = scmp.eq.s32.totalorder %s12, 0
    %p110 = por %p108, %p109
    %p111 = scmp.ne.s32.totalorder %s100, %s103
    %p112 = scmp.eq.s32.totalorder %s17, 1
    %p113 = por %p111, %p112
    %p114 = scmp.ne.s32.totalorder %s103, %s104
    %p115 = scmp.eq.s32.totalorder %s17, 0
    %p116 = por %p114, %p115
    %p117 = scmp.ne.s32.totalorder %s103, %s104
    %p118 = scmp.eq.s32.totalorder %s18, 1
    %p119 = por %p117, %p118
    %p121 = scmp.ne.s32.totalorder %s104, %s120
    %p122 = scmp.eq.s32.totalorder %s18, 0
    %p123 = por %p121, %p122
    %s124 = ssub.s32 %s12, %s19
    %p125 = scmp.eq.s32.totalorder %s124, 0
    %s127 = sadd.s32 %s126, 1
    %s128 = scalar_select %p125, %s126, %s127
    %p131 = pneg %p125
    %p132 = scmp.eq.s32.totalorder %s12, 1
    %p133 = por %p131, %p132
    %p134 = scmp.ne.s32.totalorder %s126, %s129
    %p135 = scmp.eq.s32.totalorder %s12, 0
    %p136 = por %p134, %p135
    %p137 = scmp.ne.s32.totalorder %s126, %s129
    %p138 = scmp.eq.s32.totalorder %s17, 1
    %p139 = por %p137, %p138
    %p140 = scmp.ne.s32.totalorder %s129, %s130
    %p141 = scmp.eq.s32.totalorder %s17, 0
    %p142 = por %p140, %p141
    %p143 = scmp.ne.s32.totalorder %s129, %s130
    %p144 = scmp.eq.s32.totalorder %s18, 1
    %p145 = por %p143, %p144
    %p147 = scmp.ne.s32.totalorder %s130, %s146
    %p148 = scmp.eq.s32.totalorder %s18, 0
    %p149 = por %p147, %p148
    %s150 = ssub.s32 %s12, %s19
    %p151 = scmp.eq.s32.totalorder %s150, 0
    %s153 = sadd.s32 %s152, 1
    %s154 = scalar_select %p151, %s152, %s153
    %p157 = pneg %p151
    %p158 = scmp.eq.s32.totalorder %s12, 1
    %p159 = por %p157, %p158
    %p160 = scmp.ne.s32.totalorder %s152, %s155
    %p161 = scmp.eq.s32.totalorder %s12, 0
    %p162 = por %p160, %p161
    %p163 = scmp.ne.s32.totalorder %s152, %s155
    %p164 = scmp.eq.s32.totalorder %s17, 1
    %p165 = por %p163, %p164
    %p166 = scmp.ne.s32.totalorder %s155, %s156
    %p167 = scmp.eq.s32.totalorder %s17, 0
    %p168 = por %p166, %p167
    %p169 = scmp.ne.s32.totalorder %s155, %s156
    %p170 = scmp.eq.s32.totalorder %s18, 1
    %p171 = por %p169, %p170
    %p173 = scmp.ne.s32.totalorder %s156, %s172
    %p174 = scmp.eq.s32.totalorder %s18, 0
    %p175 = por %p173, %p174
    %p176 = scmp.le.s32.totalorder 1, %s12
    %p177 = scmp.lt.s32.totalorder %s12, 3
    %p178 = pnand %p176, %p177
    %p179 = pneg %p178
    // Predicated region
    $region9: #{_lambda_.37} parent=5 // pred_check
      _
    $region10: #{_lambda_.37} parent=5 // pred_check_branch
      %181 = sbr.rel (%p178) target = $region12
    $region11: #{_lambda_.37} parent=5 // pred_region
      %s182 = ssub.s32 %s12, 1
    $region12: #{_lambda_.37} parent=5 // pred_fallthru
      _
    %p183 = scmp.lt.s32.totalorder %s12, 2
    // Predicated region
    $region13: #{_lambda_.37} parent=5 // pred_check
      %p184 = pneg %p183
    $region14: #{_lambda_.37} parent=5 // pred_check_branch
      %186 = sbr.rel (%p184) target = $region16
    $region15: #{_lambda_.37} parent=5 // pred_region
      // Predicated region
      $region17: #{_lambda_.37} parent=15 // pred_check
        %p187 = pneg %p32
      $region18: #{_lambda_.37} parent=15 // pred_check_branch
        %189 = sbr.rel (%p187) target = $region20
      $region19: #{_lambda_.37} parent=15 // pred_region
        %p190 = scmp.lt.s32.totalorder %s12, 1
        %s191 = scalar_select %p190, %s12, 1
        %s192 = smul.addr %s191, 4
        %s193 = scalar_lea.vmem %s0, %s192
      $region20: #{_lambda_.37} parent=15 // pred_fallthru
        _
      // Predicated region
      $region21: #{_lambda_.37} parent=15 // pred_check
        %p194 = pneg %p58
      $region22: #{_lambda_.37} parent=15 // pred_check_branch
        %196 = sbr.rel (%p194) target = $region24
      $region23: #{_lambda_.37} parent=15 // pred_region
        %p197 = scmp.lt.s32.totalorder %s12, 1
        %s198 = scalar_select %p197, %s12, 1
        %s199 = smul.addr %s198, 3
        %s200 = smul.addr %s199, 4
        %s201 = scalar_lea.vmem %s1, %s200
      $region24: #{_lambda_.37} parent=15 // pred_fallthru
        _
      // Predicated region
      $region25: #{_lambda_.37} parent=15 // pred_check
        %p202 = pneg %p84
      $region26: #{_lambda_.37} parent=15 // pred_check_branch
        %204 = sbr.rel (%p202) target = $region28
      $region27: #{_lambda_.37} parent=15 // pred_region
        %p205 = scmp.lt.s32.totalorder %s12, 1
        %s206 = scalar_select %p205, %s12, 1
        %s207 = smul.addr %s206, 3
        %s208 = smul.addr %s207, 4
        %s209 = scalar_lea.vmem %s2, %s208
      $region28: #{_lambda_.37} parent=15 // pred_fallthru
        _
      // Predicated region
      $region29: #{_lambda_.37} parent=15 // pred_check
        %p210 = pneg %p110
      $region30: #{_lambda_.37} parent=15 // pred_check_branch
        %212 = sbr.rel (%p210) target = $region32
      $region31: #{_lambda_.37} parent=15 // pred_region
        %p213 = scmp.lt.s32.totalorder %s12, 1
        %s214 = scalar_select %p213, %s12, 1
        %s215 = scalar_lea.vmem %s3, %s214
      $region32: #{_lambda_.37} parent=15 // pred_fallthru
        _
    $region16: #{_lambda_.37} parent=5 // pred_fallthru
      _
    %p216 = scmp.le.s32.totalorder 1, %s12
    %p217 = scmp.lt.s32.totalorder %s12, 3
    %p218 = pnand %p216, %p217
    %p219 = pneg %p218
    // Predicated region
    $region33: #{_lambda_.37} parent=5 // pred_check
      _
    $region34: #{_lambda_.37} parent=5 // pred_check_branch
      %221 = sbr.rel (%p218) target = $region36
    $region35: #{_lambda_.37} parent=5 // pred_region
      %s222 = ssub.s32 %s12, 1
      %p223 = scmp.lt.s32.totalorder %s17, 1
      %s224 = scalar_select %p223, %s17, 1
      %s225 = smul.addr %s224, 4
      %s226 = scalar_lea.vmem %s0, %s225
      %p227 = pneg %p38
      %p228 = pneg %p35
      %p229 = scmp.lt.s32.totalorder %s17, 1
      %s230 = scalar_select %p229, %s17, 1
      %s231 = smul.addr %s230, 3
      %s232 = smul.addr %s231, 4
      %s233 = scalar_lea.vmem %s1, %s232
      %p234 = pneg %p64
      %p235 = pneg %p61
      %p236 = scmp.lt.s32.totalorder %s17, 1
      %s237 = scalar_select %p236, %s17, 1
      %s238 = smul.addr %s237, 3
      %s239 = smul.addr %s238, 4
      %s240 = scalar_lea.vmem %s2, %s239
      %p241 = pneg %p90
      %p242 = pneg %p87
      %p243 = scmp.lt.s32.totalorder %s17, 1
      %s244 = scalar_select %p243, %s17, 1
      %s245 = scalar_lea.vmem %s3, %s244
      %p246 = pneg %p116
      %p247 = pneg %p113
      %p248 = pneg %p142
      %p249 = pneg %p139
      %p250 = scmp.lt.s32.totalorder %s17, 1
      %s251 = scalar_select %p250, %s17, 1
      %s252 = smul.addr %s251, 8
      %s253 = scalar_lea.vmem %s4, %s252
      %p254 = pneg %p168
      %p255 = pneg %p165
      %p256 = scmp.lt.s32.totalorder %s17, 1
      %s257 = scalar_select %p256, %s17, 1
      %s258 = smul.addr %s257, 8
      %s259 = scalar_lea.vmem %s5, %s258
      %p260 = scmp.lt.s32.totalorder %s17, 1
      %s261 = scalar_select %p260, %s17, 1
      %s262 = smul.addr %s261, 4
      %s263 = scalar_lea.vmem %s0, %s262
      %p264 = scmp.lt.s32.totalorder %s17, 1
      %s265 = scalar_select %p264, %s17, 1
      %s266 = smul.addr %s265, 3
      %s267 = smul.addr %s266, 4
      %s268 = scalar_lea.vmem %s1, %s267
      %p269 = scmp.lt.s32.totalorder %s17, 1
      %s270 = scalar_select %p269, %s17, 1
      %s271 = smul.addr %s270, 3
      %s272 = smul.addr %s271, 4
      %s273 = scalar_lea.vmem %s2, %s272
      %p274 = scmp.lt.s32.totalorder %s17, 1
      %s275 = scalar_select %p274, %s17, 1
      %s276 = scalar_lea.vmem %s3, %s275
      %p277 = scmp.lt.s32.totalorder %s17, 1
      %s278 = scalar_select %p277, %s17, 1
      %s279 = smul.addr %s278, 8
      %s280 = scalar_lea.vmem %s4, %s279
      %p281 = scmp.lt.s32.totalorder %s17, 1
      %s282 = scalar_select %p281, %s17, 1
      %s283 = smul.addr %s282, 8
      %s284 = scalar_lea.vmem %s5, %s283
      %v286 = vld [vmem:[%s263] sm:$0x7]
      %v287 = vld [vmem:[%s268] sm:$0xf]
      %v288 = vld [vmem:[%s268 + $0x4] sm:$0xf]
      %v289 = vld [vmem:[%s268 + $0x8] sm:$0x1]
      %v290 = vld [vmem:[%s273] sm:$0xf]
      %v291 = vld [vmem:[%s273 + $0x4] sm:$0xf]
      %v292 = vld [vmem:[%s273 + $0x8] sm:$0x1]
      %v293 = vld [vmem:[%s276] sm:$0x1]
      %v297 = vunpack.c.l.b16 %v287
      %v298 = vunpack.c.l.b16 %v288
      %v299 = vunpack.c.l.b16 %v289
      %v300 = vpack.c.b16 %v298, %v297
      %v301 = vpack.c.b16 %v299, %v299
      %vm302 = vcmask 261120
      %v304 = vsel %vm302, %v286, 0
      %v307 = vsel %vm302, %v300, 0
      %v310 = vsel %vm302, %v301, 0
      %312 = vmatpush.bf16.xpose.msra.mxu0 0
      %313 = vmatpush.bf16.xpose.msra.mxu0 0
      %314 = vmatpush.bf16.xpose.msra.mxu0 0
      %315 = vmatpush.bf16.xpose.msra.mxu0 0
      %316 = vmatpush.bf16.xpose.msra.mxu0 0
      %317 = vmatpush.bf16.xpose.msra.mxu0 0
      %318 = vmatpush.bf16.xpose.msra.mxu0 %v310
      %319 = vmatpush.bf16.xpose.msra.mxu0 %v307
      %320 = vmatmul.bf16.gmra.mxu0 %v304
      %v321 = vpop.f32.mrf.mxu0
      %v322 = vadd.f32 0.0, %v321
      %v323 = vpop.f32.mrf.mxu0
      %324 = vdwg.mxu0
      %v326 = vperm.slane %v293, 0
      %vm328 = vcmp.gt.f32.partialorder %v326, 0.0
      %v329 = vsel %vm328, %v322, -1e+09
      %vm330 = vcmask 144384
      %v331 = vsel %vm330, %v329, -inf
      %332 = vmax.xlane.f32.xlu0 %v331
      %v333 = vpop.xlane.xlu0 %332
      %v334 = vsub.f32 %v329, %v333
      %v335 = vmul.f32 %v334, 1.442695
      %v336 = vpow.pop %v335
      %v337 = vsel %vm330, %v336, 0.0
      %338 = vadd.xlane.f32.xlu0 %v337
      %v339 = vpop.xlane.xlu0 %338
      %v340 = vrcp.pop %v339
      %v341 = vmul.f32 %v339, %v340
      %v342 = vsub.f32 1.0, %v341
      %v343 = vmul.f32 %v340, %v342
      %v344 = vadd.f32 %v340, %v343
      %vm345 = vweird.f32 %v339
      %vm346 = vweird.f32 %v340
      %vm347 = vmor %vm345, %vm346
      %v348 = vsel %vm347, %v340, %v344
      %v349 = vand.u32 2147483647, %v339
      %vm350 = vcmp.eq.f32.partialorder %v349, 8.507059e+37
      %v351 = vand.u32 %v339, 2147483648
      %v352 = vor.u32 1.1754944e-38, %v351
      %v353 = vsel %vm350, %v352, %v348
      %v354 = vmul.f32 %v336, %v353
      %v355 = vpack.c.bf16 %v354, %v354
      %v359 = vunpack.c.l.b16 %v290
      %v360 = vunpack.c.l.b16 %v291
      %v361 = vunpack.c.l.b16 %v292
      %v362 = vpack.c.b16 %v360, %v359
      %v363 = vpack.c.b16 %v361, %v361
      %vm365 = vcmask 146432
      %v367 = vsel %vm365, %v355, 0
      %vm369 = vcmask 1040384
      %v371 = vsel %vm369, %v363, 0
      %373 = vmatpush.bf16.msra.mxu0 0
      %374 = vmatpush.bf16.msra.mxu0 0
      %375 = vmatpush.bf16.msra.mxu0 0
      %376 = vmatpush.bf16.msra.mxu0 0
      %377 = vmatpush.bf16.msra.mxu0 0
      %378 = vmatpush.bf16.msra.mxu0 0
      %379 = vmatpush.bf16.msra.mxu0 %v371
      %380 = vmatpush.bf16.msra.mxu0 %v362
      %381 = vmatmul.bf16.gmra.mxu0 %v367
      %v382 = vpop.f32.mrf.mxu0
      %v383 = vadd.f32 0.0, %v382
      %v384 = vpop.f32.mrf.mxu0
      %385 = vdwg.mxu0
      %vm386 = vcmask 259072
      %387 = vst.msk [vmem:[%s280] sm:$0x3f] %vm386, %v383
      %388 = vst.msk [vmem:[%s284] sm:$0x3f] %vm330, %v354
      %p389 = scmp.lt.s32.totalorder %s17, 1
      %s390 = scalar_select %p389, %s17, 1
      %s391 = smul.addr %s390, 8
      %s392 = scalar_lea.vmem %s4, %s391
      %p393 = scmp.lt.s32.totalorder %s17, 1
      %s394 = scalar_select %p393, %s17, 1
      %s395 = smul.addr %s394, 8
      %s396 = scalar_lea.vmem %s5, %s395
      // Predicated region
      $region37: #{_lambda_.37} parent=35 // pred_check
        %p397 = pneg %p139
      $region38: #{_lambda_.37} parent=35 // pred_check_branch
        %399 = sbr.rel (%p397) target = $region40
      $region39: #{_lambda_.37} parent=35 // pred_region
        _
      $region40: #{_lambda_.37} parent=35 // pred_fallthru
        _
      // Predicated region
      $region41: #{_lambda_.37} parent=35 // pred_check
        %p400 = pneg %p165
      $region42: #{_lambda_.37} parent=35 // pred_check_branch
        %402 = sbr.rel (%p400) target = $region44
      $region43: #{_lambda_.37} parent=35 // pred_region
        _
      $region44: #{_lambda_.37} parent=35 // pred_fallthru
        _
    $region36: #{_lambda_.37} parent=5 // pred_fallthru
      _
    %p403 = scmp.le.s32.totalorder 2, %s12
    // Predicated region
    $region45: #{_lambda_.37} parent=5 // pred_check
      %p404 = pneg %p403
    $region46: #{_lambda_.37} parent=5 // pred_check_branch
      %406 = sbr.rel (%p404) target = $region48
    $region47: #{_lambda_.37} parent=5 // pred_region
      %s407 = ssub.s32 %s12, 2
      // Predicated region
      $region49: #{_lambda_.37} parent=47 // pred_check
        %p408 = pneg %p145
      $region50: #{_lambda_.37} parent=47 // pred_check_branch
        %410 = sbr.rel (%p408) target = $region52
      $region51: #{_lambda_.37} parent=47 // pred_region
        %p411 = scmp.lt.s32.totalorder %s18, 1
        %s412 = scalar_select %p411, %s18, 1
        %s413 = smul.addr %s412, 8
        %s414 = scalar_lea.vmem %s4, %s413
      $region52: #{_lambda_.37} parent=47 // pred_fallthru
        _
      // Predicated region
      $region53: #{_lambda_.37} parent=47 // pred_check
        %p415 = pneg %p171
      $region54: #{_lambda_.37} parent=47 // pred_check_branch
        %417 = sbr.rel (%p415) target = $region56
      $region55: #{_lambda_.37} parent=47 // pred_region
        %p418 = scmp.lt.s32.totalorder %s18, 1
        %s419 = scalar_select %p418, %s18, 1
        %s420 = smul.addr %s419, 8
        %s421 = scalar_lea.vmem %s5, %s420
      $region56: #{_lambda_.37} parent=47 // pred_fallthru
        _
    $region48: #{_lambda_.37} parent=5 // pred_fallthru
      _
  $region6: #{_lambda_.37} parent=0 // loop_footer
    %s16 = sadd.s32 1, %s12
  $region7: #{_lambda_.37} parent=0 // loop_footer_branch
    %11 = sbr.rel target = $region3
  $region8: #{_lambda_.37} parent=0 // loop_exit
    _

// kernel: _lambda_.39
$region0: #{_lambda_.39}
  #allocation0 [shape = 'u32[]', space=smem, size = 0x4, offset = 0x4, fixed_abs, tag = 'smem constant byte address 0x4 - core index']
  #allocation1 [shape = 'u32[72,128]{1,0:T(1,128)}', space=vmem, size = 0x9000, scoped, tag = 'internal scratch']
  %s0 = inlined_call_operand.vmem [shape: f32[2,6,64], index: 0, kind: input, shape index: {}]
  %s1 = inlined_call_operand.vmem [shape: f32[2,6,1], index: 1, kind: input, shape index: {}]
  %s2 = inlined_call_operand.vmem [shape: f32[2,6,18], index: 2, kind: input, shape index: {}]
  %s3 = inlined_call_operand.vmem [shape: s32[2,1,18], index: 3, kind: input, shape index: {}]
  %s4 = inlined_call_operand.vmem [shape: f32[2,6,68], index: 4, kind: output, shape index: {}]
  %s5 = sld [smem:[#allocation0]]
  $region49: #{_lambda_.39} parent=0
    _
  %s7 = ssub.s32 1, %s5
  %s8 = scalar_select 0, %s7, %s5
  loop: start=0, step=1, limit=4
  $region2: #{_lambda_.39} parent=0 // loop_pre_header
    _
  $region3: #{_lambda_.39} parent=0 // loop_header
    %s10 = sphi 0, %s14
    %p11 = scmp.ge.s32.totalorder %s10, 4
    %s20 = sphi 0, %s22
    %s23 = sphi 0, %s20
    %s24 = sphi 0, %s23
    %s40 = sphi 0, %s24
    %s46 = sphi 0, %s48
    %s49 = sphi 0, %s46
    %s50 = sphi 0, %s49
    %s66 = sphi 0, %s50
    %s72 = sphi 0, %s74
    %s75 = sphi 0, %s72
    %s76 = sphi 0, %s75
    %s92 = sphi 0, %s76
    %s98 = sphi 0, %s100
    %s101 = sphi 0, %s98
    %s102 = sphi 0, %s101
    %s118 = sphi 0, %s102
    %s124 = sphi 0, %s126
    %s127 = sphi 0, %s124
    %s128 = sphi 0, %s127
    %s144 = sphi 0, %s128
  $region4: #{_lambda_.39} parent=0 // loop_header_branch
    %13 = sbr.rel (%p11) target = $region8
  $region5: #{_lambda_.39} parent=0 // loop_body
    %s15 = ssub.s32 %s10, 1
    %s16 = ssub.s32 %s10, 2
    %s17 = sadd.s32 %s10, 1
    %s18 = ssub.s32 %s10, %s17
    %p19 = scmp.eq.s32.totalorder %s18, 0
    %s21 = sadd.s32 %s20, 1
    %s22 = scalar_select %p19, %s20, %s21
    %p25 = pneg %p19
    %p26 = scmp.eq.s32.totalorder %s10, 1
    %p27 = por %p25, %p26
    %p28 = scmp.ne.s32.totalorder %s20, %s23
    %p29 = scmp.eq.s32.totalorder %s10, 0
    %p30 = por %p28, %p29
    %p31 = scmp.ne.s32.totalorder %s20, %s23
    %p32 = scmp.eq.s32.totalorder %s15, 1
    %p33 = por %p31, %p32
    %p34 = scmp.ne.s32.totalorder %s23, %s24
    %p35 = scmp.eq.s32.totalorder %s15, 0
    %p36 = por %p34, %p35
    %p37 = scmp.ne.s32.totalorder %s23, %s24
    %p38 = scmp.eq.s32.totalorder %s16, 1
    %p39 = por %p37, %p38
    %p41 = scmp.ne.s32.totalorder %s24, %s40
    %p42 = scmp.eq.s32.totalorder %s16, 0
    %p43 = por %p41, %p42
    %s44 = ssub.s32 %s10, %s17
    %p45 = scmp.eq.s32.totalorder %s44, 0
    %s47 = sadd.s32 %s46, 1
    %s48 = scalar_select %p45, %s46, %s47
    %p51 = pneg %p45
    %p52 = scmp.eq.s32.totalorder %s10, 1
    %p53 = por %p51, %p52
    %p54 = scmp.ne.s32.totalorder %s46, %s49
    %p55 = scmp.eq.s32.totalorder %s10, 0
    %p56 = por %p54, %p55
    %p57 = scmp.ne.s32.totalorder %s46, %s49
    %p58 = scmp.eq.s32.totalorder %s15, 1
    %p59 = por %p57, %p58
    %p60 = scmp.ne.s32.totalorder %s49, %s50
    %p61 = scmp.eq.s32.totalorder %s15, 0
    %p62 = por %p60, %p61
    %p63 = scmp.ne.s32.totalorder %s49, %s50
    %p64 = scmp.eq.s32.totalorder %s16, 1
    %p65 = por %p63, %p64
    %p67 = scmp.ne.s32.totalorder %s50, %s66
    %p68 = scmp.eq.s32.totalorder %s16, 0
    %p69 = por %p67, %p68
    %s70 = ssub.s32 %s10, %s17
    %p71 = scmp.eq.s32.totalorder %s70, 0
    %s73 = sadd.s32 %s72, 1
    %s74 = scalar_select %p71, %s72, %s73
    %p77 = pneg %p71
    %p78 = scmp.eq.s32.totalorder %s10, 1
    %p79 = por %p77, %p78
    %p80 = scmp.ne.s32.totalorder %s72, %s75
    %p81 = scmp.eq.s32.totalorder %s10, 0
    %p82 = por %p80, %p81
    %p83 = scmp.ne.s32.totalorder %s72, %s75
    %p84 = scmp.eq.s32.totalorder %s15, 1
    %p85 = por %p83, %p84
    %p86 = scmp.ne.s32.totalorder %s75, %s76
    %p87 = scmp.eq.s32.totalorder %s15, 0
    %p88 = por %p86, %p87
    %p89 = scmp.ne.s32.totalorder %s75, %s76
    %p90 = scmp.eq.s32.totalorder %s16, 1
    %p91 = por %p89, %p90
    %p93 = scmp.ne.s32.totalorder %s76, %s92
    %p94 = scmp.eq.s32.totalorder %s16, 0
    %p95 = por %p93, %p94
    %s96 = ssub.s32 %s10, %s17
    %p97 = scmp.eq.s32.totalorder %s96, 0
    %s99 = sadd.s32 %s98, 1
    %s100 = scalar_select %p97, %s98, %s99
    %p103 = pneg %p97
    %p104 = scmp.eq.s32.totalorder %s10, 1
    %p105 = por %p103, %p104
    %p106 = scmp.ne.s32.totalorder %s98, %s101
    %p107 = scmp.eq.s32.totalorder %s10, 0
    %p108 = por %p106, %p107
    %p109 = scmp.ne.s32.totalorder %s98, %s101
    %p110 = scmp.eq.s32.totalorder %s15, 1
    %p111 = por %p109, %p110
    %p112 = scmp.ne.s32.totalorder %s101, %s102
    %p113 = scmp.eq.s32.totalorder %s15, 0
    %p114 = por %p112, %p113
    %p115 = scmp.ne.s32.totalorder %s101, %s102
    %p116 = scmp.eq.s32.totalorder %s16, 1
    %p117 = por %p115, %p116
    %p119 = scmp.ne.s32.totalorder %s102, %s118
    %p120 = scmp.eq.s32.totalorder %s16, 0
    %p121 = por %p119, %p120
    %s122 = ssub.s32 %s10, %s17
    %p123 = scmp.eq.s32.totalorder %s122, 0
    %s125 = sadd.s32 %s124, 1
    %s126 = scalar_select %p123, %s124, %s125
    %p129 = pneg %p123
    %p130 = scmp.eq.s32.totalorder %s10, 1
    %p131 = por %p129, %p130
    %p132 = scmp.ne.s32.totalorder %s124, %s127
    %p133 = scmp.eq.s32.totalorder %s10, 0
    %p134 = por %p132, %p133
    %p135 = scmp.ne.s32.totalorder %s124, %s127
    %p136 = scmp.eq.s32.totalorder %s15, 1
    %p137 = por %p135, %p136
    %p138 = scmp.ne.s32.totalorder %s127, %s128
    %p139 = scmp.eq.s32.totalorder %s15, 0
    %p140 = por %p138, %p139
    %p141 = scmp.ne.s32.totalorder %s127, %s128
    %p142 = scmp.eq.s32.totalorder %s16, 1
    %p143 = por %p141, %p142
    %p145 = scmp.ne.s32.totalorder %s128, %s144
    %p146 = scmp.eq.s32.totalorder %s16, 0
    %p147 = por %p145, %p146
    %p148 = scmp.le.s32.totalorder 1, %s10
    %p149 = scmp.lt.s32.totalorder %s10, 3
    %p150 = pnand %p148, %p149
    %p151 = pneg %p150
    // Predicated region
    $region9: #{_lambda_.39} parent=5 // pred_check
      _
    $region10: #{_lambda_.39} parent=5 // pred_check_branch
      %153 = sbr.rel (%p150) target = $region12
    $region11: #{_lambda_.39} parent=5 // pred_region
      %s154 = ssub.s32 %s10, 1
    $region12: #{_lambda_.39} parent=5 // pred_fallthru
      _
    %p155 = scmp.lt.s32.totalorder %s10, 2
    // Predicated region
    $region13: #{_lambda_.39} parent=5 // pred_check
      %p156 = pneg %p155
    $region14: #{_lambda_.39} parent=5 // pred_check_branch
      %158 = sbr.rel (%p156) target = $region16
    $region15: #{_lambda_.39} parent=5 // pred_region
      // Predicated region
      $region17: #{_lambda_.39} parent=15 // pred_check
        %p159 = pneg %p30
      $region18: #{_lambda_.39} parent=15 // pred_check_branch
        %161 = sbr.rel (%p159) target = $region20
      $region19: #{_lambda_.39} parent=15 // pred_region
        %p162 = scmp.lt.s32.totalorder %s10, 1
        %s163 = scalar_select %p162, %s10, 1
        %s164 = smul.addr %s163, 8
        %s165 = scalar_lea.vmem %s0, %s164
      $region20: #{_lambda_.39} parent=15 // pred_fallthru
        _
      // Predicated region
      $region21: #{_lambda_.39} parent=15 // pred_check
        %p166 = pneg %p56
      $region22: #{_lambda_.39} parent=15 // pred_check_branch
        %168 = sbr.rel (%p166) target = $region24
      $region23: #{_lambda_.39} parent=15 // pred_region
        %p169 = scmp.lt.s32.totalorder %s10, 1
        %s170 = scalar_select %p169, %s10, 1
        %s171 = smul.addr %s170, 8
        %s172 = scalar_lea.vmem %s1, %s171
      $region24: #{_lambda_.39} parent=15 // pred_fallthru
        _
      // Predicated region
      $region25: #{_lambda_.39} parent=15 // pred_check
        %p173 = pneg %p82
      $region26: #{_lambda_.39} parent=15 // pred_check_branch
        %175 = sbr.rel (%p173) target = $region28
      $region27: #{_lambda_.39} parent=15 // pred_region
        %p176 = scmp.lt.s32.totalorder %s10, 1
        %s177 = scalar_select %p176, %s10, 1
        %s178 = smul.addr %s177, 8
        %s179 = scalar_lea.vmem %s2, %s178
      $region28: #{_lambda_.39} parent=15 // pred_fallthru
        _
      // Predicated region
      $region29: #{_lambda_.39} parent=15 // pred_check
        %p180 = pneg %p108
      $region30: #{_lambda_.39} parent=15 // pred_check_branch
        %182 = sbr.rel (%p180) target = $region32
      $region31: #{_lambda_.39} parent=15 // pred_region
        %p183 = scmp.lt.s32.totalorder %s10, 1
        %s184 = scalar_select %p183, %s10, 1
        %s185 = scalar_lea.vmem %s3, %s184
      $region32: #{_lambda_.39} parent=15 // pred_fallthru
        _
    $region16: #{_lambda_.39} parent=5 // pred_fallthru
      _
    %p186 = scmp.le.s32.totalorder 1, %s10
    %p187 = scmp.lt.s32.totalorder %s10, 3
    %p188 = pnand %p186, %p187
    %p189 = pneg %p188
    // Predicated region
    $region33: #{_lambda_.39} parent=5 // pred_check
      _
    $region34: #{_lambda_.39} parent=5 // pred_check_branch
      %191 = sbr.rel (%p188) target = $region36
    $region35: #{_lambda_.39} parent=5 // pred_region
      %s192 = ssub.s32 %s10, 1
      %p193 = scmp.lt.s32.totalorder %s15, 1
      %s194 = scalar_select %p193, %s15, 1
      %s195 = smul.addr %s194, 8
      %s196 = scalar_lea.vmem %s0, %s195
      %p197 = pneg %p36
      %p198 = pneg %p33
      %p199 = scmp.lt.s32.totalorder %s15, 1
      %s200 = scalar_select %p199, %s15, 1
      %s201 = smul.addr %s200, 8
      %s202 = scalar_lea.vmem %s1, %s201
      %p203 = pneg %p62
      %p204 = pneg %p59
      %p205 = scmp.lt.s32.totalorder %s15, 1
      %s206 = scalar_select %p205, %s15, 1
      %s207 = smul.addr %s206, 8
      %s208 = scalar_lea.vmem %s2, %s207
      %p209 = pneg %p88
      %p210 = pneg %p85
      %p211 = scmp.lt.s32.totalorder %s15, 1
      %s212 = scalar_select %p211, %s15, 1
      %s213 = scalar_lea.vmem %s3, %s212
      %p214 = pneg %p114
      %p215 = pneg %p111
      %p216 = pneg %p140
      %p217 = pneg %p137
      %p218 = scmp.lt.s32.totalorder %s15, 1
      %s219 = scalar_select %p218, %s15, 1
      %s220 = smul.addr %s219, 8
      %s221 = scalar_lea.vmem %s4, %s220
      %p222 = scmp.lt.s32.totalorder %s15, 1
      %s223 = scalar_select %p222, %s15, 1
      %s224 = smul.addr %s223, 8
      %s225 = scalar_lea.vmem %s0, %s224
      %p226 = scmp.lt.s32.totalorder %s15, 1
      %s227 = scalar_select %p226, %s15, 1
      %s228 = smul.addr %s227, 8
      %s229 = scalar_lea.vmem %s1, %s228
      %p230 = scmp.lt.s32.totalorder %s15, 1
      %s231 = scalar_select %p230, %s15, 1
      %s232 = smul.addr %s231, 8
      %s233 = scalar_lea.vmem %s2, %s232
      %p234 = scmp.lt.s32.totalorder %s15, 1
      %s235 = scalar_select %p234, %s15, 1
      %s236 = scalar_lea.vmem %s3, %s235
      %p237 = scmp.lt.s32.totalorder %s15, 1
      %s238 = scalar_select %p237, %s15, 1
      %s239 = smul.addr %s238, 8
      %s240 = scalar_lea.vmem %s4, %s239
      %v241 = vld [vmem:[%s225] sm:$0x3f]
      %v242 = vld [vmem:[%s229] sm:$0x3f]
      %v243 = vld [vmem:[%s233] sm:$0x3f]
      %v244 = vld [vmem:[%s236] sm:$0x1]
      %v245 = vlaneseq
      %v246 = vshrl.u32 %v245, 7
      %v247 = vadd.s32 %v246, 8
      %v248 = vadd.s32 %v246, 16
      %v249 = vadd.s32 %v246, 24
      %v250 = vadd.s32 %v246, 32
      %v251 = vadd.s32 %v246, 40
      %v252 = vadd.s32 %v246, 48
      %v253 = vadd.s32 %v246, 56
      %v254 = vadd.s32 %v246, 64
      %v255 = vperm.slane %v244, 0
      %vm256 = vcmp.eq.s32.totalorder %v246, %v255
      %vm257 = vcmp.eq.s32.totalorder %v247, %v255
      %vm258 = vcmp.eq.s32.totalorder %v248, %v255
      %vm259 = vcmp.eq.s32.totalorder %v249, %v255
      %vm260 = vcmp.eq.s32.totalorder %v250, %v255
      %vm261 = vcmp.eq.s32.totalorder %v251, %v255
      %vm262 = vcmp.eq.s32.totalorder %v252, %v255
      %vm263 = vcmp.eq.s32.totalorder %v253, %v255
      %vm264 = vcmp.eq.s32.totalorder %v254, %v255
      %v265 = vsel %vm256, 1, 0
      %v266 = vsel %vm257, 1, 0
      %v267 = vsel %vm258, 1, 0
      %v268 = vsel %vm259, 1, 0
      %v269 = vsel %vm260, 1, 0
      %v270 = vsel %vm261, 1, 0
      %v271 = vsel %vm262, 1, 0
      %v272 = vsel %vm263, 1, 0
      %v273 = vsel %vm264, 1, 0
      %v274 = vcvt.s32.f32 %v265
      %v275 = vcvt.s32.f32 %v266
      %v276 = vcvt.s32.f32 %v267
      %v277 = vcvt.s32.f32 %v268
      %v278 = vcvt.s32.f32 %v269
      %v279 = vcvt.s32.f32 %v270
      %v280 = vcvt.s32.f32 %v271
      %v281 = vcvt.s32.f32 %v272
      %v282 = vcvt.s32.f32 %v273
      %vm283 = vcmask 146432
      %v285 = vsel %vm283, %v243, 0
      %v288 = vsel %vm283, %v274, 0
      %v291 = vsel %vm283, %v275, 0
      %v294 = vsel %vm283, %v276, 0
      %v297 = vsel %vm283, %v277, 0
      %v300 = vsel %vm283, %v278, 0
      %v303 = vsel %vm283, %v279, 0
      %v306 = vsel %vm283, %v280, 0
      %v309 = vsel %vm283, %v281, 0
      %v312 = vsel %vm283, %v282, 0
      %314 = vmatpush.xpose.msra.mxu0 0.0
      %315 = vmatpush.xpose.msra.mxu0 0.0
      %316 = vmatpush.xpose.msra.mxu0 0.0
      %317 = vmatpush.xpose.msra.mxu0 0.0
      %318 = vmatpush.xpose.msra.mxu0 0.0
      %319 = vmatpush.xpose.msra.mxu0 0.0
      %320 = vmatpush.xpose.msra.mxu0 0.0
      %321 = vmatpush.xpose.msra.mxu0 %v312
      %322 = vmatpush.xpose.msra.mxu0 %v309
      %323 = vmatpush.xpose.msra.mxu0 %v306
      %324 = vmatpush.xpose.msra.mxu0 %v303
      %325 = vmatpush.xpose.msra.mxu0 %v300
      %326 = vmatpush.xpose.msra.mxu0 %v297
      %327 = vmatpush.xpose.msra.mxu0 %v294
      %328 = vmatpush.xpose.msra.mxu0 %v291
      %329 = vmatpush.xpose.msra.mxu0 %v288
      %330 = vmatmul.f32.gmra.mxu0 %v285
      %v331 = vpop.f32.mrf.mxu0
      %v332 = vadd.f32 0.0, %v331
      %333 = vdwg.mxu0
      %v334 = vsub.f32 1.0, %v242
      %336 = vset.pattern.permute.xlu0 0
      %337 = vperm.xlu0 %336, %v334
      %v338 = vpop.permute.xlu0 %337
      %v340 = vmul.f32 %v241, %v338
      %vm341 = vcmask 523264
      %v342 = vsel %vm341, %v340, 0.0
      %344 = vset.pattern.permute.xlu0 0
      %345 = vperm.xlu0 %344, %v242
      %v346 = vpop.permute.xlu0 %345
      %v348 = vmul.f32 %v332, %v346
      %v349 = vadd.f32 %v342, %v348
      %vm350 = vcmask 553984
      %351 = vst.msk [vmem:[%s240] sm:$0x3f] %vm350, %v349
      %p352 = scmp.lt.s32.totalorder %s15, 1
      %s353 = scalar_select %p352, %s15, 1
      %s354 = smul.addr %s353, 8
      %s355 = scalar_lea.vmem %s4, %s354
      // Predicated region
      $region37: #{_lambda_.39} parent=35 // pred_check
        %p356 = pneg %p137
      $region38: #{_lambda_.39} parent=35 // pred_check_branch
        %358 = sbr.rel (%p356) target = $region40
      $region39: #{_lambda_.39} parent=35 // pred_region
        _
      $region40: #{_lambda_.39} parent=35 // pred_fallthru
        _
    $region36: #{_lambda_.39} parent=5 // pred_fallthru
      _
    %p359 = scmp.le.s32.totalorder 2, %s10
    // Predicated region
    $region41: #{_lambda_.39} parent=5 // pred_check
      %p360 = pneg %p359
    $region42: #{_lambda_.39} parent=5 // pred_check_branch
      %362 = sbr.rel (%p360) target = $region44
    $region43: #{_lambda_.39} parent=5 // pred_region
      %s363 = ssub.s32 %s10, 2
      // Predicated region
      $region45: #{_lambda_.39} parent=43 // pred_check
        %p364 = pneg %p143
      $region46: #{_lambda_.39} parent=43 // pred_check_branch
        %366 = sbr.rel (%p364) target = $region48
      $region47: #{_lambda_.39} parent=43 // pred_region
        %p367 = scmp.lt.s32.totalorder %s16, 1
        %s368 = scalar_select %p367, %s16, 1
        %s369 = smul.addr %s368, 8
        %s370 = scalar_lea.vmem %s4, %s369
      $region48: #{_lambda_.39} parent=43 // pred_fallthru
        _
    $region44: #{_lambda_.39} parent=5 // pred_fallthru
      _
  $region6: #{_lambda_.39} parent=0 // loop_footer
    %s14 = sadd.s32 1, %s10
  $region7: #{_lambda_.39} parent=0 // loop_footer_branch
    %9 = sbr.rel target = $region3
  $region8: #{_lambda_.39} parent=0 // loop_exit
    _

// kernel: _lambda_.38
$region0: #{_lambda_.38}
  #allocation0 [shape = 'u32[]', space=smem, size = 0x4, offset = 0x4, fixed_abs, tag = 'smem constant byte address 0x4 - core index']
  #allocation1 [shape = 'u32[72,128]{1,0:T(1,128)}', space=vmem, size = 0x9000, scoped, tag = 'internal scratch']
  %s0 = inlined_call_operand.vmem [shape: bf16[12,96], index: 0, kind: input, shape index: {}]
  %s1 = inlined_call_operand.vmem [shape: bf16[96,65], index: 1, kind: input, shape index: {}]
  %s2 = inlined_call_operand.vmem [shape: f32[1,65], index: 2, kind: input, shape index: {}]
  %s3 = inlined_call_operand.vmem [shape: f32[12,64], index: 3, kind: output, shape index: {0}]
  %s4 = inlined_call_operand.vmem [shape: f32[12,1], index: 4, kind: output, shape index: {1}]
  %5 = xla_tuple %s3, %s4
  %s6 = sld [smem:[#allocation0]]
  $region30: #{_lambda_.38} parent=0
    _
  %s8 = ssub.s32 1, %s6
  %s9 = scalar_select 0, %s8, %s6
  // Predicated region
  $region2: #{_lambda_.38} parent=0 // pred_check
    _
  $region3: #{_lambda_.38} parent=0 // pred_check_branch
    %11 = sbr.rel (0) target = $region5
  $region4: #{_lambda_.38} parent=0 // pred_region
    _
  $region5: #{_lambda_.38} parent=0 // pred_fallthru
    _
  // Predicated region
  $region6: #{_lambda_.38} parent=0 // pred_check
    _
  $region7: #{_lambda_.38} parent=0 // pred_check_branch
    %13 = sbr.rel (0) target = $region9
  $region8: #{_lambda_.38} parent=0 // pred_region
    _
  $region9: #{_lambda_.38} parent=0 // pred_fallthru
    _
  // Predicated region
  $region10: #{_lambda_.38} parent=0 // pred_check
    _
  $region11: #{_lambda_.38} parent=0 // pred_check_branch
    %15 = sbr.rel (0) target = $region13
  $region12: #{_lambda_.38} parent=0 // pred_region
    _
  $region13: #{_lambda_.38} parent=0 // pred_fallthru
    _
  %v17 = vld [vmem:[%s0] sm:$0xf]
  %v18 = vld [vmem:[%s0 + $0x4] sm:$0x3]
  %v19 = vld [vmem:[%s1] sm:$0xf]
  %v20 = vld [vmem:[%s1 + $0x4] sm:$0xf]
  %v21 = vld [vmem:[%s1 + $0x8] sm:$0xf]
  %v22 = vld [vmem:[%s1 + $0xc] sm:$0xf]
  %v23 = vld [vmem:[%s1 + $0x10] sm:$0xf]
  %v24 = vld [vmem:[%s1 + $0x14] sm:$0xf]
  %v25 = vld [vmem:[%s1 + $0x18] sm:$0xf]
  %v26 = vld [vmem:[%s1 + $0x1c] sm:$0xf]
  %v27 = vld [vmem:[%s1 + $0x20] sm:$0xf]
  %v28 = vld [vmem:[%s1 + $0x24] sm:$0xf]
  %v29 = vld [vmem:[%s1 + $0x28] sm:$0xf]
  %v30 = vld [vmem:[%s1 + $0x2c] sm:$0xf]
  %v31 = vld [vmem:[%s2] sm:$0x1]
  %v33 = vperm.slane %v31, 0
  %v37 = vunpack.c.l.b16 %v17
  %v38 = vunpack.c.l.b16 %v18
  %v39 = vpack.c.b16 %v38, %v37
  %v52 = vunpack.c.l.b16 %v19
  %v53 = vunpack.c.l.b16 %v20
  %v54 = vunpack.c.l.b16 %v21
  %v55 = vunpack.c.l.b16 %v22
  %v56 = vunpack.c.l.b16 %v23
  %v57 = vunpack.c.l.b16 %v24
  %v58 = vunpack.c.l.b16 %v25
  %v59 = vunpack.c.l.b16 %v26
  %v60 = vunpack.c.l.b16 %v27
  %v61 = vunpack.c.l.b16 %v28
  %v62 = vunpack.c.l.b16 %v29
  %v63 = vunpack.c.l.b16 %v30
  %v64 = vpack.c.b16 %v53, %v52
  %v65 = vpack.c.b16 %v55, %v54
  %v66 = vpack.c.b16 %v57, %v56
  %v67 = vpack.c.b16 %v59, %v58
  %v68 = vpack.c.b16 %v61, %v60
  %v69 = vpack.c.b16 %v63, %v62
  %vm76 = vcmask 785408
  %v78 = vsel %vm76, %v39, 0
  %80 = vmatpush.bf16.msra.mxu0 0
  %81 = vmatpush.bf16.msra.mxu0 0
  %82 = vmatpush.bf16.msra.mxu0 %v69
  %83 = vmatpush.bf16.msra.mxu0 %v68
  %84 = vmatpush.bf16.msra.mxu0 %v67
  %85 = vmatpush.bf16.msra.mxu0 %v66
  %86 = vmatpush.bf16.msra.mxu0 %v65
  %87 = vmatpush.bf16.msra.mxu0 %v64
  %88 = vmatmul.bf16.gmra.mxu0 %v78
  %v89 = vpop.f32.mrf.mxu0
  %v90 = vadd.f32 %v33, %v89
  %v91 = vpop.f32.mrf.mxu0
  %v92 = vadd.f32 %v33, %v91
  %93 = vdwg.mxu0
  %vm94 = vcmask 523264
  %v95 = vsel %vm94, %v90, -inf
  %96 = vmax.xlane.f32.xlu0 %v95
  %v97 = vpop.xlane.xlu0 %96
  %vm98 = vcmask 519168
  %v99 = vsel %vm98, %v92, -inf
  %100 = vmax.xlane.f32.xlu0 %v99
  %v101 = vpop.xlane.xlu0 %100
  %v102 = vsub.f32 %v90, %v97
  %v103 = vsub.f32 %v92, %v101
  %v104 = vmul.f32 %v102, 1.442695
  %v105 = vpow.pop %v104
  %v106 = vmul.f32 %v103, 1.442695
  %v107 = vpow.pop %v106
  %v108 = vsel %vm94, %v105, 0.0
  %109 = vadd.xlane.f32.xlu0 %v108
  %v110 = vpop.xlane.xlu0 %109
  %v111 = vsel %vm98, %v107, 0.0
  %112 = vadd.xlane.f32.xlu0 %v111
  %v113 = vpop.xlane.xlu0 %112
  %v114 = vrcp.pop %v110
  %v115 = vmul.f32 %v110, %v114
  %v116 = vsub.f32 1.0, %v115
  %v117 = vmul.f32 %v114, %v116
  %v118 = vadd.f32 %v114, %v117
  %vm119 = vweird.f32 %v110
  %vm120 = vweird.f32 %v114
  %vm121 = vmor %vm119, %vm120
  %v122 = vsel %vm121, %v114, %v118
  %v123 = vand.u32 2147483647, %v110
  %vm124 = vcmp.eq.f32.partialorder %v123, 8.507059e+37
  %v125 = vand.u32 %v110, 2147483648
  %v126 = vor.u32 1.1754944e-38, %v125
  %v127 = vsel %vm124, %v126, %v122
  %v128 = vmul.f32 %v105, %v127
  %v129 = vrcp.pop %v113
  %v130 = vmul.f32 %v113, %v129
  %v131 = vsub.f32 1.0, %v130
  %v132 = vmul.f32 %v129, %v131
  %v133 = vadd.f32 %v129, %v132
  %vm134 = vweird.f32 %v113
  %vm135 = vweird.f32 %v129
  %vm136 = vmor %vm134, %vm135
  %v137 = vsel %vm136, %v129, %v133
  %v138 = vand.u32 2147483647, %v113
  %vm139 = vcmp.eq.f32.partialorder %v138, 8.507059e+37
  %v140 = vand.u32 %v113, 2147483648
  %v141 = vor.u32 1.1754944e-38, %v140
  %v142 = vsel %vm139, %v141, %v137
  %v143 = vmul.f32 %v107, %v142
  %144 = vst.msk [vmem:[%s3] sm:$0xff] %vm94, %v128
  %145 = vst.msk [vmem:[%s3 + $0x8] sm:$0xf] %vm98, %v143
  %v146 = vxor.u32 %v90, 2147483648
  %v147 = vxor.u32 %v92, 2147483648
  %v148 = vmul.f32 %v146, 1.442695
  %v149 = vpow.pop %v148
  %v150 = vmul.f32 %v147, 1.442695
  %v151 = vpow.pop %v150
  %v152 = vadd.f32 %v149, 1.0
  %v153 = vadd.f32 %v151, 1.0
  %v154 = vrcp.pop %v152
  %v155 = vmul.f32 %v152, %v154
  %v156 = vsub.f32 1.0, %v155
  %v157 = vmul.f32 %v154, %v156
  %v158 = vadd.f32 %v154, %v157
  %vm159 = vweird.f32 %v152
  %vm160 = vweird.f32 %v154
  %vm161 = vmor %vm159, %vm160
  %v162 = vsel %vm161, %v154, %v158
  %v163 = vand.u32 2147483647, %v152
  %vm164 = vcmp.eq.f32.partialorder %v163, 8.507059e+37
  %v165 = vand.u32 %v152, 2147483648
  %v166 = vor.u32 1.1754944e-38, %v165
  %v167 = vsel %vm164, %v166, %v162
  %v168 = vmul.f32 1.0, %v167
  %v169 = vrcp.pop %v153
  %v170 = vmul.f32 %v153, %v169
  %v171 = vsub.f32 1.0, %v170
  %v172 = vmul.f32 %v169, %v171
  %v173 = vadd.f32 %v169, %v172
  %vm174 = vweird.f32 %v153
  %vm175 = vweird.f32 %v169
  %vm176 = vmor %vm174, %vm175
  %v177 = vsel %vm176, %v169, %v173
  %v178 = vand.u32 2147483647, %v153
  %vm179 = vcmp.eq.f32.partialorder %v178, 8.507059e+37
  %v180 = vand.u32 %v153, 2147483648
  %v181 = vor.u32 1.1754944e-38, %v180
  %v182 = vsel %vm179, %v181, %v177
  %v183 = vmul.f32 1.0, %v182
  %186 = vrot.lane.b32.xlu0 %v168, 64
  %v187 = vpop.permute.xlu0 %186
  %188 = vrot.lane.b32.xlu0 %v183, 64
  %v189 = vpop.permute.xlu0 %188
  %vm192 = vcmask 7168
  %193 = vst.msk [vmem:[%s4] sm:$0xff] %vm192, %v187
  %vm194 = vcmask 3072
  %195 = vst.msk [vmem:[%s4 + $0x8] sm:$0xf] %vm194, %v189
  // Predicated region
  $region14: #{_lambda_.38} parent=0 // pred_check
    _
  $region15: #{_lambda_.38} parent=0 // pred_check_branch
    %197 = sbr.rel (0) target = $region17
  $region16: #{_lambda_.38} parent=0 // pred_region
    _
  $region17: #{_lambda_.38} parent=0 // pred_fallthru
    _
  // Predicated region
  $region18: #{_lambda_.38} parent=0 // pred_check
    _
  $region19: #{_lambda_.38} parent=0 // pred_check_branch
    %199 = sbr.rel (0) target = $region21
  $region20: #{_lambda_.38} parent=0 // pred_region
    _
  $region21: #{_lambda_.38} parent=0 // pred_fallthru
    _
  // Predicated region
  $region22: #{_lambda_.38} parent=0 // pred_check
    _
  $region23: #{_lambda_.38} parent=0 // pred_check_branch
    %201 = sbr.rel (0) target = $region25
  $region24: #{_lambda_.38} parent=0 // pred_region
    _
  $region25: #{_lambda_.38} parent=0 // pred_fallthru
    _
  // Predicated region
  $region26: #{_lambda_.38} parent=0 // pred_check
    _
  $region27: #{_lambda_.38} parent=0 // pred_check_branch
    %203 = sbr.rel (0) target = $region29
  $region28: #{_lambda_.38} parent=0 // pred_region
    _
  $region29: #{_lambda_.38} parent=0 // pred_fallthru
    _

// kernel: _lambda_.26
$region0: #{_lambda_.26}
  #allocation0 [shape = 'u32[]', space=smem, size = 0x4, offset = 0x4, fixed_abs, tag = 'smem constant byte address 0x4 - core index']
  #allocation1 [shape = 'u32[72,128]{1,0:T(1,128)}', space=vmem, size = 0x9000, scoped, tag = 'internal scratch']
  %s0 = inlined_call_operand.vmem [shape: bf16[2,64], index: 0, kind: input, shape index: {}]
  %s1 = inlined_call_operand.vmem [shape: bf16[64,32], index: 1, kind: input, shape index: {}]
  %s2 = inlined_call_operand.vmem [shape: f32[1,32], index: 2, kind: input, shape index: {}]
  %s3 = inlined_call_operand.vmem [shape: bf16[32,64], index: 3, kind: input, shape index: {}]
  %s4 = inlined_call_operand.vmem [shape: f32[1,64], index: 4, kind: input, shape index: {}]
  %s5 = inlined_call_operand.vmem [shape: f32[2,64], index: 5, kind: output, shape index: {}]
  %s6 = sld [smem:[#allocation0]]
  $region30: #{_lambda_.26} parent=0
    _
  %s8 = ssub.s32 1, %s6
  %s9 = scalar_select 0, %s8, %s6
  // Predicated region
  $region2: #{_lambda_.26} parent=0 // pred_check
    _
  $region3: #{_lambda_.26} parent=0 // pred_check_branch
    %11 = sbr.rel (0) target = $region5
  $region4: #{_lambda_.26} parent=0 // pred_region
    _
  $region5: #{_lambda_.26} parent=0 // pred_fallthru
    _
  // Predicated region
  $region6: #{_lambda_.26} parent=0 // pred_check
    _
  $region7: #{_lambda_.26} parent=0 // pred_check_branch
    %13 = sbr.rel (0) target = $region9
  $region8: #{_lambda_.26} parent=0 // pred_region
    _
  $region9: #{_lambda_.26} parent=0 // pred_fallthru
    _
  // Predicated region
  $region10: #{_lambda_.26} parent=0 // pred_check
    _
  $region11: #{_lambda_.26} parent=0 // pred_check_branch
    %15 = sbr.rel (0) target = $region13
  $region12: #{_lambda_.26} parent=0 // pred_region
    _
  $region13: #{_lambda_.26} parent=0 // pred_fallthru
    _
  // Predicated region
  $region14: #{_lambda_.26} parent=0 // pred_check
    _
  $region15: #{_lambda_.26} parent=0 // pred_check_branch
    %17 = sbr.rel (0) target = $region17
  $region16: #{_lambda_.26} parent=0 // pred_region
    _
  $region17: #{_lambda_.26} parent=0 // pred_fallthru
    _
  // Predicated region
  $region18: #{_lambda_.26} parent=0 // pred_check
    _
  $region19: #{_lambda_.26} parent=0 // pred_check_branch
    %19 = sbr.rel (0) target = $region21
  $region20: #{_lambda_.26} parent=0 // pred_region
    _
  $region21: #{_lambda_.26} parent=0 // pred_fallthru
    _
  %v21 = vld [vmem:[%s0] sm:$0x1]
  %v22 = vld [vmem:[%s1] sm:$0xf]
  %v23 = vld [vmem:[%s1 + $0x4] sm:$0xf]
  %v24 = vld [vmem:[%s1 + $0x8] sm:$0xf]
  %v25 = vld [vmem:[%s1 + $0xc] sm:$0xf]
  %v26 = vld [vmem:[%s1 + $0x10] sm:$0xf]
  %v27 = vld [vmem:[%s1 + $0x14] sm:$0xf]
  %v28 = vld [vmem:[%s1 + $0x18] sm:$0xf]
  %v29 = vld [vmem:[%s1 + $0x1c] sm:$0xf]
  %v30 = vld [vmem:[%s2] sm:$0x1]
  %v32 = vperm.slane %v30, 0
  %v42 = vunpack.c.l.b16 %v22
  %v43 = vunpack.c.l.b16 %v23
  %v44 = vunpack.c.l.b16 %v24
  %v45 = vunpack.c.l.b16 %v25
  %v46 = vunpack.c.l.b16 %v26
  %v47 = vunpack.c.l.b16 %v27
  %v48 = vunpack.c.l.b16 %v28
  %v49 = vunpack.c.l.b16 %v29
  %v50 = vpack.c.b16 %v43, %v42
  %v51 = vpack.c.b16 %v45, %v44
  %v52 = vpack.c.b16 %v47, %v46
  %v53 = vpack.c.b16 %v49, %v48
  %vm58 = vcmask 523264
  %v60 = vsel %vm58, %v21, 0
  %62 = vmatpush.bf16.msra.mxu0 0
  %63 = vmatpush.bf16.msra.mxu0 0
  %64 = vmatpush.bf16.msra.mxu0 0
  %65 = vmatpush.bf16.msra.mxu0 0
  %66 = vmatpush.bf16.msra.mxu0 %v53
  %67 = vmatpush.bf16.msra.mxu0 %v52
  %68 = vmatpush.bf16.msra.mxu0 %v51
  %69 = vmatpush.bf16.msra.mxu0 %v50
  %70 = vmatmul.bf16.gmra.mxu0 %v60
  %v71 = vpop.f32.mrf.mxu0
  %v72 = vadd.f32 %v32, %v71
  %v73 = vpop.f32.mrf.mxu0
  %74 = vdwg.mxu0
  %v75 = vtanh.pop %v72
  %v76 = vpack.c.bf16 %v75, %v75
  %v77 = vld [vmem:[%s3] sm:$0xf]
  %v78 = vld [vmem:[%s3 + $0x4] sm:$0xf]
  %v79 = vld [vmem:[%s3 + $0x8] sm:$0xf]
  %v80 = vld [vmem:[%s3 + $0xc] sm:$0xf]
  %v81 = vld [vmem:[%s4] sm:$0x1]
  %v83 = vperm.slane %v81, 0
  %v89 = vunpack.c.l.b16 %v77
  %v90 = vunpack.c.l.b16 %v78
  %v91 = vunpack.c.l.b16 %v79
  %v92 = vunpack.c.l.b16 %v80
  %v93 = vpack.c.b16 %v90, %v89
  %v94 = vpack.c.b16 %v92, %v91
  %vm97 = vcmask 261120
  %v99 = vsel %vm97, %v76, 0
  %101 = vmatpush.bf16.msra.mxu0 0
  %102 = vmatpush.bf16.msra.mxu0 0
  %103 = vmatpush.bf16.msra.mxu0 0
  %104 = vmatpush.bf16.msra.mxu0 0
  %105 = vmatpush.bf16.msra.mxu0 0
  %106 = vmatpush.bf16.msra.mxu0 0
  %107 = vmatpush.bf16.msra.mxu0 %v94
  %108 = vmatpush.bf16.msra.mxu0 %v93
  %109 = vmatmul.bf16.gmra.mxu0 %v99
  %v110 = vpop.f32.mrf.mxu0
  %v111 = vadd.f32 %v83, %v110
  %v112 = vpop.f32.mrf.mxu0
  %113 = vdwg.mxu0
  %vm114 = vcmask 517120
  %v115 = vsel %vm114, %v111, -inf
  %116 = vmax.xlane.f32.xlu0 %v115
  %v117 = vpop.xlane.xlu0 %116
  %v118 = vsub.f32 %v111, %v117
  %v119 = vmul.f32 %v118, 1.442695
  %v120 = vpow.pop %v119
  %v121 = vsel %vm114, %v120, 0.0
  %122 = vadd.xlane.f32.xlu0 %v121
  %v123 = vpop.xlane.xlu0 %122
  %v124 = vrcp.pop %v123
  %v125 = vmul.f32 %v123, %v124
  %v126 = vsub.f32 1.0, %v125
  %v127 = vmul.f32 %v124, %v126
  %v128 = vadd.f32 %v124, %v127
  %vm129 = vweird.f32 %v123
  %vm130 = vweird.f32 %v124
  %vm131 = vmor %vm129, %vm130
  %v132 = vsel %vm131, %v124, %v128
  %v133 = vand.u32 2147483647, %v123
  %vm134 = vcmp.eq.f32.partialorder %v133, 8.507059e+37
  %v135 = vand.u32 %v123, 2147483648
  %v136 = vor.u32 1.1754944e-38, %v135
  %v137 = vsel %vm134, %v136, %v132
  %v138 = vmul.f32 %v120, %v137
  %139 = vst.msk [vmem:[%s5] sm:$0x3] %vm114, %v138
  // Predicated region
  $region22: #{_lambda_.26} parent=0 // pred_check
    _
  $region23: #{_lambda_.26} parent=0 // pred_check_branch
    %141 = sbr.rel (0) target = $region25
  $region24: #{_lambda_.26} parent=0 // pred_region
    _
  $region25: #{_lambda_.26} parent=0 // pred_fallthru
    _
  // Predicated region
  $region26: #{_lambda_.26} parent=0 // pred_check
    _
  $region27: #{_lambda_.26} parent=0 // pred_check_branch
    %143 = sbr.rel (0) target = $region29
  $region28: #{_lambda_.26} parent=0 // pred_region
    _
  $region29: #{_lambda_.26} parent=0 // pred_fallthru
    _

// kernel: _lambda_.27
$region0: #{_lambda_.27}
  #allocation0 [shape = 'u32[]', space=smem, size = 0x4, offset = 0x4, fixed_abs, tag = 'smem constant byte address 0x4 - core index']
  #allocation1 [shape = 'u32[72,128]{1,0:T(1,128)}', space=vmem, size = 0x9000, scoped, tag = 'internal scratch']
  %s0 = inlined_call_operand.vmem [shape: bf16[2,64], index: 0, kind: input, shape index: {}]
  %s1 = inlined_call_operand.vmem [shape: bf16[64,16], index: 1, kind: input, shape index: {}]
  %s2 = inlined_call_operand.vmem [shape: f32[1,16], index: 2, kind: input, shape index: {}]
  %s3 = inlined_call_operand.vmem [shape: f32[2,16], index: 3, kind: output, shape index: {}]
  %s4 = sld [smem:[#allocation0]]
  $region22: #{_lambda_.27} parent=0
    _
  %s6 = ssub.s32 1, %s4
  %s7 = scalar_select 0, %s6, %s4
  // Predicated region
  $region2: #{_lambda_.27} parent=0 // pred_check
    _
  $region3: #{_lambda_.27} parent=0 // pred_check_branch
    %9 = sbr.rel (0) target = $region5
  $region4: #{_lambda_.27} parent=0 // pred_region
    _
  $region5: #{_lambda_.27} parent=0 // pred_fallthru
    _
  // Predicated region
  $region6: #{_lambda_.27} parent=0 // pred_check
    _
  $region7: #{_lambda_.27} parent=0 // pred_check_branch
    %11 = sbr.rel (0) target = $region9
  $region8: #{_lambda_.27} parent=0 // pred_region
    _
  $region9: #{_lambda_.27} parent=0 // pred_fallthru
    _
  // Predicated region
  $region10: #{_lambda_.27} parent=0 // pred_check
    _
  $region11: #{_lambda_.27} parent=0 // pred_check_branch
    %13 = sbr.rel (0) target = $region13
  $region12: #{_lambda_.27} parent=0 // pred_region
    _
  $region13: #{_lambda_.27} parent=0 // pred_fallthru
    _
  %v15 = vld [vmem:[%s0] sm:$0x1]
  %v16 = vld [vmem:[%s1] sm:$0xf]
  %v17 = vld [vmem:[%s1 + $0x4] sm:$0xf]
  %v18 = vld [vmem:[%s1 + $0x8] sm:$0xf]
  %v19 = vld [vmem:[%s1 + $0xc] sm:$0xf]
  %v20 = vld [vmem:[%s1 + $0x10] sm:$0xf]
  %v21 = vld [vmem:[%s1 + $0x14] sm:$0xf]
  %v22 = vld [vmem:[%s1 + $0x18] sm:$0xf]
  %v23 = vld [vmem:[%s1 + $0x1c] sm:$0xf]
  %v24 = vld [vmem:[%s2] sm:$0x1]
  %v26 = vperm.slane %v24, 0
  %v36 = vunpack.c.l.b16 %v16
  %v37 = vunpack.c.l.b16 %v17
  %v38 = vunpack.c.l.b16 %v18
  %v39 = vunpack.c.l.b16 %v19
  %v40 = vunpack.c.l.b16 %v20
  %v41 = vunpack.c.l.b16 %v21
  %v42 = vunpack.c.l.b16 %v22
  %v43 = vunpack.c.l.b16 %v23
  %v44 = vpack.c.b16 %v37, %v36
  %v45 = vpack.c.b16 %v39, %v38
  %v46 = vpack.c.b16 %v41, %v40
  %v47 = vpack.c.b16 %v43, %v42
  %vm52 = vcmask 523264
  %v54 = vsel %vm52, %v15, 0
  %56 = vmatpush.bf16.msra.mxu0 0
  %57 = vmatpush.bf16.msra.mxu0 0
  %58 = vmatpush.bf16.msra.mxu0 0
  %59 = vmatpush.bf16.msra.mxu0 0
  %60 = vmatpush.bf16.msra.mxu0 %v47
  %61 = vmatpush.bf16.msra.mxu0 %v46
  %62 = vmatpush.bf16.msra.mxu0 %v45
  %63 = vmatpush.bf16.msra.mxu0 %v44
  %64 = vmatmul.bf16.gmra.mxu0 %v54
  %v65 = vpop.f32.mrf.mxu0
  %v66 = vadd.f32 %v26, %v65
  %v67 = vpop.f32.mrf.mxu0
  %68 = vdwg.mxu0
  %vm69 = vcmask 123904
  %70 = vst.msk [vmem:[%s3] sm:$0x3] %vm69, %v66
  // Predicated region
  $region14: #{_lambda_.27} parent=0 // pred_check
    _
  $region15: #{_lambda_.27} parent=0 // pred_check_branch
    %72 = sbr.rel (0) target = $region17
  $region16: #{_lambda_.27} parent=0 // pred_region
    _
  $region17: #{_lambda_.27} parent=0 // pred_fallthru
    _
  // Predicated region
  $region18: #{_lambda_.27} parent=0 // pred_check
    _
  $region19: #{_lambda_.27} parent=0 // pred_check_branch
    %74 = sbr.rel (0) target = $region21
  $region20: #{_lambda_.27} parent=0 // pred_region
    _
  $region21: #{_lambda_.27} parent=0 // pred_fallthru
    _

// kernel: _lambda_.32
$region0: #{_lambda_.32}
  #allocation0 [shape = 'u32[]', space=smem, size = 0x4, offset = 0x4, fixed_abs, tag = 'smem constant byte address 0x4 - core index']
  #allocation1 [shape = 'u32[72,128]{1,0:T(1,128)}', space=vmem, size = 0x9000, scoped, tag = 'internal scratch']
  %s0 = inlined_call_operand.vmem [shape: bf16[2,32], index: 0, kind: input, shape index: {}]
  %s1 = inlined_call_operand.vmem [shape: bf16[32,32], index: 1, kind: input, shape index: {}]
  %s2 = inlined_call_operand.vmem [shape: f32[1,32], index: 2, kind: input, shape index: {}]
  %s3 = inlined_call_operand.vmem [shape: bf16[32,64], index: 3, kind: input, shape index: {}]
  %s4 = inlined_call_operand.vmem [shape: f32[1,64], index: 4, kind: input, shape index: {}]
  %s5 = inlined_call_operand.hbm [shape: f32[2,64], index: 5, kind: output, shape index: {}]
  %s6 = sld [smem:[#allocation0]]
  $region30: #{_lambda_.32} parent=0
    _
  %s8 = ssub.s32 1, %s6
  %s9 = scalar_select 0, %s8, %s6
  $region1: #{_lambda_.32} parent=0
    #allocation2 [shape = 'u8[1024]{0}', space=vmem, size = 0x400, scoped, tag = 'output window, operand 0, single buffered']
    #allocation3 [shape = 's32[1]{0}', space=sflag, size = 0x4, scoped, tag = 'scoped memory for _lambda_.32']
    %10 = vsyncpa [#allocation3], 0
    // Predicated region
    $region2: #{_lambda_.32} parent=1 // pred_check
      _
    $region3: #{_lambda_.32} parent=1 // pred_check_branch
      %12 = sbr.rel (0) target = $region5
    $region4: #{_lambda_.32} parent=1 // pred_region
      _
    $region5: #{_lambda_.32} parent=1 // pred_fallthru
      _
    // Predicated region
    $region6: #{_lambda_.32} parent=1 // pred_check
      _
    $region7: #{_lambda_.32} parent=1 // pred_check_branch
      %14 = sbr.rel (0) target = $region9
    $region8: #{_lambda_.32} parent=1 // pred_region
      _
    $region9: #{_lambda_.32} parent=1 // pred_fallthru
      _
    // Predicated region
    $region10: #{_lambda_.32} parent=1 // pred_check
      _
    $region11: #{_lambda_.32} parent=1 // pred_check_branch
      %16 = sbr.rel (0) target = $region13
    $region12: #{_lambda_.32} parent=1 // pred_region
      _
    $region13: #{_lambda_.32} parent=1 // pred_fallthru
      _
    // Predicated region
    $region14: #{_lambda_.32} parent=1 // pred_check
      _
    $region15: #{_lambda_.32} parent=1 // pred_check_branch
      %18 = sbr.rel (0) target = $region17
    $region16: #{_lambda_.32} parent=1 // pred_region
      _
    $region17: #{_lambda_.32} parent=1 // pred_fallthru
      _
    // Predicated region
    $region18: #{_lambda_.32} parent=1 // pred_check
      _
    $region19: #{_lambda_.32} parent=1 // pred_check_branch
      %20 = sbr.rel (0) target = $region21
    $region20: #{_lambda_.32} parent=1 // pred_region
      _
    $region21: #{_lambda_.32} parent=1 // pred_fallthru
      _
    %v22 = vld [vmem:[%s0] sm:$0x1]
    %v23 = vld [vmem:[%s1] sm:$0xf]
    %v24 = vld [vmem:[%s1 + $0x4] sm:$0xf]
    %v25 = vld [vmem:[%s1 + $0x8] sm:$0xf]
    %v26 = vld [vmem:[%s1 + $0xc] sm:$0xf]
    %v27 = vld [vmem:[%s2] sm:$0x1]
    %v29 = vperm.slane %v27, 0
    %v35 = vunpack.c.l.b16 %v23
    %v36 = vunpack.c.l.b16 %v24
    %v37 = vunpack.c.l.b16 %v25
    %v38 = vunpack.c.l.b16 %v26
    %v39 = vpack.c.b16 %v36, %v35
    %v40 = vpack.c.b16 %v38, %v37
    %vm43 = vcmask 261120
    %v45 = vsel %vm43, %v22, 0
    %47 = vmatpush.bf16.msra.mxu0 0
    %48 = vmatpush.bf16.msra.mxu0 0
    %49 = vmatpush.bf16.msra.mxu0 0
    %50 = vmatpush.bf16.msra.mxu0 0
    %51 = vmatpush.bf16.msra.mxu0 0
    %52 = vmatpush.bf16.msra.mxu0 0
    %53 = vmatpush.bf16.msra.mxu0 %v40
    %54 = vmatpush.bf16.msra.mxu0 %v39
    %55 = vmatmul.bf16.gmra.mxu0 %v45
    %v56 = vpop.f32.mrf.mxu0
    %v57 = vadd.f32 %v29, %v56
    %v58 = vpop.f32.mrf.mxu0
    %59 = vdwg.mxu0
    %v60 = vtanh.pop %v57
    %v61 = vpack.c.bf16 %v60, %v60
    %v62 = vld [vmem:[%s3] sm:$0xf]
    %v63 = vld [vmem:[%s3 + $0x4] sm:$0xf]
    %v64 = vld [vmem:[%s3 + $0x8] sm:$0xf]
    %v65 = vld [vmem:[%s3 + $0xc] sm:$0xf]
    %v66 = vld [vmem:[%s4] sm:$0x1]
    %v68 = vperm.slane %v66, 0
    %v74 = vunpack.c.l.b16 %v62
    %v75 = vunpack.c.l.b16 %v63
    %v76 = vunpack.c.l.b16 %v64
    %v77 = vunpack.c.l.b16 %v65
    %v78 = vpack.c.b16 %v75, %v74
    %v79 = vpack.c.b16 %v77, %v76
    %v83 = vsel %vm43, %v61, 0
    %85 = vmatpush.bf16.msra.mxu0 0
    %86 = vmatpush.bf16.msra.mxu0 0
    %87 = vmatpush.bf16.msra.mxu0 0
    %88 = vmatpush.bf16.msra.mxu0 0
    %89 = vmatpush.bf16.msra.mxu0 0
    %90 = vmatpush.bf16.msra.mxu0 0
    %91 = vmatpush.bf16.msra.mxu0 %v79
    %92 = vmatpush.bf16.msra.mxu0 %v78
    %93 = vmatmul.bf16.gmra.mxu0 %v83
    %v94 = vpop.f32.mrf.mxu0
    %v95 = vadd.f32 %v68, %v94
    %v96 = vpop.f32.mrf.mxu0
    %97 = vdwg.mxu0
    %vm98 = vcmask 517120
    %v99 = vsel %vm98, %v95, -inf
    %100 = vmax.xlane.f32.xlu0 %v99
    %v101 = vpop.xlane.xlu0 %100
    %v102 = vsub.f32 %v95, %v101
    %v103 = vmul.f32 %v102, 1.442695
    %v104 = vpow.pop %v103
    %v105 = vsel %vm98, %v104, 0.0
    %106 = vadd.xlane.f32.xlu0 %v105
    %v107 = vpop.xlane.xlu0 %106
    %v108 = vrcp.pop %v107
    %v109 = vmul.f32 %v107, %v108
    %v110 = vsub.f32 1.0, %v109
    %v111 = vmul.f32 %v108, %v110
    %v112 = vadd.f32 %v108, %v111
    %vm113 = vweird.f32 %v107
    %vm114 = vweird.f32 %v108
    %vm115 = vmor %vm113, %vm114
    %v116 = vsel %vm115, %v108, %v112
    %v117 = vand.u32 2147483647, %v107
    %vm118 = vcmp.eq.f32.partialorder %v117, 8.507059e+37
    %v119 = vand.u32 %v107, 2147483648
    %v120 = vor.u32 1.1754944e-38, %v119
    %v121 = vsel %vm118, %v120, %v116
    %v122 = vmul.f32 %v104, %v121
    %123 = vst.msk [vmem:[#allocation2] sm:$0x3] %vm98, %v122
    // Predicated region
    $region22: #{_lambda_.32} parent=1 // pred_check
      _
    $region23: #{_lambda_.32} parent=1 // pred_check_branch
      %125 = sbr.rel (0) target = $region25
    $region24: #{_lambda_.32} parent=1 // pred_region
      %127 = vsyncadd [#allocation3], 0
      %s129 = sshll.u32 [#allocation2], 4
      %s130 = int_to_ptr.vmem [resolvable:$true] %s129
      %s131 = sshll.u32 %s5, 4
      %s132 = int_to_ptr.hbm [resolvable:$true] %s131
      %134 = dma.vmem_to_hbm [thread:$0]  %s130, 32, %s132, [#allocation3]
    $region25: #{_lambda_.32} parent=1 // pred_fallthru
      _
    // Predicated region
    $region26: #{_lambda_.32} parent=1 // pred_check
      _
    $region27: #{_lambda_.32} parent=1 // pred_check_branch
      %136 = sbr.rel (0) target = $region29
    $region28: #{_lambda_.32} parent=1 // pred_region
      %138 = dma.done [#allocation3], 32
    $region29: #{_lambda_.32} parent=1 // pred_fallthru
      _
    %139 = vsyncpa [#allocation3], 1

// kernel: _lambda_.28
$region0: #{_lambda_.28}
  #allocation0 [shape = 'u32[]', space=smem, size = 0x4, offset = 0x4, fixed_abs, tag = 'smem constant byte address 0x4 - core index']
  #allocation1 [shape = 'u32[72,128]{1,0:T(1,128)}', space=vmem, size = 0x9000, scoped, tag = 'internal scratch']
  %s0 = inlined_call_operand.vmem [shape: bf16[2,1,48], index: 0, kind: input, shape index: {}]
  %s1 = inlined_call_operand.vmem [shape: bf16[48,32], index: 1, kind: input, shape index: {}]
  %s2 = inlined_call_operand.vmem [shape: f32[1,32], index: 2, kind: input, shape index: {}]
  %s3 = inlined_call_operand.vmem [shape: bf16[2,3,32], index: 3, kind: input, shape index: {}, may-alias: {3,4}]
  %s4 = inlined_call_operand.vmem [shape: bf16[2,3,32], index: 4, kind: input, shape index: {}, may-alias: {3,4}]
  %s5 = inlined_call_operand.vmem [shape: f32[2,1,3], index: 5, kind: input, shape index: {}]
  %s6 = inlined_call_operand.hbm [shape: f32[2,1,32], index: 6, kind: output, shape index: {0}]
  %s7 = inlined_call_operand.hbm [shape: f32[2,1,3], index: 7, kind: output, shape index: {1}]
  %8 = xla_tuple %s6, %s7
  %s9 = sld [smem:[#allocation0]]
  $region65: #{_lambda_.28} parent=0
    _
  %s11 = ssub.s32 1, %s9
  %s12 = scalar_select 0, %s11, %s9
  $region1: #{_lambda_.28} parent=0
    #allocation2 [shape = 'u8[1024]{0}', space=vmem, size = 0x400, scoped, tag = 'output window, operand 0']
    #allocation3 [shape = 's32[2]{0}', space=sflag, size = 0x8, scoped, tag = 'scoped memory for _lambda_.28']
    #allocation4 [shape = 'u8[1024]{0}', space=vmem, size = 0x400, scoped, tag = 'output window, operand 1']
    #allocation5 [shape = 's32[2]{0}', space=sflag, size = 0x8, scoped, tag = 'scoped memory for _lambda_.28']
    %13 = vsyncpa [#allocation3], 0
    %s14 = scalar_lea.sflag [#allocation3], 1
    %15 = vsyncpa %s14, 0
    %16 = vsyncpa [#allocation5], 0
    %s17 = scalar_lea.sflag [#allocation5], 1
    %18 = vsyncpa %s17, 0
    loop: start=0, step=1, limit=4
    $region2: #{_lambda_.28} parent=1 // loop_pre_header
      _
    $region3: #{_lambda_.28} parent=1 // loop_header
      %s20 = sphi 0, %s24
      %p21 = scmp.ge.s32.totalorder %s20, 4
      %s30 = sphi 0, %s32
      %s33 = sphi 0, %s30
      %s34 = sphi 0, %s33
      %s50 = sphi 0, %s34
      %s54 = sphi 0, %s54
      %s56 = sphi 0, %s54
      %s57 = sphi 0, %s56
      %s71 = sphi 0, %s57
      %s75 = sphi 0, %s75
      %s77 = sphi 0, %s75
      %s78 = sphi 0, %s77
      %s92 = sphi 0, %s78
      %s98 = sphi 0, %s100
      %s101 = sphi 0, %s98
      %s102 = sphi 0, %s101
      %s118 = sphi 0, %s102
      %s124 = sphi 0, %s126
      %s127 = sphi 0, %s124
      %s128 = sphi 0, %s127
      %s144 = sphi 0, %s128
      %s150 = sphi 0, %s152
      %s153 = sphi 0, %s150
      %s154 = sphi 0, %s153
      %s170 = sphi 0, %s154
      %s176 = sphi 0, %s178
      %s179 = sphi 0, %s176
      %s180 = sphi 0, %s179
      %s196 = sphi 0, %s180
      %s202 = sphi 0, %s204
      %s205 = sphi 0, %s202
      %s206 = sphi 0, %s205
      %s222 = sphi 0, %s206
    $region4: #{_lambda_.28} parent=1 // loop_header_branch
      %23 = sbr.rel (%p21) target = $region8
    $region5: #{_lambda_.28} parent=1 // loop_body
      %s25 = ssub.s32 %s20, 1
      %s26 = ssub.s32 %s20, 2
      %s27 = sadd.s32 %s20, 1
      %s28 = ssub.s32 %s20, %s27
      %p29 = scmp.eq.s32.totalorder %s28, 0
      %s31 = sadd.s32 %s30, 1
      %s32 = scalar_select %p29, %s30, %s31
      %p35 = pneg %p29
      %p36 = scmp.eq.s32.totalorder %s20, 1
      %p37 = por %p35, %p36
      %p38 = scmp.ne.s32.totalorder %s30, %s33
      %p39 = scmp.eq.s32.totalorder %s20, 0
      %p40 = por %p38, %p39
      %p41 = scmp.ne.s32.totalorder %s30, %s33
      %p42 = scmp.eq.s32.totalorder %s25, 1
      %p43 = por %p41, %p42
      %p44 = scmp.ne.s32.totalorder %s33, %s34
      %p45 = scmp.eq.s32.totalorder %s25, 0
      %p46 = por %p44, %p45
      %p47 = scmp.ne.s32.totalorder %s33, %s34
      %p48 = scmp.eq.s32.totalorder %s26, 1
      %p49 = por %p47, %p48
      %p51 = scmp.ne.s32.totalorder %s34, %s50
      %p52 = scmp.eq.s32.totalorder %s26, 0
      %p53 = por %p51, %p52
      %s55 = sadd.s32 %s54, 1
      %p58 = scmp.eq.s32.totalorder %s20, 1
      %p59 = scmp.ne.s32.totalorder %s54, %s56
      %p60 = scmp.eq.s32.totalorder %s20, 0
      %p61 = por %p59, %p60
      %p62 = scmp.ne.s32.totalorder %s54, %s56
      %p63 = scmp.eq.s32.totalorder %s25, 1
      %p64 = por %p62, %p63
      %p65 = scmp.ne.s32.totalorder %s56, %s57
      %p66 = scmp.eq.s32.totalorder %s25, 0
      %p67 = por %p65, %p66
      %p68 = scmp.ne.s32.totalorder %s56, %s57
      %p69 = scmp.eq.s32.totalorder %s26, 1
      %p70 = por %p68, %p69
      %p72 = scmp.ne.s32.totalorder %s57, %s71
      %p73 = scmp.eq.s32.totalorder %s26, 0
      %p74 = por %p72, %p73
      %s76 = sadd.s32 %s75, 1
      %p79 = scmp.eq.s32.totalorder %s20, 1
      %p80 = scmp.ne.s32.totalorder %s75, %s77
      %p81 = scmp.eq.s32.totalorder %s20, 0
      %p82 = por %p80, %p81
      %p83 = scmp.ne.s32.totalorder %s75, %s77
      %p84 = scmp.eq.s32.totalorder %s25, 1
      %p85 = por %p83, %p84
      %p86 = scmp.ne.s32.totalorder %s77, %s78
      %p87 = scmp.eq.s32.totalorder %s25, 0
      %p88 = por %p86, %p87
      %p89 = scmp.ne.s32.totalorder %s77, %s78
      %p90 = scmp.eq.s32.totalorder %s26, 1
      %p91 = por %p89, %p90
      %p93 = scmp.ne.s32.totalorder %s78, %s92
      %p94 = scmp.eq.s32.totalorder %s26, 0
      %p95 = por %p93, %p94
      %s96 = ssub.s32 %s20, %s27
      %p97 = scmp.eq.s32.totalorder %s96, 0
      %s99 = sadd.s32 %s98, 1
      %s100 = scalar_select %p97, %s98, %s99
      %p103 = pneg %p97
      %p104 = scmp.eq.s32.totalorder %s20, 1
      %p105 = por %p103, %p104
      %p106 = scmp.ne.s32.totalorder %s98, %s101
      %p107 = scmp.eq.s32.totalorder %s20, 0
      %p108 = por %p106, %p107
      %p109 = scmp.ne.s32.totalorder %s98, %s101
      %p110 = scmp.eq.s32.totalorder %s25, 1
      %p111 = por %p109, %p110
      %p112 = scmp.ne.s32.totalorder %s101, %s102
      %p113 = scmp.eq.s32.totalorder %s25, 0
      %p114 = por %p112, %p113
      %p115 = scmp.ne.s32.totalorder %s101, %s102
      %p116 = scmp.eq.s32.totalorder %s26, 1
      %p117 = por %p115, %p116
      %p119 = scmp.ne.s32.totalorder %s102, %s118
      %p120 = scmp.eq.s32.totalorder %s26, 0
      %p121 = por %p119, %p120
      %s122 = ssub.s32 %s20, %s27
      %p123 = scmp.eq.s32.totalorder %s122, 0
      %s125 = sadd.s32 %s124, 1
      %s126 = scalar_select %p123, %s124, %s125
      %p129 = pneg %p123
      %p130 = scmp.eq.s32.totalorder %s20, 1
      %p131 = por %p129, %p130
      %p132 = scmp.ne.s32.totalorder %s124, %s127
      %p133 = scmp.eq.s32.totalorder %s20, 0
      %p134 = por %p132, %p133
      %p135 = scmp.ne.s32.totalorder %s124, %s127
      %p136 = scmp.eq.s32.totalorder %s25, 1
      %p137 = por %p135, %p136
      %p138 = scmp.ne.s32.totalorder %s127, %s128
      %p139 = scmp.eq.s32.totalorder %s25, 0
      %p140 = por %p138, %p139
      %p141 = scmp.ne.s32.totalorder %s127, %s128
      %p142 = scmp.eq.s32.totalorder %s26, 1
      %p143 = por %p141, %p142
      %p145 = scmp.ne.s32.totalorder %s128, %s144
      %p146 = scmp.eq.s32.totalorder %s26, 0
      %p147 = por %p145, %p146
      %s148 = ssub.s32 %s20, %s27
      %p149 = scmp.eq.s32.totalorder %s148, 0
      %s151 = sadd.s32 %s150, 1
      %s152 = scalar_select %p149, %s150, %s151
      %p155 = pneg %p149
      %p156 = scmp.eq.s32.totalorder %s20, 1
      %p157 = por %p155, %p156
      %p158 = scmp.ne.s32.totalorder %s150, %s153
      %p159 = scmp.eq.s32.totalorder %s20, 0
      %p160 = por %p158, %p159
      %p161 = scmp.ne.s32.totalorder %s150, %s153
      %p162 = scmp.eq.s32.totalorder %s25, 1
      %p163 = por %p161, %p162
      %p164 = scmp.ne.s32.totalorder %s153, %s154
      %p165 = scmp.eq.s32.totalorder %s25, 0
      %p166 = por %p164, %p165
      %p167 = scmp.ne.s32.totalorder %s153, %s154
      %p168 = scmp.eq.s32.totalorder %s26, 1
      %p169 = por %p167, %p168
      %p171 = scmp.ne.s32.totalorder %s154, %s170
      %p172 = scmp.eq.s32.totalorder %s26, 0
      %p173 = por %p171, %p172
      %s174 = ssub.s32 %s20, %s27
      %p175 = scmp.eq.s32.totalorder %s174, 0
      %s177 = sadd.s32 %s176, 1
      %s178 = scalar_select %p175, %s176, %s177
      %p181 = pneg %p175
      %p182 = scmp.eq.s32.totalorder %s20, 1
      %p183 = por %p181, %p182
      %p184 = scmp.ne.s32.totalorder %s176, %s179
      %p185 = scmp.eq.s32.totalorder %s20, 0
      %p186 = por %p184, %p185
      %p187 = scmp.ne.s32.totalorder %s176, %s179
      %p188 = scmp.eq.s32.totalorder %s25, 1
      %p189 = por %p187, %p188
      %p190 = scmp.ne.s32.totalorder %s179, %s180
      %p191 = scmp.eq.s32.totalorder %s25, 0
      %p192 = por %p190, %p191
      %p193 = scmp.ne.s32.totalorder %s179, %s180
      %p194 = scmp.eq.s32.totalorder %s26, 1
      %p195 = por %p193, %p194
      %p197 = scmp.ne.s32.totalorder %s180, %s196
      %p198 = scmp.eq.s32.totalorder %s26, 0
      %p199 = por %p197, %p198
      %s200 = ssub.s32 %s20, %s27
      %p201 = scmp.eq.s32.totalorder %s200, 0
      %s203 = sadd.s32 %s202, 1
      %s204 = scalar_select %p201, %s202, %s203
      %p207 = pneg %p201
      %p208 = scmp.eq.s32.totalorder %s20, 1
      %p209 = por %p207, %p208
      %p210 = scmp.ne.s32.totalorder %s202, %s205
      %p211 = scmp.eq.s32.totalorder %s20, 0
      %p212 = por %p210, %p211
      %p213 = scmp.ne.s32.totalorder %s202, %s205
      %p214 = scmp.eq.s32.totalorder %s25, 1
      %p215 = por %p213, %p214
      %p216 = scmp.ne.s32.totalorder %s205, %s206
      %p217 = scmp.eq.s32.totalorder %s25, 0
      %p218 = por %p216, %p217
      %p219 = scmp.ne.s32.totalorder %s205, %s206
      %p220 = scmp.eq.s32.totalorder %s26, 1
      %p221 = por %p219, %p220
      %p223 = scmp.ne.s32.totalorder %s206, %s222
      %p224 = scmp.eq.s32.totalorder %s26, 0
      %p225 = por %p223, %p224
      %p226 = scmp.le.s32.totalorder 1, %s20
      %p227 = scmp.lt.s32.totalorder %s20, 3
      %p228 = pnand %p226, %p227
      %p229 = pneg %p228
      // Predicated region
      $region9: #{_lambda_.28} parent=5 // pred_check
        _
      $region10: #{_lambda_.28} parent=5 // pred_check_branch
        %231 = sbr.rel (%p228) target = $region12
      $region11: #{_lambda_.28} parent=5 // pred_region
        %s232 = ssub.s32 %s20, 1
        // Predicated region
        $region13: #{_lambda_.28} parent=11 // pred_check
          %p233 = pneg %p67
        $region14: #{_lambda_.28} parent=11 // pred_check_branch
          %235 = sbr.rel (%p233) target = $region16
        $region15: #{_lambda_.28} parent=11 // pred_region
          _
        $region16: #{_lambda_.28} parent=11 // pred_fallthru
          _
        // Predicated region
        $region17: #{_lambda_.28} parent=11 // pred_check
          %p236 = pneg %p88
        $region18: #{_lambda_.28} parent=11 // pred_check_branch
          %238 = sbr.rel (%p236) target = $region20
        $region19: #{_lambda_.28} parent=11 // pred_region
          _
        $region20: #{_lambda_.28} parent=11 // pred_fallthru
          _
      $region12: #{_lambda_.28} parent=5 // pred_fallthru
        _
      %p239 = scmp.lt.s32.totalorder %s20, 2
      // Predicated region
      $region21: #{_lambda_.28} parent=5 // pred_check
        %p240 = pneg %p239
      $region22: #{_lambda_.28} parent=5 // pred_check_branch
        %242 = sbr.rel (%p240) target = $region24
      $region23: #{_lambda_.28} parent=5 // pred_region
        // Predicated region
        $region25: #{_lambda_.28} parent=23 // pred_check
          %p243 = pneg %p40
        $region26: #{_lambda_.28} parent=23 // pred_check_branch
          %245 = sbr.rel (%p243) target = $region28
        $region27: #{_lambda_.28} parent=23 // pred_region
          %p246 = scmp.lt.s32.totalorder %s20, 1
          %s247 = scalar_select %p246, %s20, 1
          %s248 = scalar_lea.vmem %s0, %s247
        $region28: #{_lambda_.28} parent=23 // pred_fallthru
          _
        // Predicated region
        $region29: #{_lambda_.28} parent=23 // pred_check
          %p249 = pneg %p108
        $region30: #{_lambda_.28} parent=23 // pred_check_branch
          %251 = sbr.rel (%p249) target = $region32
        $region31: #{_lambda_.28} parent=23 // pred_region
          %p252 = scmp.lt.s32.totalorder %s20, 1
          %s253 = scalar_select %p252, %s20, 1
          %s254 = smul.addr %s253, 2
          %s255 = scalar_lea.vmem %s3, %s254
        $region32: #{_lambda_.28} parent=23 // pred_fallthru
          _
        // Predicated region
        $region33: #{_lambda_.28} parent=23 // pred_check
          %p256 = pneg %p134
        $region34: #{_lambda_.28} parent=23 // pred_check_branch
          %258 = sbr.rel (%p256) target = $region36
        $region35: #{_lambda_.28} parent=23 // pred_region
          %p259 = scmp.lt.s32.totalorder %s20, 1
          %s260 = scalar_select %p259, %s20, 1
          %s261 = smul.addr %s260, 2
          %s262 = scalar_lea.vmem %s4, %s261
        $region36: #{_lambda_.28} parent=23 // pred_fallthru
          _
        // Predicated region
        $region37: #{_lambda_.28} parent=23 // pred_check
          %p263 = pneg %p160
        $region38: #{_lambda_.28} parent=23 // pred_check_branch
          %265 = sbr.rel (%p263) target = $region40
        $region39: #{_lambda_.28} parent=23 // pred_region
          %p266 = scmp.lt.s32.totalorder %s20, 1
          %s267 = scalar_select %p266, %s20, 1
          %s268 = scalar_lea.vmem %s5, %s267
        $region40: #{_lambda_.28} parent=23 // pred_fallthru
          _
      $region24: #{_lambda_.28} parent=5 // pred_fallthru
        _
      %p269 = scmp.le.s32.totalorder 1, %s20
      %p270 = scmp.lt.s32.totalorder %s20, 3
      %p271 = pnand %p269, %p270
      %p272 = pneg %p271
      // Predicated region
      $region41: #{_lambda_.28} parent=5 // pred_check
        _
      $region42: #{_lambda_.28} parent=5 // pred_check_branch
        %274 = sbr.rel (%p271) target = $region44
      $region43: #{_lambda_.28} parent=5 // pred_region
        %s275 = ssub.s32 %s20, 1
        %p276 = scmp.lt.s32.totalorder %s25, 1
        %s277 = scalar_select %p276, %s25, 1
        %s278 = scalar_lea.vmem %s0, %s277
        %p279 = pneg %p46
        %p280 = pneg %p43
        %p281 = pneg %p67
        %p282 = pneg %p64
        %p283 = pneg %p88
        %p284 = pneg %p85
        %p285 = scmp.lt.s32.totalorder %s25, 1
        %s286 = scalar_select %p285, %s25, 1
        %s287 = smul.addr %s286, 2
        %s288 = scalar_lea.vmem %s3, %s287
        %p289 = pneg %p114
        %p290 = pneg %p111
        %p291 = scmp.lt.s32.totalorder %s25, 1
        %s292 = scalar_select %p291, %s25, 1
        %s293 = smul.addr %s292, 2
        %s294 = scalar_lea.vmem %s4, %s293
        %p295 = pneg %p140
        %p296 = pneg %p137
        %p297 = scmp.lt.s32.totalorder %s25, 1
        %s298 = scalar_select %p297, %s25, 1
        %s299 = scalar_lea.vmem %s5, %s298
        %p300 = pneg %p166
        %p301 = pneg %p163
        %p302 = pneg %p192
        %p303 = pneg %p189
        %s304 = sand.u32 %s179, 1
        %s305 = scalar_lea.sflag [#allocation3], %s304
        %s306 = sand.u32 %s179, 1
        %s307 = scalar_lea.vmem [#allocation2], %s306
        %p308 = pneg %p218
        %p309 = pneg %p215
        %s310 = sand.u32 %s205, 1
        %s311 = scalar_lea.sflag [#allocation5], %s310
        %s312 = sand.u32 %s205, 1
        %s313 = scalar_lea.vmem [#allocation4], %s312
        %p314 = scmp.lt.s32.totalorder %s25, 1
        %s315 = scalar_select %p314, %s25, 1
        %s316 = scalar_lea.vmem %s0, %s315
        %p317 = scmp.lt.s32.totalorder %s25, 1
        %s318 = scalar_select %p317, %s25, 1
        %s319 = smul.addr %s318, 2
        %s320 = scalar_lea.vmem %s3, %s319
        %p321 = scmp.lt.s32.totalorder %s25, 1
        %s322 = scalar_select %p321, %s25, 1
        %s323 = smul.addr %s322, 2
        %s324 = scalar_lea.vmem %s4, %s323
        %p325 = scmp.lt.s32.totalorder %s25, 1
        %s326 = scalar_select %p325, %s25, 1
        %s327 = scalar_lea.vmem %s5, %s326
        %v329 = vld [vmem:[%s316] sm:$0x1]
        %v330 = vld [vmem:[%s1] sm:$0xf]
        %v331 = vld [vmem:[%s1 + $0x4] sm:$0xf]
        %v332 = vld [vmem:[%s1 + $0x8] sm:$0xf]
        %v333 = vld [vmem:[%s1 + $0xc] sm:$0xf]
        %v334 = vld [vmem:[%s1 + $0x10] sm:$0xf]
        %v335 = vld [vmem:[%s1 + $0x14] sm:$0xf]
        %v336 = vld [vmem:[%s2] sm:$0x1]
        %v343 = vunpack.c.l.b16 %v330
        %v344 = vunpack.c.l.b16 %v331
        %v345 = vunpack.c.l.b16 %v332
        %v346 = vunpack.c.l.b16 %v333
        %v347 = vunpack.c.l.b16 %v334
        %v348 = vunpack.c.l.b16 %v335
        %v349 = vpack.c.b16 %v344, %v343
        %v350 = vpack.c.b16 %v346, %v345
        %v351 = vpack.c.b16 %v348, %v347
        %vm355 = vcmask 392192
        %v357 = vsel %vm355, %v329, 0
        %359 = vmatpush.bf16.msra.mxu0 0
        %360 = vmatpush.bf16.msra.mxu0 0
        %361 = vmatpush.bf16.msra.mxu0 0
        %362 = vmatpush.bf16.msra.mxu0 0
        %363 = vmatpush.bf16.msra.mxu0 0
        %364 = vmatpush.bf16.msra.mxu0 %v351
        %365 = vmatpush.bf16.msra.mxu0 %v350
        %366 = vmatpush.bf16.msra.mxu0 %v349
        %367 = vmatmul.bf16.gmra.mxu0 %v357
        %v368 = vpop.f32.mrf.mxu0
        %v369 = vadd.f32 %v336, %v368
        %v370 = vpop.f32.mrf.mxu0
        %371 = vdwg.mxu0
        %v372 = vpack.c.bf16 %v369, %v369
        %v373 = vld [vmem:[%s320] sm:$0x3]
        %v374 = vld [vmem:[%s324] sm:$0x3]
        %v375 = vld [vmem:[%s327] sm:$0x1]
        %vm376 = vcmask 261120
        %v378 = vsel %vm376, %v372, 0
        %v381 = vsel %vm376, %v373, 0
        %383 = vmatpush.bf16.xpose.msra.mxu0 0
        %384 = vmatpush.bf16.xpose.msra.mxu0 0
        %385 = vmatpush.bf16.xpose.msra.mxu0 0
        %386 = vmatpush.bf16.xpose.msra.mxu0 0
        %387 = vmatpush.bf16.xpose.msra.mxu0 0
        %388 = vmatpush.bf16.xpose.msra.mxu0 0
        %389 = vmatpush.bf16.xpose.msra.mxu0 0
        %390 = vmatpush.bf16.xpose.msra.mxu0 %v381
        %391 = vmatmul.bf16.gmra.mxu0 %v378
        %v392 = vpop.f32.mrf.mxu0
        %v393 = vadd.f32 0.0, %v392
        %v394 = vpop.f32.mrf.mxu0
        %395 = vdwg.mxu0
        %vm396 = vcmp.gt.f32.partialorder %v375, 0.0
        %v397 = vsel %vm396, %v393, -1e+09
        %vm398 = vcmask 16384
        %v399 = vsel %vm398, %v397, -inf
        %400 = vmax.xlane.f32.xlu0 %v399
        %v401 = vpop.xlane.xlu0 %400
        %v402 = vsub.f32 %v397, %v401
        %v403 = vmul.f32 %v402, 1.442695
        %v404 = vpow.pop %v403
        %v405 = vsel %vm398, %v404, 0.0
        %406 = vadd.xlane.f32.xlu0 %v405
        %v407 = vpop.xlane.xlu0 %406
        %v408 = vrcp.pop %v407
        %v409 = vmul.f32 %v407, %v408
        %v410 = vsub.f32 1.0, %v409
        %v411 = vmul.f32 %v408, %v410
        %v412 = vadd.f32 %v408, %v411
        %vm413 = vweird.f32 %v407
        %vm414 = vweird.f32 %v408
        %vm415 = vmor %vm413, %vm414
        %v416 = vsel %vm415, %v408, %v412
        %v417 = vand.u32 2147483647, %v407
        %vm418 = vcmp.eq.f32.partialorder %v417, 8.507059e+37
        %v419 = vand.u32 %v407, 2147483648
        %v420 = vor.u32 1.1754944e-38, %v419
        %v421 = vsel %vm418, %v420, %v416
        %v422 = vmul.f32 %v404, %v421
        %v423 = vpack.c.bf16 %v422, %v422
        %vm424 = vcmask 23552
        %v426 = vsel %vm424, %v423, 0
        %vm428 = vcmask 1040384
        %vm429 = vcmask 1041408
        %v430 = vsel %vm428, 4294967295, 65535
        %v431 = vsel %vm429, %v430, 0
        %v433 = vand.u32 %v374, %v431
        %435 = vmatpush.bf16.msra.mxu0 0
        %436 = vmatpush.bf16.msra.mxu0 0
        %437 = vmatpush.bf16.msra.mxu0 0
        %438 = vmatpush.bf16.msra.mxu0 0
        %439 = vmatpush.bf16.msra.mxu0 0
        %440 = vmatpush.bf16.msra.mxu0 0
        %441 = vmatpush.bf16.msra.mxu0 0
        %442 = vmatpush.bf16.msra.mxu0 %v433
        %443 = vmatmul.bf16.gmra.mxu0 %v426
        %v444 = vpop.f32.mrf.mxu0
        %v445 = vadd.f32 0.0, %v444
        %v446 = vpop.f32.mrf.mxu0
        %447 = vdwg.mxu0
        %vm448 = vcmask 253952
        %449 = vst.msk [vmem:[%s307] sm:$0x1] %vm448, %v445
        %450 = vst.msk [vmem:[%s313] sm:$0x1] %vm398, %v422
        %s451 = sand.u32 %s179, 1
        %s452 = scalar_lea.sflag [#allocation3], %s451
        %s453 = sand.u32 %s179, 1
        %s454 = scalar_lea.vmem [#allocation2], %s453
        %s455 = sand.u32 %s205, 1
        %s456 = scalar_lea.sflag [#allocation5], %s455
        %s457 = sand.u32 %s205, 1
        %s458 = scalar_lea.vmem [#allocation4], %s457
        // Predicated region
        $region45: #{_lambda_.28} parent=43 // pred_check
          %p459 = pneg %p189
        $region46: #{_lambda_.28} parent=43 // pred_check_branch
          %461 = sbr.rel (%p459) target = $region48
        $region47: #{_lambda_.28} parent=43 // pred_region
          %463 = vsyncadd %s452, 0
          %s464 = scalar_lea.hbm %s6, %s25
          %s466 = sshll.u32 %s454, 4
          %s467 = int_to_ptr.vmem [resolvable:$true] %s466
          %s468 = sshll.u32 %s464, 4
          %s469 = int_to_ptr.hbm [resolvable:$true] %s468
          %471 = dma.vmem_to_hbm [thread:$0]  %s467, 16, %s469, %s452
        $region48: #{_lambda_.28} parent=43 // pred_fallthru
          _
        // Predicated region
        $region49: #{_lambda_.28} parent=43 // pred_check
          %p472 = pneg %p215
        $region50: #{_lambda_.28} parent=43 // pred_check_branch
          %474 = sbr.rel (%p472) target = $region52
        $region51: #{_lambda_.28} parent=43 // pred_region
          %476 = vsyncadd %s456, 0
          %s477 = scalar_lea.hbm %s7, %s25
          %s479 = sshll.u32 %s458, 4
          %s480 = int_to_ptr.vmem [resolvable:$true] %s479
          %s481 = sshll.u32 %s477, 4
          %s482 = int_to_ptr.hbm [resolvable:$true] %s481
          %484 = dma.vmem_to_hbm [thread:$0]  %s480, 16, %s482, %s456
        $region52: #{_lambda_.28} parent=43 // pred_fallthru
          _
      $region44: #{_lambda_.28} parent=5 // pred_fallthru
        _
      %p485 = scmp.le.s32.totalorder 2, %s20
      // Predicated region
      $region53: #{_lambda_.28} parent=5 // pred_check
        %p486 = pneg %p485
      $region54: #{_lambda_.28} parent=5 // pred_check_branch
        %488 = sbr.rel (%p486) target = $region56
      $region55: #{_lambda_.28} parent=5 // pred_region
        %s489 = ssub.s32 %s20, 2
        // Predicated region
        $region57: #{_lambda_.28} parent=55 // pred_check
          %p490 = pneg %p195
        $region58: #{_lambda_.28} parent=55 // pred_check_branch
          %492 = sbr.rel (%p490) target = $region60
        $region59: #{_lambda_.28} parent=55 // pred_region
          %s493 = sand.u32 %s180, 1
          %s494 = scalar_lea.sflag [#allocation3], %s493
          %s495 = sand.u32 %s180, 1
          %s496 = scalar_lea.vmem [#allocation2], %s495
          %498 = dma.done %s494, 16
        $region60: #{_lambda_.28} parent=55 // pred_fallthru
          _
        // Predicated region
        $region61: #{_lambda_.28} parent=55 // pred_check
          %p499 = pneg %p221
        $region62: #{_lambda_.28} parent=55 // pred_check_branch
          %501 = sbr.rel (%p499) target = $region64
        $region63: #{_lambda_.28} parent=55 // pred_region
          %s502 = sand.u32 %s206, 1
          %s503 = scalar_lea.sflag [#allocation5], %s502
          %s504 = sand.u32 %s206, 1
          %s505 = scalar_lea.vmem [#allocation4], %s504
          %507 = dma.done %s503, 16
        $region64: #{_lambda_.28} parent=55 // pred_fallthru
          _
      $region56: #{_lambda_.28} parent=5 // pred_fallthru
        _
    $region6: #{_lambda_.28} parent=1 // loop_footer
      %s24 = sadd.s32 1, %s20
    $region7: #{_lambda_.28} parent=1 // loop_footer_branch
      %19 = sbr.rel target = $region3
    $region8: #{_lambda_.28} parent=1 // loop_exit
      _
    %508 = vsyncpa [#allocation3], 1
    %s509 = scalar_lea.sflag [#allocation3], 1
    %510 = vsyncpa %s509, 1
    %511 = vsyncpa [#allocation5], 1
    %s512 = scalar_lea.sflag [#allocation5], 1
    %513 = vsyncpa %s512, 1

</llo_original>
